<compile_context>
chip_gen: v7x
topology: tpu7x:2x2x1
jax: 0.10.0
libtpu: 0.0.40
codegen_flags: <defaults>
</compile_context>

<pallas_src>
import functools

import jax
import jax.numpy as jnp
from jax import lax
from jax.experimental import pallas as pl
from jax.experimental.pallas import tpu as pltpu

EPS = 1e-5


# --------------------------------------------------------------------------- #
# Per-generation VMEM budget / compiler params
# --------------------------------------------------------------------------- #
def _vmem_limit_bytes():
    """Scoped-VMEM limit: ~75% of physical VMEM, capped (96 MiB on v5e/v6e, 48 MiB v7x)."""
    try:
        info = pltpu.get_tpu_info()
        phys = getattr(info, "vmem_capacity_bytes", None)
    except Exception:
        phys = None
    if not phys:
        phys = 64 * 1024 * 1024          # conservative default = v7x per-core VMEM
    return min(int(phys) * 3 // 4, 100 * 1024 * 1024)


def _compiler_params(vmem_limit):
    return pltpu.CompilerParams(dimension_semantics=("parallel",),
                                vmem_limit_bytes=vmem_limit)


# --------------------------------------------------------------------------- #
# In-kernel helpers
# --------------------------------------------------------------------------- #
def _zero_border(pad_ref, nt, h, w, c):
    """Zero only the 1-pixel border of the padded scratch (cheap; done every step so
    correctness does not depend on how a 'parallel' grid is split across cores)."""
    dt = pad_ref.dtype
    zrow = jnp.zeros((nt, 1, w + 2, c), dt)
    zcol = jnp.zeros((nt, h + 2, 1, c), dt)
    pad_ref[:, 0:1, :, :] = zrow
    pad_ref[:, h + 1:h + 2, :, :] = zrow
    pad_ref[:, :, 0:1, :] = zcol
    pad_ref[:, :, w + 1:w + 2, :] = zcol


def _conv3x3_taps(pad_ref, w_ref, nt, h, w, c, cout):
    """9-tap accumulated matmul: sum_t shifted(pad) @ W[t], f32 accumulation.

    Per-tap accumulation (instead of a (M, 9C) im2col patch + concat) keeps the VMEM
    footprint small and lands as accumulating MXU pushes (in-place in the MRB on v7x).
    """
    m = nt * h * w
    acc = None
    t = 0
    for ky in range(3):
        for kx in range(3):
            tap = pad_ref[:, ky:ky + h, kx:kx + w, :].reshape(m, c)
            part = jnp.dot(tap, w_ref[t * c:(t + 1) * c, :],
                           preferred_element_type=jnp.float32)
            acc = part if acc is None else acc + part
            t += 1
    return acc


def _write_out_and_stats(acc, y_ref, stats_ref, nt, h, w, cout):
    """Store conv output (possibly bf16) and one-pass BN partials from the f32 acc."""
    y_ref[...] = acc.reshape(nt, h, w, cout).astype(y_ref.dtype)
    s = jnp.sum(acc, axis=0, keepdims=True)                 # (1, cout)
    ss = jnp.sum(acc * acc, axis=0, keepdims=True)
    stats_ref[...] = jnp.concatenate([s, ss], axis=0)[None]  # (1, 2, cout)


# --------------------------------------------------------------------------- #
# Stage 1: conv1 (3x3, SAME, no bias) + partial BN1 stats
# --------------------------------------------------------------------------- #
def _conv1_kernel(x_ref, w_ref, y_ref, stats_ref, pad_ref):
    nt, h, w, c = x_ref.shape
    cout = w_ref.shape[1]
    _zero_border(pad_ref, nt, h, w, c)
    pad_ref[:, 1:h + 1, 1:w + 1, :] = x_ref[...].astype(pad_ref.dtype)
    acc = _conv3x3_taps(pad_ref, w_ref, nt, h, w, c, cout)
    _write_out_and_stats(acc, y_ref, stats_ref, nt, h, w, cout)


# --------------------------------------------------------------------------- #
# Stage 2: BN1 (precomputed scale/shift) + ReLU + conv2 + partial BN2 stats
# --------------------------------------------------------------------------- #
def _bn_relu_conv2_kernel(y1_ref, scale_ref, shift_ref, w_ref,
                          y2_ref, stats_ref, pad_ref):
    nt, h, w, c = y1_ref.shape
    cout = w_ref.shape[1]
    hact = jnp.maximum(
        y1_ref[...].astype(jnp.float32) * scale_ref[...] + shift_ref[...], 0.0)
    _zero_border(pad_ref, nt, h, w, c)
    pad_ref[:, 1:h + 1, 1:w + 1, :] = hact.astype(pad_ref.dtype)
    acc = _conv3x3_taps(pad_ref, w_ref, nt, h, w, c, cout)
    _write_out_and_stats(acc, y2_ref, stats_ref, nt, h, w, cout)


# --------------------------------------------------------------------------- #
# Stage 3: BN2 + identity residual + ReLU, lane-dense layout
# --------------------------------------------------------------------------- #
def _bn_add_relu_kernel(y2_ref, x_ref, scale_ref, shift_ref, o_ref):
    y2 = y2_ref[...].astype(jnp.float32)
    o_ref[...] = jnp.maximum(y2 * scale_ref[...] + shift_ref[...] + x_ref[...], 0.0)


# --------------------------------------------------------------------------- #
# Host-side helpers
# --------------------------------------------------------------------------- #
def _finalize_bn(stats, gamma, beta, count):
    """Reduce per-tile (sum, sumsq) partials -> per-channel (scale, shift)."""
    s = jnp.sum(stats, axis=0)                 # (2, C)
    mu = s[0] / count
    var = s[1] / count - mu * mu               # biased variance (training-mode BN)
    scale = gamma * lax.rsqrt(var + EPS)
    shift = beta - mu * scale
    return scale.reshape(1, -1), shift.reshape(1, -1)


def prepare_conv_weight(w_oihw):
    """OIHW -> HWIO -> (9*Cin, Cout) tap-major matrix. Done once per model."""
    cout, cin, kh, kw = w_oihw.shape
    return jnp.transpose(w_oihw, (2, 3, 1, 0)).reshape(kh * kw * cin, cout).astype(jnp.float32)


def _choose_n_tile(n, h, w, c, act_bytes, mxu_bytes, budget):
    """Largest batch tile (divisor of n) whose double-buffered working set fits the
    budget, targeting >= ~1024 matmul rows per step, while preferring >= 2 grid steps
    so the 'parallel' grid axis can use both TensorCores on multi-core chips."""
    hw = h * w
    per_row = hw * c * (2 * act_bytes + 2 * act_bytes + 8)       # dbl-buffered I/O + f32 temps
    per_row += (h + 2) * (w + 2) * c * mxu_bytes                  # padded VMEM scratch
    per_row += 2 * hw * c * mxu_bytes                             # tap materializations
    n_vmem = max(1, budget // per_row)
    n_target = max(1, -(-1024 // hw))                             # ceil(1024 / (h*w))
    n_tile = max(1, min(n, n_vmem, n_target))
    while n % n_tile:
        n_tile -= 1
    if n // n_tile < 2:
        for d in range(n_tile - 1, 0, -1):
            if n % d == 0 and n // d >= 2:
                n_tile = d
                break
    return n_tile


def _choose_row_tile(rows, lane):
    """Large lane-dense blocks for the mem-bound stage 3 (~1 MiB f32 per block)."""
    max_tile = max(8, (2048 * 128 // lane) // 8 * 8)
    if rows <= max_tile:
        return rows
    if rows % 8:
        # TODO(synk): ragged row counts fall back to a single (large) block.
        return rows
    t = min(max_tile, rows)
    t -= t % 8
    while rows % t:
        t -= 8
    return t


# --------------------------------------------------------------------------- #
# Full residual block (NHWC)
# --------------------------------------------------------------------------- #
@functools.partial(jax.jit, static_argnames=("n_tile", "mxu_dtype"))
def residual_block_nhwc(x, w1_mat, g1, b1, w2_mat, g2, b2,
                        n_tile=None, mxu_dtype=jnp.float32):
    """x: (N,H,W,C) f32 NHWC. w*_mat: (9*C, C) tap-major weights. Returns (N,H,W,C) f32."""
    n, h, w, c = x.shape
    cout = w1_mat.shape[1]
    assert c == cout, "identity shortcut requires in_channel == outchannel"
    count = n * h * w

    act_dtype = jnp.bfloat16 if jnp.dtype(mxu_dtype) == jnp.bfloat16 else jnp.float32
    act_bytes = jnp.dtype(act_dtype).itemsize
    mxu_bytes = jnp.dtype(mxu_dtype).itemsize

    vmem_limit = _vmem_limit_bytes()
    if n_tile is None:
        n_tile = _choose_n_tile(n, h, w, c, act_bytes, mxu_bytes, vmem_limit * 3 // 5)
    assert n % n_tile == 0
    nt_grid = n // n_tile
    cparams = _compiler_params(vmem_limit)

    w1m = w1_mat.astype(mxu_dtype)
    w2m = w2_mat.astype(mxu_dtype)

    # ---- stage 1: conv1 + partial BN1 stats, batch-tiled ("parallel") ----
    y1, stats1 = pl.pallas_call(
        _conv1_kernel,
        out_shape=(jax.ShapeDtypeStruct((n, h, w, cout), act_dtype),
                   jax.ShapeDtypeStruct((nt_grid, 2, cout), jnp.float32)),
        grid_spec=pltpu.PrefetchScalarGridSpec(
            num_scalar_prefetch=0,
            grid=(nt_grid,),
            in_specs=[
                pl.BlockSpec((n_tile, h, w, c), lambda i: (i, 0, 0, 0)),
                pl.BlockSpec((9 * c, cout), lambda i: (0, 0)),
            ],
            out_specs=[
                pl.BlockSpec((n_tile, h, w, cout), lambda i: (i, 0, 0, 0)),
                pl.BlockSpec((1, 2, cout), lambda i: (i, 0, 0)),
            ],
            scratch_shapes=[pltpu.VMEM((n_tile, h + 2, w + 2, c), mxu_dtype)],
        ),
        compiler_params=cparams,
    )(x, w1m)

    scale1, shift1 = _finalize_bn(stats1, g1, b1, count)

    # ---- stage 2: BN1 + ReLU + conv2 + partial BN2 stats ----
    y2, stats2 = pl.pallas_call(
        _bn_relu_conv2_kernel,
        out_shape=(jax.ShapeDtypeStruct((n, h, w, cout), act_dtype),
                   jax.ShapeDtypeStruct((nt_grid, 2, cout), jnp.float32)),
        grid_spec=pltpu.PrefetchScalarGridSpec(
            num_scalar_prefetch=0,
            grid=(nt_grid,),
            in_specs=[
                pl.BlockSpec((n_tile, h, w, cout), lambda i: (i, 0, 0, 0)),
                pl.BlockSpec((1, cout), lambda i: (0, 0)),
                pl.BlockSpec((1, cout), lambda i: (0, 0)),
                pl.BlockSpec((9 * cout, cout), lambda i: (0, 0)),
            ],
            out_specs=[
                pl.BlockSpec((n_tile, h, w, cout), lambda i: (i, 0, 0, 0)),
                pl.BlockSpec((1, 2, cout), lambda i: (i, 0, 0)),
            ],
            scratch_shapes=[pltpu.VMEM((n_tile, h + 2, w + 2, cout), mxu_dtype)],
        ),
        compiler_params=cparams,
    )(y1, scale1, shift1, w2m)

    scale2, shift2 = _finalize_bn(stats2, g2, b2, count)

    # ---- stage 3: BN2 + identity residual + ReLU on a lane-dense flat layout ----
    total = n * h * w * c
    if c % 128 == 0:
        lane = c                      # channels are already lane-dense
    elif 128 % c == 0:
        lane = 128                    # pack 128//c channel groups per lane row
    else:
        lane = c                      # TODO(synk): ragged C keeps a masked lane layout
    rows = total // lane
    row_tile = _choose_row_tile(rows, lane)

    y2_flat = y2.reshape(rows, lane)              # contiguous NHWC flatten
    x_flat = x.reshape(rows, lane)
    rep = lane // c
    scale2_row = jnp.tile(scale2.reshape(-1), rep).reshape(1, lane)
    shift2_row = jnp.tile(shift2.reshape(-1), rep).reshape(1, lane)

    alias = {0: 0} if act_dtype == jnp.float32 else {}   # reuse y2's HBM buffer
    out_flat = pl.pallas_call(
        _bn_add_relu_kernel,
        out_shape=jax.ShapeDtypeStruct((rows, lane), jnp.float32),
        grid_spec=pltpu.PrefetchScalarGridSpec(
            num_scalar_prefetch=0,
            grid=(rows // row_tile,),
            in_specs=[
                pl.BlockSpec((row_tile, lane), lambda i: (i, 0)),
                pl.BlockSpec((row_tile, lane), lambda i: (i, 0)),
                pl.BlockSpec((1, lane), lambda i: (0, 0)),
                pl.BlockSpec((1, lane), lambda i: (0, 0)),
            ],
            out_specs=pl.BlockSpec((row_tile, lane), lambda i: (i, 0)),
        ),
        compiler_params=cparams,
        input_output_aliases=alias,
    )(y2_flat, x_flat, scale2_row, shift2_row)

    return out_flat.reshape(n, h, w, c)


def residual_block_forward(x_nchw, w1_oihw, g1, b1, w2_oihw, g2, b2,
                           mxu_dtype=jnp.float32):
    """NCHW adapter. A real model would keep NHWC end-to-end and call
    prepare_conv_weight() once at init instead of per forward."""
    w1_mat = prepare_conv_weight(w1_oihw)
    w2_mat = prepare_conv_weight(w2_oihw)
    x = jnp.transpose(x_nchw, (0, 2, 3, 1)).astype(jnp.float32)
    out = residual_block_nhwc(
        x, w1_mat, g1.astype(jnp.float32), b1.astype(jnp.float32),
        w2_mat, g2.astype(jnp.float32), b2.astype(jnp.float32),
        n_tile=None, mxu_dtype=mxu_dtype)
    return jnp.transpose(out, (0, 3, 1, 2))


def reference_forward(x_nchw, w1_oihw, g1, b1, w2_oihw, g2, b2):
    """Pure-JAX reference (same training-mode BN semantics as the PyTorch module)."""
    dn = ('NHWC', 'HWIO', 'NHWC')
    x = jnp.transpose(x_nchw, (0, 2, 3, 1)).astype(jnp.float32)
    w1 = jnp.transpose(w1_oihw, (2, 3, 1, 0)).astype(jnp.float32)
    w2 = jnp.transpose(w2_oihw, (2, 3, 1, 0)).astype(jnp.float32)

    y = lax.conv_general_dilated(x, w1, (1, 1), 'SAME', dimension_numbers=dn)
    mu, var = y.mean(axis=(0, 1, 2)), y.var(axis=(0, 1, 2))
    y = (y - mu) * (g1 / jnp.sqrt(var + EPS)) + b1
    y = jnp.maximum(y, 0.0)

    z = lax.conv_general_dilated(y, w2, (1, 1), 'SAME', dimension_numbers=dn)
    mu2, var2 = z.mean(axis=(0, 1, 2)), z.var(axis=(0, 1, 2))
    z = (z - mu2) * (g2 / jnp.sqrt(var2 + EPS)) + b2

    out = jnp.maximum(z + x, 0.0)
    return jnp.transpose(out, (0, 3, 1, 2))


if __name__ == "__main__":
    N, C, H, W = 2, 4, 16, 16          # in_channel == outchannel == 4, stride=1
    key = jax.random.PRNGKey(0)
    kx, kw1, kw2 = jax.random.split(key, 3)

    x = jax.random.normal(kx, (N, C, H, W), dtype=jnp.float32)
    w1 = 0.1 * jax.random.normal(kw1, (C, C, 3, 3), dtype=jnp.float32)   # OIHW
    w2 = 0.1 * jax.random.normal(kw2, (C, C, 3, 3), dtype=jnp.float32)
    g1 = 1.0 + 0.1 * jnp.arange(C, dtype=jnp.float32)
    b1 = 0.05 * jnp.arange(C, dtype=jnp.float32)
    g2 = 1.0 - 0.05 * jnp.arange(C, dtype=jnp.float32)
    b2 = -0.02 * jnp.arange(C, dtype=jnp.float32)

    ref = reference_forward(x, w1, g1, b1, w2, g2, b2)

    # exact-semantics path (f32 MXU operands, f32 inter-stage activations)
    out = jax.block_until_ready(
        residual_block_forward(x, w1, g1, b1, w2, g2, b2, mxu_dtype=jnp.float32))
    assert out.shape == (N, C, H, W)
    assert jnp.allclose(out, ref, rtol=5e-4, atol=5e-4), "f32 kernel mismatch vs reference"

    # fast path (bf16 MXU operands + bf16 inter-stage activations, f32 BN math/stats)
    out_bf16 = jax.block_until_ready(
        residual_block_forward(x, w1, g1, b1, w2, g2, b2, mxu_dtype=jnp.bfloat16))
    assert jnp.allclose(out_bf16, ref, rtol=1e-1, atol=1e-1), "bf16 kernel mismatch vs reference"

    print("KERNEL_OK")
</pallas_src>

<mosaic_0001>
module attributes {stable_mosaic.version = 11 : i64} {
  func.func @_conv1_kernel(%arg0: i32, %arg1: memref<1x16x16x4xf32, #tpu.memory_space<vmem>>, %arg2: memref<36x4xf32, #tpu.memory_space<vmem>>, %arg3: memref<1x16x16x4xf32, #tpu.memory_space<vmem>>, %arg4: memref<1x2x4xf32, #tpu.memory_space<vmem>>, %arg5: memref<1x18x18x4xf32, #tpu.memory_space<vmem>>) attributes {dimension_semantics = [#tpu.dimension_semantics<parallel>], iteration_bounds = array<i64: 2>, scalar_prefetch = 0 : i64, scratch_operands = 1 : i64, tpu.core_type = #tpu.core_type<tc>, window_params = [{transform_indices = @transform_0, window_bounds = array<i64: 1, 16, 16, 4>}, {pipeline_mode = #tpu.pipeline_mode<synchronous>, transform_indices = @transform_1, window_bounds = array<i64: 36, 4>}, {transform_indices = @transform_2, window_bounds = array<i64: 1, 16, 16, 4>}, {transform_indices = @transform_3, window_bounds = array<i64: 1, 2, 4>}]} {
    %cst = arith.constant 0.000000e+00 : f32
    %0 = vector.broadcast %cst : f32 to vector<1x1x18x4xf32>
    %cst_0 = arith.constant 0.000000e+00 : f32
    %1 = vector.broadcast %cst_0 : f32 to vector<1x18x1x4xf32>
    %c0 = arith.constant 0 : index
    %c0_1 = arith.constant 0 : index
    %c0_2 = arith.constant 0 : index
    %c0_3 = arith.constant 0 : index
    %2 = vector.load %arg5[%c0, %c0_1, %c0_2, %c0_3] : memref<1x18x18x4xf32, #tpu.memory_space<vmem>>, vector<1x1x18x4xf32>
    tpu.vector_store %arg5[%c0, %c0_1, %c0_2, %c0_3], %0 {strides = array<i32>} : memref<1x18x18x4xf32, #tpu.memory_space<vmem>>, vector<1x1x18x4xf32>,
    %c0_4 = arith.constant 0 : index
    %c17 = arith.constant 17 : index
    %c0_5 = arith.constant 0 : index
    %c0_6 = arith.constant 0 : index
    %3 = vector.load %arg5[%c0_4, %c17, %c0_5, %c0_6] : memref<1x18x18x4xf32, #tpu.memory_space<vmem>>, vector<1x1x18x4xf32>
    tpu.vector_store %arg5[%c0_4, %c17, %c0_5, %c0_6], %0 {strides = array<i32>} : memref<1x18x18x4xf32, #tpu.memory_space<vmem>>, vector<1x1x18x4xf32>,
    %c0_7 = arith.constant 0 : index
    %c0_8 = arith.constant 0 : index
    %c0_9 = arith.constant 0 : index
    %c0_10 = arith.constant 0 : index
    %4 = vector.load %arg5[%c0_7, %c0_8, %c0_9, %c0_10] : memref<1x18x18x4xf32, #tpu.memory_space<vmem>>, vector<1x18x1x4xf32>
    tpu.vector_store %arg5[%c0_7, %c0_8, %c0_9, %c0_10], %1 {strides = array<i32>} : memref<1x18x18x4xf32, #tpu.memory_space<vmem>>, vector<1x18x1x4xf32>,
    %c0_11 = arith.constant 0 : index
    %c0_12 = arith.constant 0 : index
    %c17_13 = arith.constant 17 : index
    %c0_14 = arith.constant 0 : index
    %5 = vector.load %arg5[%c0_11, %c0_12, %c17_13, %c0_14] : memref<1x18x18x4xf32, #tpu.memory_space<vmem>>, vector<1x18x1x4xf32>
    tpu.vector_store %arg5[%c0_11, %c0_12, %c17_13, %c0_14], %1 {strides = array<i32>} : memref<1x18x18x4xf32, #tpu.memory_space<vmem>>, vector<1x18x1x4xf32>,
    %c0_15 = arith.constant 0 : index
    %c0_16 = arith.constant 0 : index
    %c0_17 = arith.constant 0 : index
    %c0_18 = arith.constant 0 : index
    %6 = vector.load %arg1[%c0_15, %c0_16, %c0_17, %c0_18] : memref<1x16x16x4xf32, #tpu.memory_space<vmem>>, vector<1x16x16x4xf32>
    %c0_19 = arith.constant 0 : index
    %c1 = arith.constant 1 : index
    %c1_20 = arith.constant 1 : index
    %c0_21 = arith.constant 0 : index
    %7 = vector.load %arg5[%c0_19, %c1, %c1_20, %c0_21] : memref<1x18x18x4xf32, #tpu.memory_space<vmem>>, vector<1x16x16x4xf32>
    tpu.vector_store %arg5[%c0_19, %c1, %c1_20, %c0_21], %6 {strides = array<i32>} : memref<1x18x18x4xf32, #tpu.memory_space<vmem>>, vector<1x16x16x4xf32>,
    %c0_22 = arith.constant 0 : index
    %c0_23 = arith.constant 0 : index
    %c0_24 = arith.constant 0 : index
    %c0_25 = arith.constant 0 : index
    %8 = vector.load %arg5[%c0_22, %c0_23, %c0_24, %c0_25] : memref<1x18x18x4xf32, #tpu.memory_space<vmem>>, vector<1x16x16x4xf32>
    %9 = vector.shape_cast %8 : vector<1x16x16x4xf32> to vector<256x4xf32>
    %c0_26 = arith.constant 0 : index
    %c0_27 = arith.constant 0 : index
    %10 = vector.load %arg2[%c0_26, %c0_27] : memref<36x4xf32, #tpu.memory_space<vmem>>, vector<4x4xf32>
    %cst_28 = arith.constant dense<0.000000e+00> : vector<256x4xf32>
    %11 = tpu.matmul %9, %10, %cst_28 {dimension_numbers = #tpu.dot_dimension_numbers<[1], [0], [0], [1], [0, 0, 1, 1], [], []>} : vector<256x4xf32>, vector<4x4xf32>, vector<256x4xf32> -> vector<256x4xf32>
    %c0_29 = arith.constant 0 : index
    %c0_30 = arith.constant 0 : index
    %c1_31 = arith.constant 1 : index
    %c0_32 = arith.constant 0 : index
    %12 = vector.load %arg5[%c0_29, %c0_30, %c1_31, %c0_32] : memref<1x18x18x4xf32, #tpu.memory_space<vmem>>, vector<1x16x16x4xf32>
    %13 = vector.shape_cast %12 : vector<1x16x16x4xf32> to vector<256x4xf32>
    %c4 = arith.constant 4 : index
    %c0_33 = arith.constant 0 : index
    %14 = vector.load %arg2[%c4, %c0_33] : memref<36x4xf32, #tpu.memory_space<vmem>>, vector<4x4xf32>
    %cst_34 = arith.constant dense<0.000000e+00> : vector<256x4xf32>
    %15 = tpu.matmul %13, %14, %cst_34 {dimension_numbers = #tpu.dot_dimension_numbers<[1], [0], [0], [1], [0, 0, 1, 1], [], []>} : vector<256x4xf32>, vector<4x4xf32>, vector<256x4xf32> -> vector<256x4xf32>
    %16 = arith.addf %11, %15 : vector<256x4xf32>
    %c0_35 = arith.constant 0 : index
    %c0_36 = arith.constant 0 : index
    %c2 = arith.constant 2 : index
    %c0_37 = arith.constant 0 : index
    %17 = vector.load %arg5[%c0_35, %c0_36, %c2, %c0_37] : memref<1x18x18x4xf32, #tpu.memory_space<vmem>>, vector<1x16x16x4xf32>
    %18 = vector.shape_cast %17 : vector<1x16x16x4xf32> to vector<256x4xf32>
    %c8 = arith.constant 8 : index
    %c0_38 = arith.constant 0 : index
    %19 = vector.load %arg2[%c8, %c0_38] : memref<36x4xf32, #tpu.memory_space<vmem>>, vector<4x4xf32>
    %cst_39 = arith.constant dense<0.000000e+00> : vector<256x4xf32>
    %20 = tpu.matmul %18, %19, %cst_39 {dimension_numbers = #tpu.dot_dimension_numbers<[1], [0], [0], [1], [0, 0, 1, 1], [], []>} : vector<256x4xf32>, vector<4x4xf32>, vector<256x4xf32> -> vector<256x4xf32>
    %21 = arith.addf %16, %20 : vector<256x4xf32>
    %c0_40 = arith.constant 0 : index
    %c1_41 = arith.constant 1 : index
    %c0_42 = arith.constant 0 : index
    %c0_43 = arith.constant 0 : index
    %22 = vector.load %arg5[%c0_40, %c1_41, %c0_42, %c0_43] : memref<1x18x18x4xf32, #tpu.memory_space<vmem>>, vector<1x16x16x4xf32>
    %23 = vector.shape_cast %22 : vector<1x16x16x4xf32> to vector<256x4xf32>
    %c12 = arith.constant 12 : index
    %c0_44 = arith.constant 0 : index
    %24 = vector.load %arg2[%c12, %c0_44] : memref<36x4xf32, #tpu.memory_space<vmem>>, vector<4x4xf32>
    %cst_45 = arith.constant dense<0.000000e+00> : vector<256x4xf32>
    %25 = tpu.matmul %23, %24, %cst_45 {dimension_numbers = #tpu.dot_dimension_numbers<[1], [0], [0], [1], [0, 0, 1, 1], [], []>} : vector<256x4xf32>, vector<4x4xf32>, vector<256x4xf32> -> vector<256x4xf32>
    %26 = arith.addf %21, %25 : vector<256x4xf32>
    %c0_46 = arith.constant 0 : index
    %c1_47 = arith.constant 1 : index
    %c1_48 = arith.constant 1 : index
    %c0_49 = arith.constant 0 : index
    %27 = vector.load %arg5[%c0_46, %c1_47, %c1_48, %c0_49] : memref<1x18x18x4xf32, #tpu.memory_space<vmem>>, vector<1x16x16x4xf32>
    %28 = vector.shape_cast %27 : vector<1x16x16x4xf32> to vector<256x4xf32>
    %c16 = arith.constant 16 : index
    %c0_50 = arith.constant 0 : index
    %29 = vector.load %arg2[%c16, %c0_50] : memref<36x4xf32, #tpu.memory_space<vmem>>, vector<4x4xf32>
    %cst_51 = arith.constant dense<0.000000e+00> : vector<256x4xf32>
    %30 = tpu.matmul %28, %29, %cst_51 {dimension_numbers = #tpu.dot_dimension_numbers<[1], [0], [0], [1], [0, 0, 1, 1], [], []>} : vector<256x4xf32>, vector<4x4xf32>, vector<256x4xf32> -> vector<256x4xf32>
    %31 = arith.addf %26, %30 : vector<256x4xf32>
    %c0_52 = arith.constant 0 : index
    %c1_53 = arith.constant 1 : index
    %c2_54 = arith.constant 2 : index
    %c0_55 = arith.constant 0 : index
    %32 = vector.load %arg5[%c0_52, %c1_53, %c2_54, %c0_55] : memref<1x18x18x4xf32, #tpu.memory_space<vmem>>, vector<1x16x16x4xf32>
    %33 = vector.shape_cast %32 : vector<1x16x16x4xf32> to vector<256x4xf32>
    %c20 = arith.constant 20 : index
    %c0_56 = arith.constant 0 : index
    %34 = vector.load %arg2[%c20, %c0_56] : memref<36x4xf32, #tpu.memory_space<vmem>>, vector<4x4xf32>
    %cst_57 = arith.constant dense<0.000000e+00> : vector<256x4xf32>
    %35 = tpu.matmul %33, %34, %cst_57 {dimension_numbers = #tpu.dot_dimension_numbers<[1], [0], [0], [1], [0, 0, 1, 1], [], []>} : vector<256x4xf32>, vector<4x4xf32>, vector<256x4xf32> -> vector<256x4xf32>
    %36 = arith.addf %31, %35 : vector<256x4xf32>
    %c0_58 = arith.constant 0 : index
    %c2_59 = arith.constant 2 : index
    %c0_60 = arith.constant 0 : index
    %c0_61 = arith.constant 0 : index
    %37 = vector.load %arg5[%c0_58, %c2_59, %c0_60, %c0_61] : memref<1x18x18x4xf32, #tpu.memory_space<vmem>>, vector<1x16x16x4xf32>
    %38 = vector.shape_cast %37 : vector<1x16x16x4xf32> to vector<256x4xf32>
    %c24 = arith.constant 24 : index
    %c0_62 = arith.constant 0 : index
    %39 = vector.load %arg2[%c24, %c0_62] : memref<36x4xf32, #tpu.memory_space<vmem>>, vector<4x4xf32>
    %cst_63 = arith.constant dense<0.000000e+00> : vector<256x4xf32>
    %40 = tpu.matmul %38, %39, %cst_63 {dimension_numbers = #tpu.dot_dimension_numbers<[1], [0], [0], [1], [0, 0, 1, 1], [], []>} : vector<256x4xf32>, vector<4x4xf32>, vector<256x4xf32> -> vector<256x4xf32>
    %41 = arith.addf %36, %40 : vector<256x4xf32>
    %c0_64 = arith.constant 0 : index
    %c2_65 = arith.constant 2 : index
    %c1_66 = arith.constant 1 : index
    %c0_67 = arith.constant 0 : index
    %42 = vector.load %arg5[%c0_64, %c2_65, %c1_66, %c0_67] : memref<1x18x18x4xf32, #tpu.memory_space<vmem>>, vector<1x16x16x4xf32>
    %43 = vector.shape_cast %42 : vector<1x16x16x4xf32> to vector<256x4xf32>
    %c28 = arith.constant 28 : index
    %c0_68 = arith.constant 0 : index
    %44 = vector.load %arg2[%c28, %c0_68] : memref<36x4xf32, #tpu.memory_space<vmem>>, vector<4x4xf32>
    %cst_69 = arith.constant dense<0.000000e+00> : vector<256x4xf32>
    %45 = tpu.matmul %43, %44, %cst_69 {dimension_numbers = #tpu.dot_dimension_numbers<[1], [0], [0], [1], [0, 0, 1, 1], [], []>} : vector<256x4xf32>, vector<4x4xf32>, vector<256x4xf32> -> vector<256x4xf32>
    %46 = arith.addf %41, %45 : vector<256x4xf32>
    %c0_70 = arith.constant 0 : index
    %c2_71 = arith.constant 2 : index
    %c2_72 = arith.constant 2 : index
    %c0_73 = arith.constant 0 : index
    %47 = vector.load %arg5[%c0_70, %c2_71, %c2_72, %c0_73] : memref<1x18x18x4xf32, #tpu.memory_space<vmem>>, vector<1x16x16x4xf32>
    %48 = vector.shape_cast %47 : vector<1x16x16x4xf32> to vector<256x4xf32>
    %c32 = arith.constant 32 : index
    %c0_74 = arith.constant 0 : index
    %49 = vector.load %arg2[%c32, %c0_74] : memref<36x4xf32, #tpu.memory_space<vmem>>, vector<4x4xf32>
    %cst_75 = arith.constant dense<0.000000e+00> : vector<256x4xf32>
    %50 = tpu.matmul %48, %49, %cst_75 {dimension_numbers = #tpu.dot_dimension_numbers<[1], [0], [0], [1], [0, 0, 1, 1], [], []>} : vector<256x4xf32>, vector<4x4xf32>, vector<256x4xf32> -> vector<256x4xf32>
    %51 = arith.addf %46, %50 : vector<256x4xf32>
    %52 = vector.shape_cast %51 : vector<256x4xf32> to vector<1x16x16x4xf32>
    %c0_76 = arith.constant 0 : index
    %c0_77 = arith.constant 0 : index
    %c0_78 = arith.constant 0 : index
    %c0_79 = arith.constant 0 : index
    %53 = vector.load %arg3[%c0_76, %c0_77, %c0_78, %c0_79] : memref<1x16x16x4xf32, #tpu.memory_space<vmem>>, vector<1x16x16x4xf32>
    tpu.vector_store %arg3[%c0_76, %c0_77, %c0_78, %c0_79], %52 {strides = array<i32>} : memref<1x16x16x4xf32, #tpu.memory_space<vmem>>, vector<1x16x16x4xf32>,
    %cst_80 = arith.constant dense<0.000000e+00> : vector<4xf32>
    %54 = vector.multi_reduction <add>, %51, %cst_80 [0] : vector<256x4xf32> to vector<4xf32>
    %55 = vector.shape_cast %54 : vector<4xf32> to vector<1x4xf32>
    %56 = arith.mulf %51, %51 : vector<256x4xf32>
    %cst_81 = arith.constant dense<0.000000e+00> : vector<4xf32>
    %57 = vector.multi_reduction <add>, %56, %cst_81 [0] : vector<256x4xf32> to vector<4xf32>
    %58 = vector.shape_cast %57 : vector<4xf32> to vector<1x4xf32>
    %59 = tpu.concatenate %55, %58 in 0 : vector<1x4xf32>, vector<1x4xf32> -> vector<2x4xf32>
    %60 = vector.shape_cast %59 : vector<2x4xf32> to vector<1x2x4xf32>
    %c0_82 = arith.constant 0 : index
    %c0_83 = arith.constant 0 : index
    %c0_84 = arith.constant 0 : index
    %61 = vector.load %arg4[%c0_82, %c0_83, %c0_84] : memref<1x2x4xf32, #tpu.memory_space<vmem>>, vector<1x2x4xf32>
    tpu.vector_store %arg4[%c0_82, %c0_83, %c0_84], %60 {strides = array<i32>} : memref<1x2x4xf32, #tpu.memory_space<vmem>>, vector<1x2x4xf32>,
    return
  }
  func.func @transform_0(%arg0: i32) -> (i32, i32, i32, i32) {
    %c0_i32 = arith.constant 0 : i32
    %c0_i32_0 = arith.constant 0 : i32
    %c0_i32_1 = arith.constant 0 : i32
    %c0_i32_2 = arith.constant 0 : i32
    return %arg0, %c0_i32, %c0_i32_0, %c0_i32_1 : i32, i32, i32, i32
  }
  func.func @transform_1(%arg0: i32) -> (i32, i32) {
    %c0_i32 = arith.constant 0 : i32
    %c0_i32_0 = arith.constant 0 : i32
    %c0_i32_1 = arith.constant 0 : i32
    return %c0_i32, %c0_i32_0 : i32, i32
  }
  func.func @transform_2(%arg0: i32) -> (i32, i32, i32, i32) {
    %c0_i32 = arith.constant 0 : i32
    %c0_i32_0 = arith.constant 0 : i32
    %c0_i32_1 = arith.constant 0 : i32
    %c0_i32_2 = arith.constant 0 : i32
    return %arg0, %c0_i32, %c0_i32_0, %c0_i32_1 : i32, i32, i32, i32
  }
  func.func @transform_3(%arg0: i32) -> (i32, i32, i32) {
    %c0_i32 = arith.constant 0 : i32
    %c0_i32_0 = arith.constant 0 : i32
    %c0_i32_1 = arith.constant 0 : i32
    return %arg0, %c0_i32, %c0_i32_0 : i32, i32, i32
  }
}

module attributes {stable_mosaic.version = 11 : i64} {
  func.func @_bn_relu_conv2_kernel(%arg0: i32, %arg1: memref<1x16x16x4xf32, #tpu.memory_space<vmem>>, %arg2: memref<1x4xf32, #tpu.memory_space<vmem>>, %arg3: memref<1x4xf32, #tpu.memory_space<vmem>>, %arg4: memref<36x4xf32, #tpu.memory_space<vmem>>, %arg5: memref<1x16x16x4xf32, #tpu.memory_space<vmem>>, %arg6: memref<1x2x4xf32, #tpu.memory_space<vmem>>, %arg7: memref<1x18x18x4xf32, #tpu.memory_space<vmem>>) attributes {dimension_semantics = [#tpu.dimension_semantics<parallel>], iteration_bounds = array<i64: 2>, scalar_prefetch = 0 : i64, scratch_operands = 1 : i64, tpu.core_type = #tpu.core_type<tc>, window_params = [{transform_indices = @transform_0, window_bounds = array<i64: 1, 16, 16, 4>}, {pipeline_mode = #tpu.pipeline_mode<synchronous>, transform_indices = @transform_1, window_bounds = array<i64: 1, 4>}, {pipeline_mode = #tpu.pipeline_mode<synchronous>, transform_indices = @transform_2, window_bounds = array<i64: 1, 4>}, {pipeline_mode = #tpu.pipeline_mode<synchronous>, transform_indices = @transform_3, window_bounds = array<i64: 36, 4>}, {transform_indices = @transform_4, window_bounds = array<i64: 1, 16, 16, 4>}, {transform_indices = @transform_5, window_bounds = array<i64: 1, 2, 4>}]} {
    %c0 = arith.constant 0 : index
    %c0_0 = arith.constant 0 : index
    %c0_1 = arith.constant 0 : index
    %c0_2 = arith.constant 0 : index
    %0 = vector.load %arg1[%c0, %c0_0, %c0_1, %c0_2] : memref<1x16x16x4xf32, #tpu.memory_space<vmem>>, vector<1x16x16x4xf32>
    %c0_3 = arith.constant 0 : index
    %c0_4 = arith.constant 0 : index
    %1 = vector.load %arg2[%c0_3, %c0_4] : memref<1x4xf32, #tpu.memory_space<vmem>>, vector<1x4xf32>
    %2 = vector.shape_cast %1 : vector<1x4xf32> to vector<1x1x1x4xf32>
    %3 = vector.broadcast %2 : vector<1x1x1x4xf32> to vector<1x16x16x4xf32>
    %4 = arith.mulf %0, %3 : vector<1x16x16x4xf32>
    %c0_5 = arith.constant 0 : index
    %c0_6 = arith.constant 0 : index
    %5 = vector.load %arg3[%c0_5, %c0_6] : memref<1x4xf32, #tpu.memory_space<vmem>>, vector<1x4xf32>
    %6 = vector.shape_cast %5 : vector<1x4xf32> to vector<1x1x1x4xf32>
    %7 = vector.broadcast %6 : vector<1x1x1x4xf32> to vector<1x16x16x4xf32>
    %8 = arith.addf %4, %7 : vector<1x16x16x4xf32>
    %cst = arith.constant 0.000000e+00 : f32
    %9 = vector.broadcast %cst : f32 to vector<1x16x16x4xf32>
    %10 = arith.maximumf %8, %9 : vector<1x16x16x4xf32>
    %cst_7 = arith.constant 0.000000e+00 : f32
    %11 = vector.broadcast %cst_7 : f32 to vector<1x1x18x4xf32>
    %cst_8 = arith.constant 0.000000e+00 : f32
    %12 = vector.broadcast %cst_8 : f32 to vector<1x18x1x4xf32>
    %c0_9 = arith.constant 0 : index
    %c0_10 = arith.constant 0 : index
    %c0_11 = arith.constant 0 : index
    %c0_12 = arith.constant 0 : index
    %13 = vector.load %arg7[%c0_9, %c0_10, %c0_11, %c0_12] : memref<1x18x18x4xf32, #tpu.memory_space<vmem>>, vector<1x1x18x4xf32>
    tpu.vector_store %arg7[%c0_9, %c0_10, %c0_11, %c0_12], %11 {strides = array<i32>} : memref<1x18x18x4xf32, #tpu.memory_space<vmem>>, vector<1x1x18x4xf32>,
    %c0_13 = arith.constant 0 : index
    %c17 = arith.constant 17 : index
    %c0_14 = arith.constant 0 : index
    %c0_15 = arith.constant 0 : index
    %14 = vector.load %arg7[%c0_13, %c17, %c0_14, %c0_15] : memref<1x18x18x4xf32, #tpu.memory_space<vmem>>, vector<1x1x18x4xf32>
    tpu.vector_store %arg7[%c0_13, %c17, %c0_14, %c0_15], %11 {strides = array<i32>} : memref<1x18x18x4xf32, #tpu.memory_space<vmem>>, vector<1x1x18x4xf32>,
    %c0_16 = arith.constant 0 : index
    %c0_17 = arith.constant 0 : index
    %c0_18 = arith.constant 0 : index
    %c0_19 = arith.constant 0 : index
    %15 = vector.load %arg7[%c0_16, %c0_17, %c0_18, %c0_19] : memref<1x18x18x4xf32, #tpu.memory_space<vmem>>, vector<1x18x1x4xf32>
    tpu.vector_store %arg7[%c0_16, %c0_17, %c0_18, %c0_19], %12 {strides = array<i32>} : memref<1x18x18x4xf32, #tpu.memory_space<vmem>>, vector<1x18x1x4xf32>,
    %c0_20 = arith.constant 0 : index
    %c0_21 = arith.constant 0 : index
    %c17_22 = arith.constant 17 : index
    %c0_23 = arith.constant 0 : index
    %16 = vector.load %arg7[%c0_20, %c0_21, %c17_22, %c0_23] : memref<1x18x18x4xf32, #tpu.memory_space<vmem>>, vector<1x18x1x4xf32>
    tpu.vector_store %arg7[%c0_20, %c0_21, %c17_22, %c0_23], %12 {strides = array<i32>} : memref<1x18x18x4xf32, #tpu.memory_space<vmem>>, vector<1x18x1x4xf32>,
    %c0_24 = arith.constant 0 : index
    %c1 = arith.constant 1 : index
    %c1_25 = arith.constant 1 : index
    %c0_26 = arith.constant 0 : index
    %17 = vector.load %arg7[%c0_24, %c1, %c1_25, %c0_26] : memref<1x18x18x4xf32, #tpu.memory_space<vmem>>, vector<1x16x16x4xf32>
    tpu.vector_store %arg7[%c0_24, %c1, %c1_25, %c0_26], %10 {strides = array<i32>} : memref<1x18x18x4xf32, #tpu.memory_space<vmem>>, vector<1x16x16x4xf32>,
    %c0_27 = arith.constant 0 : index
    %c0_28 = arith.constant 0 : index
    %c0_29 = arith.constant 0 : index
    %c0_30 = arith.constant 0 : index
    %18 = vector.load %arg7[%c0_27, %c0_28, %c0_29, %c0_30] : memref<1x18x18x4xf32, #tpu.memory_space<vmem>>, vector<1x16x16x4xf32>
    %19 = vector.shape_cast %18 : vector<1x16x16x4xf32> to vector<256x4xf32>
    %c0_31 = arith.constant 0 : index
    %c0_32 = arith.constant 0 : index
    %20 = vector.load %arg4[%c0_31, %c0_32] : memref<36x4xf32, #tpu.memory_space<vmem>>, vector<4x4xf32>
    %cst_33 = arith.constant dense<0.000000e+00> : vector<256x4xf32>
    %21 = tpu.matmul %19, %20, %cst_33 {dimension_numbers = #tpu.dot_dimension_numbers<[1], [0], [0], [1], [0, 0, 1, 1], [], []>} : vector<256x4xf32>, vector<4x4xf32>, vector<256x4xf32> -> vector<256x4xf32>
    %c0_34 = arith.constant 0 : index
    %c0_35 = arith.constant 0 : index
    %c1_36 = arith.constant 1 : index
    %c0_37 = arith.constant 0 : index
    %22 = vector.load %arg7[%c0_34, %c0_35, %c1_36, %c0_37] : memref<1x18x18x4xf32, #tpu.memory_space<vmem>>, vector<1x16x16x4xf32>
    %23 = vector.shape_cast %22 : vector<1x16x16x4xf32> to vector<256x4xf32>
    %c4 = arith.constant 4 : index
    %c0_38 = arith.constant 0 : index
    %24 = vector.load %arg4[%c4, %c0_38] : memref<36x4xf32, #tpu.memory_space<vmem>>, vector<4x4xf32>
    %cst_39 = arith.constant dense<0.000000e+00> : vector<256x4xf32>
    %25 = tpu.matmul %23, %24, %cst_39 {dimension_numbers = #tpu.dot_dimension_numbers<[1], [0], [0], [1], [0, 0, 1, 1], [], []>} : vector<256x4xf32>, vector<4x4xf32>, vector<256x4xf32> -> vector<256x4xf32>
    %26 = arith.addf %21, %25 : vector<256x4xf32>
    %c0_40 = arith.constant 0 : index
    %c0_41 = arith.constant 0 : index
    %c2 = arith.constant 2 : index
    %c0_42 = arith.constant 0 : index
    %27 = vector.load %arg7[%c0_40, %c0_41, %c2, %c0_42] : memref<1x18x18x4xf32, #tpu.memory_space<vmem>>, vector<1x16x16x4xf32>
    %28 = vector.shape_cast %27 : vector<1x16x16x4xf32> to vector<256x4xf32>
    %c8 = arith.constant 8 : index
    %c0_43 = arith.constant 0 : index
    %29 = vector.load %arg4[%c8, %c0_43] : memref<36x4xf32, #tpu.memory_space<vmem>>, vector<4x4xf32>
    %cst_44 = arith.constant dense<0.000000e+00> : vector<256x4xf32>
    %30 = tpu.matmul %28, %29, %cst_44 {dimension_numbers = #tpu.dot_dimension_numbers<[1], [0], [0], [1], [0, 0, 1, 1], [], []>} : vector<256x4xf32>, vector<4x4xf32>, vector<256x4xf32> -> vector<256x4xf32>
    %31 = arith.addf %26, %30 : vector<256x4xf32>
    %c0_45 = arith.constant 0 : index
    %c1_46 = arith.constant 1 : index
    %c0_47 = arith.constant 0 : index
    %c0_48 = arith.constant 0 : index
    %32 = vector.load %arg7[%c0_45, %c1_46, %c0_47, %c0_48] : memref<1x18x18x4xf32, #tpu.memory_space<vmem>>, vector<1x16x16x4xf32>
    %33 = vector.shape_cast %32 : vector<1x16x16x4xf32> to vector<256x4xf32>
    %c12 = arith.constant 12 : index
    %c0_49 = arith.constant 0 : index
    %34 = vector.load %arg4[%c12, %c0_49] : memref<36x4xf32, #tpu.memory_space<vmem>>, vector<4x4xf32>
    %cst_50 = arith.constant dense<0.000000e+00> : vector<256x4xf32>
    %35 = tpu.matmul %33, %34, %cst_50 {dimension_numbers = #tpu.dot_dimension_numbers<[1], [0], [0], [1], [0, 0, 1, 1], [], []>} : vector<256x4xf32>, vector<4x4xf32>, vector<256x4xf32> -> vector<256x4xf32>
    %36 = arith.addf %31, %35 : vector<256x4xf32>
    %c0_51 = arith.constant 0 : index
    %c1_52 = arith.constant 1 : index
    %c1_53 = arith.constant 1 : index
    %c0_54 = arith.constant 0 : index
    %37 = vector.load %arg7[%c0_51, %c1_52, %c1_53, %c0_54] : memref<1x18x18x4xf32, #tpu.memory_space<vmem>>, vector<1x16x16x4xf32>
    %38 = vector.shape_cast %37 : vector<1x16x16x4xf32> to vector<256x4xf32>
    %c16 = arith.constant 16 : index
    %c0_55 = arith.constant 0 : index
    %39 = vector.load %arg4[%c16, %c0_55] : memref<36x4xf32, #tpu.memory_space<vmem>>, vector<4x4xf32>
    %cst_56 = arith.constant dense<0.000000e+00> : vector<256x4xf32>
    %40 = tpu.matmul %38, %39, %cst_56 {dimension_numbers = #tpu.dot_dimension_numbers<[1], [0], [0], [1], [0, 0, 1, 1], [], []>} : vector<256x4xf32>, vector<4x4xf32>, vector<256x4xf32> -> vector<256x4xf32>
    %41 = arith.addf %36, %40 : vector<256x4xf32>
    %c0_57 = arith.constant 0 : index
    %c1_58 = arith.constant 1 : index
    %c2_59 = arith.constant 2 : index
    %c0_60 = arith.constant 0 : index
    %42 = vector.load %arg7[%c0_57, %c1_58, %c2_59, %c0_60] : memref<1x18x18x4xf32, #tpu.memory_space<vmem>>, vector<1x16x16x4xf32>
    %43 = vector.shape_cast %42 : vector<1x16x16x4xf32> to vector<256x4xf32>
    %c20 = arith.constant 20 : index
    %c0_61 = arith.constant 0 : index
    %44 = vector.load %arg4[%c20, %c0_61] : memref<36x4xf32, #tpu.memory_space<vmem>>, vector<4x4xf32>
    %cst_62 = arith.constant dense<0.000000e+00> : vector<256x4xf32>
    %45 = tpu.matmul %43, %44, %cst_62 {dimension_numbers = #tpu.dot_dimension_numbers<[1], [0], [0], [1], [0, 0, 1, 1], [], []>} : vector<256x4xf32>, vector<4x4xf32>, vector<256x4xf32> -> vector<256x4xf32>
    %46 = arith.addf %41, %45 : vector<256x4xf32>
    %c0_63 = arith.constant 0 : index
    %c2_64 = arith.constant 2 : index
    %c0_65 = arith.constant 0 : index
    %c0_66 = arith.constant 0 : index
    %47 = vector.load %arg7[%c0_63, %c2_64, %c0_65, %c0_66] : memref<1x18x18x4xf32, #tpu.memory_space<vmem>>, vector<1x16x16x4xf32>
    %48 = vector.shape_cast %47 : vector<1x16x16x4xf32> to vector<256x4xf32>
    %c24 = arith.constant 24 : index
    %c0_67 = arith.constant 0 : index
    %49 = vector.load %arg4[%c24, %c0_67] : memref<36x4xf32, #tpu.memory_space<vmem>>, vector<4x4xf32>
    %cst_68 = arith.constant dense<0.000000e+00> : vector<256x4xf32>
    %50 = tpu.matmul %48, %49, %cst_68 {dimension_numbers = #tpu.dot_dimension_numbers<[1], [0], [0], [1], [0, 0, 1, 1], [], []>} : vector<256x4xf32>, vector<4x4xf32>, vector<256x4xf32> -> vector<256x4xf32>
    %51 = arith.addf %46, %50 : vector<256x4xf32>
    %c0_69 = arith.constant 0 : index
    %c2_70 = arith.constant 2 : index
    %c1_71 = arith.constant 1 : index
    %c0_72 = arith.constant 0 : index
    %52 = vector.load %arg7[%c0_69, %c2_70, %c1_71, %c0_72] : memref<1x18x18x4xf32, #tpu.memory_space<vmem>>, vector<1x16x16x4xf32>
    %53 = vector.shape_cast %52 : vector<1x16x16x4xf32> to vector<256x4xf32>
    %c28 = arith.constant 28 : index
    %c0_73 = arith.constant 0 : index
    %54 = vector.load %arg4[%c28, %c0_73] : memref<36x4xf32, #tpu.memory_space<vmem>>, vector<4x4xf32>
    %cst_74 = arith.constant dense<0.000000e+00> : vector<256x4xf32>
    %55 = tpu.matmul %53, %54, %cst_74 {dimension_numbers = #tpu.dot_dimension_numbers<[1], [0], [0], [1], [0, 0, 1, 1], [], []>} : vector<256x4xf32>, vector<4x4xf32>, vector<256x4xf32> -> vector<256x4xf32>
    %56 = arith.addf %51, %55 : vector<256x4xf32>
    %c0_75 = arith.constant 0 : index
    %c2_76 = arith.constant 2 : index
    %c2_77 = arith.constant 2 : index
    %c0_78 = arith.constant 0 : index
    %57 = vector.load %arg7[%c0_75, %c2_76, %c2_77, %c0_78] : memref<1x18x18x4xf32, #tpu.memory_space<vmem>>, vector<1x16x16x4xf32>
    %58 = vector.shape_cast %57 : vector<1x16x16x4xf32> to vector<256x4xf32>
    %c32 = arith.constant 32 : index
    %c0_79 = arith.constant 0 : index
    %59 = vector.load %arg4[%c32, %c0_79] : memref<36x4xf32, #tpu.memory_space<vmem>>, vector<4x4xf32>
    %cst_80 = arith.constant dense<0.000000e+00> : vector<256x4xf32>
    %60 = tpu.matmul %58, %59, %cst_80 {dimension_numbers = #tpu.dot_dimension_numbers<[1], [0], [0], [1], [0, 0, 1, 1], [], []>} : vector<256x4xf32>, vector<4x4xf32>, vector<256x4xf32> -> vector<256x4xf32>
    %61 = arith.addf %56, %60 : vector<256x4xf32>
    %62 = vector.shape_cast %61 : vector<256x4xf32> to vector<1x16x16x4xf32>
    %c0_81 = arith.constant 0 : index
    %c0_82 = arith.constant 0 : index
    %c0_83 = arith.constant 0 : index
    %c0_84 = arith.constant 0 : index
    %63 = vector.load %arg5[%c0_81, %c0_82, %c0_83, %c0_84] : memref<1x16x16x4xf32, #tpu.memory_space<vmem>>, vector<1x16x16x4xf32>
    tpu.vector_store %arg5[%c0_81, %c0_82, %c0_83, %c0_84], %62 {strides = array<i32>} : memref<1x16x16x4xf32, #tpu.memory_space<vmem>>, vector<1x16x16x4xf32>,
    %cst_85 = arith.constant dense<0.000000e+00> : vector<4xf32>
    %64 = vector.multi_reduction <add>, %61, %cst_85 [0] : vector<256x4xf32> to vector<4xf32>
    %65 = vector.shape_cast %64 : vector<4xf32> to vector<1x4xf32>
    %66 = arith.mulf %61, %61 : vector<256x4xf32>
    %cst_86 = arith.constant dense<0.000000e+00> : vector<4xf32>
    %67 = vector.multi_reduction <add>, %66, %cst_86 [0] : vector<256x4xf32> to vector<4xf32>
    %68 = vector.shape_cast %67 : vector<4xf32> to vector<1x4xf32>
    %69 = tpu.concatenate %65, %68 in 0 : vector<1x4xf32>, vector<1x4xf32> -> vector<2x4xf32>
    %70 = vector.shape_cast %69 : vector<2x4xf32> to vector<1x2x4xf32>
    %c0_87 = arith.constant 0 : index
    %c0_88 = arith.constant 0 : index
    %c0_89 = arith.constant 0 : index
    %71 = vector.load %arg6[%c0_87, %c0_88, %c0_89] : memref<1x2x4xf32, #tpu.memory_space<vmem>>, vector<1x2x4xf32>
    tpu.vector_store %arg6[%c0_87, %c0_88, %c0_89], %70 {strides = array<i32>} : memref<1x2x4xf32, #tpu.memory_space<vmem>>, vector<1x2x4xf32>,
    return
  }
  func.func @transform_0(%arg0: i32) -> (i32, i32, i32, i32) {
    %c0_i32 = arith.constant 0 : i32
    %c0_i32_0 = arith.constant 0 : i32
    %c0_i32_1 = arith.constant 0 : i32
    %c0_i32_2 = arith.constant 0 : i32
    return %arg0, %c0_i32, %c0_i32_0, %c0_i32_1 : i32, i32, i32, i32
  }
  func.func @transform_1(%arg0: i32) -> (i32, i32) {
    %c0_i32 = arith.constant 0 : i32
    %c0_i32_0 = arith.constant 0 : i32
    %c0_i32_1 = arith.constant 0 : i32
    return %c0_i32, %c0_i32_0 : i32, i32
  }
  func.func @transform_2(%arg0: i32) -> (i32, i32) {
    %c0_i32 = arith.constant 0 : i32
    %c0_i32_0 = arith.constant 0 : i32
    %c0_i32_1 = arith.constant 0 : i32
    return %c0_i32, %c0_i32_0 : i32, i32
  }
  func.func @transform_3(%arg0: i32) -> (i32, i32) {
    %c0_i32 = arith.constant 0 : i32
    %c0_i32_0 = arith.constant 0 : i32
    %c0_i32_1 = arith.constant 0 : i32
    return %c0_i32, %c0_i32_0 : i32, i32
  }
  func.func @transform_4(%arg0: i32) -> (i32, i32, i32, i32) {
    %c0_i32 = arith.constant 0 : i32
    %c0_i32_0 = arith.constant 0 : i32
    %c0_i32_1 = arith.constant 0 : i32
    %c0_i32_2 = arith.constant 0 : i32
    return %arg0, %c0_i32, %c0_i32_0, %c0_i32_1 : i32, i32, i32, i32
  }
  func.func @transform_5(%arg0: i32) -> (i32, i32, i32) {
    %c0_i32 = arith.constant 0 : i32
    %c0_i32_0 = arith.constant 0 : i32
    %c0_i32_1 = arith.constant 0 : i32
    return %arg0, %c0_i32, %c0_i32_0 : i32, i32, i32
  }
}

module attributes {stable_mosaic.version = 11 : i64} {
  func.func @_bn_add_relu_kernel(%arg0: i32, %arg1: memref<16x128xf32, #tpu.memory_space<vmem>>, %arg2: memref<16x128xf32, #tpu.memory_space<vmem>>, %arg3: memref<1x128xf32, #tpu.memory_space<vmem>>, %arg4: memref<1x128xf32, #tpu.memory_space<vmem>>, %arg5: memref<16x128xf32, #tpu.memory_space<vmem>>) attributes {dimension_semantics = [#tpu.dimension_semantics<parallel>], iteration_bounds = array<i64: 1>, scalar_prefetch = 0 : i64, scratch_operands = 0 : i64, tpu.core_type = #tpu.core_type<tc>, window_params = [{transform_indices = @transform_0, window_bounds = array<i64: 16, 128>}, {transform_indices = @transform_1, window_bounds = array<i64: 16, 128>}, {pipeline_mode = #tpu.pipeline_mode<synchronous>, transform_indices = @transform_2, window_bounds = array<i64: 1, 128>}, {pipeline_mode = #tpu.pipeline_mode<synchronous>, transform_indices = @transform_3, window_bounds = array<i64: 1, 128>}, {transform_indices = @transform_4, window_bounds = array<i64: 16, 128>}]} {
    %c0 = arith.constant 0 : index
    %c0_0 = arith.constant 0 : index
    %0 = vector.load %arg1[%c0, %c0_0] : memref<16x128xf32, #tpu.memory_space<vmem>>, vector<16x128xf32>
    %c0_1 = arith.constant 0 : index
    %c0_2 = arith.constant 0 : index
    %1 = vector.load %arg3[%c0_1, %c0_2] : memref<1x128xf32, #tpu.memory_space<vmem>>, vector<1x128xf32>
    %2 = vector.broadcast %1 : vector<1x128xf32> to vector<16x128xf32>
    %3 = arith.mulf %0, %2 : vector<16x128xf32>
    %c0_3 = arith.constant 0 : index
    %c0_4 = arith.constant 0 : index
    %4 = vector.load %arg4[%c0_3, %c0_4] : memref<1x128xf32, #tpu.memory_space<vmem>>, vector<1x128xf32>
    %5 = vector.broadcast %4 : vector<1x128xf32> to vector<16x128xf32>
    %6 = arith.addf %3, %5 : vector<16x128xf32>
    %c0_5 = arith.constant 0 : index
    %c0_6 = arith.constant 0 : index
    %7 = vector.load %arg2[%c0_5, %c0_6] : memref<16x128xf32, #tpu.memory_space<vmem>>, vector<16x128xf32>
    %8 = arith.addf %6, %7 : vector<16x128xf32>
    %cst = arith.constant 0.000000e+00 : f32
    %9 = vector.broadcast %cst : f32 to vector<16x128xf32>
    %10 = arith.maximumf %8, %9 : vector<16x128xf32>
    %c0_7 = arith.constant 0 : index
    %c0_8 = arith.constant 0 : index
    %11 = vector.load %arg5[%c0_7, %c0_8] : memref<16x128xf32, #tpu.memory_space<vmem>>, vector<16x128xf32>
    tpu.vector_store %arg5[%c0_7, %c0_8], %10 {strides = array<i32>} : memref<16x128xf32, #tpu.memory_space<vmem>>, vector<16x128xf32>,
    return
  }
  func.func @transform_0(%arg0: i32) -> (i32, i32) {
    %c0_i32 = arith.constant 0 : i32
    %c0_i32_0 = arith.constant 0 : i32
    return %arg0, %c0_i32 : i32, i32
  }
  func.func @transform_1(%arg0: i32) -> (i32, i32) {
    %c0_i32 = arith.constant 0 : i32
    %c0_i32_0 = arith.constant 0 : i32
    return %arg0, %c0_i32 : i32, i32
  }
  func.func @transform_2(%arg0: i32) -> (i32, i32) {
    %c0_i32 = arith.constant 0 : i32
    %c0_i32_0 = arith.constant 0 : i32
    %c0_i32_1 = arith.constant 0 : i32
    return %c0_i32, %c0_i32_0 : i32, i32
  }
  func.func @transform_3(%arg0: i32) -> (i32, i32) {
    %c0_i32 = arith.constant 0 : i32
    %c0_i32_0 = arith.constant 0 : i32
    %c0_i32_1 = arith.constant 0 : i32
    return %c0_i32, %c0_i32_0 : i32, i32
  }
  func.func @transform_4(%arg0: i32) -> (i32, i32) {
    %c0_i32 = arith.constant 0 : i32
    %c0_i32_0 = arith.constant 0 : i32
    return %arg0, %c0_i32 : i32, i32
  }
}

</mosaic_0001>

<llo_original>
// kernel: tile.14
$region0: #{tile.14}
  #allocation0 [shape = 's32[1]{0}', space=sflag, size = 0x4, scoped, tag = 'scoped memory for tile.14']
  %s0 = inlined_call_operand.vmem [shape: f32[4], index: 0, kind: input, shape index: {}]
  %s1 = inlined_call_operand.vmem [shape: f32[32,4], index: 1, kind: output, shape index: {}]
  // Predicated region
  $region2: #{tile.14} parent=0 // pred_check
    _
  $region3: #{tile.14} parent=0 // pred_check_branch
    %3 = sbr.rel (0) target = $region5
  $region4: #{tile.14} parent=0 // pred_region
    _
  $region5: #{tile.14} parent=0 // pred_fallthru
    _
  %v4 = vld [vmem:[%s0] ss:$0 sm:$0xff]
  %5 = vst [vmem:[%s1] sm:$0xff] %v4
  %s6 = scalar_lea.vmem %s1, 8
  %7 = vst [vmem:[%s6] sm:$0xff] %v4
  %s8 = scalar_lea.vmem %s1, 16
  %9 = vst [vmem:[%s8] sm:$0xff] %v4
  %s10 = scalar_lea.vmem %s1, 24
  %11 = vst [vmem:[%s10] sm:$0xff] %v4

// kernel: tile.15
$region0: #{tile.15}
  %s0 = inlined_call_operand.vmem [shape: f32[32,4], index: 0, kind: input, shape index: {}]
  %s1 = inlined_call_operand.vmem [shape: f32[1,128], index: 1, kind: output, shape index: {}]
  $region1: #{tile.15} parent=0
    #allocation0 [shape = 'u8[4096]{0}', space=vmem, size = 0x1000, scoped, tag = 'scoped mem for output reshape']
    %v2 = vld [vmem:[%s0] sm:$0x1]
    %vm3 = vcmask 31744
    %4 = vst.msk [vmem:[#allocation0] sm:$0x1] %vm3, %v2
    %s5 = scalar_lea.vmem %s0, 31
    %v6 = vld [vmem:[%s5] sm:$0x1]
    %7 = vrot.lane.b32.xlu0 %v6, 124
    %v8 = vpop.permute.xlu0 %7
    %vm9 = vcmask 1048544
    %10 = vst.msk [vmem:[#allocation0] sm:$0x1] %vm9, %v8
    %s11 = scalar_lea.vmem %s0, 30
    %v12 = vld [vmem:[%s11] sm:$0x1]
    %13 = vrot.lane.b32.xlu0 %v12, 120
    %v14 = vpop.permute.xlu0 %13
    %vm15 = vcmask 1015744
    %16 = vst.msk [vmem:[#allocation0] sm:$0x1] %vm15, %v14
    %s17 = scalar_lea.vmem %s0, 29
    %v18 = vld [vmem:[%s17] sm:$0x1]
    %19 = vrot.lane.b32.xlu0 %v18, 116
    %v20 = vpop.permute.xlu0 %19
    %vm21 = vcmask 982944
    %22 = vst.msk [vmem:[#allocation0] sm:$0x1] %vm21, %v20
    %s23 = scalar_lea.vmem %s0, 28
    %v24 = vld [vmem:[%s23] sm:$0x1]
    %25 = vrot.lane.b32.xlu0 %v24, 112
    %v26 = vpop.permute.xlu0 %25
    %vm27 = vcmask 950144
    %28 = vst.msk [vmem:[#allocation0] sm:$0x1] %vm27, %v26
    %s29 = scalar_lea.vmem %s0, 27
    %v30 = vld [vmem:[%s29] sm:$0x1]
    %31 = vrot.lane.b32.xlu0 %v30, 108
    %v32 = vpop.permute.xlu0 %31
    %vm33 = vcmask 917344
    %34 = vst.msk [vmem:[#allocation0] sm:$0x1] %vm33, %v32
    %s35 = scalar_lea.vmem %s0, 26
    %v36 = vld [vmem:[%s35] sm:$0x1]
    %37 = vrot.lane.b32.xlu0 %v36, 104
    %v38 = vpop.permute.xlu0 %37
    %vm39 = vcmask 884544
    %40 = vst.msk [vmem:[#allocation0] sm:$0x1] %vm39, %v38
    %s41 = scalar_lea.vmem %s0, 25
    %v42 = vld [vmem:[%s41] sm:$0x1]
    %43 = vrot.lane.b32.xlu0 %v42, 100
    %v44 = vpop.permute.xlu0 %43
    %vm45 = vcmask 851744
    %46 = vst.msk [vmem:[#allocation0] sm:$0x1] %vm45, %v44
    %s47 = scalar_lea.vmem %s0, 24
    %v48 = vld [vmem:[%s47] sm:$0x1]
    %49 = vrot.lane.b32.xlu0 %v48, 96
    %v50 = vpop.permute.xlu0 %49
    %vm51 = vcmask 818944
    %52 = vst.msk [vmem:[#allocation0] sm:$0x1] %vm51, %v50
    %s53 = scalar_lea.vmem %s0, 23
    %v54 = vld [vmem:[%s53] sm:$0x1]
    %55 = vrot.lane.b32.xlu0 %v54, 92
    %v56 = vpop.permute.xlu0 %55
    %vm57 = vcmask 786144
    %58 = vst.msk [vmem:[#allocation0] sm:$0x1] %vm57, %v56
    %s59 = scalar_lea.vmem %s0, 22
    %v60 = vld [vmem:[%s59] sm:$0x1]
    %61 = vrot.lane.b32.xlu0 %v60, 88
    %v62 = vpop.permute.xlu0 %61
    %vm63 = vcmask 753344
    %64 = vst.msk [vmem:[#allocation0] sm:$0x1] %vm63, %v62
    %s65 = scalar_lea.vmem %s0, 21
    %v66 = vld [vmem:[%s65] sm:$0x1]
    %67 = vrot.lane.b32.xlu0 %v66, 84
    %v68 = vpop.permute.xlu0 %67
    %vm69 = vcmask 720544
    %70 = vst.msk [vmem:[#allocation0] sm:$0x1] %vm69, %v68
    %s71 = scalar_lea.vmem %s0, 20
    %v72 = vld [vmem:[%s71] sm:$0x1]
    %73 = vrot.lane.b32.xlu0 %v72, 80
    %v74 = vpop.permute.xlu0 %73
    %vm75 = vcmask 687744
    %76 = vst.msk [vmem:[#allocation0] sm:$0x1] %vm75, %v74
    %s77 = scalar_lea.vmem %s0, 19
    %v78 = vld [vmem:[%s77] sm:$0x1]
    %79 = vrot.lane.b32.xlu0 %v78, 76
    %v80 = vpop.permute.xlu0 %79
    %vm81 = vcmask 654944
    %82 = vst.msk [vmem:[#allocation0] sm:$0x1] %vm81, %v80
    %s83 = scalar_lea.vmem %s0, 18
    %v84 = vld [vmem:[%s83] sm:$0x1]
    %85 = vrot.lane.b32.xlu0 %v84, 72
    %v86 = vpop.permute.xlu0 %85
    %vm87 = vcmask 622144
    %88 = vst.msk [vmem:[#allocation0] sm:$0x1] %vm87, %v86
    %s89 = scalar_lea.vmem %s0, 17
    %v90 = vld [vmem:[%s89] sm:$0x1]
    %91 = vrot.lane.b32.xlu0 %v90, 68
    %v92 = vpop.permute.xlu0 %91
    %vm93 = vcmask 589344
    %94 = vst.msk [vmem:[#allocation0] sm:$0x1] %vm93, %v92
    %s95 = scalar_lea.vmem %s0, 16
    %v96 = vld [vmem:[%s95] sm:$0x1]
    %97 = vrot.lane.b32.xlu0 %v96, 64
    %v98 = vpop.permute.xlu0 %97
    %vm99 = vcmask 556544
    %100 = vst.msk [vmem:[#allocation0] sm:$0x1] %vm99, %v98
    %s101 = scalar_lea.vmem %s0, 15
    %v102 = vld [vmem:[%s101] sm:$0x1]
    %103 = vrot.lane.b32.xlu0 %v102, 60
    %v104 = vpop.permute.xlu0 %103
    %vm105 = vcmask 523744
    %106 = vst.msk [vmem:[#allocation0] sm:$0x1] %vm105, %v104
    %s107 = scalar_lea.vmem %s0, 14
    %v108 = vld [vmem:[%s107] sm:$0x1]
    %109 = vrot.lane.b32.xlu0 %v108, 56
    %v110 = vpop.permute.xlu0 %109
    %vm111 = vcmask 490944
    %112 = vst.msk [vmem:[#allocation0] sm:$0x1] %vm111, %v110
    %s113 = scalar_lea.vmem %s0, 13
    %v114 = vld [vmem:[%s113] sm:$0x1]
    %115 = vrot.lane.b32.xlu0 %v114, 52
    %v116 = vpop.permute.xlu0 %115
    %vm117 = vcmask 458144
    %118 = vst.msk [vmem:[#allocation0] sm:$0x1] %vm117, %v116
    %s119 = scalar_lea.vmem %s0, 12
    %v120 = vld [vmem:[%s119] sm:$0x1]
    %121 = vrot.lane.b32.xlu0 %v120, 48
    %v122 = vpop.permute.xlu0 %121
    %vm123 = vcmask 425344
    %124 = vst.msk [vmem:[#allocation0] sm:$0x1] %vm123, %v122
    %s125 = scalar_lea.vmem %s0, 11
    %v126 = vld [vmem:[%s125] sm:$0x1]
    %127 = vrot.lane.b32.xlu0 %v126, 44
    %v128 = vpop.permute.xlu0 %127
    %vm129 = vcmask 392544
    %130 = vst.msk [vmem:[#allocation0] sm:$0x1] %vm129, %v128
    %s131 = scalar_lea.vmem %s0, 10
    %v132 = vld [vmem:[%s131] sm:$0x1]
    %133 = vrot.lane.b32.xlu0 %v132, 40
    %v134 = vpop.permute.xlu0 %133
    %vm135 = vcmask 359744
    %136 = vst.msk [vmem:[#allocation0] sm:$0x1] %vm135, %v134
    %s137 = scalar_lea.vmem %s0, 9
    %v138 = vld [vmem:[%s137] sm:$0x1]
    %139 = vrot.lane.b32.xlu0 %v138, 36
    %v140 = vpop.permute.xlu0 %139
    %vm141 = vcmask 326944
    %142 = vst.msk [vmem:[#allocation0] sm:$0x1] %vm141, %v140
    %s143 = scalar_lea.vmem %s0, 8
    %v144 = vld [vmem:[%s143] sm:$0x1]
    %145 = vrot.lane.b32.xlu0 %v144, 32
    %v146 = vpop.permute.xlu0 %145
    %vm147 = vcmask 294144
    %148 = vst.msk [vmem:[#allocation0] sm:$0x1] %vm147, %v146
    %s149 = scalar_lea.vmem %s0, 7
    %v150 = vld [vmem:[%s149] sm:$0x1]
    %151 = vrot.lane.b32.xlu0 %v150, 28
    %v152 = vpop.permute.xlu0 %151
    %vm153 = vcmask 261344
    %154 = vst.msk [vmem:[#allocation0] sm:$0x1] %vm153, %v152
    %s155 = scalar_lea.vmem %s0, 6
    %v156 = vld [vmem:[%s155] sm:$0x1]
    %157 = vrot.lane.b32.xlu0 %v156, 24
    %v158 = vpop.permute.xlu0 %157
    %vm159 = vcmask 228544
    %160 = vst.msk [vmem:[#allocation0] sm:$0x1] %vm159, %v158
    %s161 = scalar_lea.vmem %s0, 5
    %v162 = vld [vmem:[%s161] sm:$0x1]
    %163 = vrot.lane.b32.xlu0 %v162, 20
    %v164 = vpop.permute.xlu0 %163
    %vm165 = vcmask 195744
    %166 = vst.msk [vmem:[#allocation0] sm:$0x1] %vm165, %v164
    %s167 = scalar_lea.vmem %s0, 4
    %v168 = vld [vmem:[%s167] sm:$0x1]
    %169 = vrot.lane.b32.xlu0 %v168, 16
    %v170 = vpop.permute.xlu0 %169
    %vm171 = vcmask 162944
    %172 = vst.msk [vmem:[#allocation0] sm:$0x1] %vm171, %v170
    %s173 = scalar_lea.vmem %s0, 3
    %v174 = vld [vmem:[%s173] sm:$0x1]
    %175 = vrot.lane.b32.xlu0 %v174, 12
    %v176 = vpop.permute.xlu0 %175
    %vm177 = vcmask 130144
    %178 = vst.msk [vmem:[#allocation0] sm:$0x1] %vm177, %v176
    %s179 = scalar_lea.vmem %s0, 2
    %v180 = vld [vmem:[%s179] sm:$0x1]
    %181 = vrot.lane.b32.xlu0 %v180, 8
    %v182 = vpop.permute.xlu0 %181
    %vm183 = vcmask 97344
    %184 = vst.msk [vmem:[#allocation0] sm:$0x1] %vm183, %v182
    %s185 = scalar_lea.vmem %s0, 1
    %v186 = vld [vmem:[%s185] sm:$0x1]
    %187 = vrot.lane.b32.xlu0 %v186, 4
    %v188 = vpop.permute.xlu0 %187
    %vm189 = vcmask 64544
    %190 = vst.msk [vmem:[#allocation0] sm:$0x1] %vm189, %v188
    %s192 = sshllo.u32 0, 1
    %v194 = vld [vmem:[#allocation0] sm:%s192]
    %s195 = sshllo.u32 0, 1
    %196 = vst [vmem:[%s1] sm:%s195] %v194

// kernel: residual_block_nhwc.5
$region0: #{residual_block_nhwc.5}
  #allocation0 [shape = 'u32[]', space=smem, size = 0x4, offset = 0x4, fixed_abs, tag = 'smem constant byte address 0x4 - core index']
  #allocation1 [shape = 'u32[144,128]{1,0:T(1,128)}', space=vmem, size = 0x12000, scoped, tag = 'internal scratch']
  %s0 = inlined_call_operand.vmem [shape: f32[16,128], index: 0, kind: input, shape index: {}, may-alias: {0,4}]
  %s1 = inlined_call_operand.vmem [shape: f32[16,128], index: 1, kind: input, shape index: {}]
  %s2 = inlined_call_operand.vmem [shape: f32[1,128], index: 2, kind: input, shape index: {}]
  %s3 = inlined_call_operand.vmem [shape: f32[1,128], index: 3, kind: input, shape index: {}]
  %s4 = inlined_call_operand.vmem [shape: f32[16,128], index: 4, kind: output, shape index: {}, may-alias: {0,4}]
  %s5 = sld [smem:[#allocation0]]
  $region26: #{residual_block_nhwc.5} parent=0
    _
  %s7 = ssub.s32 1, %s5
  %s8 = scalar_select 0, %s7, %s5
  // Predicated region
  $region2: #{residual_block_nhwc.5} parent=0 // pred_check
    _
  $region3: #{residual_block_nhwc.5} parent=0 // pred_check_branch
    %10 = sbr.rel (0) target = $region5
  $region4: #{residual_block_nhwc.5} parent=0 // pred_region
    _
  $region5: #{residual_block_nhwc.5} parent=0 // pred_fallthru
    _
  // Predicated region
  $region6: #{residual_block_nhwc.5} parent=0 // pred_check
    _
  $region7: #{residual_block_nhwc.5} parent=0 // pred_check_branch
    %12 = sbr.rel (0) target = $region9
  $region8: #{residual_block_nhwc.5} parent=0 // pred_region
    _
  $region9: #{residual_block_nhwc.5} parent=0 // pred_fallthru
    _
  // Predicated region
  $region10: #{residual_block_nhwc.5} parent=0 // pred_check
    _
  $region11: #{residual_block_nhwc.5} parent=0 // pred_check_branch
    %14 = sbr.rel (0) target = $region13
  $region12: #{residual_block_nhwc.5} parent=0 // pred_region
    _
  $region13: #{residual_block_nhwc.5} parent=0 // pred_fallthru
    _
  // Predicated region
  $region14: #{residual_block_nhwc.5} parent=0 // pred_check
    _
  $region15: #{residual_block_nhwc.5} parent=0 // pred_check_branch
    %16 = sbr.rel (0) target = $region17
  $region16: #{residual_block_nhwc.5} parent=0 // pred_region
    _
  $region17: #{residual_block_nhwc.5} parent=0 // pred_fallthru
    _
  %v17 = vld [vmem:[%s0] sm:$0xff]
  %v18 = vld [vmem:[%s0 + $0x8] sm:$0xff]
  %v19 = vld [vmem:[%s2] sm:$0x1]
  %v21 = vlaneseq
  %v22 = vshrl.u32 %v21, 7
  %v23 = vsub.s32 0, %v22
  %v24 = vrot.slane %v19, %v23
  %v26 = vmul.f32 %v17, %v24
  %v27 = vmul.f32 %v18, %v24
  %v28 = vld [vmem:[%s3] sm:$0x1]
  %v30 = vlaneseq
  %v31 = vshrl.u32 %v30, 7
  %v32 = vsub.s32 0, %v31
  %v33 = vrot.slane %v28, %v32
  %v35 = vadd.f32 %v26, %v33
  %v36 = vadd.f32 %v27, %v33
  %v37 = vld [vmem:[%s1] sm:$0xff]
  %v38 = vld [vmem:[%s1 + $0x8] sm:$0xff]
  %v39 = vadd.f32 %v35, %v37
  %v40 = vadd.f32 %v36, %v38
  %v41 = vmax.f32 %v39, 0.0
  %v42 = vmax.f32 %v40, 0.0
  %43 = vst [vmem:[%s4] sm:$0xff] %v41
  %44 = vst [vmem:[%s4 + $0x8] sm:$0xff] %v42
  // Predicated region
  $region18: #{residual_block_nhwc.5} parent=0 // pred_check
    _
  $region19: #{residual_block_nhwc.5} parent=0 // pred_check_branch
    %46 = sbr.rel (0) target = $region21
  $region20: #{residual_block_nhwc.5} parent=0 // pred_region
    _
  $region21: #{residual_block_nhwc.5} parent=0 // pred_fallthru
    _
  // Predicated region
  $region22: #{residual_block_nhwc.5} parent=0 // pred_check
    _
  $region23: #{residual_block_nhwc.5} parent=0 // pred_check_branch
    %48 = sbr.rel (0) target = $region25
  $region24: #{residual_block_nhwc.5} parent=0 // pred_region
    _
  $region25: #{residual_block_nhwc.5} parent=0 // pred_fallthru
    _

// kernel: residual_block_nhwc.3
$region0: #{residual_block_nhwc.3}
  #allocation0 [shape = 'u32[]', space=smem, size = 0x4, offset = 0x4, fixed_abs, tag = 'smem constant byte address 0x4 - core index']
  #allocation1 [shape = 'u32[144,128]{1,0:T(1,128)}', space=vmem, size = 0x12000, scoped, tag = 'internal scratch']
  #allocation2 [shape = 'f32[1,18,18,4]{3,2,1,0:T(8,128)}', space=vmem, size = 0x36000, scoped, tag = 'scratch operand']
  %s0 = inlined_call_operand.vmem [shape: f32[2,16,16,4], index: 0, kind: input, shape index: {}]
  %s1 = inlined_call_operand.vmem [shape: f32[36,4], index: 1, kind: input, shape index: {}]
  %s2 = inlined_call_operand.vmem [shape: f32[2,16,16,4], index: 2, kind: output, shape index: {0}]
  %s3 = inlined_call_operand.vmem [shape: f32[2,2,4], index: 3, kind: output, shape index: {1}]
  %4 = xla_tuple %s2, %s3
  %s5 = sld [smem:[#allocation0]]
  $region49: #{residual_block_nhwc.3} parent=0
    _
  %s7 = ssub.s32 1, %s5
  %s8 = scalar_select 0, %s7, %s5
  loop: start=0, step=1, limit=4
  $region2: #{residual_block_nhwc.3} parent=0 // loop_pre_header
    _
  $region3: #{residual_block_nhwc.3} parent=0 // loop_header
    %s10 = sphi 0, %s14
    %p11 = scmp.ge.s32.totalorder %s10, 4
    %s20 = sphi 0, %s22
    %s23 = sphi 0, %s20
    %s24 = sphi 0, %s23
    %s40 = sphi 0, %s24
    %s44 = sphi 0, %s44
    %s46 = sphi 0, %s44
    %s47 = sphi 0, %s46
    %s61 = sphi 0, %s47
    %s67 = sphi 0, %s69
    %s70 = sphi 0, %s67
    %s71 = sphi 0, %s70
    %s87 = sphi 0, %s71
    %s93 = sphi 0, %s95
    %s96 = sphi 0, %s93
    %s97 = sphi 0, %s96
    %s113 = sphi 0, %s97
  $region4: #{residual_block_nhwc.3} parent=0 // loop_header_branch
    %13 = sbr.rel (%p11) target = $region8
  $region5: #{residual_block_nhwc.3} parent=0 // loop_body
    %s15 = ssub.s32 %s10, 1
    %s16 = ssub.s32 %s10, 2
    %s17 = sadd.s32 %s10, 1
    %s18 = ssub.s32 %s10, %s17
    %p19 = scmp.eq.s32.totalorder %s18, 0
    %s21 = sadd.s32 %s20, 1
    %s22 = scalar_select %p19, %s20, %s21
    %p25 = pneg %p19
    %p26 = scmp.eq.s32.totalorder %s10, 1
    %p27 = por %p25, %p26
    %p28 = scmp.ne.s32.totalorder %s20, %s23
    %p29 = scmp.eq.s32.totalorder %s10, 0
    %p30 = por %p28, %p29
    %p31 = scmp.ne.s32.totalorder %s20, %s23
    %p32 = scmp.eq.s32.totalorder %s15, 1
    %p33 = por %p31, %p32
    %p34 = scmp.ne.s32.totalorder %s23, %s24
    %p35 = scmp.eq.s32.totalorder %s15, 0
    %p36 = por %p34, %p35
    %p37 = scmp.ne.s32.totalorder %s23, %s24
    %p38 = scmp.eq.s32.totalorder %s16, 1
    %p39 = por %p37, %p38
    %p41 = scmp.ne.s32.totalorder %s24, %s40
    %p42 = scmp.eq.s32.totalorder %s16, 0
    %p43 = por %p41, %p42
    %s45 = sadd.s32 %s44, 1
    %p48 = scmp.eq.s32.totalorder %s10, 1
    %p49 = scmp.ne.s32.totalorder %s44, %s46
    %p50 = scmp.eq.s32.totalorder %s10, 0
    %p51 = por %p49, %p50
    %p52 = scmp.ne.s32.totalorder %s44, %s46
    %p53 = scmp.eq.s32.totalorder %s15, 1
    %p54 = por %p52, %p53
    %p55 = scmp.ne.s32.totalorder %s46, %s47
    %p56 = scmp.eq.s32.totalorder %s15, 0
    %p57 = por %p55, %p56
    %p58 = scmp.ne.s32.totalorder %s46, %s47
    %p59 = scmp.eq.s32.totalorder %s16, 1
    %p60 = por %p58, %p59
    %p62 = scmp.ne.s32.totalorder %s47, %s61
    %p63 = scmp.eq.s32.totalorder %s16, 0
    %p64 = por %p62, %p63
    %s65 = ssub.s32 %s10, %s17
    %p66 = scmp.eq.s32.totalorder %s65, 0
    %s68 = sadd.s32 %s67, 1
    %s69 = scalar_select %p66, %s67, %s68
    %p72 = pneg %p66
    %p73 = scmp.eq.s32.totalorder %s10, 1
    %p74 = por %p72, %p73
    %p75 = scmp.ne.s32.totalorder %s67, %s70
    %p76 = scmp.eq.s32.totalorder %s10, 0
    %p77 = por %p75, %p76
    %p78 = scmp.ne.s32.totalorder %s67, %s70
    %p79 = scmp.eq.s32.totalorder %s15, 1
    %p80 = por %p78, %p79
    %p81 = scmp.ne.s32.totalorder %s70, %s71
    %p82 = scmp.eq.s32.totalorder %s15, 0
    %p83 = por %p81, %p82
    %p84 = scmp.ne.s32.totalorder %s70, %s71
    %p85 = scmp.eq.s32.totalorder %s16, 1
    %p86 = por %p84, %p85
    %p88 = scmp.ne.s32.totalorder %s71, %s87
    %p89 = scmp.eq.s32.totalorder %s16, 0
    %p90 = por %p88, %p89
    %s91 = ssub.s32 %s10, %s17
    %p92 = scmp.eq.s32.totalorder %s91, 0
    %s94 = sadd.s32 %s93, 1
    %s95 = scalar_select %p92, %s93, %s94
    %p98 = pneg %p92
    %p99 = scmp.eq.s32.totalorder %s10, 1
    %p100 = por %p98, %p99
    %p101 = scmp.ne.s32.totalorder %s93, %s96
    %p102 = scmp.eq.s32.totalorder %s10, 0
    %p103 = por %p101, %p102
    %p104 = scmp.ne.s32.totalorder %s93, %s96
    %p105 = scmp.eq.s32.totalorder %s15, 1
    %p106 = por %p104, %p105
    %p107 = scmp.ne.s32.totalorder %s96, %s97
    %p108 = scmp.eq.s32.totalorder %s15, 0
    %p109 = por %p107, %p108
    %p110 = scmp.ne.s32.totalorder %s96, %s97
    %p111 = scmp.eq.s32.totalorder %s16, 1
    %p112 = por %p110, %p111
    %p114 = scmp.ne.s32.totalorder %s97, %s113
    %p115 = scmp.eq.s32.totalorder %s16, 0
    %p116 = por %p114, %p115
    %p117 = scmp.le.s32.totalorder 1, %s10
    %p118 = scmp.lt.s32.totalorder %s10, 3
    %p119 = pnand %p117, %p118
    %p120 = pneg %p119
    // Predicated region
    $region9: #{residual_block_nhwc.3} parent=5 // pred_check
      _
    $region10: #{residual_block_nhwc.3} parent=5 // pred_check_branch
      %122 = sbr.rel (%p119) target = $region12
    $region11: #{residual_block_nhwc.3} parent=5 // pred_region
      %s123 = ssub.s32 %s10, 1
      // Predicated region
      $region13: #{residual_block_nhwc.3} parent=11 // pred_check
        %p124 = pneg %p57
      $region14: #{residual_block_nhwc.3} parent=11 // pred_check_branch
        %126 = sbr.rel (%p124) target = $region16
      $region15: #{residual_block_nhwc.3} parent=11 // pred_region
        _
      $region16: #{residual_block_nhwc.3} parent=11 // pred_fallthru
        _
    $region12: #{residual_block_nhwc.3} parent=5 // pred_fallthru
      _
    %p127 = scmp.lt.s32.totalorder %s10, 2
    // Predicated region
    $region17: #{residual_block_nhwc.3} parent=5 // pred_check
      %p128 = pneg %p127
    $region18: #{residual_block_nhwc.3} parent=5 // pred_check_branch
      %130 = sbr.rel (%p128) target = $region20
    $region19: #{residual_block_nhwc.3} parent=5 // pred_region
      // Predicated region
      $region21: #{residual_block_nhwc.3} parent=19 // pred_check
        %p131 = pneg %p30
      $region22: #{residual_block_nhwc.3} parent=19 // pred_check_branch
        %133 = sbr.rel (%p131) target = $region24
      $region23: #{residual_block_nhwc.3} parent=19 // pred_region
        %p134 = scmp.lt.s32.totalorder %s10, 1
        %s135 = scalar_select %p134, %s10, 1
        %s136 = smul.addr %s135, 32
        %s137 = smul.addr %s136, 8
        %s138 = scalar_lea.vmem %s0, %s137
      $region24: #{residual_block_nhwc.3} parent=19 // pred_fallthru
        _
    $region20: #{residual_block_nhwc.3} parent=5 // pred_fallthru
      _
    %p139 = scmp.le.s32.totalorder 1, %s10
    %p140 = scmp.lt.s32.totalorder %s10, 3
    %p141 = pnand %p139, %p140
    %p142 = pneg %p141
    // Predicated region
    $region25: #{residual_block_nhwc.3} parent=5 // pred_check
      _
    $region26: #{residual_block_nhwc.3} parent=5 // pred_check_branch
      %144 = sbr.rel (%p141) target = $region28
    $region27: #{residual_block_nhwc.3} parent=5 // pred_region
      %s145 = ssub.s32 %s10, 1
      %p146 = scmp.lt.s32.totalorder %s15, 1
      %s147 = scalar_select %p146, %s15, 1
      %s148 = smul.addr %s147, 32
      %s149 = smul.addr %s148, 8
      %s150 = scalar_lea.vmem %s0, %s149
      %p151 = pneg %p36
      %p152 = pneg %p33
      %p153 = pneg %p57
      %p154 = pneg %p54
      %p155 = pneg %p83
      %p156 = pneg %p80
      %p157 = scmp.lt.s32.totalorder %s15, 1
      %s158 = scalar_select %p157, %s15, 1
      %s159 = smul.addr %s158, 32
      %s160 = smul.addr %s159, 8
      %s161 = scalar_lea.vmem %s2, %s160
      %p162 = pneg %p109
      %p163 = pneg %p106
      %p164 = scmp.lt.s32.totalorder %s15, 1
      %s165 = scalar_select %p164, %s15, 1
      %s166 = smul.addr %s165, 2
      %s167 = scalar_lea.vmem %s3, %s166
      %p168 = scmp.lt.s32.totalorder %s15, 1
      %s169 = scalar_select %p168, %s15, 1
      %s170 = smul.addr %s169, 32
      %s171 = smul.addr %s170, 8
      %s172 = scalar_lea.vmem %s0, %s171
      %p173 = scmp.lt.s32.totalorder %s15, 1
      %s174 = scalar_select %p173, %s15, 1
      %s175 = smul.addr %s174, 32
      %s176 = smul.addr %s175, 8
      %s177 = scalar_lea.vmem %s2, %s176
      %p178 = scmp.lt.s32.totalorder %s15, 1
      %s179 = scalar_select %p178, %s15, 1
      %s180 = smul.addr %s179, 2
      %s181 = scalar_lea.vmem %s3, %s180
      %vm182 = vcmask 31744
      %183 = vst.msk [vmem:[#allocation2] sm:$0xff] %vm182, 0.0
      %184 = vst.msk [vmem:[#allocation2 + $0x8] sm:$0xff] %vm182, 0.0
      %vm185 = vcmask 25600
      %186 = vst.msk [vmem:[#allocation2 + $0x10] sm:$0x3] %vm185, 0.0
      %s187 = scalar_lea.vmem [#allocation2], 408
      %188 = vst.msk [vmem:[%s187] sm:$0xff] %vm182, 0.0
      %189 = vst.msk [vmem:[%s187 + $0x8] sm:$0xff] %vm182, 0.0
      %190 = vst.msk [vmem:[%s187 + $0x10] sm:$0x3] %vm185, 0.0
      %vm191 = vcmask 24576
      %192 = vst.msk [vmem:[#allocation2] sm:$0x1] %vm191, 0.0
      %193 = vst.msk [vmem:[#allocation2 + $0x18] sm:$0x1] %vm191, 0.0
      %194 = vst.msk [vmem:[#allocation2 + $0x30] sm:$0x1] %vm191, 0.0
      %195 = vst.msk [vmem:[#allocation2 + $0x48] sm:$0x1] %vm191, 0.0
      %196 = vst.msk [vmem:[#allocation2 + $0x60] sm:$0x1] %vm191, 0.0
      %197 = vst.msk [vmem:[#allocation2 + $0x78] sm:$0x1] %vm191, 0.0
      %198 = vst.msk [vmem:[#allocation2 + $0x90] sm:$0x1] %vm191, 0.0
      %199 = vst.msk [vmem:[#allocation2 + $0xa8] sm:$0x1] %vm191, 0.0
      %200 = vst.msk [vmem:[#allocation2 + $0xc0] sm:$0x1] %vm191, 0.0
      %201 = vst.msk [vmem:[#allocation2 + $0xd8] sm:$0x1] %vm191, 0.0
      %202 = vst.msk [vmem:[#allocation2 + $0xf0] sm:$0x1] %vm191, 0.0
      %203 = vst.msk [vmem:[#allocation2 + $0x108] sm:$0x1] %vm191, 0.0
      %204 = vst.msk [vmem:[#allocation2 + $0x120] sm:$0x1] %vm191, 0.0
      %205 = vst.msk [vmem:[#allocation2 + $0x138] sm:$0x1] %vm191, 0.0
      %206 = vst.msk [vmem:[#allocation2 + $0x150] sm:$0x1] %vm191, 0.0
      %207 = vst.msk [vmem:[#allocation2 + $0x168] sm:$0x1] %vm191, 0.0
      %208 = vst.msk [vmem:[#allocation2 + $0x180] sm:$0x1] %vm191, 0.0
      %209 = vst.msk [vmem:[#allocation2 + $0x198] sm:$0x1] %vm191, 0.0
      %210 = vst.msk [vmem:[#allocation2 + $0x11] sm:$0x1] %vm191, 0.0
      %211 = vst.msk [vmem:[#allocation2 + $0x29] sm:$0x1] %vm191, 0.0
      %212 = vst.msk [vmem:[#allocation2 + $0x41] sm:$0x1] %vm191, 0.0
      %213 = vst.msk [vmem:[#allocation2 + $0x59] sm:$0x1] %vm191, 0.0
      %214 = vst.msk [vmem:[#allocation2 + $0x71] sm:$0x1] %vm191, 0.0
      %215 = vst.msk [vmem:[#allocation2 + $0x89] sm:$0x1] %vm191, 0.0
      %216 = vst.msk [vmem:[#allocation2 + $0xa1] sm:$0x1] %vm191, 0.0
      %217 = vst.msk [vmem:[#allocation2 + $0xb9] sm:$0x1] %vm191, 0.0
      %218 = vst.msk [vmem:[#allocation2 + $0xd1] sm:$0x1] %vm191, 0.0
      %219 = vst.msk [vmem:[#allocation2 + $0xe9] sm:$0x1] %vm191, 0.0
      %220 = vst.msk [vmem:[#allocation2 + $0x101] sm:$0x1] %vm191, 0.0
      %221 = vst.msk [vmem:[#allocation2 + $0x119] sm:$0x1] %vm191, 0.0
      %222 = vst.msk [vmem:[#allocation2 + $0x131] sm:$0x1] %vm191, 0.0
      %223 = vst.msk [vmem:[#allocation2 + $0x149] sm:$0x1] %vm191, 0.0
      %224 = vst.msk [vmem:[#allocation2 + $0x161] sm:$0x1] %vm191, 0.0
      %225 = vst.msk [vmem:[#allocation2 + $0x179] sm:$0x1] %vm191, 0.0
      %226 = vst.msk [vmem:[#allocation2 + $0x191] sm:$0x1] %vm191, 0.0
      %227 = vst.msk [vmem:[#allocation2 + $0x1a9] sm:$0x1] %vm191, 0.0
      %v228 = vld [vmem:[%s172] sm:$0xff]
      %v229 = vld [vmem:[%s172 + $0x8] sm:$0xff]
      %v230 = vld [vmem:[%s172 + $0x10] sm:$0xff]
      %v231 = vld [vmem:[%s172 + $0x18] sm:$0xff]
      %v232 = vld [vmem:[%s172 + $0x20] sm:$0xff]
      %v233 = vld [vmem:[%s172 + $0x28] sm:$0xff]
      %v234 = vld [vmem:[%s172 + $0x30] sm:$0xff]
      %v235 = vld [vmem:[%s172 + $0x38] sm:$0xff]
      %v236 = vld [vmem:[%s172 + $0x40] sm:$0xff]
      %v237 = vld [vmem:[%s172 + $0x48] sm:$0xff]
      %v238 = vld [vmem:[%s172 + $0x50] sm:$0xff]
      %v239 = vld [vmem:[%s172 + $0x58] sm:$0xff]
      %v240 = vld [vmem:[%s172 + $0x60] sm:$0xff]
      %v241 = vld [vmem:[%s172 + $0x68] sm:$0xff]
      %v242 = vld [vmem:[%s172 + $0x70] sm:$0xff]
      %v243 = vld [vmem:[%s172 + $0x78] sm:$0xff]
      %v244 = vld [vmem:[%s172 + $0x80] sm:$0xff]
      %v245 = vld [vmem:[%s172 + $0x88] sm:$0xff]
      %v246 = vld [vmem:[%s172 + $0x90] sm:$0xff]
      %v247 = vld [vmem:[%s172 + $0x98] sm:$0xff]
      %v248 = vld [vmem:[%s172 + $0xa0] sm:$0xff]
      %v249 = vld [vmem:[%s172 + $0xa8] sm:$0xff]
      %v250 = vld [vmem:[%s172 + $0xb0] sm:$0xff]
      %v251 = vld [vmem:[%s172 + $0xb8] sm:$0xff]
      %v252 = vld [vmem:[%s172 + $0xc0] sm:$0xff]
      %v253 = vld [vmem:[%s172 + $0xc8] sm:$0xff]
      %v254 = vld [vmem:[%s172 + $0xd0] sm:$0xff]
      %v255 = vld [vmem:[%s172 + $0xd8] sm:$0xff]
      %v256 = vld [vmem:[%s172 + $0xe0] sm:$0xff]
      %v257 = vld [vmem:[%s172 + $0xe8] sm:$0xff]
      %v258 = vld [vmem:[%s172 + $0xf0] sm:$0xff]
      %v259 = vld [vmem:[%s172 + $0xf8] sm:$0xff]
      %s260 = scalar_lea.vmem [#allocation2], 24
      %261 = vst.msk [vmem:[%s260 + $0x1] sm:$0xff] %vm182, %v228
      %262 = vst.msk [vmem:[%s260 + $0x9] sm:$0xff] %vm182, %v229
      %263 = vst.msk [vmem:[%s260 + $0x19] sm:$0xff] %vm182, %v230
      %264 = vst.msk [vmem:[%s260 + $0x21] sm:$0xff] %vm182, %v231
      %265 = vst.msk [vmem:[%s260 + $0x31] sm:$0xff] %vm182, %v232
      %266 = vst.msk [vmem:[%s260 + $0x39] sm:$0xff] %vm182, %v233
      %267 = vst.msk [vmem:[%s260 + $0x49] sm:$0xff] %vm182, %v234
      %268 = vst.msk [vmem:[%s260 + $0x51] sm:$0xff] %vm182, %v235
      %269 = vst.msk [vmem:[%s260 + $0x61] sm:$0xff] %vm182, %v236
      %270 = vst.msk [vmem:[%s260 + $0x69] sm:$0xff] %vm182, %v237
      %271 = vst.msk [vmem:[%s260 + $0x79] sm:$0xff] %vm182, %v238
      %272 = vst.msk [vmem:[%s260 + $0x81] sm:$0xff] %vm182, %v239
      %273 = vst.msk [vmem:[%s260 + $0x91] sm:$0xff] %vm182, %v240
      %274 = vst.msk [vmem:[%s260 + $0x99] sm:$0xff] %vm182, %v241
      %275 = vst.msk [vmem:[%s260 + $0xa9] sm:$0xff] %vm182, %v242
      %276 = vst.msk [vmem:[%s260 + $0xb1] sm:$0xff] %vm182, %v243
      %277 = vst.msk [vmem:[%s260 + $0xc1] sm:$0xff] %vm182, %v244
      %278 = vst.msk [vmem:[%s260 + $0xc9] sm:$0xff] %vm182, %v245
      %279 = vst.msk [vmem:[%s260 + $0xd9] sm:$0xff] %vm182, %v246
      %280 = vst.msk [vmem:[%s260 + $0xe1] sm:$0xff] %vm182, %v247
      %281 = vst.msk [vmem:[%s260 + $0xf1] sm:$0xff] %vm182, %v248
      %282 = vst.msk [vmem:[%s260 + $0xf9] sm:$0xff] %vm182, %v249
      %283 = vst.msk [vmem:[%s260 + $0x109] sm:$0xff] %vm182, %v250
      %284 = vst.msk [vmem:[%s260 + $0x111] sm:$0xff] %vm182, %v251
      %285 = vst.msk [vmem:[%s260 + $0x121] sm:$0xff] %vm182, %v252
      %286 = vst.msk [vmem:[%s260 + $0x129] sm:$0xff] %vm182, %v253
      %287 = vst.msk [vmem:[%s260 + $0x139] sm:$0xff] %vm182, %v254
      %288 = vst.msk [vmem:[%s260 + $0x141] sm:$0xff] %vm182, %v255
      %289 = vst.msk [vmem:[%s260 + $0x151] sm:$0xff] %vm182, %v256
      %290 = vst.msk [vmem:[%s260 + $0x159] sm:$0xff] %vm182, %v257
      %291 = vst.msk [vmem:[%s260 + $0x169] sm:$0xff] %vm182, %v258
      %292 = vst.msk [vmem:[%s260 + $0x171] sm:$0xff] %vm182, %v259
      %v293 = vld [vmem:[#allocation2] sm:$0xff]
      %v294 = vld [vmem:[#allocation2 + $0x8] sm:$0xff]
      %v295 = vld [vmem:[#allocation2 + $0x18] sm:$0xff]
      %v296 = vld [vmem:[#allocation2 + $0x20] sm:$0xff]
      %v297 = vld [vmem:[#allocation2 + $0x30] sm:$0xff]
      %v298 = vld [vmem:[#allocation2 + $0x38] sm:$0xff]
      %v299 = vld [vmem:[#allocation2 + $0x48] sm:$0xff]
      %v300 = vld [vmem:[#allocation2 + $0x50] sm:$0xff]
      %v301 = vld [vmem:[#allocation2 + $0x60] sm:$0xff]
      %v302 = vld [vmem:[#allocation2 + $0x68] sm:$0xff]
      %v303 = vld [vmem:[#allocation2 + $0x78] sm:$0xff]
      %v304 = vld [vmem:[#allocation2 + $0x80] sm:$0xff]
      %v305 = vld [vmem:[#allocation2 + $0x90] sm:$0xff]
      %v306 = vld [vmem:[#allocation2 + $0x98] sm:$0xff]
      %v307 = vld [vmem:[#allocation2 + $0xa8] sm:$0xff]
      %v308 = vld [vmem:[#allocation2 + $0xb0] sm:$0xff]
      %v309 = vld [vmem:[#allocation2 + $0xc0] sm:$0xff]
      %v310 = vld [vmem:[#allocation2 + $0xc8] sm:$0xff]
      %v311 = vld [vmem:[#allocation2 + $0xd8] sm:$0xff]
      %v312 = vld [vmem:[#allocation2 + $0xe0] sm:$0xff]
      %v313 = vld [vmem:[#allocation2 + $0xf0] sm:$0xff]
      %v314 = vld [vmem:[#allocation2 + $0xf8] sm:$0xff]
      %v315 = vld [vmem:[#allocation2 + $0x108] sm:$0xff]
      %v316 = vld [vmem:[#allocation2 + $0x110] sm:$0xff]
      %v317 = vld [vmem:[#allocation2 + $0x120] sm:$0xff]
      %v318 = vld [vmem:[#allocation2 + $0x128] sm:$0xff]
      %v319 = vld [vmem:[#allocation2 + $0x138] sm:$0xff]
      %v320 = vld [vmem:[#allocation2 + $0x140] sm:$0xff]
      %v321 = vld [vmem:[#allocation2 + $0x150] sm:$0xff]
      %v322 = vld [vmem:[#allocation2 + $0x158] sm:$0xff]
      %v323 = vld [vmem:[#allocation2 + $0x168] sm:$0xff]
      %v324 = vld [vmem:[#allocation2 + $0x170] sm:$0xff]
      %v325 = vld [vmem:[%s1] sm:$0xf]
      %v326 = vld [vmem:[#allocation2 + $0x1] sm:$0xff]
      %v327 = vld [vmem:[#allocation2 + $0x9] sm:$0xff]
      %v328 = vld [vmem:[#allocation2 + $0x19] sm:$0xff]
      %v329 = vld [vmem:[#allocation2 + $0x21] sm:$0xff]
      %v330 = vld [vmem:[#allocation2 + $0x31] sm:$0xff]
      %v331 = vld [vmem:[#allocation2 + $0x39] sm:$0xff]
      %v332 = vld [vmem:[#allocation2 + $0x49] sm:$0xff]
      %v333 = vld [vmem:[#allocation2 + $0x51] sm:$0xff]
      %v334 = vld [vmem:[#allocation2 + $0x61] sm:$0xff]
      %v335 = vld [vmem:[#allocation2 + $0x69] sm:$0xff]
      %v336 = vld [vmem:[#allocation2 + $0x79] sm:$0xff]
      %v337 = vld [vmem:[#allocation2 + $0x81] sm:$0xff]
      %v338 = vld [vmem:[#allocation2 + $0x91] sm:$0xff]
      %v339 = vld [vmem:[#allocation2 + $0x99] sm:$0xff]
      %v340 = vld [vmem:[#allocation2 + $0xa9] sm:$0xff]
      %v341 = vld [vmem:[#allocation2 + $0xb1] sm:$0xff]
      %v342 = vld [vmem:[#allocation2 + $0xc1] sm:$0xff]
      %v343 = vld [vmem:[#allocation2 + $0xc9] sm:$0xff]
      %v344 = vld [vmem:[#allocation2 + $0xd9] sm:$0xff]
      %v345 = vld [vmem:[#allocation2 + $0xe1] sm:$0xff]
      %v346 = vld [vmem:[#allocation2 + $0xf1] sm:$0xff]
      %v347 = vld [vmem:[#allocation2 + $0xf9] sm:$0xff]
      %v348 = vld [vmem:[#allocation2 + $0x109] sm:$0xff]
      %v349 = vld [vmem:[#allocation2 + $0x111] sm:$0xff]
      %v350 = vld [vmem:[#allocation2 + $0x121] sm:$0xff]
      %v351 = vld [vmem:[#allocation2 + $0x129] sm:$0xff]
      %v352 = vld [vmem:[#allocation2 + $0x139] sm:$0xff]
      %v353 = vld [vmem:[#allocation2 + $0x141] sm:$0xff]
      %v354 = vld [vmem:[#allocation2 + $0x151] sm:$0xff]
      %v355 = vld [vmem:[#allocation2 + $0x159] sm:$0xff]
      %v356 = vld [vmem:[#allocation2 + $0x169] sm:$0xff]
      %v357 = vld [vmem:[#allocation2 + $0x171] sm:$0xff]
      %v358 = vld [vmem:[%s1 + $0x4] sm:$0xf]
      %v360 = vsel %vm182, %v326, 0
      %v363 = vsel %vm182, %v327, 0
      %v366 = vsel %vm182, %v328, 0
      %v369 = vsel %vm182, %v329, 0
      %v372 = vsel %vm182, %v330, 0
      %v375 = vsel %vm182, %v331, 0
      %v378 = vsel %vm182, %v332, 0
      %v381 = vsel %vm182, %v333, 0
      %v384 = vsel %vm182, %v334, 0
      %v387 = vsel %vm182, %v335, 0
      %v390 = vsel %vm182, %v336, 0
      %v393 = vsel %vm182, %v337, 0
      %v396 = vsel %vm182, %v338, 0
      %v399 = vsel %vm182, %v339, 0
      %v402 = vsel %vm182, %v340, 0
      %v405 = vsel %vm182, %v341, 0
      %v408 = vsel %vm182, %v342, 0
      %v411 = vsel %vm182, %v343, 0
      %v414 = vsel %vm182, %v344, 0
      %v417 = vsel %vm182, %v345, 0
      %v420 = vsel %vm182, %v346, 0
      %v423 = vsel %vm182, %v347, 0
      %v426 = vsel %vm182, %v348, 0
      %v429 = vsel %vm182, %v349, 0
      %v432 = vsel %vm182, %v350, 0
      %v435 = vsel %vm182, %v351, 0
      %v438 = vsel %vm182, %v352, 0
      %v441 = vsel %vm182, %v353, 0
      %v444 = vsel %vm182, %v354, 0
      %v447 = vsel %vm182, %v355, 0
      %v450 = vsel %vm182, %v356, 0
      %v453 = vsel %vm182, %v357, 0
      %vm455 = vcmask 1043456
      %v457 = vsel %vm455, %v358, 0
      %459 = vmatprep.subr.mxu0 0.0
      %460 = vmatpush1.msra.mxu0 %v457
      %461 = vmatprep.subr.mxu0 0.0
      %462 = vmatpush1.msra.mxu0 0.0
      %463 = vmatprep.subr.mxu0 0.0
      %464 = vmatpush1.msra.mxu0 0.0
      %465 = vmatprep.subr.mxu0 0.0
      %466 = vmatpush1.msra.mxu0 0.0
      %467 = vmatprep.subr.mxu0 0.0
      %468 = vmatpush1.msra.mxu0 0.0
      %469 = vmatprep.subr.mxu0 0.0
      %470 = vmatpush1.msra.mxu0 0.0
      %471 = vmatprep.subr.mxu0 0.0
      %472 = vmatpush1.msra.mxu0 0.0
      %473 = vmatprep.subr.mxu0 0.0
      %474 = vmatpush1.msra.mxu0 0.0
      %475 = vmatprep.subr.mxu0 0.0
      %476 = vmatpush1.msra.mxu0 0.0
      %477 = vmatprep.subr.mxu0 0.0
      %478 = vmatpush1.msra.mxu0 0.0
      %479 = vmatprep.subr.mxu0 0.0
      %480 = vmatpush1.msra.mxu0 0.0
      %481 = vmatprep.subr.mxu0 0.0
      %482 = vmatpush1.msra.mxu0 0.0
      %483 = vmatprep.subr.mxu0 0.0
      %484 = vmatpush1.msra.mxu0 0.0
      %485 = vmatprep.subr.mxu0 0.0
      %486 = vmatpush1.msra.mxu0 0.0
      %487 = vmatprep.subr.mxu0 0.0
      %488 = vmatpush1.msra.mxu0 0.0
      %489 = vmatprep.subr.mxu0 0.0
      %490 = vmatpush1.msra.mxu0 0.0
      %491 = vmatprep.subr.mxu0 0.0
      %492 = vmatpush1.msra.mxu0 0.0
      %493 = vmatprep.subr.mxu0 0.0
      %494 = vmatpush1.msra.mxu0 0.0
      %495 = vmatprep.subr.mxu0 0.0
      %496 = vmatpush1.msra.mxu0 0.0
      %497 = vmatprep.subr.mxu0 0.0
      %498 = vmatpush1.msra.mxu0 0.0
      %499 = vmatprep.subr.mxu0 0.0
      %500 = vmatpush1.msra.mxu0 0.0
      %501 = vmatprep.subr.mxu0 0.0
      %502 = vmatpush1.msra.mxu0 0.0
      %503 = vmatprep.subr.mxu0 0.0
      %504 = vmatpush1.msra.mxu0 0.0
      %505 = vmatprep.subr.mxu0 0.0
      %506 = vmatpush1.msra.mxu0 0.0
      %507 = vmatprep.subr.mxu0 0.0
      %508 = vmatpush1.msra.mxu0 0.0
      %509 = vmatprep.subr.mxu0 0.0
      %510 = vmatpush1.msra.mxu0 0.0
      %511 = vmatprep.subr.mxu0 0.0
      %512 = vmatpush1.msra.mxu0 0.0
      %513 = vmatprep.subr.mxu0 0.0
      %514 = vmatpush1.msra.mxu0 0.0
      %515 = vmatprep.subr.mxu0 0.0
      %516 = vmatpush1.msra.mxu0 0.0
      %517 = vmatprep.subr.mxu0 0.0
      %518 = vmatpush1.msra.mxu0 0.0
      %519 = vmatprep.subr.mxu0 0.0
      %520 = vmatpush1.msra.mxu0 0.0
      %521 = vmatprep.subr.mxu0 0.0
      %522 = vmatpush1.msra.mxu0 0.0
      %523 = vmatprep.mubr.f32.mxu0 0.0
      %524 = vmatmul.mubr.f32.gmra.mrb[0].mxu0 %v360
      %v525 = vpop.f32.mrb[0].mxu0
      %v526 = vadd.f32 0.0, %v525
      %v527 = vpop.f32.mrb[0].mxu0
      %528 = vmatprep.mubr.f32.mxu0 0.0
      %529 = vmatmul.mubr.f32.gmra.mrb[0].mxu0 %v363
      %v530 = vpop.f32.mrb[0].mxu0
      %v531 = vadd.f32 0.0, %v530
      %v532 = vpop.f32.mrb[0].mxu0
      %533 = vmatprep.mubr.f32.mxu0 0.0
      %534 = vmatmul.mubr.f32.gmra.mrb[0].mxu0 %v366
      %v535 = vpop.f32.mrb[0].mxu0
      %v536 = vadd.f32 0.0, %v535
      %v537 = vpop.f32.mrb[0].mxu0
      %538 = vmatprep.mubr.f32.mxu0 0.0
      %539 = vmatmul.mubr.f32.gmra.mrb[0].mxu0 %v369
      %v540 = vpop.f32.mrb[0].mxu0
      %v541 = vadd.f32 0.0, %v540
      %v542 = vpop.f32.mrb[0].mxu0
      %543 = vmatprep.mubr.f32.mxu0 0.0
      %544 = vmatmul.mubr.f32.gmra.mrb[0].mxu0 %v372
      %v545 = vpop.f32.mrb[0].mxu0
      %v546 = vadd.f32 0.0, %v545
      %v547 = vpop.f32.mrb[0].mxu0
      %548 = vmatprep.mubr.f32.mxu0 0.0
      %549 = vmatmul.mubr.f32.gmra.mrb[0].mxu0 %v375
      %v550 = vpop.f32.mrb[0].mxu0
      %v551 = vadd.f32 0.0, %v550
      %v552 = vpop.f32.mrb[0].mxu0
      %553 = vmatprep.mubr.f32.mxu0 0.0
      %554 = vmatmul.mubr.f32.gmra.mrb[0].mxu0 %v378
      %v555 = vpop.f32.mrb[0].mxu0
      %v556 = vadd.f32 0.0, %v555
      %v557 = vpop.f32.mrb[0].mxu0
      %558 = vmatprep.mubr.f32.mxu0 0.0
      %559 = vmatmul.mubr.f32.gmra.mrb[0].mxu0 %v381
      %v560 = vpop.f32.mrb[0].mxu0
      %v561 = vadd.f32 0.0, %v560
      %v562 = vpop.f32.mrb[0].mxu0
      %563 = vmatprep.mubr.f32.mxu0 0.0
      %564 = vmatmul.mubr.f32.gmra.mrb[0].mxu0 %v384
      %v565 = vpop.f32.mrb[0].mxu0
      %v566 = vadd.f32 0.0, %v565
      %v567 = vpop.f32.mrb[0].mxu0
      %568 = vmatprep.mubr.f32.mxu0 0.0
      %569 = vmatmul.mubr.f32.gmra.mrb[0].mxu0 %v387
      %v570 = vpop.f32.mrb[0].mxu0
      %v571 = vadd.f32 0.0, %v570
      %v572 = vpop.f32.mrb[0].mxu0
      %573 = vmatprep.mubr.f32.mxu0 0.0
      %574 = vmatmul.mubr.f32.gmra.mrb[0].mxu0 %v390
      %v575 = vpop.f32.mrb[0].mxu0
      %v576 = vadd.f32 0.0, %v575
      %v577 = vpop.f32.mrb[0].mxu0
      %578 = vmatprep.mubr.f32.mxu0 0.0
      %579 = vmatmul.mubr.f32.gmra.mrb[0].mxu0 %v393
      %v580 = vpop.f32.mrb[0].mxu0
      %v581 = vadd.f32 0.0, %v580
      %v582 = vpop.f32.mrb[0].mxu0
      %583 = vmatprep.mubr.f32.mxu0 0.0
      %584 = vmatmul.mubr.f32.gmra.mrb[0].mxu0 %v396
      %v585 = vpop.f32.mrb[0].mxu0
      %v586 = vadd.f32 0.0, %v585
      %v587 = vpop.f32.mrb[0].mxu0
      %588 = vmatprep.mubr.f32.mxu0 0.0
      %589 = vmatmul.mubr.f32.gmra.mrb[0].mxu0 %v399
      %v590 = vpop.f32.mrb[0].mxu0
      %v591 = vadd.f32 0.0, %v590
      %v592 = vpop.f32.mrb[0].mxu0
      %593 = vmatprep.mubr.f32.mxu0 0.0
      %594 = vmatmul.mubr.f32.gmra.mrb[0].mxu0 %v402
      %v595 = vpop.f32.mrb[0].mxu0
      %v596 = vadd.f32 0.0, %v595
      %v597 = vpop.f32.mrb[0].mxu0
      %598 = vmatprep.mubr.f32.mxu0 0.0
      %599 = vmatmul.mubr.f32.gmra.mrb[0].mxu0 %v405
      %v600 = vpop.f32.mrb[0].mxu0
      %v601 = vadd.f32 0.0, %v600
      %v602 = vpop.f32.mrb[0].mxu0
      %603 = vmatprep.mubr.f32.mxu0 0.0
      %604 = vmatmul.mubr.f32.gmra.mrb[0].mxu0 %v408
      %v605 = vpop.f32.mrb[0].mxu0
      %v606 = vadd.f32 0.0, %v605
      %v607 = vpop.f32.mrb[0].mxu0
      %608 = vmatprep.mubr.f32.mxu0 0.0
      %609 = vmatmul.mubr.f32.gmra.mrb[0].mxu0 %v411
      %v610 = vpop.f32.mrb[0].mxu0
      %v611 = vadd.f32 0.0, %v610
      %v612 = vpop.f32.mrb[0].mxu0
      %613 = vmatprep.mubr.f32.mxu0 0.0
      %614 = vmatmul.mubr.f32.gmra.mrb[0].mxu0 %v414
      %v615 = vpop.f32.mrb[0].mxu0
      %v616 = vadd.f32 0.0, %v615
      %v617 = vpop.f32.mrb[0].mxu0
      %618 = vmatprep.mubr.f32.mxu0 0.0
      %619 = vmatmul.mubr.f32.gmra.mrb[0].mxu0 %v417
      %v620 = vpop.f32.mrb[0].mxu0
      %v621 = vadd.f32 0.0, %v620
      %v622 = vpop.f32.mrb[0].mxu0
      %623 = vmatprep.mubr.f32.mxu0 0.0
      %624 = vmatmul.mubr.f32.gmra.mrb[0].mxu0 %v420
      %v625 = vpop.f32.mrb[0].mxu0
      %v626 = vadd.f32 0.0, %v625
      %v627 = vpop.f32.mrb[0].mxu0
      %628 = vmatprep.mubr.f32.mxu0 0.0
      %629 = vmatmul.mubr.f32.gmra.mrb[0].mxu0 %v423
      %v630 = vpop.f32.mrb[0].mxu0
      %v631 = vadd.f32 0.0, %v630
      %v632 = vpop.f32.mrb[0].mxu0
      %633 = vmatprep.mubr.f32.mxu0 0.0
      %634 = vmatmul.mubr.f32.gmra.mrb[0].mxu0 %v426
      %v635 = vpop.f32.mrb[0].mxu0
      %v636 = vadd.f32 0.0, %v635
      %v637 = vpop.f32.mrb[0].mxu0
      %638 = vmatprep.mubr.f32.mxu0 0.0
      %639 = vmatmul.mubr.f32.gmra.mrb[0].mxu0 %v429
      %v640 = vpop.f32.mrb[0].mxu0
      %v641 = vadd.f32 0.0, %v640
      %v642 = vpop.f32.mrb[0].mxu0
      %643 = vmatprep.mubr.f32.mxu0 0.0
      %644 = vmatmul.mubr.f32.gmra.mrb[0].mxu0 %v432
      %v645 = vpop.f32.mrb[0].mxu0
      %v646 = vadd.f32 0.0, %v645
      %v647 = vpop.f32.mrb[0].mxu0
      %648 = vmatprep.mubr.f32.mxu0 0.0
      %649 = vmatmul.mubr.f32.gmra.mrb[0].mxu0 %v435
      %v650 = vpop.f32.mrb[0].mxu0
      %v651 = vadd.f32 0.0, %v650
      %v652 = vpop.f32.mrb[0].mxu0
      %653 = vmatprep.mubr.f32.mxu0 0.0
      %654 = vmatmul.mubr.f32.gmra.mrb[0].mxu0 %v438
      %v655 = vpop.f32.mrb[0].mxu0
      %v656 = vadd.f32 0.0, %v655
      %v657 = vpop.f32.mrb[0].mxu0
      %658 = vmatprep.mubr.f32.mxu0 0.0
      %659 = vmatmul.mubr.f32.gmra.mrb[0].mxu0 %v441
      %v660 = vpop.f32.mrb[0].mxu0
      %v661 = vadd.f32 0.0, %v660
      %v662 = vpop.f32.mrb[0].mxu0
      %663 = vmatprep.mubr.f32.mxu0 0.0
      %664 = vmatmul.mubr.f32.gmra.mrb[0].mxu0 %v444
      %v665 = vpop.f32.mrb[0].mxu0
      %v666 = vadd.f32 0.0, %v665
      %v667 = vpop.f32.mrb[0].mxu0
      %668 = vmatprep.mubr.f32.mxu0 0.0
      %669 = vmatmul.mubr.f32.gmra.mrb[0].mxu0 %v447
      %v670 = vpop.f32.mrb[0].mxu0
      %v671 = vadd.f32 0.0, %v670
      %v672 = vpop.f32.mrb[0].mxu0
      %673 = vmatprep.mubr.f32.mxu0 0.0
      %674 = vmatmul.mubr.f32.gmra.mrb[0].mxu0 %v450
      %v675 = vpop.f32.mrb[0].mxu0
      %v676 = vadd.f32 0.0, %v675
      %v677 = vpop.f32.mrb[0].mxu0
      %678 = vmatprep.mubr.f32.mxu0 0.0
      %679 = vmatmul.mubr.f32.gmra.mrb[0].mxu0 %v453
      %v680 = vpop.f32.mrb[0].mxu0
      %v681 = vadd.f32 0.0, %v680
      %v682 = vpop.f32.mrb[0].mxu0
      %683 = vdwg.mxu0
      %v685 = vsel %vm182, %v293, 0
      %v688 = vsel %vm182, %v294, 0
      %v691 = vsel %vm182, %v295, 0
      %v694 = vsel %vm182, %v296, 0
      %v697 = vsel %vm182, %v297, 0
      %v700 = vsel %vm182, %v298, 0
      %v703 = vsel %vm182, %v299, 0
      %v706 = vsel %vm182, %v300, 0
      %v709 = vsel %vm182, %v301, 0
      %v712 = vsel %vm182, %v302, 0
      %v715 = vsel %vm182, %v303, 0
      %v718 = vsel %vm182, %v304, 0
      %v721 = vsel %vm182, %v305, 0
      %v724 = vsel %vm182, %v306, 0
      %v727 = vsel %vm182, %v307, 0
      %v730 = vsel %vm182, %v308, 0
      %v733 = vsel %vm182, %v309, 0
      %v736 = vsel %vm182, %v310, 0
      %v739 = vsel %vm182, %v311, 0
      %v742 = vsel %vm182, %v312, 0
      %v745 = vsel %vm182, %v313, 0
      %v748 = vsel %vm182, %v314, 0
      %v751 = vsel %vm182, %v315, 0
      %v754 = vsel %vm182, %v316, 0
      %v757 = vsel %vm182, %v317, 0
      %v760 = vsel %vm182, %v318, 0
      %v763 = vsel %vm182, %v319, 0
      %v766 = vsel %vm182, %v320, 0
      %v769 = vsel %vm182, %v321, 0
      %v772 = vsel %vm182, %v322, 0
      %v775 = vsel %vm182, %v323, 0
      %v778 = vsel %vm182, %v324, 0
      %v781 = vsel %vm455, %v325, 0
      %783 = vmatprep.subr.mxu0 0.0
      %784 = vmatpush1.msra.mxu0 %v781
      %785 = vmatprep.subr.mxu0 0.0
      %786 = vmatpush1.msra.mxu0 0.0
      %787 = vmatprep.subr.mxu0 0.0
      %788 = vmatpush1.msra.mxu0 0.0
      %789 = vmatprep.subr.mxu0 0.0
      %790 = vmatpush1.msra.mxu0 0.0
      %791 = vmatprep.subr.mxu0 0.0
      %792 = vmatpush1.msra.mxu0 0.0
      %793 = vmatprep.subr.mxu0 0.0
      %794 = vmatpush1.msra.mxu0 0.0
      %795 = vmatprep.subr.mxu0 0.0
      %796 = vmatpush1.msra.mxu0 0.0
      %797 = vmatprep.subr.mxu0 0.0
      %798 = vmatpush1.msra.mxu0 0.0
      %799 = vmatprep.subr.mxu0 0.0
      %800 = vmatpush1.msra.mxu0 0.0
      %801 = vmatprep.subr.mxu0 0.0
      %802 = vmatpush1.msra.mxu0 0.0
      %803 = vmatprep.subr.mxu0 0.0
      %804 = vmatpush1.msra.mxu0 0.0
      %805 = vmatprep.subr.mxu0 0.0
      %806 = vmatpush1.msra.mxu0 0.0
      %807 = vmatprep.subr.mxu0 0.0
      %808 = vmatpush1.msra.mxu0 0.0
      %809 = vmatprep.subr.mxu0 0.0
      %810 = vmatpush1.msra.mxu0 0.0
      %811 = vmatprep.subr.mxu0 0.0
      %812 = vmatpush1.msra.mxu0 0.0
      %813 = vmatprep.subr.mxu0 0.0
      %814 = vmatpush1.msra.mxu0 0.0
      %815 = vmatprep.subr.mxu0 0.0
      %816 = vmatpush1.msra.mxu0 0.0
      %817 = vmatprep.subr.mxu0 0.0
      %818 = vmatpush1.msra.mxu0 0.0
      %819 = vmatprep.subr.mxu0 0.0
      %820 = vmatpush1.msra.mxu0 0.0
      %821 = vmatprep.subr.mxu0 0.0
      %822 = vmatpush1.msra.mxu0 0.0
      %823 = vmatprep.subr.mxu0 0.0
      %824 = vmatpush1.msra.mxu0 0.0
      %825 = vmatprep.subr.mxu0 0.0
      %826 = vmatpush1.msra.mxu0 0.0
      %827 = vmatprep.subr.mxu0 0.0
      %828 = vmatpush1.msra.mxu0 0.0
      %829 = vmatprep.subr.mxu0 0.0
      %830 = vmatpush1.msra.mxu0 0.0
      %831 = vmatprep.subr.mxu0 0.0
      %832 = vmatpush1.msra.mxu0 0.0
      %833 = vmatprep.subr.mxu0 0.0
      %834 = vmatpush1.msra.mxu0 0.0
      %835 = vmatprep.subr.mxu0 0.0
      %836 = vmatpush1.msra.mxu0 0.0
      %837 = vmatprep.subr.mxu0 0.0
      %838 = vmatpush1.msra.mxu0 0.0
      %839 = vmatprep.subr.mxu0 0.0
      %840 = vmatpush1.msra.mxu0 0.0
      %841 = vmatprep.subr.mxu0 0.0
      %842 = vmatpush1.msra.mxu0 0.0
      %843 = vmatprep.subr.mxu0 0.0
      %844 = vmatpush1.msra.mxu0 0.0
      %845 = vmatprep.subr.mxu0 0.0
      %846 = vmatpush1.msra.mxu0 0.0
      %847 = vmatprep.mubr.f32.mxu0 0.0
      %848 = vmatmul.mubr.f32.gmra.mrb[0].mxu0 %v685
      %v849 = vpop.f32.mrb[0].mxu0
      %v850 = vadd.f32 %v526, %v849
      %v851 = vpop.f32.mrb[0].mxu0
      %852 = vmatprep.mubr.f32.mxu0 0.0
      %853 = vmatmul.mubr.f32.gmra.mrb[0].mxu0 %v688
      %v854 = vpop.f32.mrb[0].mxu0
      %v855 = vadd.f32 %v531, %v854
      %v856 = vpop.f32.mrb[0].mxu0
      %857 = vmatprep.mubr.f32.mxu0 0.0
      %858 = vmatmul.mubr.f32.gmra.mrb[0].mxu0 %v691
      %v859 = vpop.f32.mrb[0].mxu0
      %v860 = vadd.f32 %v536, %v859
      %v861 = vpop.f32.mrb[0].mxu0
      %862 = vmatprep.mubr.f32.mxu0 0.0
      %863 = vmatmul.mubr.f32.gmra.mrb[0].mxu0 %v694
      %v864 = vpop.f32.mrb[0].mxu0
      %v865 = vadd.f32 %v541, %v864
      %v866 = vpop.f32.mrb[0].mxu0
      %867 = vmatprep.mubr.f32.mxu0 0.0
      %868 = vmatmul.mubr.f32.gmra.mrb[0].mxu0 %v697
      %v869 = vpop.f32.mrb[0].mxu0
      %v870 = vadd.f32 %v546, %v869
      %v871 = vpop.f32.mrb[0].mxu0
      %872 = vmatprep.mubr.f32.mxu0 0.0
      %873 = vmatmul.mubr.f32.gmra.mrb[0].mxu0 %v700
      %v874 = vpop.f32.mrb[0].mxu0
      %v875 = vadd.f32 %v551, %v874
      %v876 = vpop.f32.mrb[0].mxu0
      %877 = vmatprep.mubr.f32.mxu0 0.0
      %878 = vmatmul.mubr.f32.gmra.mrb[0].mxu0 %v703
      %v879 = vpop.f32.mrb[0].mxu0
      %v880 = vadd.f32 %v556, %v879
      %v881 = vpop.f32.mrb[0].mxu0
      %882 = vmatprep.mubr.f32.mxu0 0.0
      %883 = vmatmul.mubr.f32.gmra.mrb[0].mxu0 %v706
      %v884 = vpop.f32.mrb[0].mxu0
      %v885 = vadd.f32 %v561, %v884
      %v886 = vpop.f32.mrb[0].mxu0
      %887 = vmatprep.mubr.f32.mxu0 0.0
      %888 = vmatmul.mubr.f32.gmra.mrb[0].mxu0 %v709
      %v889 = vpop.f32.mrb[0].mxu0
      %v890 = vadd.f32 %v566, %v889
      %v891 = vpop.f32.mrb[0].mxu0
      %892 = vmatprep.mubr.f32.mxu0 0.0
      %893 = vmatmul.mubr.f32.gmra.mrb[0].mxu0 %v712
      %v894 = vpop.f32.mrb[0].mxu0
      %v895 = vadd.f32 %v571, %v894
      %v896 = vpop.f32.mrb[0].mxu0
      %897 = vmatprep.mubr.f32.mxu0 0.0
      %898 = vmatmul.mubr.f32.gmra.mrb[0].mxu0 %v715
      %v899 = vpop.f32.mrb[0].mxu0
      %v900 = vadd.f32 %v576, %v899
      %v901 = vpop.f32.mrb[0].mxu0
      %902 = vmatprep.mubr.f32.mxu0 0.0
      %903 = vmatmul.mubr.f32.gmra.mrb[0].mxu0 %v718
      %v904 = vpop.f32.mrb[0].mxu0
      %v905 = vadd.f32 %v581, %v904
      %v906 = vpop.f32.mrb[0].mxu0
      %907 = vmatprep.mubr.f32.mxu0 0.0
      %908 = vmatmul.mubr.f32.gmra.mrb[0].mxu0 %v721
      %v909 = vpop.f32.mrb[0].mxu0
      %v910 = vadd.f32 %v586, %v909
      %v911 = vpop.f32.mrb[0].mxu0
      %912 = vmatprep.mubr.f32.mxu0 0.0
      %913 = vmatmul.mubr.f32.gmra.mrb[0].mxu0 %v724
      %v914 = vpop.f32.mrb[0].mxu0
      %v915 = vadd.f32 %v591, %v914
      %v916 = vpop.f32.mrb[0].mxu0
      %917 = vmatprep.mubr.f32.mxu0 0.0
      %918 = vmatmul.mubr.f32.gmra.mrb[0].mxu0 %v727
      %v919 = vpop.f32.mrb[0].mxu0
      %v920 = vadd.f32 %v596, %v919
      %v921 = vpop.f32.mrb[0].mxu0
      %922 = vmatprep.mubr.f32.mxu0 0.0
      %923 = vmatmul.mubr.f32.gmra.mrb[0].mxu0 %v730
      %v924 = vpop.f32.mrb[0].mxu0
      %v925 = vadd.f32 %v601, %v924
      %v926 = vpop.f32.mrb[0].mxu0
      %927 = vmatprep.mubr.f32.mxu0 0.0
      %928 = vmatmul.mubr.f32.gmra.mrb[0].mxu0 %v733
      %v929 = vpop.f32.mrb[0].mxu0
      %v930 = vadd.f32 %v606, %v929
      %v931 = vpop.f32.mrb[0].mxu0
      %932 = vmatprep.mubr.f32.mxu0 0.0
      %933 = vmatmul.mubr.f32.gmra.mrb[0].mxu0 %v736
      %v934 = vpop.f32.mrb[0].mxu0
      %v935 = vadd.f32 %v611, %v934
      %v936 = vpop.f32.mrb[0].mxu0
      %937 = vmatprep.mubr.f32.mxu0 0.0
      %938 = vmatmul.mubr.f32.gmra.mrb[0].mxu0 %v739
      %v939 = vpop.f32.mrb[0].mxu0
      %v940 = vadd.f32 %v616, %v939
      %v941 = vpop.f32.mrb[0].mxu0
      %942 = vmatprep.mubr.f32.mxu0 0.0
      %943 = vmatmul.mubr.f32.gmra.mrb[0].mxu0 %v742
      %v944 = vpop.f32.mrb[0].mxu0
      %v945 = vadd.f32 %v621, %v944
      %v946 = vpop.f32.mrb[0].mxu0
      %947 = vmatprep.mubr.f32.mxu0 0.0
      %948 = vmatmul.mubr.f32.gmra.mrb[0].mxu0 %v745
      %v949 = vpop.f32.mrb[0].mxu0
      %v950 = vadd.f32 %v626, %v949
      %v951 = vpop.f32.mrb[0].mxu0
      %952 = vmatprep.mubr.f32.mxu0 0.0
      %953 = vmatmul.mubr.f32.gmra.mrb[0].mxu0 %v748
      %v954 = vpop.f32.mrb[0].mxu0
      %v955 = vadd.f32 %v631, %v954
      %v956 = vpop.f32.mrb[0].mxu0
      %957 = vmatprep.mubr.f32.mxu0 0.0
      %958 = vmatmul.mubr.f32.gmra.mrb[0].mxu0 %v751
      %v959 = vpop.f32.mrb[0].mxu0
      %v960 = vadd.f32 %v636, %v959
      %v961 = vpop.f32.mrb[0].mxu0
      %962 = vmatprep.mubr.f32.mxu0 0.0
      %963 = vmatmul.mubr.f32.gmra.mrb[0].mxu0 %v754
      %v964 = vpop.f32.mrb[0].mxu0
      %v965 = vadd.f32 %v641, %v964
      %v966 = vpop.f32.mrb[0].mxu0
      %967 = vmatprep.mubr.f32.mxu0 0.0
      %968 = vmatmul.mubr.f32.gmra.mrb[0].mxu0 %v757
      %v969 = vpop.f32.mrb[0].mxu0
      %v970 = vadd.f32 %v646, %v969
      %v971 = vpop.f32.mrb[0].mxu0
      %972 = vmatprep.mubr.f32.mxu0 0.0
      %973 = vmatmul.mubr.f32.gmra.mrb[0].mxu0 %v760
      %v974 = vpop.f32.mrb[0].mxu0
      %v975 = vadd.f32 %v651, %v974
      %v976 = vpop.f32.mrb[0].mxu0
      %977 = vmatprep.mubr.f32.mxu0 0.0
      %978 = vmatmul.mubr.f32.gmra.mrb[0].mxu0 %v763
      %v979 = vpop.f32.mrb[0].mxu0
      %v980 = vadd.f32 %v656, %v979
      %v981 = vpop.f32.mrb[0].mxu0
      %982 = vmatprep.mubr.f32.mxu0 0.0
      %983 = vmatmul.mubr.f32.gmra.mrb[0].mxu0 %v766
      %v984 = vpop.f32.mrb[0].mxu0
      %v985 = vadd.f32 %v661, %v984
      %v986 = vpop.f32.mrb[0].mxu0
      %987 = vmatprep.mubr.f32.mxu0 0.0
      %988 = vmatmul.mubr.f32.gmra.mrb[0].mxu0 %v769
      %v989 = vpop.f32.mrb[0].mxu0
      %v990 = vadd.f32 %v666, %v989
      %v991 = vpop.f32.mrb[0].mxu0
      %992 = vmatprep.mubr.f32.mxu0 0.0
      %993 = vmatmul.mubr.f32.gmra.mrb[0].mxu0 %v772
      %v994 = vpop.f32.mrb[0].mxu0
      %v995 = vadd.f32 %v671, %v994
      %v996 = vpop.f32.mrb[0].mxu0
      %997 = vmatprep.mubr.f32.mxu0 0.0
      %998 = vmatmul.mubr.f32.gmra.mrb[0].mxu0 %v775
      %v999 = vpop.f32.mrb[0].mxu0
      %v1000 = vadd.f32 %v676, %v999
      %v1001 = vpop.f32.mrb[0].mxu0
      %1002 = vmatprep.mubr.f32.mxu0 0.0
      %1003 = vmatmul.mubr.f32.gmra.mrb[0].mxu0 %v778
      %v1004 = vpop.f32.mrb[0].mxu0
      %v1005 = vadd.f32 %v681, %v1004
      %v1006 = vpop.f32.mrb[0].mxu0
      %1007 = vdwg.mxu0
      %v1008 = vld [vmem:[#allocation2 + $0x2] sm:$0xff]
      %v1009 = vld [vmem:[#allocation2 + $0xa] sm:$0xff]
      %v1010 = vld [vmem:[#allocation2 + $0x1a] sm:$0xff]
      %v1011 = vld [vmem:[#allocation2 + $0x22] sm:$0xff]
      %v1012 = vld [vmem:[#allocation2 + $0x32] sm:$0xff]
      %v1013 = vld [vmem:[#allocation2 + $0x3a] sm:$0xff]
      %v1014 = vld [vmem:[#allocation2 + $0x4a] sm:$0xff]
      %v1015 = vld [vmem:[#allocation2 + $0x52] sm:$0xff]
      %v1016 = vld [vmem:[#allocation2 + $0x62] sm:$0xff]
      %v1017 = vld [vmem:[#allocation2 + $0x6a] sm:$0xff]
      %v1018 = vld [vmem:[#allocation2 + $0x7a] sm:$0xff]
      %v1019 = vld [vmem:[#allocation2 + $0x82] sm:$0xff]
      %v1020 = vld [vmem:[#allocation2 + $0x92] sm:$0xff]
      %v1021 = vld [vmem:[#allocation2 + $0x9a] sm:$0xff]
      %v1022 = vld [vmem:[#allocation2 + $0xaa] sm:$0xff]
      %v1023 = vld [vmem:[#allocation2 + $0xb2] sm:$0xff]
      %v1024 = vld [vmem:[#allocation2 + $0xc2] sm:$0xff]
      %v1025 = vld [vmem:[#allocation2 + $0xca] sm:$0xff]
      %v1026 = vld [vmem:[#allocation2 + $0xda] sm:$0xff]
      %v1027 = vld [vmem:[#allocation2 + $0xe2] sm:$0xff]
      %v1028 = vld [vmem:[#allocation2 + $0xf2] sm:$0xff]
      %v1029 = vld [vmem:[#allocation2 + $0xfa] sm:$0xff]
      %v1030 = vld [vmem:[#allocation2 + $0x10a] sm:$0xff]
      %v1031 = vld [vmem:[#allocation2 + $0x112] sm:$0xff]
      %v1032 = vld [vmem:[#allocation2 + $0x122] sm:$0xff]
      %v1033 = vld [vmem:[#allocation2 + $0x12a] sm:$0xff]
      %v1034 = vld [vmem:[#allocation2 + $0x13a] sm:$0xff]
      %v1035 = vld [vmem:[#allocation2 + $0x142] sm:$0xff]
      %v1036 = vld [vmem:[#allocation2 + $0x152] sm:$0xff]
      %v1037 = vld [vmem:[#allocation2 + $0x15a] sm:$0xff]
      %v1038 = vld [vmem:[#allocation2 + $0x16a] sm:$0xff]
      %v1039 = vld [vmem:[#allocation2 + $0x172] sm:$0xff]
      %v1040 = vld [vmem:[%s1 + $0x8] sm:$0xf]
      %v1042 = vsel %vm182, %v1008, 0
      %v1045 = vsel %vm182, %v1009, 0
      %v1048 = vsel %vm182, %v1010, 0
      %v1051 = vsel %vm182, %v1011, 0
      %v1054 = vsel %vm182, %v1012, 0
      %v1057 = vsel %vm182, %v1013, 0
      %v1060 = vsel %vm182, %v1014, 0
      %v1063 = vsel %vm182, %v1015, 0
      %v1066 = vsel %vm182, %v1016, 0
      %v1069 = vsel %vm182, %v1017, 0
      %v1072 = vsel %vm182, %v1018, 0
      %v1075 = vsel %vm182, %v1019, 0
      %v1078 = vsel %vm182, %v1020, 0
      %v1081 = vsel %vm182, %v1021, 0
      %v1084 = vsel %vm182, %v1022, 0
      %v1087 = vsel %vm182, %v1023, 0
      %v1090 = vsel %vm182, %v1024, 0
      %v1093 = vsel %vm182, %v1025, 0
      %v1096 = vsel %vm182, %v1026, 0
      %v1099 = vsel %vm182, %v1027, 0
      %v1102 = vsel %vm182, %v1028, 0
      %v1105 = vsel %vm182, %v1029, 0
      %v1108 = vsel %vm182, %v1030, 0
      %v1111 = vsel %vm182, %v1031, 0
      %v1114 = vsel %vm182, %v1032, 0
      %v1117 = vsel %vm182, %v1033, 0
      %v1120 = vsel %vm182, %v1034, 0
      %v1123 = vsel %vm182, %v1035, 0
      %v1126 = vsel %vm182, %v1036, 0
      %v1129 = vsel %vm182, %v1037, 0
      %v1132 = vsel %vm182, %v1038, 0
      %v1135 = vsel %vm182, %v1039, 0
      %v1138 = vsel %vm455, %v1040, 0
      %1140 = vmatprep.subr.mxu0 0.0
      %1141 = vmatpush1.msra.mxu0 %v1138
      %1142 = vmatprep.subr.mxu0 0.0
      %1143 = vmatpush1.msra.mxu0 0.0
      %1144 = vmatprep.subr.mxu0 0.0
      %1145 = vmatpush1.msra.mxu0 0.0
      %1146 = vmatprep.subr.mxu0 0.0
      %1147 = vmatpush1.msra.mxu0 0.0
      %1148 = vmatprep.subr.mxu0 0.0
      %1149 = vmatpush1.msra.mxu0 0.0
      %1150 = vmatprep.subr.mxu0 0.0
      %1151 = vmatpush1.msra.mxu0 0.0
      %1152 = vmatprep.subr.mxu0 0.0
      %1153 = vmatpush1.msra.mxu0 0.0
      %1154 = vmatprep.subr.mxu0 0.0
      %1155 = vmatpush1.msra.mxu0 0.0
      %1156 = vmatprep.subr.mxu0 0.0
      %1157 = vmatpush1.msra.mxu0 0.0
      %1158 = vmatprep.subr.mxu0 0.0
      %1159 = vmatpush1.msra.mxu0 0.0
      %1160 = vmatprep.subr.mxu0 0.0
      %1161 = vmatpush1.msra.mxu0 0.0
      %1162 = vmatprep.subr.mxu0 0.0
      %1163 = vmatpush1.msra.mxu0 0.0
      %1164 = vmatprep.subr.mxu0 0.0
      %1165 = vmatpush1.msra.mxu0 0.0
      %1166 = vmatprep.subr.mxu0 0.0
      %1167 = vmatpush1.msra.mxu0 0.0
      %1168 = vmatprep.subr.mxu0 0.0
      %1169 = vmatpush1.msra.mxu0 0.0
      %1170 = vmatprep.subr.mxu0 0.0
      %1171 = vmatpush1.msra.mxu0 0.0
      %1172 = vmatprep.subr.mxu0 0.0
      %1173 = vmatpush1.msra.mxu0 0.0
      %1174 = vmatprep.subr.mxu0 0.0
      %1175 = vmatpush1.msra.mxu0 0.0
      %1176 = vmatprep.subr.mxu0 0.0
      %1177 = vmatpush1.msra.mxu0 0.0
      %1178 = vmatprep.subr.mxu0 0.0
      %1179 = vmatpush1.msra.mxu0 0.0
      %1180 = vmatprep.subr.mxu0 0.0
      %1181 = vmatpush1.msra.mxu0 0.0
      %1182 = vmatprep.subr.mxu0 0.0
      %1183 = vmatpush1.msra.mxu0 0.0
      %1184 = vmatprep.subr.mxu0 0.0
      %1185 = vmatpush1.msra.mxu0 0.0
      %1186 = vmatprep.subr.mxu0 0.0
      %1187 = vmatpush1.msra.mxu0 0.0
      %1188 = vmatprep.subr.mxu0 0.0
      %1189 = vmatpush1.msra.mxu0 0.0
      %1190 = vmatprep.subr.mxu0 0.0
      %1191 = vmatpush1.msra.mxu0 0.0
      %1192 = vmatprep.subr.mxu0 0.0
      %1193 = vmatpush1.msra.mxu0 0.0
      %1194 = vmatprep.subr.mxu0 0.0
      %1195 = vmatpush1.msra.mxu0 0.0
      %1196 = vmatprep.subr.mxu0 0.0
      %1197 = vmatpush1.msra.mxu0 0.0
      %1198 = vmatprep.subr.mxu0 0.0
      %1199 = vmatpush1.msra.mxu0 0.0
      %1200 = vmatprep.subr.mxu0 0.0
      %1201 = vmatpush1.msra.mxu0 0.0
      %1202 = vmatprep.subr.mxu0 0.0
      %1203 = vmatpush1.msra.mxu0 0.0
      %1204 = vmatprep.mubr.f32.mxu0 0.0
      %1205 = vmatmul.mubr.f32.gmra.mrb[0].mxu0 %v1042
      %v1206 = vpop.f32.mrb[0].mxu0
      %v1207 = vadd.f32 0.0, %v1206
      %v1208 = vpop.f32.mrb[0].mxu0
      %1209 = vmatprep.mubr.f32.mxu0 0.0
      %1210 = vmatmul.mubr.f32.gmra.mrb[0].mxu0 %v1045
      %v1211 = vpop.f32.mrb[0].mxu0
      %v1212 = vadd.f32 0.0, %v1211
      %v1213 = vpop.f32.mrb[0].mxu0
      %1214 = vmatprep.mubr.f32.mxu0 0.0
      %1215 = vmatmul.mubr.f32.gmra.mrb[0].mxu0 %v1048
      %v1216 = vpop.f32.mrb[0].mxu0
      %v1217 = vadd.f32 0.0, %v1216
      %v1218 = vpop.f32.mrb[0].mxu0
      %1219 = vmatprep.mubr.f32.mxu0 0.0
      %1220 = vmatmul.mubr.f32.gmra.mrb[0].mxu0 %v1051
      %v1221 = vpop.f32.mrb[0].mxu0
      %v1222 = vadd.f32 0.0, %v1221
      %v1223 = vpop.f32.mrb[0].mxu0
      %1224 = vmatprep.mubr.f32.mxu0 0.0
      %1225 = vmatmul.mubr.f32.gmra.mrb[0].mxu0 %v1054
      %v1226 = vpop.f32.mrb[0].mxu0
      %v1227 = vadd.f32 0.0, %v1226
      %v1228 = vpop.f32.mrb[0].mxu0
      %1229 = vmatprep.mubr.f32.mxu0 0.0
      %1230 = vmatmul.mubr.f32.gmra.mrb[0].mxu0 %v1057
      %v1231 = vpop.f32.mrb[0].mxu0
      %v1232 = vadd.f32 0.0, %v1231
      %v1233 = vpop.f32.mrb[0].mxu0
      %1234 = vmatprep.mubr.f32.mxu0 0.0
      %1235 = vmatmul.mubr.f32.gmra.mrb[0].mxu0 %v1060
      %v1236 = vpop.f32.mrb[0].mxu0
      %v1237 = vadd.f32 0.0, %v1236
      %v1238 = vpop.f32.mrb[0].mxu0
      %1239 = vmatprep.mubr.f32.mxu0 0.0
      %1240 = vmatmul.mubr.f32.gmra.mrb[0].mxu0 %v1063
      %v1241 = vpop.f32.mrb[0].mxu0
      %v1242 = vadd.f32 0.0, %v1241
      %v1243 = vpop.f32.mrb[0].mxu0
      %1244 = vmatprep.mubr.f32.mxu0 0.0
      %1245 = vmatmul.mubr.f32.gmra.mrb[0].mxu0 %v1066
      %v1246 = vpop.f32.mrb[0].mxu0
      %v1247 = vadd.f32 0.0, %v1246
      %v1248 = vpop.f32.mrb[0].mxu0
      %1249 = vmatprep.mubr.f32.mxu0 0.0
      %1250 = vmatmul.mubr.f32.gmra.mrb[0].mxu0 %v1069
      %v1251 = vpop.f32.mrb[0].mxu0
      %v1252 = vadd.f32 0.0, %v1251
      %v1253 = vpop.f32.mrb[0].mxu0
      %1254 = vmatprep.mubr.f32.mxu0 0.0
      %1255 = vmatmul.mubr.f32.gmra.mrb[0].mxu0 %v1072
      %v1256 = vpop.f32.mrb[0].mxu0
      %v1257 = vadd.f32 0.0, %v1256
      %v1258 = vpop.f32.mrb[0].mxu0
      %1259 = vmatprep.mubr.f32.mxu0 0.0
      %1260 = vmatmul.mubr.f32.gmra.mrb[0].mxu0 %v1075
      %v1261 = vpop.f32.mrb[0].mxu0
      %v1262 = vadd.f32 0.0, %v1261
      %v1263 = vpop.f32.mrb[0].mxu0
      %1264 = vmatprep.mubr.f32.mxu0 0.0
      %1265 = vmatmul.mubr.f32.gmra.mrb[0].mxu0 %v1078
      %v1266 = vpop.f32.mrb[0].mxu0
      %v1267 = vadd.f32 0.0, %v1266
      %v1268 = vpop.f32.mrb[0].mxu0
      %1269 = vmatprep.mubr.f32.mxu0 0.0
      %1270 = vmatmul.mubr.f32.gmra.mrb[0].mxu0 %v1081
      %v1271 = vpop.f32.mrb[0].mxu0
      %v1272 = vadd.f32 0.0, %v1271
      %v1273 = vpop.f32.mrb[0].mxu0
      %1274 = vmatprep.mubr.f32.mxu0 0.0
      %1275 = vmatmul.mubr.f32.gmra.mrb[0].mxu0 %v1084
      %v1276 = vpop.f32.mrb[0].mxu0
      %v1277 = vadd.f32 0.0, %v1276
      %v1278 = vpop.f32.mrb[0].mxu0
      %1279 = vmatprep.mubr.f32.mxu0 0.0
      %1280 = vmatmul.mubr.f32.gmra.mrb[0].mxu0 %v1087
      %v1281 = vpop.f32.mrb[0].mxu0
      %v1282 = vadd.f32 0.0, %v1281
      %v1283 = vpop.f32.mrb[0].mxu0
      %1284 = vmatprep.mubr.f32.mxu0 0.0
      %1285 = vmatmul.mubr.f32.gmra.mrb[0].mxu0 %v1090
      %v1286 = vpop.f32.mrb[0].mxu0
      %v1287 = vadd.f32 0.0, %v1286
      %v1288 = vpop.f32.mrb[0].mxu0
      %1289 = vmatprep.mubr.f32.mxu0 0.0
      %1290 = vmatmul.mubr.f32.gmra.mrb[0].mxu0 %v1093
      %v1291 = vpop.f32.mrb[0].mxu0
      %v1292 = vadd.f32 0.0, %v1291
      %v1293 = vpop.f32.mrb[0].mxu0
      %1294 = vmatprep.mubr.f32.mxu0 0.0
      %1295 = vmatmul.mubr.f32.gmra.mrb[0].mxu0 %v1096
      %v1296 = vpop.f32.mrb[0].mxu0
      %v1297 = vadd.f32 0.0, %v1296
      %v1298 = vpop.f32.mrb[0].mxu0
      %1299 = vmatprep.mubr.f32.mxu0 0.0
      %1300 = vmatmul.mubr.f32.gmra.mrb[0].mxu0 %v1099
      %v1301 = vpop.f32.mrb[0].mxu0
      %v1302 = vadd.f32 0.0, %v1301
      %v1303 = vpop.f32.mrb[0].mxu0
      %1304 = vmatprep.mubr.f32.mxu0 0.0
      %1305 = vmatmul.mubr.f32.gmra.mrb[0].mxu0 %v1102
      %v1306 = vpop.f32.mrb[0].mxu0
      %v1307 = vadd.f32 0.0, %v1306
      %v1308 = vpop.f32.mrb[0].mxu0
      %1309 = vmatprep.mubr.f32.mxu0 0.0
      %1310 = vmatmul.mubr.f32.gmra.mrb[0].mxu0 %v1105
      %v1311 = vpop.f32.mrb[0].mxu0
      %v1312 = vadd.f32 0.0, %v1311
      %v1313 = vpop.f32.mrb[0].mxu0
      %1314 = vmatprep.mubr.f32.mxu0 0.0
      %1315 = vmatmul.mubr.f32.gmra.mrb[0].mxu0 %v1108
      %v1316 = vpop.f32.mrb[0].mxu0
      %v1317 = vadd.f32 0.0, %v1316
      %v1318 = vpop.f32.mrb[0].mxu0
      %1319 = vmatprep.mubr.f32.mxu0 0.0
      %1320 = vmatmul.mubr.f32.gmra.mrb[0].mxu0 %v1111
      %v1321 = vpop.f32.mrb[0].mxu0
      %v1322 = vadd.f32 0.0, %v1321
      %v1323 = vpop.f32.mrb[0].mxu0
      %1324 = vmatprep.mubr.f32.mxu0 0.0
      %1325 = vmatmul.mubr.f32.gmra.mrb[0].mxu0 %v1114
      %v1326 = vpop.f32.mrb[0].mxu0
      %v1327 = vadd.f32 0.0, %v1326
      %v1328 = vpop.f32.mrb[0].mxu0
      %1329 = vmatprep.mubr.f32.mxu0 0.0
      %1330 = vmatmul.mubr.f32.gmra.mrb[0].mxu0 %v1117
      %v1331 = vpop.f32.mrb[0].mxu0
      %v1332 = vadd.f32 0.0, %v1331
      %v1333 = vpop.f32.mrb[0].mxu0
      %1334 = vmatprep.mubr.f32.mxu0 0.0
      %1335 = vmatmul.mubr.f32.gmra.mrb[0].mxu0 %v1120
      %v1336 = vpop.f32.mrb[0].mxu0
      %v1337 = vadd.f32 0.0, %v1336
      %v1338 = vpop.f32.mrb[0].mxu0
      %1339 = vmatprep.mubr.f32.mxu0 0.0
      %1340 = vmatmul.mubr.f32.gmra.mrb[0].mxu0 %v1123
      %v1341 = vpop.f32.mrb[0].mxu0
      %v1342 = vadd.f32 0.0, %v1341
      %v1343 = vpop.f32.mrb[0].mxu0
      %1344 = vmatprep.mubr.f32.mxu0 0.0
      %1345 = vmatmul.mubr.f32.gmra.mrb[0].mxu0 %v1126
      %v1346 = vpop.f32.mrb[0].mxu0
      %v1347 = vadd.f32 0.0, %v1346
      %v1348 = vpop.f32.mrb[0].mxu0
      %1349 = vmatprep.mubr.f32.mxu0 0.0
      %1350 = vmatmul.mubr.f32.gmra.mrb[0].mxu0 %v1129
      %v1351 = vpop.f32.mrb[0].mxu0
      %v1352 = vadd.f32 0.0, %v1351
      %v1353 = vpop.f32.mrb[0].mxu0
      %1354 = vmatprep.mubr.f32.mxu0 0.0
      %1355 = vmatmul.mubr.f32.gmra.mrb[0].mxu0 %v1132
      %v1356 = vpop.f32.mrb[0].mxu0
      %v1357 = vadd.f32 0.0, %v1356
      %v1358 = vpop.f32.mrb[0].mxu0
      %1359 = vmatprep.mubr.f32.mxu0 0.0
      %1360 = vmatmul.mubr.f32.gmra.mrb[0].mxu0 %v1135
      %v1361 = vpop.f32.mrb[0].mxu0
      %v1362 = vadd.f32 0.0, %v1361
      %v1363 = vpop.f32.mrb[0].mxu0
      %1364 = vdwg.mxu0
      %v1365 = vadd.f32 %v850, %v1207
      %v1366 = vadd.f32 %v855, %v1212
      %v1367 = vadd.f32 %v860, %v1217
      %v1368 = vadd.f32 %v865, %v1222
      %v1369 = vadd.f32 %v870, %v1227
      %v1370 = vadd.f32 %v875, %v1232
      %v1371 = vadd.f32 %v880, %v1237
      %v1372 = vadd.f32 %v885, %v1242
      %v1373 = vadd.f32 %v890, %v1247
      %v1374 = vadd.f32 %v895, %v1252
      %v1375 = vadd.f32 %v900, %v1257
      %v1376 = vadd.f32 %v905, %v1262
      %v1377 = vadd.f32 %v910, %v1267
      %v1378 = vadd.f32 %v915, %v1272
      %v1379 = vadd.f32 %v920, %v1277
      %v1380 = vadd.f32 %v925, %v1282
      %v1381 = vadd.f32 %v930, %v1287
      %v1382 = vadd.f32 %v935, %v1292
      %v1383 = vadd.f32 %v940, %v1297
      %v1384 = vadd.f32 %v945, %v1302
      %v1385 = vadd.f32 %v950, %v1307
      %v1386 = vadd.f32 %v955, %v1312
      %v1387 = vadd.f32 %v960, %v1317
      %v1388 = vadd.f32 %v965, %v1322
      %v1389 = vadd.f32 %v970, %v1327
      %v1390 = vadd.f32 %v975, %v1332
      %v1391 = vadd.f32 %v980, %v1337
      %v1392 = vadd.f32 %v985, %v1342
      %v1393 = vadd.f32 %v990, %v1347
      %v1394 = vadd.f32 %v995, %v1352
      %v1395 = vadd.f32 %v1000, %v1357
      %v1396 = vadd.f32 %v1005, %v1362
      %v1397 = vld [vmem:[%s260] sm:$0xff]
      %v1398 = vld [vmem:[%s260 + $0x8] sm:$0xff]
      %v1399 = vld [vmem:[%s260 + $0x18] sm:$0xff]
      %v1400 = vld [vmem:[%s260 + $0x20] sm:$0xff]
      %v1401 = vld [vmem:[%s260 + $0x30] sm:$0xff]
      %v1402 = vld [vmem:[%s260 + $0x38] sm:$0xff]
      %v1403 = vld [vmem:[%s260 + $0x48] sm:$0xff]
      %v1404 = vld [vmem:[%s260 + $0x50] sm:$0xff]
      %v1405 = vld [vmem:[%s260 + $0x60] sm:$0xff]
      %v1406 = vld [vmem:[%s260 + $0x68] sm:$0xff]
      %v1407 = vld [vmem:[%s260 + $0x78] sm:$0xff]
      %v1408 = vld [vmem:[%s260 + $0x80] sm:$0xff]
      %v1409 = vld [vmem:[%s260 + $0x90] sm:$0xff]
      %v1410 = vld [vmem:[%s260 + $0x98] sm:$0xff]
      %v1411 = vld [vmem:[%s260 + $0xa8] sm:$0xff]
      %v1412 = vld [vmem:[%s260 + $0xb0] sm:$0xff]
      %v1413 = vld [vmem:[%s260 + $0xc0] sm:$0xff]
      %v1414 = vld [vmem:[%s260 + $0xc8] sm:$0xff]
      %v1415 = vld [vmem:[%s260 + $0xd8] sm:$0xff]
      %v1416 = vld [vmem:[%s260 + $0xe0] sm:$0xff]
      %v1417 = vld [vmem:[%s260 + $0xf0] sm:$0xff]
      %v1418 = vld [vmem:[%s260 + $0xf8] sm:$0xff]
      %v1419 = vld [vmem:[%s260 + $0x108] sm:$0xff]
      %v1420 = vld [vmem:[%s260 + $0x110] sm:$0xff]
      %v1421 = vld [vmem:[%s260 + $0x120] sm:$0xff]
      %v1422 = vld [vmem:[%s260 + $0x128] sm:$0xff]
      %v1423 = vld [vmem:[%s260 + $0x138] sm:$0xff]
      %v1424 = vld [vmem:[%s260 + $0x140] sm:$0xff]
      %v1425 = vld [vmem:[%s260 + $0x150] sm:$0xff]
      %v1426 = vld [vmem:[%s260 + $0x158] sm:$0xff]
      %v1427 = vld [vmem:[%s260 + $0x168] sm:$0xff]
      %v1428 = vld [vmem:[%s260 + $0x170] sm:$0xff]
      %v1429 = vld [vmem:[%s1 + $0xc] sm:$0xf]
      %v1431 = vsel %vm182, %v1397, 0
      %v1434 = vsel %vm182, %v1398, 0
      %v1437 = vsel %vm182, %v1399, 0
      %v1440 = vsel %vm182, %v1400, 0
      %v1443 = vsel %vm182, %v1401, 0
      %v1446 = vsel %vm182, %v1402, 0
      %v1449 = vsel %vm182, %v1403, 0
      %v1452 = vsel %vm182, %v1404, 0
      %v1455 = vsel %vm182, %v1405, 0
      %v1458 = vsel %vm182, %v1406, 0
      %v1461 = vsel %vm182, %v1407, 0
      %v1464 = vsel %vm182, %v1408, 0
      %v1467 = vsel %vm182, %v1409, 0
      %v1470 = vsel %vm182, %v1410, 0
      %v1473 = vsel %vm182, %v1411, 0
      %v1476 = vsel %vm182, %v1412, 0
      %v1479 = vsel %vm182, %v1413, 0
      %v1482 = vsel %vm182, %v1414, 0
      %v1485 = vsel %vm182, %v1415, 0
      %v1488 = vsel %vm182, %v1416, 0
      %v1491 = vsel %vm182, %v1417, 0
      %v1494 = vsel %vm182, %v1418, 0
      %v1497 = vsel %vm182, %v1419, 0
      %v1500 = vsel %vm182, %v1420, 0
      %v1503 = vsel %vm182, %v1421, 0
      %v1506 = vsel %vm182, %v1422, 0
      %v1509 = vsel %vm182, %v1423, 0
      %v1512 = vsel %vm182, %v1424, 0
      %v1515 = vsel %vm182, %v1425, 0
      %v1518 = vsel %vm182, %v1426, 0
      %v1521 = vsel %vm182, %v1427, 0
      %v1524 = vsel %vm182, %v1428, 0
      %v1527 = vsel %vm455, %v1429, 0
      %1529 = vmatprep.subr.mxu0 0.0
      %1530 = vmatpush1.msra.mxu0 %v1527
      %1531 = vmatprep.subr.mxu0 0.0
      %1532 = vmatpush1.msra.mxu0 0.0
      %1533 = vmatprep.subr.mxu0 0.0
      %1534 = vmatpush1.msra.mxu0 0.0
      %1535 = vmatprep.subr.mxu0 0.0
      %1536 = vmatpush1.msra.mxu0 0.0
      %1537 = vmatprep.subr.mxu0 0.0
      %1538 = vmatpush1.msra.mxu0 0.0
      %1539 = vmatprep.subr.mxu0 0.0
      %1540 = vmatpush1.msra.mxu0 0.0
      %1541 = vmatprep.subr.mxu0 0.0
      %1542 = vmatpush1.msra.mxu0 0.0
      %1543 = vmatprep.subr.mxu0 0.0
      %1544 = vmatpush1.msra.mxu0 0.0
      %1545 = vmatprep.subr.mxu0 0.0
      %1546 = vmatpush1.msra.mxu0 0.0
      %1547 = vmatprep.subr.mxu0 0.0
      %1548 = vmatpush1.msra.mxu0 0.0
      %1549 = vmatprep.subr.mxu0 0.0
      %1550 = vmatpush1.msra.mxu0 0.0
      %1551 = vmatprep.subr.mxu0 0.0
      %1552 = vmatpush1.msra.mxu0 0.0
      %1553 = vmatprep.subr.mxu0 0.0
      %1554 = vmatpush1.msra.mxu0 0.0
      %1555 = vmatprep.subr.mxu0 0.0
      %1556 = vmatpush1.msra.mxu0 0.0
      %1557 = vmatprep.subr.mxu0 0.0
      %1558 = vmatpush1.msra.mxu0 0.0
      %1559 = vmatprep.subr.mxu0 0.0
      %1560 = vmatpush1.msra.mxu0 0.0
      %1561 = vmatprep.subr.mxu0 0.0
      %1562 = vmatpush1.msra.mxu0 0.0
      %1563 = vmatprep.subr.mxu0 0.0
      %1564 = vmatpush1.msra.mxu0 0.0
      %1565 = vmatprep.subr.mxu0 0.0
      %1566 = vmatpush1.msra.mxu0 0.0
      %1567 = vmatprep.subr.mxu0 0.0
      %1568 = vmatpush1.msra.mxu0 0.0
      %1569 = vmatprep.subr.mxu0 0.0
      %1570 = vmatpush1.msra.mxu0 0.0
      %1571 = vmatprep.subr.mxu0 0.0
      %1572 = vmatpush1.msra.mxu0 0.0
      %1573 = vmatprep.subr.mxu0 0.0
      %1574 = vmatpush1.msra.mxu0 0.0
      %1575 = vmatprep.subr.mxu0 0.0
      %1576 = vmatpush1.msra.mxu0 0.0
      %1577 = vmatprep.subr.mxu0 0.0
      %1578 = vmatpush1.msra.mxu0 0.0
      %1579 = vmatprep.subr.mxu0 0.0
      %1580 = vmatpush1.msra.mxu0 0.0
      %1581 = vmatprep.subr.mxu0 0.0
      %1582 = vmatpush1.msra.mxu0 0.0
      %1583 = vmatprep.subr.mxu0 0.0
      %1584 = vmatpush1.msra.mxu0 0.0
      %1585 = vmatprep.subr.mxu0 0.0
      %1586 = vmatpush1.msra.mxu0 0.0
      %1587 = vmatprep.subr.mxu0 0.0
      %1588 = vmatpush1.msra.mxu0 0.0
      %1589 = vmatprep.subr.mxu0 0.0
      %1590 = vmatpush1.msra.mxu0 0.0
      %1591 = vmatprep.subr.mxu0 0.0
      %1592 = vmatpush1.msra.mxu0 0.0
      %1593 = vmatprep.mubr.f32.mxu0 0.0
      %1594 = vmatmul.mubr.f32.gmra.mrb[0].mxu0 %v1431
      %v1595 = vpop.f32.mrb[0].mxu0
      %v1596 = vadd.f32 0.0, %v1595
      %v1597 = vpop.f32.mrb[0].mxu0
      %1598 = vmatprep.mubr.f32.mxu0 0.0
      %1599 = vmatmul.mubr.f32.gmra.mrb[0].mxu0 %v1434
      %v1600 = vpop.f32.mrb[0].mxu0
      %v1601 = vadd.f32 0.0, %v1600
      %v1602 = vpop.f32.mrb[0].mxu0
      %1603 = vmatprep.mubr.f32.mxu0 0.0
      %1604 = vmatmul.mubr.f32.gmra.mrb[0].mxu0 %v1437
      %v1605 = vpop.f32.mrb[0].mxu0
      %v1606 = vadd.f32 0.0, %v1605
      %v1607 = vpop.f32.mrb[0].mxu0
      %1608 = vmatprep.mubr.f32.mxu0 0.0
      %1609 = vmatmul.mubr.f32.gmra.mrb[0].mxu0 %v1440
      %v1610 = vpop.f32.mrb[0].mxu0
      %v1611 = vadd.f32 0.0, %v1610
      %v1612 = vpop.f32.mrb[0].mxu0
      %1613 = vmatprep.mubr.f32.mxu0 0.0
      %1614 = vmatmul.mubr.f32.gmra.mrb[0].mxu0 %v1443
      %v1615 = vpop.f32.mrb[0].mxu0
      %v1616 = vadd.f32 0.0, %v1615
      %v1617 = vpop.f32.mrb[0].mxu0
      %1618 = vmatprep.mubr.f32.mxu0 0.0
      %1619 = vmatmul.mubr.f32.gmra.mrb[0].mxu0 %v1446
      %v1620 = vpop.f32.mrb[0].mxu0
      %v1621 = vadd.f32 0.0, %v1620
      %v1622 = vpop.f32.mrb[0].mxu0
      %1623 = vmatprep.mubr.f32.mxu0 0.0
      %1624 = vmatmul.mubr.f32.gmra.mrb[0].mxu0 %v1449
      %v1625 = vpop.f32.mrb[0].mxu0
      %v1626 = vadd.f32 0.0, %v1625
      %v1627 = vpop.f32.mrb[0].mxu0
      %1628 = vmatprep.mubr.f32.mxu0 0.0
      %1629 = vmatmul.mubr.f32.gmra.mrb[0].mxu0 %v1452
      %v1630 = vpop.f32.mrb[0].mxu0
      %v1631 = vadd.f32 0.0, %v1630
      %v1632 = vpop.f32.mrb[0].mxu0
      %1633 = vmatprep.mubr.f32.mxu0 0.0
      %1634 = vmatmul.mubr.f32.gmra.mrb[0].mxu0 %v1455
      %v1635 = vpop.f32.mrb[0].mxu0
      %v1636 = vadd.f32 0.0, %v1635
      %v1637 = vpop.f32.mrb[0].mxu0
      %1638 = vmatprep.mubr.f32.mxu0 0.0
      %1639 = vmatmul.mubr.f32.gmra.mrb[0].mxu0 %v1458
      %v1640 = vpop.f32.mrb[0].mxu0
      %v1641 = vadd.f32 0.0, %v1640
      %v1642 = vpop.f32.mrb[0].mxu0
      %1643 = vmatprep.mubr.f32.mxu0 0.0
      %1644 = vmatmul.mubr.f32.gmra.mrb[0].mxu0 %v1461
      %v1645 = vpop.f32.mrb[0].mxu0
      %v1646 = vadd.f32 0.0, %v1645
      %v1647 = vpop.f32.mrb[0].mxu0
      %1648 = vmatprep.mubr.f32.mxu0 0.0
      %1649 = vmatmul.mubr.f32.gmra.mrb[0].mxu0 %v1464
      %v1650 = vpop.f32.mrb[0].mxu0
      %v1651 = vadd.f32 0.0, %v1650
      %v1652 = vpop.f32.mrb[0].mxu0
      %1653 = vmatprep.mubr.f32.mxu0 0.0
      %1654 = vmatmul.mubr.f32.gmra.mrb[0].mxu0 %v1467
      %v1655 = vpop.f32.mrb[0].mxu0
      %v1656 = vadd.f32 0.0, %v1655
      %v1657 = vpop.f32.mrb[0].mxu0
      %1658 = vmatprep.mubr.f32.mxu0 0.0
      %1659 = vmatmul.mubr.f32.gmra.mrb[0].mxu0 %v1470
      %v1660 = vpop.f32.mrb[0].mxu0
      %v1661 = vadd.f32 0.0, %v1660
      %v1662 = vpop.f32.mrb[0].mxu0
      %1663 = vmatprep.mubr.f32.mxu0 0.0
      %1664 = vmatmul.mubr.f32.gmra.mrb[0].mxu0 %v1473
      %v1665 = vpop.f32.mrb[0].mxu0
      %v1666 = vadd.f32 0.0, %v1665
      %v1667 = vpop.f32.mrb[0].mxu0
      %1668 = vmatprep.mubr.f32.mxu0 0.0
      %1669 = vmatmul.mubr.f32.gmra.mrb[0].mxu0 %v1476
      %v1670 = vpop.f32.mrb[0].mxu0
      %v1671 = vadd.f32 0.0, %v1670
      %v1672 = vpop.f32.mrb[0].mxu0
      %1673 = vmatprep.mubr.f32.mxu0 0.0
      %1674 = vmatmul.mubr.f32.gmra.mrb[0].mxu0 %v1479
      %v1675 = vpop.f32.mrb[0].mxu0
      %v1676 = vadd.f32 0.0, %v1675
      %v1677 = vpop.f32.mrb[0].mxu0
      %1678 = vmatprep.mubr.f32.mxu0 0.0
      %1679 = vmatmul.mubr.f32.gmra.mrb[0].mxu0 %v1482
      %v1680 = vpop.f32.mrb[0].mxu0
      %v1681 = vadd.f32 0.0, %v1680
      %v1682 = vpop.f32.mrb[0].mxu0
      %1683 = vmatprep.mubr.f32.mxu0 0.0
      %1684 = vmatmul.mubr.f32.gmra.mrb[0].mxu0 %v1485
      %v1685 = vpop.f32.mrb[0].mxu0
      %v1686 = vadd.f32 0.0, %v1685
      %v1687 = vpop.f32.mrb[0].mxu0
      %1688 = vmatprep.mubr.f32.mxu0 0.0
      %1689 = vmatmul.mubr.f32.gmra.mrb[0].mxu0 %v1488
      %v1690 = vpop.f32.mrb[0].mxu0
      %v1691 = vadd.f32 0.0, %v1690
      %v1692 = vpop.f32.mrb[0].mxu0
      %1693 = vmatprep.mubr.f32.mxu0 0.0
      %1694 = vmatmul.mubr.f32.gmra.mrb[0].mxu0 %v1491
      %v1695 = vpop.f32.mrb[0].mxu0
      %v1696 = vadd.f32 0.0, %v1695
      %v1697 = vpop.f32.mrb[0].mxu0
      %1698 = vmatprep.mubr.f32.mxu0 0.0
      %1699 = vmatmul.mubr.f32.gmra.mrb[0].mxu0 %v1494
      %v1700 = vpop.f32.mrb[0].mxu0
      %v1701 = vadd.f32 0.0, %v1700
      %v1702 = vpop.f32.mrb[0].mxu0
      %1703 = vmatprep.mubr.f32.mxu0 0.0
      %1704 = vmatmul.mubr.f32.gmra.mrb[0].mxu0 %v1497
      %v1705 = vpop.f32.mrb[0].mxu0
      %v1706 = vadd.f32 0.0, %v1705
      %v1707 = vpop.f32.mrb[0].mxu0
      %1708 = vmatprep.mubr.f32.mxu0 0.0
      %1709 = vmatmul.mubr.f32.gmra.mrb[0].mxu0 %v1500
      %v1710 = vpop.f32.mrb[0].mxu0
      %v1711 = vadd.f32 0.0, %v1710
      %v1712 = vpop.f32.mrb[0].mxu0
      %1713 = vmatprep.mubr.f32.mxu0 0.0
      %1714 = vmatmul.mubr.f32.gmra.mrb[0].mxu0 %v1503
      %v1715 = vpop.f32.mrb[0].mxu0
      %v1716 = vadd.f32 0.0, %v1715
      %v1717 = vpop.f32.mrb[0].mxu0
      %1718 = vmatprep.mubr.f32.mxu0 0.0
      %1719 = vmatmul.mubr.f32.gmra.mrb[0].mxu0 %v1506
      %v1720 = vpop.f32.mrb[0].mxu0
      %v1721 = vadd.f32 0.0, %v1720
      %v1722 = vpop.f32.mrb[0].mxu0
      %1723 = vmatprep.mubr.f32.mxu0 0.0
      %1724 = vmatmul.mubr.f32.gmra.mrb[0].mxu0 %v1509
      %v1725 = vpop.f32.mrb[0].mxu0
      %v1726 = vadd.f32 0.0, %v1725
      %v1727 = vpop.f32.mrb[0].mxu0
      %1728 = vmatprep.mubr.f32.mxu0 0.0
      %1729 = vmatmul.mubr.f32.gmra.mrb[0].mxu0 %v1512
      %v1730 = vpop.f32.mrb[0].mxu0
      %v1731 = vadd.f32 0.0, %v1730
      %v1732 = vpop.f32.mrb[0].mxu0
      %1733 = vmatprep.mubr.f32.mxu0 0.0
      %1734 = vmatmul.mubr.f32.gmra.mrb[0].mxu0 %v1515
      %v1735 = vpop.f32.mrb[0].mxu0
      %v1736 = vadd.f32 0.0, %v1735
      %v1737 = vpop.f32.mrb[0].mxu0
      %1738 = vmatprep.mubr.f32.mxu0 0.0
      %1739 = vmatmul.mubr.f32.gmra.mrb[0].mxu0 %v1518
      %v1740 = vpop.f32.mrb[0].mxu0
      %v1741 = vadd.f32 0.0, %v1740
      %v1742 = vpop.f32.mrb[0].mxu0
      %1743 = vmatprep.mubr.f32.mxu0 0.0
      %1744 = vmatmul.mubr.f32.gmra.mrb[0].mxu0 %v1521
      %v1745 = vpop.f32.mrb[0].mxu0
      %v1746 = vadd.f32 0.0, %v1745
      %v1747 = vpop.f32.mrb[0].mxu0
      %1748 = vmatprep.mubr.f32.mxu0 0.0
      %1749 = vmatmul.mubr.f32.gmra.mrb[0].mxu0 %v1524
      %v1750 = vpop.f32.mrb[0].mxu0
      %v1751 = vadd.f32 0.0, %v1750
      %v1752 = vpop.f32.mrb[0].mxu0
      %1753 = vdwg.mxu0
      %v1754 = vadd.f32 %v1365, %v1596
      %v1755 = vadd.f32 %v1366, %v1601
      %v1756 = vadd.f32 %v1367, %v1606
      %v1757 = vadd.f32 %v1368, %v1611
      %v1758 = vadd.f32 %v1369, %v1616
      %v1759 = vadd.f32 %v1370, %v1621
      %v1760 = vadd.f32 %v1371, %v1626
      %v1761 = vadd.f32 %v1372, %v1631
      %v1762 = vadd.f32 %v1373, %v1636
      %v1763 = vadd.f32 %v1374, %v1641
      %v1764 = vadd.f32 %v1375, %v1646
      %v1765 = vadd.f32 %v1376, %v1651
      %v1766 = vadd.f32 %v1377, %v1656
      %v1767 = vadd.f32 %v1378, %v1661
      %v1768 = vadd.f32 %v1379, %v1666
      %v1769 = vadd.f32 %v1380, %v1671
      %v1770 = vadd.f32 %v1381, %v1676
      %v1771 = vadd.f32 %v1382, %v1681
      %v1772 = vadd.f32 %v1383, %v1686
      %v1773 = vadd.f32 %v1384, %v1691
      %v1774 = vadd.f32 %v1385, %v1696
      %v1775 = vadd.f32 %v1386, %v1701
      %v1776 = vadd.f32 %v1387, %v1706
      %v1777 = vadd.f32 %v1388, %v1711
      %v1778 = vadd.f32 %v1389, %v1716
      %v1779 = vadd.f32 %v1390, %v1721
      %v1780 = vadd.f32 %v1391, %v1726
      %v1781 = vadd.f32 %v1392, %v1731
      %v1782 = vadd.f32 %v1393, %v1736
      %v1783 = vadd.f32 %v1394, %v1741
      %v1784 = vadd.f32 %v1395, %v1746
      %v1785 = vadd.f32 %v1396, %v1751
      %v1786 = vld [vmem:[%s260 + $0x1] sm:$0xff]
      %v1787 = vld [vmem:[%s260 + $0x9] sm:$0xff]
      %v1788 = vld [vmem:[%s260 + $0x19] sm:$0xff]
      %v1789 = vld [vmem:[%s260 + $0x21] sm:$0xff]
      %v1790 = vld [vmem:[%s260 + $0x31] sm:$0xff]
      %v1791 = vld [vmem:[%s260 + $0x39] sm:$0xff]
      %v1792 = vld [vmem:[%s260 + $0x49] sm:$0xff]
      %v1793 = vld [vmem:[%s260 + $0x51] sm:$0xff]
      %v1794 = vld [vmem:[%s260 + $0x61] sm:$0xff]
      %v1795 = vld [vmem:[%s260 + $0x69] sm:$0xff]
      %v1796 = vld [vmem:[%s260 + $0x79] sm:$0xff]
      %v1797 = vld [vmem:[%s260 + $0x81] sm:$0xff]
      %v1798 = vld [vmem:[%s260 + $0x91] sm:$0xff]
      %v1799 = vld [vmem:[%s260 + $0x99] sm:$0xff]
      %v1800 = vld [vmem:[%s260 + $0xa9] sm:$0xff]
      %v1801 = vld [vmem:[%s260 + $0xb1] sm:$0xff]
      %v1802 = vld [vmem:[%s260 + $0xc1] sm:$0xff]
      %v1803 = vld [vmem:[%s260 + $0xc9] sm:$0xff]
      %v1804 = vld [vmem:[%s260 + $0xd9] sm:$0xff]
      %v1805 = vld [vmem:[%s260 + $0xe1] sm:$0xff]
      %v1806 = vld [vmem:[%s260 + $0xf1] sm:$0xff]
      %v1807 = vld [vmem:[%s260 + $0xf9] sm:$0xff]
      %v1808 = vld [vmem:[%s260 + $0x109] sm:$0xff]
      %v1809 = vld [vmem:[%s260 + $0x111] sm:$0xff]
      %v1810 = vld [vmem:[%s260 + $0x121] sm:$0xff]
      %v1811 = vld [vmem:[%s260 + $0x129] sm:$0xff]
      %v1812 = vld [vmem:[%s260 + $0x139] sm:$0xff]
      %v1813 = vld [vmem:[%s260 + $0x141] sm:$0xff]
      %v1814 = vld [vmem:[%s260 + $0x151] sm:$0xff]
      %v1815 = vld [vmem:[%s260 + $0x159] sm:$0xff]
      %v1816 = vld [vmem:[%s260 + $0x169] sm:$0xff]
      %v1817 = vld [vmem:[%s260 + $0x171] sm:$0xff]
      %v1818 = vld [vmem:[%s1 + $0x10] sm:$0xf]
      %v1820 = vsel %vm182, %v1786, 0
      %v1823 = vsel %vm182, %v1787, 0
      %v1826 = vsel %vm182, %v1788, 0
      %v1829 = vsel %vm182, %v1789, 0
      %v1832 = vsel %vm182, %v1790, 0
      %v1835 = vsel %vm182, %v1791, 0
      %v1838 = vsel %vm182, %v1792, 0
      %v1841 = vsel %vm182, %v1793, 0
      %v1844 = vsel %vm182, %v1794, 0
      %v1847 = vsel %vm182, %v1795, 0
      %v1850 = vsel %vm182, %v1796, 0
      %v1853 = vsel %vm182, %v1797, 0
      %v1856 = vsel %vm182, %v1798, 0
      %v1859 = vsel %vm182, %v1799, 0
      %v1862 = vsel %vm182, %v1800, 0
      %v1865 = vsel %vm182, %v1801, 0
      %v1868 = vsel %vm182, %v1802, 0
      %v1871 = vsel %vm182, %v1803, 0
      %v1874 = vsel %vm182, %v1804, 0
      %v1877 = vsel %vm182, %v1805, 0
      %v1880 = vsel %vm182, %v1806, 0
      %v1883 = vsel %vm182, %v1807, 0
      %v1886 = vsel %vm182, %v1808, 0
      %v1889 = vsel %vm182, %v1809, 0
      %v1892 = vsel %vm182, %v1810, 0
      %v1895 = vsel %vm182, %v1811, 0
      %v1898 = vsel %vm182, %v1812, 0
      %v1901 = vsel %vm182, %v1813, 0
      %v1904 = vsel %vm182, %v1814, 0
      %v1907 = vsel %vm182, %v1815, 0
      %v1910 = vsel %vm182, %v1816, 0
      %v1913 = vsel %vm182, %v1817, 0
      %v1916 = vsel %vm455, %v1818, 0
      %1918 = vmatprep.subr.mxu0 0.0
      %1919 = vmatpush1.msra.mxu0 %v1916
      %1920 = vmatprep.subr.mxu0 0.0
      %1921 = vmatpush1.msra.mxu0 0.0
      %1922 = vmatprep.subr.mxu0 0.0
      %1923 = vmatpush1.msra.mxu0 0.0
      %1924 = vmatprep.subr.mxu0 0.0
      %1925 = vmatpush1.msra.mxu0 0.0
      %1926 = vmatprep.subr.mxu0 0.0
      %1927 = vmatpush1.msra.mxu0 0.0
      %1928 = vmatprep.subr.mxu0 0.0
      %1929 = vmatpush1.msra.mxu0 0.0
      %1930 = vmatprep.subr.mxu0 0.0
      %1931 = vmatpush1.msra.mxu0 0.0
      %1932 = vmatprep.subr.mxu0 0.0
      %1933 = vmatpush1.msra.mxu0 0.0
      %1934 = vmatprep.subr.mxu0 0.0
      %1935 = vmatpush1.msra.mxu0 0.0
      %1936 = vmatprep.subr.mxu0 0.0
      %1937 = vmatpush1.msra.mxu0 0.0
      %1938 = vmatprep.subr.mxu0 0.0
      %1939 = vmatpush1.msra.mxu0 0.0
      %1940 = vmatprep.subr.mxu0 0.0
      %1941 = vmatpush1.msra.mxu0 0.0
      %1942 = vmatprep.subr.mxu0 0.0
      %1943 = vmatpush1.msra.mxu0 0.0
      %1944 = vmatprep.subr.mxu0 0.0
      %1945 = vmatpush1.msra.mxu0 0.0
      %1946 = vmatprep.subr.mxu0 0.0
      %1947 = vmatpush1.msra.mxu0 0.0
      %1948 = vmatprep.subr.mxu0 0.0
      %1949 = vmatpush1.msra.mxu0 0.0
      %1950 = vmatprep.subr.mxu0 0.0
      %1951 = vmatpush1.msra.mxu0 0.0
      %1952 = vmatprep.subr.mxu0 0.0
      %1953 = vmatpush1.msra.mxu0 0.0
      %1954 = vmatprep.subr.mxu0 0.0
      %1955 = vmatpush1.msra.mxu0 0.0
      %1956 = vmatprep.subr.mxu0 0.0
      %1957 = vmatpush1.msra.mxu0 0.0
      %1958 = vmatprep.subr.mxu0 0.0
      %1959 = vmatpush1.msra.mxu0 0.0
      %1960 = vmatprep.subr.mxu0 0.0
      %1961 = vmatpush1.msra.mxu0 0.0
      %1962 = vmatprep.subr.mxu0 0.0
      %1963 = vmatpush1.msra.mxu0 0.0
      %1964 = vmatprep.subr.mxu0 0.0
      %1965 = vmatpush1.msra.mxu0 0.0
      %1966 = vmatprep.subr.mxu0 0.0
      %1967 = vmatpush1.msra.mxu0 0.0
      %1968 = vmatprep.subr.mxu0 0.0
      %1969 = vmatpush1.msra.mxu0 0.0
      %1970 = vmatprep.subr.mxu0 0.0
      %1971 = vmatpush1.msra.mxu0 0.0
      %1972 = vmatprep.subr.mxu0 0.0
      %1973 = vmatpush1.msra.mxu0 0.0
      %1974 = vmatprep.subr.mxu0 0.0
      %1975 = vmatpush1.msra.mxu0 0.0
      %1976 = vmatprep.subr.mxu0 0.0
      %1977 = vmatpush1.msra.mxu0 0.0
      %1978 = vmatprep.subr.mxu0 0.0
      %1979 = vmatpush1.msra.mxu0 0.0
      %1980 = vmatprep.subr.mxu0 0.0
      %1981 = vmatpush1.msra.mxu0 0.0
      %1982 = vmatprep.mubr.f32.mxu0 0.0
      %1983 = vmatmul.mubr.f32.gmra.mrb[0].mxu0 %v1820
      %v1984 = vpop.f32.mrb[0].mxu0
      %v1985 = vadd.f32 0.0, %v1984
      %v1986 = vpop.f32.mrb[0].mxu0
      %1987 = vmatprep.mubr.f32.mxu0 0.0
      %1988 = vmatmul.mubr.f32.gmra.mrb[0].mxu0 %v1823
      %v1989 = vpop.f32.mrb[0].mxu0
      %v1990 = vadd.f32 0.0, %v1989
      %v1991 = vpop.f32.mrb[0].mxu0
      %1992 = vmatprep.mubr.f32.mxu0 0.0
      %1993 = vmatmul.mubr.f32.gmra.mrb[0].mxu0 %v1826
      %v1994 = vpop.f32.mrb[0].mxu0
      %v1995 = vadd.f32 0.0, %v1994
      %v1996 = vpop.f32.mrb[0].mxu0
      %1997 = vmatprep.mubr.f32.mxu0 0.0
      %1998 = vmatmul.mubr.f32.gmra.mrb[0].mxu0 %v1829
      %v1999 = vpop.f32.mrb[0].mxu0
      %v2000 = vadd.f32 0.0, %v1999
      %v2001 = vpop.f32.mrb[0].mxu0
      %2002 = vmatprep.mubr.f32.mxu0 0.0
      %2003 = vmatmul.mubr.f32.gmra.mrb[0].mxu0 %v1832
      %v2004 = vpop.f32.mrb[0].mxu0
      %v2005 = vadd.f32 0.0, %v2004
      %v2006 = vpop.f32.mrb[0].mxu0
      %2007 = vmatprep.mubr.f32.mxu0 0.0
      %2008 = vmatmul.mubr.f32.gmra.mrb[0].mxu0 %v1835
      %v2009 = vpop.f32.mrb[0].mxu0
      %v2010 = vadd.f32 0.0, %v2009
      %v2011 = vpop.f32.mrb[0].mxu0
      %2012 = vmatprep.mubr.f32.mxu0 0.0
      %2013 = vmatmul.mubr.f32.gmra.mrb[0].mxu0 %v1838
      %v2014 = vpop.f32.mrb[0].mxu0
      %v2015 = vadd.f32 0.0, %v2014
      %v2016 = vpop.f32.mrb[0].mxu0
      %2017 = vmatprep.mubr.f32.mxu0 0.0
      %2018 = vmatmul.mubr.f32.gmra.mrb[0].mxu0 %v1841
      %v2019 = vpop.f32.mrb[0].mxu0
      %v2020 = vadd.f32 0.0, %v2019
      %v2021 = vpop.f32.mrb[0].mxu0
      %2022 = vmatprep.mubr.f32.mxu0 0.0
      %2023 = vmatmul.mubr.f32.gmra.mrb[0].mxu0 %v1844
      %v2024 = vpop.f32.mrb[0].mxu0
      %v2025 = vadd.f32 0.0, %v2024
      %v2026 = vpop.f32.mrb[0].mxu0
      %2027 = vmatprep.mubr.f32.mxu0 0.0
      %2028 = vmatmul.mubr.f32.gmra.mrb[0].mxu0 %v1847
      %v2029 = vpop.f32.mrb[0].mxu0
      %v2030 = vadd.f32 0.0, %v2029
      %v2031 = vpop.f32.mrb[0].mxu0
      %2032 = vmatprep.mubr.f32.mxu0 0.0
      %2033 = vmatmul.mubr.f32.gmra.mrb[0].mxu0 %v1850
      %v2034 = vpop.f32.mrb[0].mxu0
      %v2035 = vadd.f32 0.0, %v2034
      %v2036 = vpop.f32.mrb[0].mxu0
      %2037 = vmatprep.mubr.f32.mxu0 0.0
      %2038 = vmatmul.mubr.f32.gmra.mrb[0].mxu0 %v1853
      %v2039 = vpop.f32.mrb[0].mxu0
      %v2040 = vadd.f32 0.0, %v2039
      %v2041 = vpop.f32.mrb[0].mxu0
      %2042 = vmatprep.mubr.f32.mxu0 0.0
      %2043 = vmatmul.mubr.f32.gmra.mrb[0].mxu0 %v1856
      %v2044 = vpop.f32.mrb[0].mxu0
      %v2045 = vadd.f32 0.0, %v2044
      %v2046 = vpop.f32.mrb[0].mxu0
      %2047 = vmatprep.mubr.f32.mxu0 0.0
      %2048 = vmatmul.mubr.f32.gmra.mrb[0].mxu0 %v1859
      %v2049 = vpop.f32.mrb[0].mxu0
      %v2050 = vadd.f32 0.0, %v2049
      %v2051 = vpop.f32.mrb[0].mxu0
      %2052 = vmatprep.mubr.f32.mxu0 0.0
      %2053 = vmatmul.mubr.f32.gmra.mrb[0].mxu0 %v1862
      %v2054 = vpop.f32.mrb[0].mxu0
      %v2055 = vadd.f32 0.0, %v2054
      %v2056 = vpop.f32.mrb[0].mxu0
      %2057 = vmatprep.mubr.f32.mxu0 0.0
      %2058 = vmatmul.mubr.f32.gmra.mrb[0].mxu0 %v1865
      %v2059 = vpop.f32.mrb[0].mxu0
      %v2060 = vadd.f32 0.0, %v2059
      %v2061 = vpop.f32.mrb[0].mxu0
      %2062 = vmatprep.mubr.f32.mxu0 0.0
      %2063 = vmatmul.mubr.f32.gmra.mrb[0].mxu0 %v1868
      %v2064 = vpop.f32.mrb[0].mxu0
      %v2065 = vadd.f32 0.0, %v2064
      %v2066 = vpop.f32.mrb[0].mxu0
      %2067 = vmatprep.mubr.f32.mxu0 0.0
      %2068 = vmatmul.mubr.f32.gmra.mrb[0].mxu0 %v1871
      %v2069 = vpop.f32.mrb[0].mxu0
      %v2070 = vadd.f32 0.0, %v2069
      %v2071 = vpop.f32.mrb[0].mxu0
      %2072 = vmatprep.mubr.f32.mxu0 0.0
      %2073 = vmatmul.mubr.f32.gmra.mrb[0].mxu0 %v1874
      %v2074 = vpop.f32.mrb[0].mxu0
      %v2075 = vadd.f32 0.0, %v2074
      %v2076 = vpop.f32.mrb[0].mxu0
      %2077 = vmatprep.mubr.f32.mxu0 0.0
      %2078 = vmatmul.mubr.f32.gmra.mrb[0].mxu0 %v1877
      %v2079 = vpop.f32.mrb[0].mxu0
      %v2080 = vadd.f32 0.0, %v2079
      %v2081 = vpop.f32.mrb[0].mxu0
      %2082 = vmatprep.mubr.f32.mxu0 0.0
      %2083 = vmatmul.mubr.f32.gmra.mrb[0].mxu0 %v1880
      %v2084 = vpop.f32.mrb[0].mxu0
      %v2085 = vadd.f32 0.0, %v2084
      %v2086 = vpop.f32.mrb[0].mxu0
      %2087 = vmatprep.mubr.f32.mxu0 0.0
      %2088 = vmatmul.mubr.f32.gmra.mrb[0].mxu0 %v1883
      %v2089 = vpop.f32.mrb[0].mxu0
      %v2090 = vadd.f32 0.0, %v2089
      %v2091 = vpop.f32.mrb[0].mxu0
      %2092 = vmatprep.mubr.f32.mxu0 0.0
      %2093 = vmatmul.mubr.f32.gmra.mrb[0].mxu0 %v1886
      %v2094 = vpop.f32.mrb[0].mxu0
      %v2095 = vadd.f32 0.0, %v2094
      %v2096 = vpop.f32.mrb[0].mxu0
      %2097 = vmatprep.mubr.f32.mxu0 0.0
      %2098 = vmatmul.mubr.f32.gmra.mrb[0].mxu0 %v1889
      %v2099 = vpop.f32.mrb[0].mxu0
      %v2100 = vadd.f32 0.0, %v2099
      %v2101 = vpop.f32.mrb[0].mxu0
      %2102 = vmatprep.mubr.f32.mxu0 0.0
      %2103 = vmatmul.mubr.f32.gmra.mrb[0].mxu0 %v1892
      %v2104 = vpop.f32.mrb[0].mxu0
      %v2105 = vadd.f32 0.0, %v2104
      %v2106 = vpop.f32.mrb[0].mxu0
      %2107 = vmatprep.mubr.f32.mxu0 0.0
      %2108 = vmatmul.mubr.f32.gmra.mrb[0].mxu0 %v1895
      %v2109 = vpop.f32.mrb[0].mxu0
      %v2110 = vadd.f32 0.0, %v2109
      %v2111 = vpop.f32.mrb[0].mxu0
      %2112 = vmatprep.mubr.f32.mxu0 0.0
      %2113 = vmatmul.mubr.f32.gmra.mrb[0].mxu0 %v1898
      %v2114 = vpop.f32.mrb[0].mxu0
      %v2115 = vadd.f32 0.0, %v2114
      %v2116 = vpop.f32.mrb[0].mxu0
      %2117 = vmatprep.mubr.f32.mxu0 0.0
      %2118 = vmatmul.mubr.f32.gmra.mrb[0].mxu0 %v1901
      %v2119 = vpop.f32.mrb[0].mxu0
      %v2120 = vadd.f32 0.0, %v2119
      %v2121 = vpop.f32.mrb[0].mxu0
      %2122 = vmatprep.mubr.f32.mxu0 0.0
      %2123 = vmatmul.mubr.f32.gmra.mrb[0].mxu0 %v1904
      %v2124 = vpop.f32.mrb[0].mxu0
      %v2125 = vadd.f32 0.0, %v2124
      %v2126 = vpop.f32.mrb[0].mxu0
      %2127 = vmatprep.mubr.f32.mxu0 0.0
      %2128 = vmatmul.mubr.f32.gmra.mrb[0].mxu0 %v1907
      %v2129 = vpop.f32.mrb[0].mxu0
      %v2130 = vadd.f32 0.0, %v2129
      %v2131 = vpop.f32.mrb[0].mxu0
      %2132 = vmatprep.mubr.f32.mxu0 0.0
      %2133 = vmatmul.mubr.f32.gmra.mrb[0].mxu0 %v1910
      %v2134 = vpop.f32.mrb[0].mxu0
      %v2135 = vadd.f32 0.0, %v2134
      %v2136 = vpop.f32.mrb[0].mxu0
      %2137 = vmatprep.mubr.f32.mxu0 0.0
      %2138 = vmatmul.mubr.f32.gmra.mrb[0].mxu0 %v1913
      %v2139 = vpop.f32.mrb[0].mxu0
      %v2140 = vadd.f32 0.0, %v2139
      %v2141 = vpop.f32.mrb[0].mxu0
      %2142 = vdwg.mxu0
      %v2143 = vadd.f32 %v1754, %v1985
      %v2144 = vadd.f32 %v1755, %v1990
      %v2145 = vadd.f32 %v1756, %v1995
      %v2146 = vadd.f32 %v1757, %v2000
      %v2147 = vadd.f32 %v1758, %v2005
      %v2148 = vadd.f32 %v1759, %v2010
      %v2149 = vadd.f32 %v1760, %v2015
      %v2150 = vadd.f32 %v1761, %v2020
      %v2151 = vadd.f32 %v1762, %v2025
      %v2152 = vadd.f32 %v1763, %v2030
      %v2153 = vadd.f32 %v1764, %v2035
      %v2154 = vadd.f32 %v1765, %v2040
      %v2155 = vadd.f32 %v1766, %v2045
      %v2156 = vadd.f32 %v1767, %v2050
      %v2157 = vadd.f32 %v1768, %v2055
      %v2158 = vadd.f32 %v1769, %v2060
      %v2159 = vadd.f32 %v1770, %v2065
      %v2160 = vadd.f32 %v1771, %v2070
      %v2161 = vadd.f32 %v1772, %v2075
      %v2162 = vadd.f32 %v1773, %v2080
      %v2163 = vadd.f32 %v1774, %v2085
      %v2164 = vadd.f32 %v1775, %v2090
      %v2165 = vadd.f32 %v1776, %v2095
      %v2166 = vadd.f32 %v1777, %v2100
      %v2167 = vadd.f32 %v1778, %v2105
      %v2168 = vadd.f32 %v1779, %v2110
      %v2169 = vadd.f32 %v1780, %v2115
      %v2170 = vadd.f32 %v1781, %v2120
      %v2171 = vadd.f32 %v1782, %v2125
      %v2172 = vadd.f32 %v1783, %v2130
      %v2173 = vadd.f32 %v1784, %v2135
      %v2174 = vadd.f32 %v1785, %v2140
      %v2175 = vld [vmem:[%s260 + $0x2] sm:$0xff]
      %v2176 = vld [vmem:[%s260 + $0xa] sm:$0xff]
      %v2177 = vld [vmem:[%s260 + $0x1a] sm:$0xff]
      %v2178 = vld [vmem:[%s260 + $0x22] sm:$0xff]
      %v2179 = vld [vmem:[%s260 + $0x32] sm:$0xff]
      %v2180 = vld [vmem:[%s260 + $0x3a] sm:$0xff]
      %v2181 = vld [vmem:[%s260 + $0x4a] sm:$0xff]
      %v2182 = vld [vmem:[%s260 + $0x52] sm:$0xff]
      %v2183 = vld [vmem:[%s260 + $0x62] sm:$0xff]
      %v2184 = vld [vmem:[%s260 + $0x6a] sm:$0xff]
      %v2185 = vld [vmem:[%s260 + $0x7a] sm:$0xff]
      %v2186 = vld [vmem:[%s260 + $0x82] sm:$0xff]
      %v2187 = vld [vmem:[%s260 + $0x92] sm:$0xff]
      %v2188 = vld [vmem:[%s260 + $0x9a] sm:$0xff]
      %v2189 = vld [vmem:[%s260 + $0xaa] sm:$0xff]
      %v2190 = vld [vmem:[%s260 + $0xb2] sm:$0xff]
      %v2191 = vld [vmem:[%s260 + $0xc2] sm:$0xff]
      %v2192 = vld [vmem:[%s260 + $0xca] sm:$0xff]
      %v2193 = vld [vmem:[%s260 + $0xda] sm:$0xff]
      %v2194 = vld [vmem:[%s260 + $0xe2] sm:$0xff]
      %v2195 = vld [vmem:[%s260 + $0xf2] sm:$0xff]
      %v2196 = vld [vmem:[%s260 + $0xfa] sm:$0xff]
      %v2197 = vld [vmem:[%s260 + $0x10a] sm:$0xff]
      %v2198 = vld [vmem:[%s260 + $0x112] sm:$0xff]
      %v2199 = vld [vmem:[%s260 + $0x122] sm:$0xff]
      %v2200 = vld [vmem:[%s260 + $0x12a] sm:$0xff]
      %v2201 = vld [vmem:[%s260 + $0x13a] sm:$0xff]
      %v2202 = vld [vmem:[%s260 + $0x142] sm:$0xff]
      %v2203 = vld [vmem:[%s260 + $0x152] sm:$0xff]
      %v2204 = vld [vmem:[%s260 + $0x15a] sm:$0xff]
      %v2205 = vld [vmem:[%s260 + $0x16a] sm:$0xff]
      %v2206 = vld [vmem:[%s260 + $0x172] sm:$0xff]
      %v2207 = vld [vmem:[%s1 + $0x14] sm:$0xf]
      %v2209 = vsel %vm182, %v2175, 0
      %v2212 = vsel %vm182, %v2176, 0
      %v2215 = vsel %vm182, %v2177, 0
      %v2218 = vsel %vm182, %v2178, 0
      %v2221 = vsel %vm182, %v2179, 0
      %v2224 = vsel %vm182, %v2180, 0
      %v2227 = vsel %vm182, %v2181, 0
      %v2230 = vsel %vm182, %v2182, 0
      %v2233 = vsel %vm182, %v2183, 0
      %v2236 = vsel %vm182, %v2184, 0
      %v2239 = vsel %vm182, %v2185, 0
      %v2242 = vsel %vm182, %v2186, 0
      %v2245 = vsel %vm182, %v2187, 0
      %v2248 = vsel %vm182, %v2188, 0
      %v2251 = vsel %vm182, %v2189, 0
      %v2254 = vsel %vm182, %v2190, 0
      %v2257 = vsel %vm182, %v2191, 0
      %v2260 = vsel %vm182, %v2192, 0
      %v2263 = vsel %vm182, %v2193, 0
      %v2266 = vsel %vm182, %v2194, 0
      %v2269 = vsel %vm182, %v2195, 0
      %v2272 = vsel %vm182, %v2196, 0
      %v2275 = vsel %vm182, %v2197, 0
      %v2278 = vsel %vm182, %v2198, 0
      %v2281 = vsel %vm182, %v2199, 0
      %v2284 = vsel %vm182, %v2200, 0
      %v2287 = vsel %vm182, %v2201, 0
      %v2290 = vsel %vm182, %v2202, 0
      %v2293 = vsel %vm182, %v2203, 0
      %v2296 = vsel %vm182, %v2204, 0
      %v2299 = vsel %vm182, %v2205, 0
      %v2302 = vsel %vm182, %v2206, 0
      %v2305 = vsel %vm455, %v2207, 0
      %2307 = vmatprep.subr.mxu0 0.0
      %2308 = vmatpush1.msra.mxu0 %v2305
      %2309 = vmatprep.subr.mxu0 0.0
      %2310 = vmatpush1.msra.mxu0 0.0
      %2311 = vmatprep.subr.mxu0 0.0
      %2312 = vmatpush1.msra.mxu0 0.0
      %2313 = vmatprep.subr.mxu0 0.0
      %2314 = vmatpush1.msra.mxu0 0.0
      %2315 = vmatprep.subr.mxu0 0.0
      %2316 = vmatpush1.msra.mxu0 0.0
      %2317 = vmatprep.subr.mxu0 0.0
      %2318 = vmatpush1.msra.mxu0 0.0
      %2319 = vmatprep.subr.mxu0 0.0
      %2320 = vmatpush1.msra.mxu0 0.0
      %2321 = vmatprep.subr.mxu0 0.0
      %2322 = vmatpush1.msra.mxu0 0.0
      %2323 = vmatprep.subr.mxu0 0.0
      %2324 = vmatpush1.msra.mxu0 0.0
      %2325 = vmatprep.subr.mxu0 0.0
      %2326 = vmatpush1.msra.mxu0 0.0
      %2327 = vmatprep.subr.mxu0 0.0
      %2328 = vmatpush1.msra.mxu0 0.0
      %2329 = vmatprep.subr.mxu0 0.0
      %2330 = vmatpush1.msra.mxu0 0.0
      %2331 = vmatprep.subr.mxu0 0.0
      %2332 = vmatpush1.msra.mxu0 0.0
      %2333 = vmatprep.subr.mxu0 0.0
      %2334 = vmatpush1.msra.mxu0 0.0
      %2335 = vmatprep.subr.mxu0 0.0
      %2336 = vmatpush1.msra.mxu0 0.0
      %2337 = vmatprep.subr.mxu0 0.0
      %2338 = vmatpush1.msra.mxu0 0.0
      %2339 = vmatprep.subr.mxu0 0.0
      %2340 = vmatpush1.msra.mxu0 0.0
      %2341 = vmatprep.subr.mxu0 0.0
      %2342 = vmatpush1.msra.mxu0 0.0
      %2343 = vmatprep.subr.mxu0 0.0
      %2344 = vmatpush1.msra.mxu0 0.0
      %2345 = vmatprep.subr.mxu0 0.0
      %2346 = vmatpush1.msra.mxu0 0.0
      %2347 = vmatprep.subr.mxu0 0.0
      %2348 = vmatpush1.msra.mxu0 0.0
      %2349 = vmatprep.subr.mxu0 0.0
      %2350 = vmatpush1.msra.mxu0 0.0
      %2351 = vmatprep.subr.mxu0 0.0
      %2352 = vmatpush1.msra.mxu0 0.0
      %2353 = vmatprep.subr.mxu0 0.0
      %2354 = vmatpush1.msra.mxu0 0.0
      %2355 = vmatprep.subr.mxu0 0.0
      %2356 = vmatpush1.msra.mxu0 0.0
      %2357 = vmatprep.subr.mxu0 0.0
      %2358 = vmatpush1.msra.mxu0 0.0
      %2359 = vmatprep.subr.mxu0 0.0
      %2360 = vmatpush1.msra.mxu0 0.0
      %2361 = vmatprep.subr.mxu0 0.0
      %2362 = vmatpush1.msra.mxu0 0.0
      %2363 = vmatprep.subr.mxu0 0.0
      %2364 = vmatpush1.msra.mxu0 0.0
      %2365 = vmatprep.subr.mxu0 0.0
      %2366 = vmatpush1.msra.mxu0 0.0
      %2367 = vmatprep.subr.mxu0 0.0
      %2368 = vmatpush1.msra.mxu0 0.0
      %2369 = vmatprep.subr.mxu0 0.0
      %2370 = vmatpush1.msra.mxu0 0.0
      %2371 = vmatprep.mubr.f32.mxu0 0.0
      %2372 = vmatmul.mubr.f32.gmra.mrb[0].mxu0 %v2209
      %v2373 = vpop.f32.mrb[0].mxu0
      %v2374 = vadd.f32 0.0, %v2373
      %v2375 = vpop.f32.mrb[0].mxu0
      %2376 = vmatprep.mubr.f32.mxu0 0.0
      %2377 = vmatmul.mubr.f32.gmra.mrb[0].mxu0 %v2212
      %v2378 = vpop.f32.mrb[0].mxu0
      %v2379 = vadd.f32 0.0, %v2378
      %v2380 = vpop.f32.mrb[0].mxu0
      %2381 = vmatprep.mubr.f32.mxu0 0.0
      %2382 = vmatmul.mubr.f32.gmra.mrb[0].mxu0 %v2215
      %v2383 = vpop.f32.mrb[0].mxu0
      %v2384 = vadd.f32 0.0, %v2383
      %v2385 = vpop.f32.mrb[0].mxu0
      %2386 = vmatprep.mubr.f32.mxu0 0.0
      %2387 = vmatmul.mubr.f32.gmra.mrb[0].mxu0 %v2218
      %v2388 = vpop.f32.mrb[0].mxu0
      %v2389 = vadd.f32 0.0, %v2388
      %v2390 = vpop.f32.mrb[0].mxu0
      %2391 = vmatprep.mubr.f32.mxu0 0.0
      %2392 = vmatmul.mubr.f32.gmra.mrb[0].mxu0 %v2221
      %v2393 = vpop.f32.mrb[0].mxu0
      %v2394 = vadd.f32 0.0, %v2393
      %v2395 = vpop.f32.mrb[0].mxu0
      %2396 = vmatprep.mubr.f32.mxu0 0.0
      %2397 = vmatmul.mubr.f32.gmra.mrb[0].mxu0 %v2224
      %v2398 = vpop.f32.mrb[0].mxu0
      %v2399 = vadd.f32 0.0, %v2398
      %v2400 = vpop.f32.mrb[0].mxu0
      %2401 = vmatprep.mubr.f32.mxu0 0.0
      %2402 = vmatmul.mubr.f32.gmra.mrb[0].mxu0 %v2227
      %v2403 = vpop.f32.mrb[0].mxu0
      %v2404 = vadd.f32 0.0, %v2403
      %v2405 = vpop.f32.mrb[0].mxu0
      %2406 = vmatprep.mubr.f32.mxu0 0.0
      %2407 = vmatmul.mubr.f32.gmra.mrb[0].mxu0 %v2230
      %v2408 = vpop.f32.mrb[0].mxu0
      %v2409 = vadd.f32 0.0, %v2408
      %v2410 = vpop.f32.mrb[0].mxu0
      %2411 = vmatprep.mubr.f32.mxu0 0.0
      %2412 = vmatmul.mubr.f32.gmra.mrb[0].mxu0 %v2233
      %v2413 = vpop.f32.mrb[0].mxu0
      %v2414 = vadd.f32 0.0, %v2413
      %v2415 = vpop.f32.mrb[0].mxu0
      %2416 = vmatprep.mubr.f32.mxu0 0.0
      %2417 = vmatmul.mubr.f32.gmra.mrb[0].mxu0 %v2236
      %v2418 = vpop.f32.mrb[0].mxu0
      %v2419 = vadd.f32 0.0, %v2418
      %v2420 = vpop.f32.mrb[0].mxu0
      %2421 = vmatprep.mubr.f32.mxu0 0.0
      %2422 = vmatmul.mubr.f32.gmra.mrb[0].mxu0 %v2239
      %v2423 = vpop.f32.mrb[0].mxu0
      %v2424 = vadd.f32 0.0, %v2423
      %v2425 = vpop.f32.mrb[0].mxu0
      %2426 = vmatprep.mubr.f32.mxu0 0.0
      %2427 = vmatmul.mubr.f32.gmra.mrb[0].mxu0 %v2242
      %v2428 = vpop.f32.mrb[0].mxu0
      %v2429 = vadd.f32 0.0, %v2428
      %v2430 = vpop.f32.mrb[0].mxu0
      %2431 = vmatprep.mubr.f32.mxu0 0.0
      %2432 = vmatmul.mubr.f32.gmra.mrb[0].mxu0 %v2245
      %v2433 = vpop.f32.mrb[0].mxu0
      %v2434 = vadd.f32 0.0, %v2433
      %v2435 = vpop.f32.mrb[0].mxu0
      %2436 = vmatprep.mubr.f32.mxu0 0.0
      %2437 = vmatmul.mubr.f32.gmra.mrb[0].mxu0 %v2248
      %v2438 = vpop.f32.mrb[0].mxu0
      %v2439 = vadd.f32 0.0, %v2438
      %v2440 = vpop.f32.mrb[0].mxu0
      %2441 = vmatprep.mubr.f32.mxu0 0.0
      %2442 = vmatmul.mubr.f32.gmra.mrb[0].mxu0 %v2251
      %v2443 = vpop.f32.mrb[0].mxu0
      %v2444 = vadd.f32 0.0, %v2443
      %v2445 = vpop.f32.mrb[0].mxu0
      %2446 = vmatprep.mubr.f32.mxu0 0.0
      %2447 = vmatmul.mubr.f32.gmra.mrb[0].mxu0 %v2254
      %v2448 = vpop.f32.mrb[0].mxu0
      %v2449 = vadd.f32 0.0, %v2448
      %v2450 = vpop.f32.mrb[0].mxu0
      %2451 = vmatprep.mubr.f32.mxu0 0.0
      %2452 = vmatmul.mubr.f32.gmra.mrb[0].mxu0 %v2257
      %v2453 = vpop.f32.mrb[0].mxu0
      %v2454 = vadd.f32 0.0, %v2453
      %v2455 = vpop.f32.mrb[0].mxu0
      %2456 = vmatprep.mubr.f32.mxu0 0.0
      %2457 = vmatmul.mubr.f32.gmra.mrb[0].mxu0 %v2260
      %v2458 = vpop.f32.mrb[0].mxu0
      %v2459 = vadd.f32 0.0, %v2458
      %v2460 = vpop.f32.mrb[0].mxu0
      %2461 = vmatprep.mubr.f32.mxu0 0.0
      %2462 = vmatmul.mubr.f32.gmra.mrb[0].mxu0 %v2263
      %v2463 = vpop.f32.mrb[0].mxu0
      %v2464 = vadd.f32 0.0, %v2463
      %v2465 = vpop.f32.mrb[0].mxu0
      %2466 = vmatprep.mubr.f32.mxu0 0.0
      %2467 = vmatmul.mubr.f32.gmra.mrb[0].mxu0 %v2266
      %v2468 = vpop.f32.mrb[0].mxu0
      %v2469 = vadd.f32 0.0, %v2468
      %v2470 = vpop.f32.mrb[0].mxu0
      %2471 = vmatprep.mubr.f32.mxu0 0.0
      %2472 = vmatmul.mubr.f32.gmra.mrb[0].mxu0 %v2269
      %v2473 = vpop.f32.mrb[0].mxu0
      %v2474 = vadd.f32 0.0, %v2473
      %v2475 = vpop.f32.mrb[0].mxu0
      %2476 = vmatprep.mubr.f32.mxu0 0.0
      %2477 = vmatmul.mubr.f32.gmra.mrb[0].mxu0 %v2272
      %v2478 = vpop.f32.mrb[0].mxu0
      %v2479 = vadd.f32 0.0, %v2478
      %v2480 = vpop.f32.mrb[0].mxu0
      %2481 = vmatprep.mubr.f32.mxu0 0.0
      %2482 = vmatmul.mubr.f32.gmra.mrb[0].mxu0 %v2275
      %v2483 = vpop.f32.mrb[0].mxu0
      %v2484 = vadd.f32 0.0, %v2483
      %v2485 = vpop.f32.mrb[0].mxu0
      %2486 = vmatprep.mubr.f32.mxu0 0.0
      %2487 = vmatmul.mubr.f32.gmra.mrb[0].mxu0 %v2278
      %v2488 = vpop.f32.mrb[0].mxu0
      %v2489 = vadd.f32 0.0, %v2488
      %v2490 = vpop.f32.mrb[0].mxu0
      %2491 = vmatprep.mubr.f32.mxu0 0.0
      %2492 = vmatmul.mubr.f32.gmra.mrb[0].mxu0 %v2281
      %v2493 = vpop.f32.mrb[0].mxu0
      %v2494 = vadd.f32 0.0, %v2493
      %v2495 = vpop.f32.mrb[0].mxu0
      %2496 = vmatprep.mubr.f32.mxu0 0.0
      %2497 = vmatmul.mubr.f32.gmra.mrb[0].mxu0 %v2284
      %v2498 = vpop.f32.mrb[0].mxu0
      %v2499 = vadd.f32 0.0, %v2498
      %v2500 = vpop.f32.mrb[0].mxu0
      %2501 = vmatprep.mubr.f32.mxu0 0.0
      %2502 = vmatmul.mubr.f32.gmra.mrb[0].mxu0 %v2287
      %v2503 = vpop.f32.mrb[0].mxu0
      %v2504 = vadd.f32 0.0, %v2503
      %v2505 = vpop.f32.mrb[0].mxu0
      %2506 = vmatprep.mubr.f32.mxu0 0.0
      %2507 = vmatmul.mubr.f32.gmra.mrb[0].mxu0 %v2290
      %v2508 = vpop.f32.mrb[0].mxu0
      %v2509 = vadd.f32 0.0, %v2508
      %v2510 = vpop.f32.mrb[0].mxu0
      %2511 = vmatprep.mubr.f32.mxu0 0.0
      %2512 = vmatmul.mubr.f32.gmra.mrb[0].mxu0 %v2293
      %v2513 = vpop.f32.mrb[0].mxu0
      %v2514 = vadd.f32 0.0, %v2513
      %v2515 = vpop.f32.mrb[0].mxu0
      %2516 = vmatprep.mubr.f32.mxu0 0.0
      %2517 = vmatmul.mubr.f32.gmra.mrb[0].mxu0 %v2296
      %v2518 = vpop.f32.mrb[0].mxu0
      %v2519 = vadd.f32 0.0, %v2518
      %v2520 = vpop.f32.mrb[0].mxu0
      %2521 = vmatprep.mubr.f32.mxu0 0.0
      %2522 = vmatmul.mubr.f32.gmra.mrb[0].mxu0 %v2299
      %v2523 = vpop.f32.mrb[0].mxu0
      %v2524 = vadd.f32 0.0, %v2523
      %v2525 = vpop.f32.mrb[0].mxu0
      %2526 = vmatprep.mubr.f32.mxu0 0.0
      %2527 = vmatmul.mubr.f32.gmra.mrb[0].mxu0 %v2302
      %v2528 = vpop.f32.mrb[0].mxu0
      %v2529 = vadd.f32 0.0, %v2528
      %v2530 = vpop.f32.mrb[0].mxu0
      %2531 = vdwg.mxu0
      %v2532 = vadd.f32 %v2143, %v2374
      %v2533 = vadd.f32 %v2144, %v2379
      %v2534 = vadd.f32 %v2145, %v2384
      %v2535 = vadd.f32 %v2146, %v2389
      %v2536 = vadd.f32 %v2147, %v2394
      %v2537 = vadd.f32 %v2148, %v2399
      %v2538 = vadd.f32 %v2149, %v2404
      %v2539 = vadd.f32 %v2150, %v2409
      %v2540 = vadd.f32 %v2151, %v2414
      %v2541 = vadd.f32 %v2152, %v2419
      %v2542 = vadd.f32 %v2153, %v2424
      %v2543 = vadd.f32 %v2154, %v2429
      %v2544 = vadd.f32 %v2155, %v2434
      %v2545 = vadd.f32 %v2156, %v2439
      %v2546 = vadd.f32 %v2157, %v2444
      %v2547 = vadd.f32 %v2158, %v2449
      %v2548 = vadd.f32 %v2159, %v2454
      %v2549 = vadd.f32 %v2160, %v2459
      %v2550 = vadd.f32 %v2161, %v2464
      %v2551 = vadd.f32 %v2162, %v2469
      %v2552 = vadd.f32 %v2163, %v2474
      %v2553 = vadd.f32 %v2164, %v2479
      %v2554 = vadd.f32 %v2165, %v2484
      %v2555 = vadd.f32 %v2166, %v2489
      %v2556 = vadd.f32 %v2167, %v2494
      %v2557 = vadd.f32 %v2168, %v2499
      %v2558 = vadd.f32 %v2169, %v2504
      %v2559 = vadd.f32 %v2170, %v2509
      %v2560 = vadd.f32 %v2171, %v2514
      %v2561 = vadd.f32 %v2172, %v2519
      %v2562 = vadd.f32 %v2173, %v2524
      %v2563 = vadd.f32 %v2174, %v2529
      %s2564 = scalar_lea.vmem [#allocation2], 48
      %v2565 = vld [vmem:[%s2564] sm:$0xff]
      %v2566 = vld [vmem:[%s2564 + $0x8] sm:$0xff]
      %v2567 = vld [vmem:[%s2564 + $0x18] sm:$0xff]
      %v2568 = vld [vmem:[%s2564 + $0x20] sm:$0xff]
      %v2569 = vld [vmem:[%s2564 + $0x30] sm:$0xff]
      %v2570 = vld [vmem:[%s2564 + $0x38] sm:$0xff]
      %v2571 = vld [vmem:[%s2564 + $0x48] sm:$0xff]
      %v2572 = vld [vmem:[%s2564 + $0x50] sm:$0xff]
      %v2573 = vld [vmem:[%s2564 + $0x60] sm:$0xff]
      %v2574 = vld [vmem:[%s2564 + $0x68] sm:$0xff]
      %v2575 = vld [vmem:[%s2564 + $0x78] sm:$0xff]
      %v2576 = vld [vmem:[%s2564 + $0x80] sm:$0xff]
      %v2577 = vld [vmem:[%s2564 + $0x90] sm:$0xff]
      %v2578 = vld [vmem:[%s2564 + $0x98] sm:$0xff]
      %v2579 = vld [vmem:[%s2564 + $0xa8] sm:$0xff]
      %v2580 = vld [vmem:[%s2564 + $0xb0] sm:$0xff]
      %v2581 = vld [vmem:[%s2564 + $0xc0] sm:$0xff]
      %v2582 = vld [vmem:[%s2564 + $0xc8] sm:$0xff]
      %v2583 = vld [vmem:[%s2564 + $0xd8] sm:$0xff]
      %v2584 = vld [vmem:[%s2564 + $0xe0] sm:$0xff]
      %v2585 = vld [vmem:[%s2564 + $0xf0] sm:$0xff]
      %v2586 = vld [vmem:[%s2564 + $0xf8] sm:$0xff]
      %v2587 = vld [vmem:[%s2564 + $0x108] sm:$0xff]
      %v2588 = vld [vmem:[%s2564 + $0x110] sm:$0xff]
      %v2589 = vld [vmem:[%s2564 + $0x120] sm:$0xff]
      %v2590 = vld [vmem:[%s2564 + $0x128] sm:$0xff]
      %v2591 = vld [vmem:[%s2564 + $0x138] sm:$0xff]
      %v2592 = vld [vmem:[%s2564 + $0x140] sm:$0xff]
      %v2593 = vld [vmem:[%s2564 + $0x150] sm:$0xff]
      %v2594 = vld [vmem:[%s2564 + $0x158] sm:$0xff]
      %v2595 = vld [vmem:[%s2564 + $0x168] sm:$0xff]
      %v2596 = vld [vmem:[%s2564 + $0x170] sm:$0xff]
      %v2597 = vld [vmem:[%s1 + $0x18] sm:$0xf]
      %v2599 = vsel %vm182, %v2565, 0
      %v2602 = vsel %vm182, %v2566, 0
      %v2605 = vsel %vm182, %v2567, 0
      %v2608 = vsel %vm182, %v2568, 0
      %v2611 = vsel %vm182, %v2569, 0
      %v2614 = vsel %vm182, %v2570, 0
      %v2617 = vsel %vm182, %v2571, 0
      %v2620 = vsel %vm182, %v2572, 0
      %v2623 = vsel %vm182, %v2573, 0
      %v2626 = vsel %vm182, %v2574, 0
      %v2629 = vsel %vm182, %v2575, 0
      %v2632 = vsel %vm182, %v2576, 0
      %v2635 = vsel %vm182, %v2577, 0
      %v2638 = vsel %vm182, %v2578, 0
      %v2641 = vsel %vm182, %v2579, 0
      %v2644 = vsel %vm182, %v2580, 0
      %v2647 = vsel %vm182, %v2581, 0
      %v2650 = vsel %vm182, %v2582, 0
      %v2653 = vsel %vm182, %v2583, 0
      %v2656 = vsel %vm182, %v2584, 0
      %v2659 = vsel %vm182, %v2585, 0
      %v2662 = vsel %vm182, %v2586, 0
      %v2665 = vsel %vm182, %v2587, 0
      %v2668 = vsel %vm182, %v2588, 0
      %v2671 = vsel %vm182, %v2589, 0
      %v2674 = vsel %vm182, %v2590, 0
      %v2677 = vsel %vm182, %v2591, 0
      %v2680 = vsel %vm182, %v2592, 0
      %v2683 = vsel %vm182, %v2593, 0
      %v2686 = vsel %vm182, %v2594, 0
      %v2689 = vsel %vm182, %v2595, 0
      %v2692 = vsel %vm182, %v2596, 0
      %v2695 = vsel %vm455, %v2597, 0
      %2697 = vmatprep.subr.mxu0 0.0
      %2698 = vmatpush1.msra.mxu0 %v2695
      %2699 = vmatprep.subr.mxu0 0.0
      %2700 = vmatpush1.msra.mxu0 0.0
      %2701 = vmatprep.subr.mxu0 0.0
      %2702 = vmatpush1.msra.mxu0 0.0
      %2703 = vmatprep.subr.mxu0 0.0
      %2704 = vmatpush1.msra.mxu0 0.0
      %2705 = vmatprep.subr.mxu0 0.0
      %2706 = vmatpush1.msra.mxu0 0.0
      %2707 = vmatprep.subr.mxu0 0.0
      %2708 = vmatpush1.msra.mxu0 0.0
      %2709 = vmatprep.subr.mxu0 0.0
      %2710 = vmatpush1.msra.mxu0 0.0
      %2711 = vmatprep.subr.mxu0 0.0
      %2712 = vmatpush1.msra.mxu0 0.0
      %2713 = vmatprep.subr.mxu0 0.0
      %2714 = vmatpush1.msra.mxu0 0.0
      %2715 = vmatprep.subr.mxu0 0.0
      %2716 = vmatpush1.msra.mxu0 0.0
      %2717 = vmatprep.subr.mxu0 0.0
      %2718 = vmatpush1.msra.mxu0 0.0
      %2719 = vmatprep.subr.mxu0 0.0
      %2720 = vmatpush1.msra.mxu0 0.0
      %2721 = vmatprep.subr.mxu0 0.0
      %2722 = vmatpush1.msra.mxu0 0.0
      %2723 = vmatprep.subr.mxu0 0.0
      %2724 = vmatpush1.msra.mxu0 0.0
      %2725 = vmatprep.subr.mxu0 0.0
      %2726 = vmatpush1.msra.mxu0 0.0
      %2727 = vmatprep.subr.mxu0 0.0
      %2728 = vmatpush1.msra.mxu0 0.0
      %2729 = vmatprep.subr.mxu0 0.0
      %2730 = vmatpush1.msra.mxu0 0.0
      %2731 = vmatprep.subr.mxu0 0.0
      %2732 = vmatpush1.msra.mxu0 0.0
      %2733 = vmatprep.subr.mxu0 0.0
      %2734 = vmatpush1.msra.mxu0 0.0
      %2735 = vmatprep.subr.mxu0 0.0
      %2736 = vmatpush1.msra.mxu0 0.0
      %2737 = vmatprep.subr.mxu0 0.0
      %2738 = vmatpush1.msra.mxu0 0.0
      %2739 = vmatprep.subr.mxu0 0.0
      %2740 = vmatpush1.msra.mxu0 0.0
      %2741 = vmatprep.subr.mxu0 0.0
      %2742 = vmatpush1.msra.mxu0 0.0
      %2743 = vmatprep.subr.mxu0 0.0
      %2744 = vmatpush1.msra.mxu0 0.0
      %2745 = vmatprep.subr.mxu0 0.0
      %2746 = vmatpush1.msra.mxu0 0.0
      %2747 = vmatprep.subr.mxu0 0.0
      %2748 = vmatpush1.msra.mxu0 0.0
      %2749 = vmatprep.subr.mxu0 0.0
      %2750 = vmatpush1.msra.mxu0 0.0
      %2751 = vmatprep.subr.mxu0 0.0
      %2752 = vmatpush1.msra.mxu0 0.0
      %2753 = vmatprep.subr.mxu0 0.0
      %2754 = vmatpush1.msra.mxu0 0.0
      %2755 = vmatprep.subr.mxu0 0.0
      %2756 = vmatpush1.msra.mxu0 0.0
      %2757 = vmatprep.subr.mxu0 0.0
      %2758 = vmatpush1.msra.mxu0 0.0
      %2759 = vmatprep.subr.mxu0 0.0
      %2760 = vmatpush1.msra.mxu0 0.0
      %2761 = vmatprep.mubr.f32.mxu0 0.0
      %2762 = vmatmul.mubr.f32.gmra.mrb[0].mxu0 %v2599
      %v2763 = vpop.f32.mrb[0].mxu0
      %v2764 = vadd.f32 0.0, %v2763
      %v2765 = vpop.f32.mrb[0].mxu0
      %2766 = vmatprep.mubr.f32.mxu0 0.0
      %2767 = vmatmul.mubr.f32.gmra.mrb[0].mxu0 %v2602
      %v2768 = vpop.f32.mrb[0].mxu0
      %v2769 = vadd.f32 0.0, %v2768
      %v2770 = vpop.f32.mrb[0].mxu0
      %2771 = vmatprep.mubr.f32.mxu0 0.0
      %2772 = vmatmul.mubr.f32.gmra.mrb[0].mxu0 %v2605
      %v2773 = vpop.f32.mrb[0].mxu0
      %v2774 = vadd.f32 0.0, %v2773
      %v2775 = vpop.f32.mrb[0].mxu0
      %2776 = vmatprep.mubr.f32.mxu0 0.0
      %2777 = vmatmul.mubr.f32.gmra.mrb[0].mxu0 %v2608
      %v2778 = vpop.f32.mrb[0].mxu0
      %v2779 = vadd.f32 0.0, %v2778
      %v2780 = vpop.f32.mrb[0].mxu0
      %2781 = vmatprep.mubr.f32.mxu0 0.0
      %2782 = vmatmul.mubr.f32.gmra.mrb[0].mxu0 %v2611
      %v2783 = vpop.f32.mrb[0].mxu0
      %v2784 = vadd.f32 0.0, %v2783
      %v2785 = vpop.f32.mrb[0].mxu0
      %2786 = vmatprep.mubr.f32.mxu0 0.0
      %2787 = vmatmul.mubr.f32.gmra.mrb[0].mxu0 %v2614
      %v2788 = vpop.f32.mrb[0].mxu0
      %v2789 = vadd.f32 0.0, %v2788
      %v2790 = vpop.f32.mrb[0].mxu0
      %2791 = vmatprep.mubr.f32.mxu0 0.0
      %2792 = vmatmul.mubr.f32.gmra.mrb[0].mxu0 %v2617
      %v2793 = vpop.f32.mrb[0].mxu0
      %v2794 = vadd.f32 0.0, %v2793
      %v2795 = vpop.f32.mrb[0].mxu0
      %2796 = vmatprep.mubr.f32.mxu0 0.0
      %2797 = vmatmul.mubr.f32.gmra.mrb[0].mxu0 %v2620
      %v2798 = vpop.f32.mrb[0].mxu0
      %v2799 = vadd.f32 0.0, %v2798
      %v2800 = vpop.f32.mrb[0].mxu0
      %2801 = vmatprep.mubr.f32.mxu0 0.0
      %2802 = vmatmul.mubr.f32.gmra.mrb[0].mxu0 %v2623
      %v2803 = vpop.f32.mrb[0].mxu0
      %v2804 = vadd.f32 0.0, %v2803
      %v2805 = vpop.f32.mrb[0].mxu0
      %2806 = vmatprep.mubr.f32.mxu0 0.0
      %2807 = vmatmul.mubr.f32.gmra.mrb[0].mxu0 %v2626
      %v2808 = vpop.f32.mrb[0].mxu0
      %v2809 = vadd.f32 0.0, %v2808
      %v2810 = vpop.f32.mrb[0].mxu0
      %2811 = vmatprep.mubr.f32.mxu0 0.0
      %2812 = vmatmul.mubr.f32.gmra.mrb[0].mxu0 %v2629
      %v2813 = vpop.f32.mrb[0].mxu0
      %v2814 = vadd.f32 0.0, %v2813
      %v2815 = vpop.f32.mrb[0].mxu0
      %2816 = vmatprep.mubr.f32.mxu0 0.0
      %2817 = vmatmul.mubr.f32.gmra.mrb[0].mxu0 %v2632
      %v2818 = vpop.f32.mrb[0].mxu0
      %v2819 = vadd.f32 0.0, %v2818
      %v2820 = vpop.f32.mrb[0].mxu0
      %2821 = vmatprep.mubr.f32.mxu0 0.0
      %2822 = vmatmul.mubr.f32.gmra.mrb[0].mxu0 %v2635
      %v2823 = vpop.f32.mrb[0].mxu0
      %v2824 = vadd.f32 0.0, %v2823
      %v2825 = vpop.f32.mrb[0].mxu0
      %2826 = vmatprep.mubr.f32.mxu0 0.0
      %2827 = vmatmul.mubr.f32.gmra.mrb[0].mxu0 %v2638
      %v2828 = vpop.f32.mrb[0].mxu0
      %v2829 = vadd.f32 0.0, %v2828
      %v2830 = vpop.f32.mrb[0].mxu0
      %2831 = vmatprep.mubr.f32.mxu0 0.0
      %2832 = vmatmul.mubr.f32.gmra.mrb[0].mxu0 %v2641
      %v2833 = vpop.f32.mrb[0].mxu0
      %v2834 = vadd.f32 0.0, %v2833
      %v2835 = vpop.f32.mrb[0].mxu0
      %2836 = vmatprep.mubr.f32.mxu0 0.0
      %2837 = vmatmul.mubr.f32.gmra.mrb[0].mxu0 %v2644
      %v2838 = vpop.f32.mrb[0].mxu0
      %v2839 = vadd.f32 0.0, %v2838
      %v2840 = vpop.f32.mrb[0].mxu0
      %2841 = vmatprep.mubr.f32.mxu0 0.0
      %2842 = vmatmul.mubr.f32.gmra.mrb[0].mxu0 %v2647
      %v2843 = vpop.f32.mrb[0].mxu0
      %v2844 = vadd.f32 0.0, %v2843
      %v2845 = vpop.f32.mrb[0].mxu0
      %2846 = vmatprep.mubr.f32.mxu0 0.0
      %2847 = vmatmul.mubr.f32.gmra.mrb[0].mxu0 %v2650
      %v2848 = vpop.f32.mrb[0].mxu0
      %v2849 = vadd.f32 0.0, %v2848
      %v2850 = vpop.f32.mrb[0].mxu0
      %2851 = vmatprep.mubr.f32.mxu0 0.0
      %2852 = vmatmul.mubr.f32.gmra.mrb[0].mxu0 %v2653
      %v2853 = vpop.f32.mrb[0].mxu0
      %v2854 = vadd.f32 0.0, %v2853
      %v2855 = vpop.f32.mrb[0].mxu0
      %2856 = vmatprep.mubr.f32.mxu0 0.0
      %2857 = vmatmul.mubr.f32.gmra.mrb[0].mxu0 %v2656
      %v2858 = vpop.f32.mrb[0].mxu0
      %v2859 = vadd.f32 0.0, %v2858
      %v2860 = vpop.f32.mrb[0].mxu0
      %2861 = vmatprep.mubr.f32.mxu0 0.0
      %2862 = vmatmul.mubr.f32.gmra.mrb[0].mxu0 %v2659
      %v2863 = vpop.f32.mrb[0].mxu0
      %v2864 = vadd.f32 0.0, %v2863
      %v2865 = vpop.f32.mrb[0].mxu0
      %2866 = vmatprep.mubr.f32.mxu0 0.0
      %2867 = vmatmul.mubr.f32.gmra.mrb[0].mxu0 %v2662
      %v2868 = vpop.f32.mrb[0].mxu0
      %v2869 = vadd.f32 0.0, %v2868
      %v2870 = vpop.f32.mrb[0].mxu0
      %2871 = vmatprep.mubr.f32.mxu0 0.0
      %2872 = vmatmul.mubr.f32.gmra.mrb[0].mxu0 %v2665
      %v2873 = vpop.f32.mrb[0].mxu0
      %v2874 = vadd.f32 0.0, %v2873
      %v2875 = vpop.f32.mrb[0].mxu0
      %2876 = vmatprep.mubr.f32.mxu0 0.0
      %2877 = vmatmul.mubr.f32.gmra.mrb[0].mxu0 %v2668
      %v2878 = vpop.f32.mrb[0].mxu0
      %v2879 = vadd.f32 0.0, %v2878
      %v2880 = vpop.f32.mrb[0].mxu0
      %2881 = vmatprep.mubr.f32.mxu0 0.0
      %2882 = vmatmul.mubr.f32.gmra.mrb[0].mxu0 %v2671
      %v2883 = vpop.f32.mrb[0].mxu0
      %v2884 = vadd.f32 0.0, %v2883
      %v2885 = vpop.f32.mrb[0].mxu0
      %2886 = vmatprep.mubr.f32.mxu0 0.0
      %2887 = vmatmul.mubr.f32.gmra.mrb[0].mxu0 %v2674
      %v2888 = vpop.f32.mrb[0].mxu0
      %v2889 = vadd.f32 0.0, %v2888
      %v2890 = vpop.f32.mrb[0].mxu0
      %2891 = vmatprep.mubr.f32.mxu0 0.0
      %2892 = vmatmul.mubr.f32.gmra.mrb[0].mxu0 %v2677
      %v2893 = vpop.f32.mrb[0].mxu0
      %v2894 = vadd.f32 0.0, %v2893
      %v2895 = vpop.f32.mrb[0].mxu0
      %2896 = vmatprep.mubr.f32.mxu0 0.0
      %2897 = vmatmul.mubr.f32.gmra.mrb[0].mxu0 %v2680
      %v2898 = vpop.f32.mrb[0].mxu0
      %v2899 = vadd.f32 0.0, %v2898
      %v2900 = vpop.f32.mrb[0].mxu0
      %2901 = vmatprep.mubr.f32.mxu0 0.0
      %2902 = vmatmul.mubr.f32.gmra.mrb[0].mxu0 %v2683
      %v2903 = vpop.f32.mrb[0].mxu0
      %v2904 = vadd.f32 0.0, %v2903
      %v2905 = vpop.f32.mrb[0].mxu0
      %2906 = vmatprep.mubr.f32.mxu0 0.0
      %2907 = vmatmul.mubr.f32.gmra.mrb[0].mxu0 %v2686
      %v2908 = vpop.f32.mrb[0].mxu0
      %v2909 = vadd.f32 0.0, %v2908
      %v2910 = vpop.f32.mrb[0].mxu0
      %2911 = vmatprep.mubr.f32.mxu0 0.0
      %2912 = vmatmul.mubr.f32.gmra.mrb[0].mxu0 %v2689
      %v2913 = vpop.f32.mrb[0].mxu0
      %v2914 = vadd.f32 0.0, %v2913
      %v2915 = vpop.f32.mrb[0].mxu0
      %2916 = vmatprep.mubr.f32.mxu0 0.0
      %2917 = vmatmul.mubr.f32.gmra.mrb[0].mxu0 %v2692
      %v2918 = vpop.f32.mrb[0].mxu0
      %v2919 = vadd.f32 0.0, %v2918
      %v2920 = vpop.f32.mrb[0].mxu0
      %2921 = vdwg.mxu0
      %v2922 = vadd.f32 %v2532, %v2764
      %v2923 = vadd.f32 %v2533, %v2769
      %v2924 = vadd.f32 %v2534, %v2774
      %v2925 = vadd.f32 %v2535, %v2779
      %v2926 = vadd.f32 %v2536, %v2784
      %v2927 = vadd.f32 %v2537, %v2789
      %v2928 = vadd.f32 %v2538, %v2794
      %v2929 = vadd.f32 %v2539, %v2799
      %v2930 = vadd.f32 %v2540, %v2804
      %v2931 = vadd.f32 %v2541, %v2809
      %v2932 = vadd.f32 %v2542, %v2814
      %v2933 = vadd.f32 %v2543, %v2819
      %v2934 = vadd.f32 %v2544, %v2824
      %v2935 = vadd.f32 %v2545, %v2829
      %v2936 = vadd.f32 %v2546, %v2834
      %v2937 = vadd.f32 %v2547, %v2839
      %v2938 = vadd.f32 %v2548, %v2844
      %v2939 = vadd.f32 %v2549, %v2849
      %v2940 = vadd.f32 %v2550, %v2854
      %v2941 = vadd.f32 %v2551, %v2859
      %v2942 = vadd.f32 %v2552, %v2864
      %v2943 = vadd.f32 %v2553, %v2869
      %v2944 = vadd.f32 %v2554, %v2874
      %v2945 = vadd.f32 %v2555, %v2879
      %v2946 = vadd.f32 %v2556, %v2884
      %v2947 = vadd.f32 %v2557, %v2889
      %v2948 = vadd.f32 %v2558, %v2894
      %v2949 = vadd.f32 %v2559, %v2899
      %v2950 = vadd.f32 %v2560, %v2904
      %v2951 = vadd.f32 %v2561, %v2909
      %v2952 = vadd.f32 %v2562, %v2914
      %v2953 = vadd.f32 %v2563, %v2919
      %v2954 = vld [vmem:[%s2564 + $0x1] sm:$0xff]
      %v2955 = vld [vmem:[%s2564 + $0x9] sm:$0xff]
      %v2956 = vld [vmem:[%s2564 + $0x19] sm:$0xff]
      %v2957 = vld [vmem:[%s2564 + $0x21] sm:$0xff]
      %v2958 = vld [vmem:[%s2564 + $0x31] sm:$0xff]
      %v2959 = vld [vmem:[%s2564 + $0x39] sm:$0xff]
      %v2960 = vld [vmem:[%s2564 + $0x49] sm:$0xff]
      %v2961 = vld [vmem:[%s2564 + $0x51] sm:$0xff]
      %v2962 = vld [vmem:[%s2564 + $0x61] sm:$0xff]
      %v2963 = vld [vmem:[%s2564 + $0x69] sm:$0xff]
      %v2964 = vld [vmem:[%s2564 + $0x79] sm:$0xff]
      %v2965 = vld [vmem:[%s2564 + $0x81] sm:$0xff]
      %v2966 = vld [vmem:[%s2564 + $0x91] sm:$0xff]
      %v2967 = vld [vmem:[%s2564 + $0x99] sm:$0xff]
      %v2968 = vld [vmem:[%s2564 + $0xa9] sm:$0xff]
      %v2969 = vld [vmem:[%s2564 + $0xb1] sm:$0xff]
      %v2970 = vld [vmem:[%s2564 + $0xc1] sm:$0xff]
      %v2971 = vld [vmem:[%s2564 + $0xc9] sm:$0xff]
      %v2972 = vld [vmem:[%s2564 + $0xd9] sm:$0xff]
      %v2973 = vld [vmem:[%s2564 + $0xe1] sm:$0xff]
      %v2974 = vld [vmem:[%s2564 + $0xf1] sm:$0xff]
      %v2975 = vld [vmem:[%s2564 + $0xf9] sm:$0xff]
      %v2976 = vld [vmem:[%s2564 + $0x109] sm:$0xff]
      %v2977 = vld [vmem:[%s2564 + $0x111] sm:$0xff]
      %v2978 = vld [vmem:[%s2564 + $0x121] sm:$0xff]
      %v2979 = vld [vmem:[%s2564 + $0x129] sm:$0xff]
      %v2980 = vld [vmem:[%s2564 + $0x139] sm:$0xff]
      %v2981 = vld [vmem:[%s2564 + $0x141] sm:$0xff]
      %v2982 = vld [vmem:[%s2564 + $0x151] sm:$0xff]
      %v2983 = vld [vmem:[%s2564 + $0x159] sm:$0xff]
      %v2984 = vld [vmem:[%s2564 + $0x169] sm:$0xff]
      %v2985 = vld [vmem:[%s2564 + $0x171] sm:$0xff]
      %v2986 = vld [vmem:[%s1 + $0x1c] sm:$0xf]
      %v2988 = vsel %vm182, %v2954, 0
      %v2991 = vsel %vm182, %v2955, 0
      %v2994 = vsel %vm182, %v2956, 0
      %v2997 = vsel %vm182, %v2957, 0
      %v3000 = vsel %vm182, %v2958, 0
      %v3003 = vsel %vm182, %v2959, 0
      %v3006 = vsel %vm182, %v2960, 0
      %v3009 = vsel %vm182, %v2961, 0
      %v3012 = vsel %vm182, %v2962, 0
      %v3015 = vsel %vm182, %v2963, 0
      %v3018 = vsel %vm182, %v2964, 0
      %v3021 = vsel %vm182, %v2965, 0
      %v3024 = vsel %vm182, %v2966, 0
      %v3027 = vsel %vm182, %v2967, 0
      %v3030 = vsel %vm182, %v2968, 0
      %v3033 = vsel %vm182, %v2969, 0
      %v3036 = vsel %vm182, %v2970, 0
      %v3039 = vsel %vm182, %v2971, 0
      %v3042 = vsel %vm182, %v2972, 0
      %v3045 = vsel %vm182, %v2973, 0
      %v3048 = vsel %vm182, %v2974, 0
      %v3051 = vsel %vm182, %v2975, 0
      %v3054 = vsel %vm182, %v2976, 0
      %v3057 = vsel %vm182, %v2977, 0
      %v3060 = vsel %vm182, %v2978, 0
      %v3063 = vsel %vm182, %v2979, 0
      %v3066 = vsel %vm182, %v2980, 0
      %v3069 = vsel %vm182, %v2981, 0
      %v3072 = vsel %vm182, %v2982, 0
      %v3075 = vsel %vm182, %v2983, 0
      %v3078 = vsel %vm182, %v2984, 0
      %v3081 = vsel %vm182, %v2985, 0
      %v3084 = vsel %vm455, %v2986, 0
      %3086 = vmatprep.subr.mxu0 0.0
      %3087 = vmatpush1.msra.mxu0 %v3084
      %3088 = vmatprep.subr.mxu0 0.0
      %3089 = vmatpush1.msra.mxu0 0.0
      %3090 = vmatprep.subr.mxu0 0.0
      %3091 = vmatpush1.msra.mxu0 0.0
      %3092 = vmatprep.subr.mxu0 0.0
      %3093 = vmatpush1.msra.mxu0 0.0
      %3094 = vmatprep.subr.mxu0 0.0
      %3095 = vmatpush1.msra.mxu0 0.0
      %3096 = vmatprep.subr.mxu0 0.0
      %3097 = vmatpush1.msra.mxu0 0.0
      %3098 = vmatprep.subr.mxu0 0.0
      %3099 = vmatpush1.msra.mxu0 0.0
      %3100 = vmatprep.subr.mxu0 0.0
      %3101 = vmatpush1.msra.mxu0 0.0
      %3102 = vmatprep.subr.mxu0 0.0
      %3103 = vmatpush1.msra.mxu0 0.0
      %3104 = vmatprep.subr.mxu0 0.0
      %3105 = vmatpush1.msra.mxu0 0.0
      %3106 = vmatprep.subr.mxu0 0.0
      %3107 = vmatpush1.msra.mxu0 0.0
      %3108 = vmatprep.subr.mxu0 0.0
      %3109 = vmatpush1.msra.mxu0 0.0
      %3110 = vmatprep.subr.mxu0 0.0
      %3111 = vmatpush1.msra.mxu0 0.0
      %3112 = vmatprep.subr.mxu0 0.0
      %3113 = vmatpush1.msra.mxu0 0.0
      %3114 = vmatprep.subr.mxu0 0.0
      %3115 = vmatpush1.msra.mxu0 0.0
      %3116 = vmatprep.subr.mxu0 0.0
      %3117 = vmatpush1.msra.mxu0 0.0
      %3118 = vmatprep.subr.mxu0 0.0
      %3119 = vmatpush1.msra.mxu0 0.0
      %3120 = vmatprep.subr.mxu0 0.0
      %3121 = vmatpush1.msra.mxu0 0.0
      %3122 = vmatprep.subr.mxu0 0.0
      %3123 = vmatpush1.msra.mxu0 0.0
      %3124 = vmatprep.subr.mxu0 0.0
      %3125 = vmatpush1.msra.mxu0 0.0
      %3126 = vmatprep.subr.mxu0 0.0
      %3127 = vmatpush1.msra.mxu0 0.0
      %3128 = vmatprep.subr.mxu0 0.0
      %3129 = vmatpush1.msra.mxu0 0.0
      %3130 = vmatprep.subr.mxu0 0.0
      %3131 = vmatpush1.msra.mxu0 0.0
      %3132 = vmatprep.subr.mxu0 0.0
      %3133 = vmatpush1.msra.mxu0 0.0
      %3134 = vmatprep.subr.mxu0 0.0
      %3135 = vmatpush1.msra.mxu0 0.0
      %3136 = vmatprep.subr.mxu0 0.0
      %3137 = vmatpush1.msra.mxu0 0.0
      %3138 = vmatprep.subr.mxu0 0.0
      %3139 = vmatpush1.msra.mxu0 0.0
      %3140 = vmatprep.subr.mxu0 0.0
      %3141 = vmatpush1.msra.mxu0 0.0
      %3142 = vmatprep.subr.mxu0 0.0
      %3143 = vmatpush1.msra.mxu0 0.0
      %3144 = vmatprep.subr.mxu0 0.0
      %3145 = vmatpush1.msra.mxu0 0.0
      %3146 = vmatprep.subr.mxu0 0.0
      %3147 = vmatpush1.msra.mxu0 0.0
      %3148 = vmatprep.subr.mxu0 0.0
      %3149 = vmatpush1.msra.mxu0 0.0
      %3150 = vmatprep.mubr.f32.mxu0 0.0
      %3151 = vmatmul.mubr.f32.gmra.mrb[0].mxu0 %v2988
      %v3152 = vpop.f32.mrb[0].mxu0
      %v3153 = vadd.f32 0.0, %v3152
      %v3154 = vpop.f32.mrb[0].mxu0
      %3155 = vmatprep.mubr.f32.mxu0 0.0
      %3156 = vmatmul.mubr.f32.gmra.mrb[0].mxu0 %v2991
      %v3157 = vpop.f32.mrb[0].mxu0
      %v3158 = vadd.f32 0.0, %v3157
      %v3159 = vpop.f32.mrb[0].mxu0
      %3160 = vmatprep.mubr.f32.mxu0 0.0
      %3161 = vmatmul.mubr.f32.gmra.mrb[0].mxu0 %v2994
      %v3162 = vpop.f32.mrb[0].mxu0
      %v3163 = vadd.f32 0.0, %v3162
      %v3164 = vpop.f32.mrb[0].mxu0
      %3165 = vmatprep.mubr.f32.mxu0 0.0
      %3166 = vmatmul.mubr.f32.gmra.mrb[0].mxu0 %v2997
      %v3167 = vpop.f32.mrb[0].mxu0
      %v3168 = vadd.f32 0.0, %v3167
      %v3169 = vpop.f32.mrb[0].mxu0
      %3170 = vmatprep.mubr.f32.mxu0 0.0
      %3171 = vmatmul.mubr.f32.gmra.mrb[0].mxu0 %v3000
      %v3172 = vpop.f32.mrb[0].mxu0
      %v3173 = vadd.f32 0.0, %v3172
      %v3174 = vpop.f32.mrb[0].mxu0
      %3175 = vmatprep.mubr.f32.mxu0 0.0
      %3176 = vmatmul.mubr.f32.gmra.mrb[0].mxu0 %v3003
      %v3177 = vpop.f32.mrb[0].mxu0
      %v3178 = vadd.f32 0.0, %v3177
      %v3179 = vpop.f32.mrb[0].mxu0
      %3180 = vmatprep.mubr.f32.mxu0 0.0
      %3181 = vmatmul.mubr.f32.gmra.mrb[0].mxu0 %v3006
      %v3182 = vpop.f32.mrb[0].mxu0
      %v3183 = vadd.f32 0.0, %v3182
      %v3184 = vpop.f32.mrb[0].mxu0
      %3185 = vmatprep.mubr.f32.mxu0 0.0
      %3186 = vmatmul.mubr.f32.gmra.mrb[0].mxu0 %v3009
      %v3187 = vpop.f32.mrb[0].mxu0
      %v3188 = vadd.f32 0.0, %v3187
      %v3189 = vpop.f32.mrb[0].mxu0
      %3190 = vmatprep.mubr.f32.mxu0 0.0
      %3191 = vmatmul.mubr.f32.gmra.mrb[0].mxu0 %v3012
      %v3192 = vpop.f32.mrb[0].mxu0
      %v3193 = vadd.f32 0.0, %v3192
      %v3194 = vpop.f32.mrb[0].mxu0
      %3195 = vmatprep.mubr.f32.mxu0 0.0
      %3196 = vmatmul.mubr.f32.gmra.mrb[0].mxu0 %v3015
      %v3197 = vpop.f32.mrb[0].mxu0
      %v3198 = vadd.f32 0.0, %v3197
      %v3199 = vpop.f32.mrb[0].mxu0
      %3200 = vmatprep.mubr.f32.mxu0 0.0
      %3201 = vmatmul.mubr.f32.gmra.mrb[0].mxu0 %v3018
      %v3202 = vpop.f32.mrb[0].mxu0
      %v3203 = vadd.f32 0.0, %v3202
      %v3204 = vpop.f32.mrb[0].mxu0
      %3205 = vmatprep.mubr.f32.mxu0 0.0
      %3206 = vmatmul.mubr.f32.gmra.mrb[0].mxu0 %v3021
      %v3207 = vpop.f32.mrb[0].mxu0
      %v3208 = vadd.f32 0.0, %v3207
      %v3209 = vpop.f32.mrb[0].mxu0
      %3210 = vmatprep.mubr.f32.mxu0 0.0
      %3211 = vmatmul.mubr.f32.gmra.mrb[0].mxu0 %v3024
      %v3212 = vpop.f32.mrb[0].mxu0
      %v3213 = vadd.f32 0.0, %v3212
      %v3214 = vpop.f32.mrb[0].mxu0
      %3215 = vmatprep.mubr.f32.mxu0 0.0
      %3216 = vmatmul.mubr.f32.gmra.mrb[0].mxu0 %v3027
      %v3217 = vpop.f32.mrb[0].mxu0
      %v3218 = vadd.f32 0.0, %v3217
      %v3219 = vpop.f32.mrb[0].mxu0
      %3220 = vmatprep.mubr.f32.mxu0 0.0
      %3221 = vmatmul.mubr.f32.gmra.mrb[0].mxu0 %v3030
      %v3222 = vpop.f32.mrb[0].mxu0
      %v3223 = vadd.f32 0.0, %v3222
      %v3224 = vpop.f32.mrb[0].mxu0
      %3225 = vmatprep.mubr.f32.mxu0 0.0
      %3226 = vmatmul.mubr.f32.gmra.mrb[0].mxu0 %v3033
      %v3227 = vpop.f32.mrb[0].mxu0
      %v3228 = vadd.f32 0.0, %v3227
      %v3229 = vpop.f32.mrb[0].mxu0
      %3230 = vmatprep.mubr.f32.mxu0 0.0
      %3231 = vmatmul.mubr.f32.gmra.mrb[0].mxu0 %v3036
      %v3232 = vpop.f32.mrb[0].mxu0
      %v3233 = vadd.f32 0.0, %v3232
      %v3234 = vpop.f32.mrb[0].mxu0
      %3235 = vmatprep.mubr.f32.mxu0 0.0
      %3236 = vmatmul.mubr.f32.gmra.mrb[0].mxu0 %v3039
      %v3237 = vpop.f32.mrb[0].mxu0
      %v3238 = vadd.f32 0.0, %v3237
      %v3239 = vpop.f32.mrb[0].mxu0
      %3240 = vmatprep.mubr.f32.mxu0 0.0
      %3241 = vmatmul.mubr.f32.gmra.mrb[0].mxu0 %v3042
      %v3242 = vpop.f32.mrb[0].mxu0
      %v3243 = vadd.f32 0.0, %v3242
      %v3244 = vpop.f32.mrb[0].mxu0
      %3245 = vmatprep.mubr.f32.mxu0 0.0
      %3246 = vmatmul.mubr.f32.gmra.mrb[0].mxu0 %v3045
      %v3247 = vpop.f32.mrb[0].mxu0
      %v3248 = vadd.f32 0.0, %v3247
      %v3249 = vpop.f32.mrb[0].mxu0
      %3250 = vmatprep.mubr.f32.mxu0 0.0
      %3251 = vmatmul.mubr.f32.gmra.mrb[0].mxu0 %v3048
      %v3252 = vpop.f32.mrb[0].mxu0
      %v3253 = vadd.f32 0.0, %v3252
      %v3254 = vpop.f32.mrb[0].mxu0
      %3255 = vmatprep.mubr.f32.mxu0 0.0
      %3256 = vmatmul.mubr.f32.gmra.mrb[0].mxu0 %v3051
      %v3257 = vpop.f32.mrb[0].mxu0
      %v3258 = vadd.f32 0.0, %v3257
      %v3259 = vpop.f32.mrb[0].mxu0
      %3260 = vmatprep.mubr.f32.mxu0 0.0
      %3261 = vmatmul.mubr.f32.gmra.mrb[0].mxu0 %v3054
      %v3262 = vpop.f32.mrb[0].mxu0
      %v3263 = vadd.f32 0.0, %v3262
      %v3264 = vpop.f32.mrb[0].mxu0
      %3265 = vmatprep.mubr.f32.mxu0 0.0
      %3266 = vmatmul.mubr.f32.gmra.mrb[0].mxu0 %v3057
      %v3267 = vpop.f32.mrb[0].mxu0
      %v3268 = vadd.f32 0.0, %v3267
      %v3269 = vpop.f32.mrb[0].mxu0
      %3270 = vmatprep.mubr.f32.mxu0 0.0
      %3271 = vmatmul.mubr.f32.gmra.mrb[0].mxu0 %v3060
      %v3272 = vpop.f32.mrb[0].mxu0
      %v3273 = vadd.f32 0.0, %v3272
      %v3274 = vpop.f32.mrb[0].mxu0
      %3275 = vmatprep.mubr.f32.mxu0 0.0
      %3276 = vmatmul.mubr.f32.gmra.mrb[0].mxu0 %v3063
      %v3277 = vpop.f32.mrb[0].mxu0
      %v3278 = vadd.f32 0.0, %v3277
      %v3279 = vpop.f32.mrb[0].mxu0
      %3280 = vmatprep.mubr.f32.mxu0 0.0
      %3281 = vmatmul.mubr.f32.gmra.mrb[0].mxu0 %v3066
      %v3282 = vpop.f32.mrb[0].mxu0
      %v3283 = vadd.f32 0.0, %v3282
      %v3284 = vpop.f32.mrb[0].mxu0
      %3285 = vmatprep.mubr.f32.mxu0 0.0
      %3286 = vmatmul.mubr.f32.gmra.mrb[0].mxu0 %v3069
      %v3287 = vpop.f32.mrb[0].mxu0
      %v3288 = vadd.f32 0.0, %v3287
      %v3289 = vpop.f32.mrb[0].mxu0
      %3290 = vmatprep.mubr.f32.mxu0 0.0
      %3291 = vmatmul.mubr.f32.gmra.mrb[0].mxu0 %v3072
      %v3292 = vpop.f32.mrb[0].mxu0
      %v3293 = vadd.f32 0.0, %v3292
      %v3294 = vpop.f32.mrb[0].mxu0
      %3295 = vmatprep.mubr.f32.mxu0 0.0
      %3296 = vmatmul.mubr.f32.gmra.mrb[0].mxu0 %v3075
      %v3297 = vpop.f32.mrb[0].mxu0
      %v3298 = vadd.f32 0.0, %v3297
      %v3299 = vpop.f32.mrb[0].mxu0
      %3300 = vmatprep.mubr.f32.mxu0 0.0
      %3301 = vmatmul.mubr.f32.gmra.mrb[0].mxu0 %v3078
      %v3302 = vpop.f32.mrb[0].mxu0
      %v3303 = vadd.f32 0.0, %v3302
      %v3304 = vpop.f32.mrb[0].mxu0
      %3305 = vmatprep.mubr.f32.mxu0 0.0
      %3306 = vmatmul.mubr.f32.gmra.mrb[0].mxu0 %v3081
      %v3307 = vpop.f32.mrb[0].mxu0
      %v3308 = vadd.f32 0.0, %v3307
      %v3309 = vpop.f32.mrb[0].mxu0
      %3310 = vdwg.mxu0
      %v3311 = vadd.f32 %v2922, %v3153
      %v3312 = vadd.f32 %v2923, %v3158
      %v3313 = vadd.f32 %v2924, %v3163
      %v3314 = vadd.f32 %v2925, %v3168
      %v3315 = vadd.f32 %v2926, %v3173
      %v3316 = vadd.f32 %v2927, %v3178
      %v3317 = vadd.f32 %v2928, %v3183
      %v3318 = vadd.f32 %v2929, %v3188
      %v3319 = vadd.f32 %v2930, %v3193
      %v3320 = vadd.f32 %v2931, %v3198
      %v3321 = vadd.f32 %v2932, %v3203
      %v3322 = vadd.f32 %v2933, %v3208
      %v3323 = vadd.f32 %v2934, %v3213
      %v3324 = vadd.f32 %v2935, %v3218
      %v3325 = vadd.f32 %v2936, %v3223
      %v3326 = vadd.f32 %v2937, %v3228
      %v3327 = vadd.f32 %v2938, %v3233
      %v3328 = vadd.f32 %v2939, %v3238
      %v3329 = vadd.f32 %v2940, %v3243
      %v3330 = vadd.f32 %v2941, %v3248
      %v3331 = vadd.f32 %v2942, %v3253
      %v3332 = vadd.f32 %v2943, %v3258
      %v3333 = vadd.f32 %v2944, %v3263
      %v3334 = vadd.f32 %v2945, %v3268
      %v3335 = vadd.f32 %v2946, %v3273
      %v3336 = vadd.f32 %v2947, %v3278
      %v3337 = vadd.f32 %v2948, %v3283
      %v3338 = vadd.f32 %v2949, %v3288
      %v3339 = vadd.f32 %v2950, %v3293
      %v3340 = vadd.f32 %v2951, %v3298
      %v3341 = vadd.f32 %v2952, %v3303
      %v3342 = vadd.f32 %v2953, %v3308
      %v3343 = vld [vmem:[%s2564 + $0x2] sm:$0xff]
      %v3344 = vld [vmem:[%s2564 + $0xa] sm:$0xff]
      %v3345 = vld [vmem:[%s2564 + $0x1a] sm:$0xff]
      %v3346 = vld [vmem:[%s2564 + $0x22] sm:$0xff]
      %v3347 = vld [vmem:[%s2564 + $0x32] sm:$0xff]
      %v3348 = vld [vmem:[%s2564 + $0x3a] sm:$0xff]
      %v3349 = vld [vmem:[%s2564 + $0x4a] sm:$0xff]
      %v3350 = vld [vmem:[%s2564 + $0x52] sm:$0xff]
      %v3351 = vld [vmem:[%s2564 + $0x62] sm:$0xff]
      %v3352 = vld [vmem:[%s2564 + $0x6a] sm:$0xff]
      %v3353 = vld [vmem:[%s2564 + $0x7a] sm:$0xff]
      %v3354 = vld [vmem:[%s2564 + $0x82] sm:$0xff]
      %v3355 = vld [vmem:[%s2564 + $0x92] sm:$0xff]
      %v3356 = vld [vmem:[%s2564 + $0x9a] sm:$0xff]
      %v3357 = vld [vmem:[%s2564 + $0xaa] sm:$0xff]
      %v3358 = vld [vmem:[%s2564 + $0xb2] sm:$0xff]
      %v3359 = vld [vmem:[%s2564 + $0xc2] sm:$0xff]
      %v3360 = vld [vmem:[%s2564 + $0xca] sm:$0xff]
      %v3361 = vld [vmem:[%s2564 + $0xda] sm:$0xff]
      %v3362 = vld [vmem:[%s2564 + $0xe2] sm:$0xff]
      %v3363 = vld [vmem:[%s2564 + $0xf2] sm:$0xff]
      %v3364 = vld [vmem:[%s2564 + $0xfa] sm:$0xff]
      %v3365 = vld [vmem:[%s2564 + $0x10a] sm:$0xff]
      %v3366 = vld [vmem:[%s2564 + $0x112] sm:$0xff]
      %v3367 = vld [vmem:[%s2564 + $0x122] sm:$0xff]
      %v3368 = vld [vmem:[%s2564 + $0x12a] sm:$0xff]
      %v3369 = vld [vmem:[%s2564 + $0x13a] sm:$0xff]
      %v3370 = vld [vmem:[%s2564 + $0x142] sm:$0xff]
      %v3371 = vld [vmem:[%s2564 + $0x152] sm:$0xff]
      %v3372 = vld [vmem:[%s2564 + $0x15a] sm:$0xff]
      %v3373 = vld [vmem:[%s2564 + $0x16a] sm:$0xff]
      %v3374 = vld [vmem:[%s2564 + $0x172] sm:$0xff]
      %v3375 = vld [vmem:[%s1 + $0x20] sm:$0xf]
      %v3377 = vsel %vm182, %v3343, 0
      %v3380 = vsel %vm182, %v3344, 0
      %v3383 = vsel %vm182, %v3345, 0
      %v3386 = vsel %vm182, %v3346, 0
      %v3389 = vsel %vm182, %v3347, 0
      %v3392 = vsel %vm182, %v3348, 0
      %v3395 = vsel %vm182, %v3349, 0
      %v3398 = vsel %vm182, %v3350, 0
      %v3401 = vsel %vm182, %v3351, 0
      %v3404 = vsel %vm182, %v3352, 0
      %v3407 = vsel %vm182, %v3353, 0
      %v3410 = vsel %vm182, %v3354, 0
      %v3413 = vsel %vm182, %v3355, 0
      %v3416 = vsel %vm182, %v3356, 0
      %v3419 = vsel %vm182, %v3357, 0
      %v3422 = vsel %vm182, %v3358, 0
      %v3425 = vsel %vm182, %v3359, 0
      %v3428 = vsel %vm182, %v3360, 0
      %v3431 = vsel %vm182, %v3361, 0
      %v3434 = vsel %vm182, %v3362, 0
      %v3437 = vsel %vm182, %v3363, 0
      %v3440 = vsel %vm182, %v3364, 0
      %v3443 = vsel %vm182, %v3365, 0
      %v3446 = vsel %vm182, %v3366, 0
      %v3449 = vsel %vm182, %v3367, 0
      %v3452 = vsel %vm182, %v3368, 0
      %v3455 = vsel %vm182, %v3369, 0
      %v3458 = vsel %vm182, %v3370, 0
      %v3461 = vsel %vm182, %v3371, 0
      %v3464 = vsel %vm182, %v3372, 0
      %v3467 = vsel %vm182, %v3373, 0
      %v3470 = vsel %vm182, %v3374, 0
      %v3473 = vsel %vm455, %v3375, 0
      %3475 = vmatprep.subr.mxu0 0.0
      %3476 = vmatpush1.msra.mxu0 %v3473
      %3477 = vmatprep.subr.mxu0 0.0
      %3478 = vmatpush1.msra.mxu0 0.0
      %3479 = vmatprep.subr.mxu0 0.0
      %3480 = vmatpush1.msra.mxu0 0.0
      %3481 = vmatprep.subr.mxu0 0.0
      %3482 = vmatpush1.msra.mxu0 0.0
      %3483 = vmatprep.subr.mxu0 0.0
      %3484 = vmatpush1.msra.mxu0 0.0
      %3485 = vmatprep.subr.mxu0 0.0
      %3486 = vmatpush1.msra.mxu0 0.0
      %3487 = vmatprep.subr.mxu0 0.0
      %3488 = vmatpush1.msra.mxu0 0.0
      %3489 = vmatprep.subr.mxu0 0.0
      %3490 = vmatpush1.msra.mxu0 0.0
      %3491 = vmatprep.subr.mxu0 0.0
      %3492 = vmatpush1.msra.mxu0 0.0
      %3493 = vmatprep.subr.mxu0 0.0
      %3494 = vmatpush1.msra.mxu0 0.0
      %3495 = vmatprep.subr.mxu0 0.0
      %3496 = vmatpush1.msra.mxu0 0.0
      %3497 = vmatprep.subr.mxu0 0.0
      %3498 = vmatpush1.msra.mxu0 0.0
      %3499 = vmatprep.subr.mxu0 0.0
      %3500 = vmatpush1.msra.mxu0 0.0
      %3501 = vmatprep.subr.mxu0 0.0
      %3502 = vmatpush1.msra.mxu0 0.0
      %3503 = vmatprep.subr.mxu0 0.0
      %3504 = vmatpush1.msra.mxu0 0.0
      %3505 = vmatprep.subr.mxu0 0.0
      %3506 = vmatpush1.msra.mxu0 0.0
      %3507 = vmatprep.subr.mxu0 0.0
      %3508 = vmatpush1.msra.mxu0 0.0
      %3509 = vmatprep.subr.mxu0 0.0
      %3510 = vmatpush1.msra.mxu0 0.0
      %3511 = vmatprep.subr.mxu0 0.0
      %3512 = vmatpush1.msra.mxu0 0.0
      %3513 = vmatprep.subr.mxu0 0.0
      %3514 = vmatpush1.msra.mxu0 0.0
      %3515 = vmatprep.subr.mxu0 0.0
      %3516 = vmatpush1.msra.mxu0 0.0
      %3517 = vmatprep.subr.mxu0 0.0
      %3518 = vmatpush1.msra.mxu0 0.0
      %3519 = vmatprep.subr.mxu0 0.0
      %3520 = vmatpush1.msra.mxu0 0.0
      %3521 = vmatprep.subr.mxu0 0.0
      %3522 = vmatpush1.msra.mxu0 0.0
      %3523 = vmatprep.subr.mxu0 0.0
      %3524 = vmatpush1.msra.mxu0 0.0
      %3525 = vmatprep.subr.mxu0 0.0
      %3526 = vmatpush1.msra.mxu0 0.0
      %3527 = vmatprep.subr.mxu0 0.0
      %3528 = vmatpush1.msra.mxu0 0.0
      %3529 = vmatprep.subr.mxu0 0.0
      %3530 = vmatpush1.msra.mxu0 0.0
      %3531 = vmatprep.subr.mxu0 0.0
      %3532 = vmatpush1.msra.mxu0 0.0
      %3533 = vmatprep.subr.mxu0 0.0
      %3534 = vmatpush1.msra.mxu0 0.0
      %3535 = vmatprep.subr.mxu0 0.0
      %3536 = vmatpush1.msra.mxu0 0.0
      %3537 = vmatprep.subr.mxu0 0.0
      %3538 = vmatpush1.msra.mxu0 0.0
      %3539 = vmatprep.mubr.f32.mxu0 0.0
      %3540 = vmatmul.mubr.f32.gmra.mrb[0].mxu0 %v3377
      %v3541 = vpop.f32.mrb[0].mxu0
      %v3542 = vadd.f32 0.0, %v3541
      %v3543 = vpop.f32.mrb[0].mxu0
      %3544 = vmatprep.mubr.f32.mxu0 0.0
      %3545 = vmatmul.mubr.f32.gmra.mrb[0].mxu0 %v3380
      %v3546 = vpop.f32.mrb[0].mxu0
      %v3547 = vadd.f32 0.0, %v3546
      %v3548 = vpop.f32.mrb[0].mxu0
      %3549 = vmatprep.mubr.f32.mxu0 0.0
      %3550 = vmatmul.mubr.f32.gmra.mrb[0].mxu0 %v3383
      %v3551 = vpop.f32.mrb[0].mxu0
      %v3552 = vadd.f32 0.0, %v3551
      %v3553 = vpop.f32.mrb[0].mxu0
      %3554 = vmatprep.mubr.f32.mxu0 0.0
      %3555 = vmatmul.mubr.f32.gmra.mrb[0].mxu0 %v3386
      %v3556 = vpop.f32.mrb[0].mxu0
      %v3557 = vadd.f32 0.0, %v3556
      %v3558 = vpop.f32.mrb[0].mxu0
      %3559 = vmatprep.mubr.f32.mxu0 0.0
      %3560 = vmatmul.mubr.f32.gmra.mrb[0].mxu0 %v3389
      %v3561 = vpop.f32.mrb[0].mxu0
      %v3562 = vadd.f32 0.0, %v3561
      %v3563 = vpop.f32.mrb[0].mxu0
      %3564 = vmatprep.mubr.f32.mxu0 0.0
      %3565 = vmatmul.mubr.f32.gmra.mrb[0].mxu0 %v3392
      %v3566 = vpop.f32.mrb[0].mxu0
      %v3567 = vadd.f32 0.0, %v3566
      %v3568 = vpop.f32.mrb[0].mxu0
      %3569 = vmatprep.mubr.f32.mxu0 0.0
      %3570 = vmatmul.mubr.f32.gmra.mrb[0].mxu0 %v3395
      %v3571 = vpop.f32.mrb[0].mxu0
      %v3572 = vadd.f32 0.0, %v3571
      %v3573 = vpop.f32.mrb[0].mxu0
      %3574 = vmatprep.mubr.f32.mxu0 0.0
      %3575 = vmatmul.mubr.f32.gmra.mrb[0].mxu0 %v3398
      %v3576 = vpop.f32.mrb[0].mxu0
      %v3577 = vadd.f32 0.0, %v3576
      %v3578 = vpop.f32.mrb[0].mxu0
      %3579 = vmatprep.mubr.f32.mxu0 0.0
      %3580 = vmatmul.mubr.f32.gmra.mrb[0].mxu0 %v3401
      %v3581 = vpop.f32.mrb[0].mxu0
      %v3582 = vadd.f32 0.0, %v3581
      %v3583 = vpop.f32.mrb[0].mxu0
      %3584 = vmatprep.mubr.f32.mxu0 0.0
      %3585 = vmatmul.mubr.f32.gmra.mrb[0].mxu0 %v3404
      %v3586 = vpop.f32.mrb[0].mxu0
      %v3587 = vadd.f32 0.0, %v3586
      %v3588 = vpop.f32.mrb[0].mxu0
      %3589 = vmatprep.mubr.f32.mxu0 0.0
      %3590 = vmatmul.mubr.f32.gmra.mrb[0].mxu0 %v3407
      %v3591 = vpop.f32.mrb[0].mxu0
      %v3592 = vadd.f32 0.0, %v3591
      %v3593 = vpop.f32.mrb[0].mxu0
      %3594 = vmatprep.mubr.f32.mxu0 0.0
      %3595 = vmatmul.mubr.f32.gmra.mrb[0].mxu0 %v3410
      %v3596 = vpop.f32.mrb[0].mxu0
      %v3597 = vadd.f32 0.0, %v3596
      %v3598 = vpop.f32.mrb[0].mxu0
      %3599 = vmatprep.mubr.f32.mxu0 0.0
      %3600 = vmatmul.mubr.f32.gmra.mrb[0].mxu0 %v3413
      %v3601 = vpop.f32.mrb[0].mxu0
      %v3602 = vadd.f32 0.0, %v3601
      %v3603 = vpop.f32.mrb[0].mxu0
      %3604 = vmatprep.mubr.f32.mxu0 0.0
      %3605 = vmatmul.mubr.f32.gmra.mrb[0].mxu0 %v3416
      %v3606 = vpop.f32.mrb[0].mxu0
      %v3607 = vadd.f32 0.0, %v3606
      %v3608 = vpop.f32.mrb[0].mxu0
      %3609 = vmatprep.mubr.f32.mxu0 0.0
      %3610 = vmatmul.mubr.f32.gmra.mrb[0].mxu0 %v3419
      %v3611 = vpop.f32.mrb[0].mxu0
      %v3612 = vadd.f32 0.0, %v3611
      %v3613 = vpop.f32.mrb[0].mxu0
      %3614 = vmatprep.mubr.f32.mxu0 0.0
      %3615 = vmatmul.mubr.f32.gmra.mrb[0].mxu0 %v3422
      %v3616 = vpop.f32.mrb[0].mxu0
      %v3617 = vadd.f32 0.0, %v3616
      %v3618 = vpop.f32.mrb[0].mxu0
      %3619 = vmatprep.mubr.f32.mxu0 0.0
      %3620 = vmatmul.mubr.f32.gmra.mrb[0].mxu0 %v3425
      %v3621 = vpop.f32.mrb[0].mxu0
      %v3622 = vadd.f32 0.0, %v3621
      %v3623 = vpop.f32.mrb[0].mxu0
      %3624 = vmatprep.mubr.f32.mxu0 0.0
      %3625 = vmatmul.mubr.f32.gmra.mrb[0].mxu0 %v3428
      %v3626 = vpop.f32.mrb[0].mxu0
      %v3627 = vadd.f32 0.0, %v3626
      %v3628 = vpop.f32.mrb[0].mxu0
      %3629 = vmatprep.mubr.f32.mxu0 0.0
      %3630 = vmatmul.mubr.f32.gmra.mrb[0].mxu0 %v3431
      %v3631 = vpop.f32.mrb[0].mxu0
      %v3632 = vadd.f32 0.0, %v3631
      %v3633 = vpop.f32.mrb[0].mxu0
      %3634 = vmatprep.mubr.f32.mxu0 0.0
      %3635 = vmatmul.mubr.f32.gmra.mrb[0].mxu0 %v3434
      %v3636 = vpop.f32.mrb[0].mxu0
      %v3637 = vadd.f32 0.0, %v3636
      %v3638 = vpop.f32.mrb[0].mxu0
      %3639 = vmatprep.mubr.f32.mxu0 0.0
      %3640 = vmatmul.mubr.f32.gmra.mrb[0].mxu0 %v3437
      %v3641 = vpop.f32.mrb[0].mxu0
      %v3642 = vadd.f32 0.0, %v3641
      %v3643 = vpop.f32.mrb[0].mxu0
      %3644 = vmatprep.mubr.f32.mxu0 0.0
      %3645 = vmatmul.mubr.f32.gmra.mrb[0].mxu0 %v3440
      %v3646 = vpop.f32.mrb[0].mxu0
      %v3647 = vadd.f32 0.0, %v3646
      %v3648 = vpop.f32.mrb[0].mxu0
      %3649 = vmatprep.mubr.f32.mxu0 0.0
      %3650 = vmatmul.mubr.f32.gmra.mrb[0].mxu0 %v3443
      %v3651 = vpop.f32.mrb[0].mxu0
      %v3652 = vadd.f32 0.0, %v3651
      %v3653 = vpop.f32.mrb[0].mxu0
      %3654 = vmatprep.mubr.f32.mxu0 0.0
      %3655 = vmatmul.mubr.f32.gmra.mrb[0].mxu0 %v3446
      %v3656 = vpop.f32.mrb[0].mxu0
      %v3657 = vadd.f32 0.0, %v3656
      %v3658 = vpop.f32.mrb[0].mxu0
      %3659 = vmatprep.mubr.f32.mxu0 0.0
      %3660 = vmatmul.mubr.f32.gmra.mrb[0].mxu0 %v3449
      %v3661 = vpop.f32.mrb[0].mxu0
      %v3662 = vadd.f32 0.0, %v3661
      %v3663 = vpop.f32.mrb[0].mxu0
      %3664 = vmatprep.mubr.f32.mxu0 0.0
      %3665 = vmatmul.mubr.f32.gmra.mrb[0].mxu0 %v3452
      %v3666 = vpop.f32.mrb[0].mxu0
      %v3667 = vadd.f32 0.0, %v3666
      %v3668 = vpop.f32.mrb[0].mxu0
      %3669 = vmatprep.mubr.f32.mxu0 0.0
      %3670 = vmatmul.mubr.f32.gmra.mrb[0].mxu0 %v3455
      %v3671 = vpop.f32.mrb[0].mxu0
      %v3672 = vadd.f32 0.0, %v3671
      %v3673 = vpop.f32.mrb[0].mxu0
      %3674 = vmatprep.mubr.f32.mxu0 0.0
      %3675 = vmatmul.mubr.f32.gmra.mrb[0].mxu0 %v3458
      %v3676 = vpop.f32.mrb[0].mxu0
      %v3677 = vadd.f32 0.0, %v3676
      %v3678 = vpop.f32.mrb[0].mxu0
      %3679 = vmatprep.mubr.f32.mxu0 0.0
      %3680 = vmatmul.mubr.f32.gmra.mrb[0].mxu0 %v3461
      %v3681 = vpop.f32.mrb[0].mxu0
      %v3682 = vadd.f32 0.0, %v3681
      %v3683 = vpop.f32.mrb[0].mxu0
      %3684 = vmatprep.mubr.f32.mxu0 0.0
      %3685 = vmatmul.mubr.f32.gmra.mrb[0].mxu0 %v3464
      %v3686 = vpop.f32.mrb[0].mxu0
      %v3687 = vadd.f32 0.0, %v3686
      %v3688 = vpop.f32.mrb[0].mxu0
      %3689 = vmatprep.mubr.f32.mxu0 0.0
      %3690 = vmatmul.mubr.f32.gmra.mrb[0].mxu0 %v3467
      %v3691 = vpop.f32.mrb[0].mxu0
      %v3692 = vadd.f32 0.0, %v3691
      %v3693 = vpop.f32.mrb[0].mxu0
      %3694 = vmatprep.mubr.f32.mxu0 0.0
      %3695 = vmatmul.mubr.f32.gmra.mrb[0].mxu0 %v3470
      %v3696 = vpop.f32.mrb[0].mxu0
      %v3697 = vadd.f32 0.0, %v3696
      %v3698 = vpop.f32.mrb[0].mxu0
      %3699 = vdwg.mxu0
      %v3700 = vadd.f32 %v3311, %v3542
      %v3701 = vadd.f32 %v3312, %v3547
      %v3702 = vadd.f32 %v3313, %v3552
      %v3703 = vadd.f32 %v3314, %v3557
      %v3704 = vadd.f32 %v3315, %v3562
      %v3705 = vadd.f32 %v3316, %v3567
      %v3706 = vadd.f32 %v3317, %v3572
      %v3707 = vadd.f32 %v3318, %v3577
      %v3708 = vadd.f32 %v3319, %v3582
      %v3709 = vadd.f32 %v3320, %v3587
      %v3710 = vadd.f32 %v3321, %v3592
      %v3711 = vadd.f32 %v3322, %v3597
      %v3712 = vadd.f32 %v3323, %v3602
      %v3713 = vadd.f32 %v3324, %v3607
      %v3714 = vadd.f32 %v3325, %v3612
      %v3715 = vadd.f32 %v3326, %v3617
      %v3716 = vadd.f32 %v3327, %v3622
      %v3717 = vadd.f32 %v3328, %v3627
      %v3718 = vadd.f32 %v3329, %v3632
      %v3719 = vadd.f32 %v3330, %v3637
      %v3720 = vadd.f32 %v3331, %v3642
      %v3721 = vadd.f32 %v3332, %v3647
      %v3722 = vadd.f32 %v3333, %v3652
      %v3723 = vadd.f32 %v3334, %v3657
      %v3724 = vadd.f32 %v3335, %v3662
      %v3725 = vadd.f32 %v3336, %v3667
      %v3726 = vadd.f32 %v3337, %v3672
      %v3727 = vadd.f32 %v3338, %v3677
      %v3728 = vadd.f32 %v3339, %v3682
      %v3729 = vadd.f32 %v3340, %v3687
      %v3730 = vadd.f32 %v3341, %v3692
      %v3731 = vadd.f32 %v3342, %v3697
      %3732 = vst.msk [vmem:[%s177] sm:$0xff] %vm182, %v3700
      %3733 = vst.msk [vmem:[%s177 + $0x8] sm:$0xff] %vm182, %v3701
      %3734 = vst.msk [vmem:[%s177 + $0x10] sm:$0xff] %vm182, %v3702
      %3735 = vst.msk [vmem:[%s177 + $0x18] sm:$0xff] %vm182, %v3703
      %3736 = vst.msk [vmem:[%s177 + $0x20] sm:$0xff] %vm182, %v3704
      %3737 = vst.msk [vmem:[%s177 + $0x28] sm:$0xff] %vm182, %v3705
      %3738 = vst.msk [vmem:[%s177 + $0x30] sm:$0xff] %vm182, %v3706
      %3739 = vst.msk [vmem:[%s177 + $0x38] sm:$0xff] %vm182, %v3707
      %3740 = vst.msk [vmem:[%s177 + $0x40] sm:$0xff] %vm182, %v3708
      %3741 = vst.msk [vmem:[%s177 + $0x48] sm:$0xff] %vm182, %v3709
      %3742 = vst.msk [vmem:[%s177 + $0x50] sm:$0xff] %vm182, %v3710
      %3743 = vst.msk [vmem:[%s177 + $0x58] sm:$0xff] %vm182, %v3711
      %3744 = vst.msk [vmem:[%s177 + $0x60] sm:$0xff] %vm182, %v3712
      %3745 = vst.msk [vmem:[%s177 + $0x68] sm:$0xff] %vm182, %v3713
      %3746 = vst.msk [vmem:[%s177 + $0x70] sm:$0xff] %vm182, %v3714
      %3747 = vst.msk [vmem:[%s177 + $0x78] sm:$0xff] %vm182, %v3715
      %3748 = vst.msk [vmem:[%s177 + $0x80] sm:$0xff] %vm182, %v3716
      %3749 = vst.msk [vmem:[%s177 + $0x88] sm:$0xff] %vm182, %v3717
      %3750 = vst.msk [vmem:[%s177 + $0x90] sm:$0xff] %vm182, %v3718
      %3751 = vst.msk [vmem:[%s177 + $0x98] sm:$0xff] %vm182, %v3719
      %3752 = vst.msk [vmem:[%s177 + $0xa0] sm:$0xff] %vm182, %v3720
      %3753 = vst.msk [vmem:[%s177 + $0xa8] sm:$0xff] %vm182, %v3721
      %3754 = vst.msk [vmem:[%s177 + $0xb0] sm:$0xff] %vm182, %v3722
      %3755 = vst.msk [vmem:[%s177 + $0xb8] sm:$0xff] %vm182, %v3723
      %3756 = vst.msk [vmem:[%s177 + $0xc0] sm:$0xff] %vm182, %v3724
      %3757 = vst.msk [vmem:[%s177 + $0xc8] sm:$0xff] %vm182, %v3725
      %3758 = vst.msk [vmem:[%s177 + $0xd0] sm:$0xff] %vm182, %v3726
      %3759 = vst.msk [vmem:[%s177 + $0xd8] sm:$0xff] %vm182, %v3727
      %3760 = vst.msk [vmem:[%s177 + $0xe0] sm:$0xff] %vm182, %v3728
      %3761 = vst.msk [vmem:[%s177 + $0xe8] sm:$0xff] %vm182, %v3729
      %3762 = vst.msk [vmem:[%s177 + $0xf0] sm:$0xff] %vm182, %v3730
      %3763 = vst.msk [vmem:[%s177 + $0xf8] sm:$0xff] %vm182, %v3731
      %v3764 = vsel %vm182, %v3700, 0.0
      %v3765 = vsel %vm182, %v3701, 0.0
      %v3766 = vadd.f32 %v3764, %v3765
      %v3767 = vsel %vm182, %v3702, 0.0
      %v3768 = vadd.f32 %v3766, %v3767
      %v3769 = vsel %vm182, %v3703, 0.0
      %v3770 = vadd.f32 %v3768, %v3769
      %v3771 = vsel %vm182, %v3704, 0.0
      %v3772 = vadd.f32 %v3770, %v3771
      %v3773 = vsel %vm182, %v3705, 0.0
      %v3774 = vadd.f32 %v3772, %v3773
      %v3775 = vsel %vm182, %v3706, 0.0
      %v3776 = vadd.f32 %v3774, %v3775
      %v3777 = vsel %vm182, %v3707, 0.0
      %v3778 = vadd.f32 %v3776, %v3777
      %v3779 = vsel %vm182, %v3708, 0.0
      %v3780 = vadd.f32 %v3778, %v3779
      %v3781 = vsel %vm182, %v3709, 0.0
      %v3782 = vadd.f32 %v3780, %v3781
      %v3783 = vsel %vm182, %v3710, 0.0
      %v3784 = vadd.f32 %v3782, %v3783
      %v3785 = vsel %vm182, %v3711, 0.0
      %v3786 = vadd.f32 %v3784, %v3785
      %v3787 = vsel %vm182, %v3712, 0.0
      %v3788 = vadd.f32 %v3786, %v3787
      %v3789 = vsel %vm182, %v3713, 0.0
      %v3790 = vadd.f32 %v3788, %v3789
      %v3791 = vsel %vm182, %v3714, 0.0
      %v3792 = vadd.f32 %v3790, %v3791
      %v3793 = vsel %vm182, %v3715, 0.0
      %v3794 = vadd.f32 %v3792, %v3793
      %v3795 = vsel %vm182, %v3716, 0.0
      %v3796 = vadd.f32 %v3794, %v3795
      %v3797 = vsel %vm182, %v3717, 0.0
      %v3798 = vadd.f32 %v3796, %v3797
      %v3799 = vsel %vm182, %v3718, 0.0
      %v3800 = vadd.f32 %v3798, %v3799
      %v3801 = vsel %vm182, %v3719, 0.0
      %v3802 = vadd.f32 %v3800, %v3801
      %v3803 = vsel %vm182, %v3720, 0.0
      %v3804 = vadd.f32 %v3802, %v3803
      %v3805 = vsel %vm182, %v3721, 0.0
      %v3806 = vadd.f32 %v3804, %v3805
      %v3807 = vsel %vm182, %v3722, 0.0
      %v3808 = vadd.f32 %v3806, %v3807
      %v3809 = vsel %vm182, %v3723, 0.0
      %v3810 = vadd.f32 %v3808, %v3809
      %v3811 = vsel %vm182, %v3724, 0.0
      %v3812 = vadd.f32 %v3810, %v3811
      %v3813 = vsel %vm182, %v3725, 0.0
      %v3814 = vadd.f32 %v3812, %v3813
      %v3815 = vsel %vm182, %v3726, 0.0
      %v3816 = vadd.f32 %v3814, %v3815
      %v3817 = vsel %vm182, %v3727, 0.0
      %v3818 = vadd.f32 %v3816, %v3817
      %v3819 = vsel %vm182, %v3728, 0.0
      %v3820 = vadd.f32 %v3818, %v3819
      %v3821 = vsel %vm182, %v3729, 0.0
      %v3822 = vadd.f32 %v3820, %v3821
      %v3823 = vsel %vm182, %v3730, 0.0
      %v3824 = vadd.f32 %v3822, %v3823
      %v3825 = vsel %vm182, %v3731, 0.0
      %v3826 = vadd.f32 %v3824, %v3825
      %v3827 = vrot.slane %v3826, 4
      %v3828 = vadd.f32 %v3826, %v3827
      %v3829 = vrot.slane %v3828, 2
      %v3830 = vadd.f32 %v3828, %v3829
      %v3831 = vrot.slane %v3830, 1
      %v3832 = vadd.f32 %v3830, %v3831
      %v3833 = vmul.f32 %v3700, %v3700
      %v3834 = vmul.f32 %v3701, %v3701
      %v3835 = vmul.f32 %v3702, %v3702
      %v3836 = vmul.f32 %v3703, %v3703
      %v3837 = vmul.f32 %v3704, %v3704
      %v3838 = vmul.f32 %v3705, %v3705
      %v3839 = vmul.f32 %v3706, %v3706
      %v3840 = vmul.f32 %v3707, %v3707
      %v3841 = vmul.f32 %v3708, %v3708
      %v3842 = vmul.f32 %v3709, %v3709
      %v3843 = vmul.f32 %v3710, %v3710
      %v3844 = vmul.f32 %v3711, %v3711
      %v3845 = vmul.f32 %v3712, %v3712
      %v3846 = vmul.f32 %v3713, %v3713
      %v3847 = vmul.f32 %v3714, %v3714
      %v3848 = vmul.f32 %v3715, %v3715
      %v3849 = vmul.f32 %v3716, %v3716
      %v3850 = vmul.f32 %v3717, %v3717
      %v3851 = vmul.f32 %v3718, %v3718
      %v3852 = vmul.f32 %v3719, %v3719
      %v3853 = vmul.f32 %v3720, %v3720
      %v3854 = vmul.f32 %v3721, %v3721
      %v3855 = vmul.f32 %v3722, %v3722
      %v3856 = vmul.f32 %v3723, %v3723
      %v3857 = vmul.f32 %v3724, %v3724
      %v3858 = vmul.f32 %v3725, %v3725
      %v3859 = vmul.f32 %v3726, %v3726
      %v3860 = vmul.f32 %v3727, %v3727
      %v3861 = vmul.f32 %v3728, %v3728
      %v3862 = vmul.f32 %v3729, %v3729
      %v3863 = vmul.f32 %v3730, %v3730
      %v3864 = vmul.f32 %v3731, %v3731
      %v3865 = vsel %vm182, %v3833, 0.0
      %v3866 = vsel %vm182, %v3834, 0.0
      %v3867 = vadd.f32 %v3865, %v3866
      %v3868 = vsel %vm182, %v3835, 0.0
      %v3869 = vadd.f32 %v3867, %v3868
      %v3870 = vsel %vm182, %v3836, 0.0
      %v3871 = vadd.f32 %v3869, %v3870
      %v3872 = vsel %vm182, %v3837, 0.0
      %v3873 = vadd.f32 %v3871, %v3872
      %v3874 = vsel %vm182, %v3838, 0.0
      %v3875 = vadd.f32 %v3873, %v3874
      %v3876 = vsel %vm182, %v3839, 0.0
      %v3877 = vadd.f32 %v3875, %v3876
      %v3878 = vsel %vm182, %v3840, 0.0
      %v3879 = vadd.f32 %v3877, %v3878
      %v3880 = vsel %vm182, %v3841, 0.0
      %v3881 = vadd.f32 %v3879, %v3880
      %v3882 = vsel %vm182, %v3842, 0.0
      %v3883 = vadd.f32 %v3881, %v3882
      %v3884 = vsel %vm182, %v3843, 0.0
      %v3885 = vadd.f32 %v3883, %v3884
      %v3886 = vsel %vm182, %v3844, 0.0
      %v3887 = vadd.f32 %v3885, %v3886
      %v3888 = vsel %vm182, %v3845, 0.0
      %v3889 = vadd.f32 %v3887, %v3888
      %v3890 = vsel %vm182, %v3846, 0.0
      %v3891 = vadd.f32 %v3889, %v3890
      %v3892 = vsel %vm182, %v3847, 0.0
      %v3893 = vadd.f32 %v3891, %v3892
      %v3894 = vsel %vm182, %v3848, 0.0
      %v3895 = vadd.f32 %v3893, %v3894
      %v3896 = vsel %vm182, %v3849, 0.0
      %v3897 = vadd.f32 %v3895, %v3896
      %v3898 = vsel %vm182, %v3850, 0.0
      %v3899 = vadd.f32 %v3897, %v3898
      %v3900 = vsel %vm182, %v3851, 0.0
      %v3901 = vadd.f32 %v3899, %v3900
      %v3902 = vsel %vm182, %v3852, 0.0
      %v3903 = vadd.f32 %v3901, %v3902
      %v3904 = vsel %vm182, %v3853, 0.0
      %v3905 = vadd.f32 %v3903, %v3904
      %v3906 = vsel %vm182, %v3854, 0.0
      %v3907 = vadd.f32 %v3905, %v3906
      %v3908 = vsel %vm182, %v3855, 0.0
      %v3909 = vadd.f32 %v3907, %v3908
      %v3910 = vsel %vm182, %v3856, 0.0
      %v3911 = vadd.f32 %v3909, %v3910
      %v3912 = vsel %vm182, %v3857, 0.0
      %v3913 = vadd.f32 %v3911, %v3912
      %v3914 = vsel %vm182, %v3858, 0.0
      %v3915 = vadd.f32 %v3913, %v3914
      %v3916 = vsel %vm182, %v3859, 0.0
      %v3917 = vadd.f32 %v3915, %v3916
      %v3918 = vsel %vm182, %v3860, 0.0
      %v3919 = vadd.f32 %v3917, %v3918
      %v3920 = vsel %vm182, %v3861, 0.0
      %v3921 = vadd.f32 %v3919, %v3920
      %v3922 = vsel %vm182, %v3862, 0.0
      %v3923 = vadd.f32 %v3921, %v3922
      %v3924 = vsel %vm182, %v3863, 0.0
      %v3925 = vadd.f32 %v3923, %v3924
      %v3926 = vsel %vm182, %v3864, 0.0
      %v3927 = vadd.f32 %v3925, %v3926
      %v3928 = vrot.slane %v3927, 4
      %v3929 = vadd.f32 %v3927, %v3928
      %v3930 = vrot.slane %v3929, 2
      %v3931 = vadd.f32 %v3929, %v3930
      %v3932 = vrot.slane %v3931, 1
      %v3933 = vadd.f32 %v3931, %v3932
      %vm3934 = vcmask 1040384
      %v3935 = vsel %vm3934, %v3832, %v3933
      %3936 = vst.msk [vmem:[%s181] sm:$0x3] %vm185, %v3935
      %p3937 = scmp.lt.s32.totalorder %s15, 1
      %s3938 = scalar_select %p3937, %s15, 1
      %s3939 = smul.addr %s3938, 32
      %s3940 = smul.addr %s3939, 8
      %s3941 = scalar_lea.vmem %s2, %s3940
      %p3942 = scmp.lt.s32.totalorder %s15, 1
      %s3943 = scalar_select %p3942, %s15, 1
      %s3944 = smul.addr %s3943, 2
      %s3945 = scalar_lea.vmem %s3, %s3944
      // Predicated region
      $region29: #{residual_block_nhwc.3} parent=27 // pred_check
        %p3946 = pneg %p80
      $region30: #{residual_block_nhwc.3} parent=27 // pred_check_branch
        %3948 = sbr.rel (%p3946) target = $region32
      $region31: #{residual_block_nhwc.3} parent=27 // pred_region
        _
      $region32: #{residual_block_nhwc.3} parent=27 // pred_fallthru
        _
      // Predicated region
      $region33: #{residual_block_nhwc.3} parent=27 // pred_check
        %p3949 = pneg %p106
      $region34: #{residual_block_nhwc.3} parent=27 // pred_check_branch
        %3951 = sbr.rel (%p3949) target = $region36
      $region35: #{residual_block_nhwc.3} parent=27 // pred_region
        _
      $region36: #{residual_block_nhwc.3} parent=27 // pred_fallthru
        _
    $region28: #{residual_block_nhwc.3} parent=5 // pred_fallthru
      _
    %p3952 = scmp.le.s32.totalorder 2, %s10
    // Predicated region
    $region37: #{residual_block_nhwc.3} parent=5 // pred_check
      %p3953 = pneg %p3952
    $region38: #{residual_block_nhwc.3} parent=5 // pred_check_branch
      %3955 = sbr.rel (%p3953) target = $region40
    $region39: #{residual_block_nhwc.3} parent=5 // pred_region
      %s3956 = ssub.s32 %s10, 2
      // Predicated region
      $region41: #{residual_block_nhwc.3} parent=39 // pred_check
        %p3957 = pneg %p86
      $region42: #{residual_block_nhwc.3} parent=39 // pred_check_branch
        %3959 = sbr.rel (%p3957) target = $region44
      $region43: #{residual_block_nhwc.3} parent=39 // pred_region
        %p3960 = scmp.lt.s32.totalorder %s16, 1
        %s3961 = scalar_select %p3960, %s16, 1
        %s3962 = smul.addr %s3961, 32
        %s3963 = smul.addr %s3962, 8
        %s3964 = scalar_lea.vmem %s2, %s3963
      $region44: #{residual_block_nhwc.3} parent=39 // pred_fallthru
        _
      // Predicated region
      $region45: #{residual_block_nhwc.3} parent=39 // pred_check
        %p3965 = pneg %p112
      $region46: #{residual_block_nhwc.3} parent=39 // pred_check_branch
        %3967 = sbr.rel (%p3965) target = $region48
      $region47: #{residual_block_nhwc.3} parent=39 // pred_region
        %p3968 = scmp.lt.s32.totalorder %s16, 1
        %s3969 = scalar_select %p3968, %s16, 1
        %s3970 = smul.addr %s3969, 2
        %s3971 = scalar_lea.vmem %s3, %s3970
      $region48: #{residual_block_nhwc.3} parent=39 // pred_fallthru
        _
    $region40: #{residual_block_nhwc.3} parent=5 // pred_fallthru
      _
  $region6: #{residual_block_nhwc.3} parent=0 // loop_footer
    %s14 = sadd.s32 1, %s10
  $region7: #{residual_block_nhwc.3} parent=0 // loop_footer_branch
    %9 = sbr.rel target = $region3
  $region8: #{residual_block_nhwc.3} parent=0 // loop_exit
    _

// kernel: residual_block_nhwc.4
$region0: #{residual_block_nhwc.4}
  #allocation0 [shape = 'u32[]', space=smem, size = 0x4, offset = 0x4, fixed_abs, tag = 'smem constant byte address 0x4 - core index']
  #allocation1 [shape = 'u32[144,128]{1,0:T(1,128)}', space=vmem, size = 0x12000, scoped, tag = 'internal scratch']
  #allocation2 [shape = 'f32[1,18,18,4]{3,2,1,0:T(8,128)}', space=vmem, size = 0x36000, scoped, tag = 'scratch operand']
  %s0 = inlined_call_operand.vmem [shape: f32[2,16,16,4], index: 0, kind: input, shape index: {}]
  %s1 = inlined_call_operand.vmem [shape: f32[1,4], index: 1, kind: input, shape index: {}]
  %s2 = inlined_call_operand.vmem [shape: f32[1,4], index: 2, kind: input, shape index: {}]
  %s3 = inlined_call_operand.vmem [shape: f32[36,4], index: 3, kind: input, shape index: {}]
  %s4 = inlined_call_operand.vmem [shape: f32[2,16,16,4], index: 4, kind: output, shape index: {0}]
  %s5 = inlined_call_operand.vmem [shape: f32[2,2,4], index: 5, kind: output, shape index: {1}]
  %6 = xla_tuple %s4, %s5
  %s7 = sld [smem:[#allocation0]]
  $region57: #{residual_block_nhwc.4} parent=0
    _
  %s9 = ssub.s32 1, %s7
  %s10 = scalar_select 0, %s9, %s7
  loop: start=0, step=1, limit=4
  $region2: #{residual_block_nhwc.4} parent=0 // loop_pre_header
    _
  $region3: #{residual_block_nhwc.4} parent=0 // loop_header
    %s12 = sphi 0, %s16
    %p13 = scmp.ge.s32.totalorder %s12, 4
    %s22 = sphi 0, %s24
    %s25 = sphi 0, %s22
    %s26 = sphi 0, %s25
    %s42 = sphi 0, %s26
    %s46 = sphi 0, %s46
    %s48 = sphi 0, %s46
    %s49 = sphi 0, %s48
    %s63 = sphi 0, %s49
    %s67 = sphi 0, %s67
    %s69 = sphi 0, %s67
    %s70 = sphi 0, %s69
    %s84 = sphi 0, %s70
    %s88 = sphi 0, %s88
    %s90 = sphi 0, %s88
    %s91 = sphi 0, %s90
    %s105 = sphi 0, %s91
    %s111 = sphi 0, %s113
    %s114 = sphi 0, %s111
    %s115 = sphi 0, %s114
    %s131 = sphi 0, %s115
    %s137 = sphi 0, %s139
    %s140 = sphi 0, %s137
    %s141 = sphi 0, %s140
    %s157 = sphi 0, %s141
  $region4: #{residual_block_nhwc.4} parent=0 // loop_header_branch
    %15 = sbr.rel (%p13) target = $region8
  $region5: #{residual_block_nhwc.4} parent=0 // loop_body
    %s17 = ssub.s32 %s12, 1
    %s18 = ssub.s32 %s12, 2
    %s19 = sadd.s32 %s12, 1
    %s20 = ssub.s32 %s12, %s19
    %p21 = scmp.eq.s32.totalorder %s20, 0
    %s23 = sadd.s32 %s22, 1
    %s24 = scalar_select %p21, %s22, %s23
    %p27 = pneg %p21
    %p28 = scmp.eq.s32.totalorder %s12, 1
    %p29 = por %p27, %p28
    %p30 = scmp.ne.s32.totalorder %s22, %s25
    %p31 = scmp.eq.s32.totalorder %s12, 0
    %p32 = por %p30, %p31
    %p33 = scmp.ne.s32.totalorder %s22, %s25
    %p34 = scmp.eq.s32.totalorder %s17, 1
    %p35 = por %p33, %p34
    %p36 = scmp.ne.s32.totalorder %s25, %s26
    %p37 = scmp.eq.s32.totalorder %s17, 0
    %p38 = por %p36, %p37
    %p39 = scmp.ne.s32.totalorder %s25, %s26
    %p40 = scmp.eq.s32.totalorder %s18, 1
    %p41 = por %p39, %p40
    %p43 = scmp.ne.s32.totalorder %s26, %s42
    %p44 = scmp.eq.s32.totalorder %s18, 0
    %p45 = por %p43, %p44
    %s47 = sadd.s32 %s46, 1
    %p50 = scmp.eq.s32.totalorder %s12, 1
    %p51 = scmp.ne.s32.totalorder %s46, %s48
    %p52 = scmp.eq.s32.totalorder %s12, 0
    %p53 = por %p51, %p52
    %p54 = scmp.ne.s32.totalorder %s46, %s48
    %p55 = scmp.eq.s32.totalorder %s17, 1
    %p56 = por %p54, %p55
    %p57 = scmp.ne.s32.totalorder %s48, %s49
    %p58 = scmp.eq.s32.totalorder %s17, 0
    %p59 = por %p57, %p58
    %p60 = scmp.ne.s32.totalorder %s48, %s49
    %p61 = scmp.eq.s32.totalorder %s18, 1
    %p62 = por %p60, %p61
    %p64 = scmp.ne.s32.totalorder %s49, %s63
    %p65 = scmp.eq.s32.totalorder %s18, 0
    %p66 = por %p64, %p65
    %s68 = sadd.s32 %s67, 1
    %p71 = scmp.eq.s32.totalorder %s12, 1
    %p72 = scmp.ne.s32.totalorder %s67, %s69
    %p73 = scmp.eq.s32.totalorder %s12, 0
    %p74 = por %p72, %p73
    %p75 = scmp.ne.s32.totalorder %s67, %s69
    %p76 = scmp.eq.s32.totalorder %s17, 1
    %p77 = por %p75, %p76
    %p78 = scmp.ne.s32.totalorder %s69, %s70
    %p79 = scmp.eq.s32.totalorder %s17, 0
    %p80 = por %p78, %p79
    %p81 = scmp.ne.s32.totalorder %s69, %s70
    %p82 = scmp.eq.s32.totalorder %s18, 1
    %p83 = por %p81, %p82
    %p85 = scmp.ne.s32.totalorder %s70, %s84
    %p86 = scmp.eq.s32.totalorder %s18, 0
    %p87 = por %p85, %p86
    %s89 = sadd.s32 %s88, 1
    %p92 = scmp.eq.s32.totalorder %s12, 1
    %p93 = scmp.ne.s32.totalorder %s88, %s90
    %p94 = scmp.eq.s32.totalorder %s12, 0
    %p95 = por %p93, %p94
    %p96 = scmp.ne.s32.totalorder %s88, %s90
    %p97 = scmp.eq.s32.totalorder %s17, 1
    %p98 = por %p96, %p97
    %p99 = scmp.ne.s32.totalorder %s90, %s91
    %p100 = scmp.eq.s32.totalorder %s17, 0
    %p101 = por %p99, %p100
    %p102 = scmp.ne.s32.totalorder %s90, %s91
    %p103 = scmp.eq.s32.totalorder %s18, 1
    %p104 = por %p102, %p103
    %p106 = scmp.ne.s32.totalorder %s91, %s105
    %p107 = scmp.eq.s32.totalorder %s18, 0
    %p108 = por %p106, %p107
    %s109 = ssub.s32 %s12, %s19
    %p110 = scmp.eq.s32.totalorder %s109, 0
    %s112 = sadd.s32 %s111, 1
    %s113 = scalar_select %p110, %s111, %s112
    %p116 = pneg %p110
    %p117 = scmp.eq.s32.totalorder %s12, 1
    %p118 = por %p116, %p117
    %p119 = scmp.ne.s32.totalorder %s111, %s114
    %p120 = scmp.eq.s32.totalorder %s12, 0
    %p121 = por %p119, %p120
    %p122 = scmp.ne.s32.totalorder %s111, %s114
    %p123 = scmp.eq.s32.totalorder %s17, 1
    %p124 = por %p122, %p123
    %p125 = scmp.ne.s32.totalorder %s114, %s115
    %p126 = scmp.eq.s32.totalorder %s17, 0
    %p127 = por %p125, %p126
    %p128 = scmp.ne.s32.totalorder %s114, %s115
    %p129 = scmp.eq.s32.totalorder %s18, 1
    %p130 = por %p128, %p129
    %p132 = scmp.ne.s32.totalorder %s115, %s131
    %p133 = scmp.eq.s32.totalorder %s18, 0
    %p134 = por %p132, %p133
    %s135 = ssub.s32 %s12, %s19
    %p136 = scmp.eq.s32.totalorder %s135, 0
    %s138 = sadd.s32 %s137, 1
    %s139 = scalar_select %p136, %s137, %s138
    %p142 = pneg %p136
    %p143 = scmp.eq.s32.totalorder %s12, 1
    %p144 = por %p142, %p143
    %p145 = scmp.ne.s32.totalorder %s137, %s140
    %p146 = scmp.eq.s32.totalorder %s12, 0
    %p147 = por %p145, %p146
    %p148 = scmp.ne.s32.totalorder %s137, %s140
    %p149 = scmp.eq.s32.totalorder %s17, 1
    %p150 = por %p148, %p149
    %p151 = scmp.ne.s32.totalorder %s140, %s141
    %p152 = scmp.eq.s32.totalorder %s17, 0
    %p153 = por %p151, %p152
    %p154 = scmp.ne.s32.totalorder %s140, %s141
    %p155 = scmp.eq.s32.totalorder %s18, 1
    %p156 = por %p154, %p155
    %p158 = scmp.ne.s32.totalorder %s141, %s157
    %p159 = scmp.eq.s32.totalorder %s18, 0
    %p160 = por %p158, %p159
    %p161 = scmp.le.s32.totalorder 1, %s12
    %p162 = scmp.lt.s32.totalorder %s12, 3
    %p163 = pnand %p161, %p162
    %p164 = pneg %p163
    // Predicated region
    $region9: #{residual_block_nhwc.4} parent=5 // pred_check
      _
    $region10: #{residual_block_nhwc.4} parent=5 // pred_check_branch
      %166 = sbr.rel (%p163) target = $region12
    $region11: #{residual_block_nhwc.4} parent=5 // pred_region
      %s167 = ssub.s32 %s12, 1
      // Predicated region
      $region13: #{residual_block_nhwc.4} parent=11 // pred_check
        %p168 = pneg %p59
      $region14: #{residual_block_nhwc.4} parent=11 // pred_check_branch
        %170 = sbr.rel (%p168) target = $region16
      $region15: #{residual_block_nhwc.4} parent=11 // pred_region
        _
      $region16: #{residual_block_nhwc.4} parent=11 // pred_fallthru
        _
      // Predicated region
      $region17: #{residual_block_nhwc.4} parent=11 // pred_check
        %p171 = pneg %p80
      $region18: #{residual_block_nhwc.4} parent=11 // pred_check_branch
        %173 = sbr.rel (%p171) target = $region20
      $region19: #{residual_block_nhwc.4} parent=11 // pred_region
        _
      $region20: #{residual_block_nhwc.4} parent=11 // pred_fallthru
        _
      // Predicated region
      $region21: #{residual_block_nhwc.4} parent=11 // pred_check
        %p174 = pneg %p101
      $region22: #{residual_block_nhwc.4} parent=11 // pred_check_branch
        %176 = sbr.rel (%p174) target = $region24
      $region23: #{residual_block_nhwc.4} parent=11 // pred_region
        _
      $region24: #{residual_block_nhwc.4} parent=11 // pred_fallthru
        _
    $region12: #{residual_block_nhwc.4} parent=5 // pred_fallthru
      _
    %p177 = scmp.lt.s32.totalorder %s12, 2
    // Predicated region
    $region25: #{residual_block_nhwc.4} parent=5 // pred_check
      %p178 = pneg %p177
    $region26: #{residual_block_nhwc.4} parent=5 // pred_check_branch
      %180 = sbr.rel (%p178) target = $region28
    $region27: #{residual_block_nhwc.4} parent=5 // pred_region
      // Predicated region
      $region29: #{residual_block_nhwc.4} parent=27 // pred_check
        %p181 = pneg %p32
      $region30: #{residual_block_nhwc.4} parent=27 // pred_check_branch
        %183 = sbr.rel (%p181) target = $region32
      $region31: #{residual_block_nhwc.4} parent=27 // pred_region
        %p184 = scmp.lt.s32.totalorder %s12, 1
        %s185 = scalar_select %p184, %s12, 1
        %s186 = smul.addr %s185, 32
        %s187 = smul.addr %s186, 8
        %s188 = scalar_lea.vmem %s0, %s187
      $region32: #{residual_block_nhwc.4} parent=27 // pred_fallthru
        _
    $region28: #{residual_block_nhwc.4} parent=5 // pred_fallthru
      _
    %p189 = scmp.le.s32.totalorder 1, %s12
    %p190 = scmp.lt.s32.totalorder %s12, 3
    %p191 = pnand %p189, %p190
    %p192 = pneg %p191
    // Predicated region
    $region33: #{residual_block_nhwc.4} parent=5 // pred_check
      _
    $region34: #{residual_block_nhwc.4} parent=5 // pred_check_branch
      %194 = sbr.rel (%p191) target = $region36
    $region35: #{residual_block_nhwc.4} parent=5 // pred_region
      %s195 = ssub.s32 %s12, 1
      %p196 = scmp.lt.s32.totalorder %s17, 1
      %s197 = scalar_select %p196, %s17, 1
      %s198 = smul.addr %s197, 32
      %s199 = smul.addr %s198, 8
      %s200 = scalar_lea.vmem %s0, %s199
      %p201 = pneg %p38
      %p202 = pneg %p35
      %p203 = pneg %p59
      %p204 = pneg %p56
      %p205 = pneg %p80
      %p206 = pneg %p77
      %p207 = pneg %p101
      %p208 = pneg %p98
      %p209 = pneg %p127
      %p210 = pneg %p124
      %p211 = scmp.lt.s32.totalorder %s17, 1
      %s212 = scalar_select %p211, %s17, 1
      %s213 = smul.addr %s212, 32
      %s214 = smul.addr %s213, 8
      %s215 = scalar_lea.vmem %s4, %s214
      %p216 = pneg %p153
      %p217 = pneg %p150
      %p218 = scmp.lt.s32.totalorder %s17, 1
      %s219 = scalar_select %p218, %s17, 1
      %s220 = smul.addr %s219, 2
      %s221 = scalar_lea.vmem %s5, %s220
      %p222 = scmp.lt.s32.totalorder %s17, 1
      %s223 = scalar_select %p222, %s17, 1
      %s224 = smul.addr %s223, 32
      %s225 = smul.addr %s224, 8
      %s226 = scalar_lea.vmem %s0, %s225
      %p227 = scmp.lt.s32.totalorder %s17, 1
      %s228 = scalar_select %p227, %s17, 1
      %s229 = smul.addr %s228, 32
      %s230 = smul.addr %s229, 8
      %s231 = scalar_lea.vmem %s4, %s230
      %p232 = scmp.lt.s32.totalorder %s17, 1
      %s233 = scalar_select %p232, %s17, 1
      %s234 = smul.addr %s233, 2
      %s235 = scalar_lea.vmem %s5, %s234
      %v236 = vld [vmem:[%s226] sm:$0xff]
      %v237 = vld [vmem:[%s226 + $0x8] sm:$0xff]
      %v238 = vld [vmem:[%s226 + $0x10] sm:$0xff]
      %v239 = vld [vmem:[%s226 + $0x18] sm:$0xff]
      %v240 = vld [vmem:[%s226 + $0x20] sm:$0xff]
      %v241 = vld [vmem:[%s226 + $0x28] sm:$0xff]
      %v242 = vld [vmem:[%s226 + $0x30] sm:$0xff]
      %v243 = vld [vmem:[%s226 + $0x38] sm:$0xff]
      %v244 = vld [vmem:[%s226 + $0x40] sm:$0xff]
      %v245 = vld [vmem:[%s226 + $0x48] sm:$0xff]
      %v246 = vld [vmem:[%s226 + $0x50] sm:$0xff]
      %v247 = vld [vmem:[%s226 + $0x58] sm:$0xff]
      %v248 = vld [vmem:[%s226 + $0x60] sm:$0xff]
      %v249 = vld [vmem:[%s226 + $0x68] sm:$0xff]
      %v250 = vld [vmem:[%s226 + $0x70] sm:$0xff]
      %v251 = vld [vmem:[%s226 + $0x78] sm:$0xff]
      %v252 = vld [vmem:[%s226 + $0x80] sm:$0xff]
      %v253 = vld [vmem:[%s226 + $0x88] sm:$0xff]
      %v254 = vld [vmem:[%s226 + $0x90] sm:$0xff]
      %v255 = vld [vmem:[%s226 + $0x98] sm:$0xff]
      %v256 = vld [vmem:[%s226 + $0xa0] sm:$0xff]
      %v257 = vld [vmem:[%s226 + $0xa8] sm:$0xff]
      %v258 = vld [vmem:[%s226 + $0xb0] sm:$0xff]
      %v259 = vld [vmem:[%s226 + $0xb8] sm:$0xff]
      %v260 = vld [vmem:[%s226 + $0xc0] sm:$0xff]
      %v261 = vld [vmem:[%s226 + $0xc8] sm:$0xff]
      %v262 = vld [vmem:[%s226 + $0xd0] sm:$0xff]
      %v263 = vld [vmem:[%s226 + $0xd8] sm:$0xff]
      %v264 = vld [vmem:[%s226 + $0xe0] sm:$0xff]
      %v265 = vld [vmem:[%s226 + $0xe8] sm:$0xff]
      %v266 = vld [vmem:[%s226 + $0xf0] sm:$0xff]
      %v267 = vld [vmem:[%s226 + $0xf8] sm:$0xff]
      %v268 = vld [vmem:[%s1] sm:$0x1]
      %v270 = vlaneseq
      %v271 = vshrl.u32 %v270, 7
      %v272 = vsub.s32 0, %v271
      %v273 = vrot.slane %v268, %v272
      %v275 = vmul.f32 %v236, %v273
      %v276 = vmul.f32 %v237, %v273
      %v277 = vmul.f32 %v238, %v273
      %v278 = vmul.f32 %v239, %v273
      %v279 = vmul.f32 %v240, %v273
      %v280 = vmul.f32 %v241, %v273
      %v281 = vmul.f32 %v242, %v273
      %v282 = vmul.f32 %v243, %v273
      %v283 = vmul.f32 %v244, %v273
      %v284 = vmul.f32 %v245, %v273
      %v285 = vmul.f32 %v246, %v273
      %v286 = vmul.f32 %v247, %v273
      %v287 = vmul.f32 %v248, %v273
      %v288 = vmul.f32 %v249, %v273
      %v289 = vmul.f32 %v250, %v273
      %v290 = vmul.f32 %v251, %v273
      %v291 = vmul.f32 %v252, %v273
      %v292 = vmul.f32 %v253, %v273
      %v293 = vmul.f32 %v254, %v273
      %v294 = vmul.f32 %v255, %v273
      %v295 = vmul.f32 %v256, %v273
      %v296 = vmul.f32 %v257, %v273
      %v297 = vmul.f32 %v258, %v273
      %v298 = vmul.f32 %v259, %v273
      %v299 = vmul.f32 %v260, %v273
      %v300 = vmul.f32 %v261, %v273
      %v301 = vmul.f32 %v262, %v273
      %v302 = vmul.f32 %v263, %v273
      %v303 = vmul.f32 %v264, %v273
      %v304 = vmul.f32 %v265, %v273
      %v305 = vmul.f32 %v266, %v273
      %v306 = vmul.f32 %v267, %v273
      %v307 = vld [vmem:[%s2] sm:$0x1]
      %v309 = vlaneseq
      %v310 = vshrl.u32 %v309, 7
      %v311 = vsub.s32 0, %v310
      %v312 = vrot.slane %v307, %v311
      %v314 = vadd.f32 %v275, %v312
      %v315 = vadd.f32 %v276, %v312
      %v316 = vadd.f32 %v277, %v312
      %v317 = vadd.f32 %v278, %v312
      %v318 = vadd.f32 %v279, %v312
      %v319 = vadd.f32 %v280, %v312
      %v320 = vadd.f32 %v281, %v312
      %v321 = vadd.f32 %v282, %v312
      %v322 = vadd.f32 %v283, %v312
      %v323 = vadd.f32 %v284, %v312
      %v324 = vadd.f32 %v285, %v312
      %v325 = vadd.f32 %v286, %v312
      %v326 = vadd.f32 %v287, %v312
      %v327 = vadd.f32 %v288, %v312
      %v328 = vadd.f32 %v289, %v312
      %v329 = vadd.f32 %v290, %v312
      %v330 = vadd.f32 %v291, %v312
      %v331 = vadd.f32 %v292, %v312
      %v332 = vadd.f32 %v293, %v312
      %v333 = vadd.f32 %v294, %v312
      %v334 = vadd.f32 %v295, %v312
      %v335 = vadd.f32 %v296, %v312
      %v336 = vadd.f32 %v297, %v312
      %v337 = vadd.f32 %v298, %v312
      %v338 = vadd.f32 %v299, %v312
      %v339 = vadd.f32 %v300, %v312
      %v340 = vadd.f32 %v301, %v312
      %v341 = vadd.f32 %v302, %v312
      %v342 = vadd.f32 %v303, %v312
      %v343 = vadd.f32 %v304, %v312
      %v344 = vadd.f32 %v305, %v312
      %v345 = vadd.f32 %v306, %v312
      %v346 = vmax.f32 %v314, 0.0
      %v347 = vmax.f32 %v315, 0.0
      %v348 = vmax.f32 %v316, 0.0
      %v349 = vmax.f32 %v317, 0.0
      %v350 = vmax.f32 %v318, 0.0
      %v351 = vmax.f32 %v319, 0.0
      %v352 = vmax.f32 %v320, 0.0
      %v353 = vmax.f32 %v321, 0.0
      %v354 = vmax.f32 %v322, 0.0
      %v355 = vmax.f32 %v323, 0.0
      %v356 = vmax.f32 %v324, 0.0
      %v357 = vmax.f32 %v325, 0.0
      %v358 = vmax.f32 %v326, 0.0
      %v359 = vmax.f32 %v327, 0.0
      %v360 = vmax.f32 %v328, 0.0
      %v361 = vmax.f32 %v329, 0.0
      %v362 = vmax.f32 %v330, 0.0
      %v363 = vmax.f32 %v331, 0.0
      %v364 = vmax.f32 %v332, 0.0
      %v365 = vmax.f32 %v333, 0.0
      %v366 = vmax.f32 %v334, 0.0
      %v367 = vmax.f32 %v335, 0.0
      %v368 = vmax.f32 %v336, 0.0
      %v369 = vmax.f32 %v337, 0.0
      %v370 = vmax.f32 %v338, 0.0
      %v371 = vmax.f32 %v339, 0.0
      %v372 = vmax.f32 %v340, 0.0
      %v373 = vmax.f32 %v341, 0.0
      %v374 = vmax.f32 %v342, 0.0
      %v375 = vmax.f32 %v343, 0.0
      %v376 = vmax.f32 %v344, 0.0
      %v377 = vmax.f32 %v345, 0.0
      %vm378 = vcmask 31744
      %379 = vst.msk [vmem:[#allocation2] sm:$0xff] %vm378, 0.0
      %380 = vst.msk [vmem:[#allocation2 + $0x8] sm:$0xff] %vm378, 0.0
      %vm381 = vcmask 25600
      %382 = vst.msk [vmem:[#allocation2 + $0x10] sm:$0x3] %vm381, 0.0
      %s383 = scalar_lea.vmem [#allocation2], 408
      %384 = vst.msk [vmem:[%s383] sm:$0xff] %vm378, 0.0
      %385 = vst.msk [vmem:[%s383 + $0x8] sm:$0xff] %vm378, 0.0
      %386 = vst.msk [vmem:[%s383 + $0x10] sm:$0x3] %vm381, 0.0
      %vm387 = vcmask 24576
      %388 = vst.msk [vmem:[#allocation2] sm:$0x1] %vm387, 0.0
      %389 = vst.msk [vmem:[#allocation2 + $0x18] sm:$0x1] %vm387, 0.0
      %390 = vst.msk [vmem:[#allocation2 + $0x30] sm:$0x1] %vm387, 0.0
      %391 = vst.msk [vmem:[#allocation2 + $0x48] sm:$0x1] %vm387, 0.0
      %392 = vst.msk [vmem:[#allocation2 + $0x60] sm:$0x1] %vm387, 0.0
      %393 = vst.msk [vmem:[#allocation2 + $0x78] sm:$0x1] %vm387, 0.0
      %394 = vst.msk [vmem:[#allocation2 + $0x90] sm:$0x1] %vm387, 0.0
      %395 = vst.msk [vmem:[#allocation2 + $0xa8] sm:$0x1] %vm387, 0.0
      %396 = vst.msk [vmem:[#allocation2 + $0xc0] sm:$0x1] %vm387, 0.0
      %397 = vst.msk [vmem:[#allocation2 + $0xd8] sm:$0x1] %vm387, 0.0
      %398 = vst.msk [vmem:[#allocation2 + $0xf0] sm:$0x1] %vm387, 0.0
      %399 = vst.msk [vmem:[#allocation2 + $0x108] sm:$0x1] %vm387, 0.0
      %400 = vst.msk [vmem:[#allocation2 + $0x120] sm:$0x1] %vm387, 0.0
      %401 = vst.msk [vmem:[#allocation2 + $0x138] sm:$0x1] %vm387, 0.0
      %402 = vst.msk [vmem:[#allocation2 + $0x150] sm:$0x1] %vm387, 0.0
      %403 = vst.msk [vmem:[#allocation2 + $0x168] sm:$0x1] %vm387, 0.0
      %404 = vst.msk [vmem:[#allocation2 + $0x180] sm:$0x1] %vm387, 0.0
      %405 = vst.msk [vmem:[#allocation2 + $0x198] sm:$0x1] %vm387, 0.0
      %406 = vst.msk [vmem:[#allocation2 + $0x11] sm:$0x1] %vm387, 0.0
      %407 = vst.msk [vmem:[#allocation2 + $0x29] sm:$0x1] %vm387, 0.0
      %408 = vst.msk [vmem:[#allocation2 + $0x41] sm:$0x1] %vm387, 0.0
      %409 = vst.msk [vmem:[#allocation2 + $0x59] sm:$0x1] %vm387, 0.0
      %410 = vst.msk [vmem:[#allocation2 + $0x71] sm:$0x1] %vm387, 0.0
      %411 = vst.msk [vmem:[#allocation2 + $0x89] sm:$0x1] %vm387, 0.0
      %412 = vst.msk [vmem:[#allocation2 + $0xa1] sm:$0x1] %vm387, 0.0
      %413 = vst.msk [vmem:[#allocation2 + $0xb9] sm:$0x1] %vm387, 0.0
      %414 = vst.msk [vmem:[#allocation2 + $0xd1] sm:$0x1] %vm387, 0.0
      %415 = vst.msk [vmem:[#allocation2 + $0xe9] sm:$0x1] %vm387, 0.0
      %416 = vst.msk [vmem:[#allocation2 + $0x101] sm:$0x1] %vm387, 0.0
      %417 = vst.msk [vmem:[#allocation2 + $0x119] sm:$0x1] %vm387, 0.0
      %418 = vst.msk [vmem:[#allocation2 + $0x131] sm:$0x1] %vm387, 0.0
      %419 = vst.msk [vmem:[#allocation2 + $0x149] sm:$0x1] %vm387, 0.0
      %420 = vst.msk [vmem:[#allocation2 + $0x161] sm:$0x1] %vm387, 0.0
      %421 = vst.msk [vmem:[#allocation2 + $0x179] sm:$0x1] %vm387, 0.0
      %422 = vst.msk [vmem:[#allocation2 + $0x191] sm:$0x1] %vm387, 0.0
      %423 = vst.msk [vmem:[#allocation2 + $0x1a9] sm:$0x1] %vm387, 0.0
      %s424 = scalar_lea.vmem [#allocation2], 24
      %425 = vst.msk [vmem:[%s424 + $0x1] sm:$0xff] %vm378, %v346
      %426 = vst.msk [vmem:[%s424 + $0x9] sm:$0xff] %vm378, %v347
      %427 = vst.msk [vmem:[%s424 + $0x19] sm:$0xff] %vm378, %v348
      %428 = vst.msk [vmem:[%s424 + $0x21] sm:$0xff] %vm378, %v349
      %429 = vst.msk [vmem:[%s424 + $0x31] sm:$0xff] %vm378, %v350
      %430 = vst.msk [vmem:[%s424 + $0x39] sm:$0xff] %vm378, %v351
      %431 = vst.msk [vmem:[%s424 + $0x49] sm:$0xff] %vm378, %v352
      %432 = vst.msk [vmem:[%s424 + $0x51] sm:$0xff] %vm378, %v353
      %433 = vst.msk [vmem:[%s424 + $0x61] sm:$0xff] %vm378, %v354
      %434 = vst.msk [vmem:[%s424 + $0x69] sm:$0xff] %vm378, %v355
      %435 = vst.msk [vmem:[%s424 + $0x79] sm:$0xff] %vm378, %v356
      %436 = vst.msk [vmem:[%s424 + $0x81] sm:$0xff] %vm378, %v357
      %437 = vst.msk [vmem:[%s424 + $0x91] sm:$0xff] %vm378, %v358
      %438 = vst.msk [vmem:[%s424 + $0x99] sm:$0xff] %vm378, %v359
      %439 = vst.msk [vmem:[%s424 + $0xa9] sm:$0xff] %vm378, %v360
      %440 = vst.msk [vmem:[%s424 + $0xb1] sm:$0xff] %vm378, %v361
      %441 = vst.msk [vmem:[%s424 + $0xc1] sm:$0xff] %vm378, %v362
      %442 = vst.msk [vmem:[%s424 + $0xc9] sm:$0xff] %vm378, %v363
      %443 = vst.msk [vmem:[%s424 + $0xd9] sm:$0xff] %vm378, %v364
      %444 = vst.msk [vmem:[%s424 + $0xe1] sm:$0xff] %vm378, %v365
      %445 = vst.msk [vmem:[%s424 + $0xf1] sm:$0xff] %vm378, %v366
      %446 = vst.msk [vmem:[%s424 + $0xf9] sm:$0xff] %vm378, %v367
      %447 = vst.msk [vmem:[%s424 + $0x109] sm:$0xff] %vm378, %v368
      %448 = vst.msk [vmem:[%s424 + $0x111] sm:$0xff] %vm378, %v369
      %449 = vst.msk [vmem:[%s424 + $0x121] sm:$0xff] %vm378, %v370
      %450 = vst.msk [vmem:[%s424 + $0x129] sm:$0xff] %vm378, %v371
      %451 = vst.msk [vmem:[%s424 + $0x139] sm:$0xff] %vm378, %v372
      %452 = vst.msk [vmem:[%s424 + $0x141] sm:$0xff] %vm378, %v373
      %453 = vst.msk [vmem:[%s424 + $0x151] sm:$0xff] %vm378, %v374
      %454 = vst.msk [vmem:[%s424 + $0x159] sm:$0xff] %vm378, %v375
      %455 = vst.msk [vmem:[%s424 + $0x169] sm:$0xff] %vm378, %v376
      %456 = vst.msk [vmem:[%s424 + $0x171] sm:$0xff] %vm378, %v377
      %v457 = vld [vmem:[#allocation2] sm:$0xff]
      %v458 = vld [vmem:[#allocation2 + $0x8] sm:$0xff]
      %v459 = vld [vmem:[#allocation2 + $0x18] sm:$0xff]
      %v460 = vld [vmem:[#allocation2 + $0x20] sm:$0xff]
      %v461 = vld [vmem:[#allocation2 + $0x30] sm:$0xff]
      %v462 = vld [vmem:[#allocation2 + $0x38] sm:$0xff]
      %v463 = vld [vmem:[#allocation2 + $0x48] sm:$0xff]
      %v464 = vld [vmem:[#allocation2 + $0x50] sm:$0xff]
      %v465 = vld [vmem:[#allocation2 + $0x60] sm:$0xff]
      %v466 = vld [vmem:[#allocation2 + $0x68] sm:$0xff]
      %v467 = vld [vmem:[#allocation2 + $0x78] sm:$0xff]
      %v468 = vld [vmem:[#allocation2 + $0x80] sm:$0xff]
      %v469 = vld [vmem:[#allocation2 + $0x90] sm:$0xff]
      %v470 = vld [vmem:[#allocation2 + $0x98] sm:$0xff]
      %v471 = vld [vmem:[#allocation2 + $0xa8] sm:$0xff]
      %v472 = vld [vmem:[#allocation2 + $0xb0] sm:$0xff]
      %v473 = vld [vmem:[#allocation2 + $0xc0] sm:$0xff]
      %v474 = vld [vmem:[#allocation2 + $0xc8] sm:$0xff]
      %v475 = vld [vmem:[#allocation2 + $0xd8] sm:$0xff]
      %v476 = vld [vmem:[#allocation2 + $0xe0] sm:$0xff]
      %v477 = vld [vmem:[#allocation2 + $0xf0] sm:$0xff]
      %v478 = vld [vmem:[#allocation2 + $0xf8] sm:$0xff]
      %v479 = vld [vmem:[#allocation2 + $0x108] sm:$0xff]
      %v480 = vld [vmem:[#allocation2 + $0x110] sm:$0xff]
      %v481 = vld [vmem:[#allocation2 + $0x120] sm:$0xff]
      %v482 = vld [vmem:[#allocation2 + $0x128] sm:$0xff]
      %v483 = vld [vmem:[#allocation2 + $0x138] sm:$0xff]
      %v484 = vld [vmem:[#allocation2 + $0x140] sm:$0xff]
      %v485 = vld [vmem:[#allocation2 + $0x150] sm:$0xff]
      %v486 = vld [vmem:[#allocation2 + $0x158] sm:$0xff]
      %v487 = vld [vmem:[#allocation2 + $0x168] sm:$0xff]
      %v488 = vld [vmem:[#allocation2 + $0x170] sm:$0xff]
      %v489 = vld [vmem:[%s3] sm:$0xf]
      %v490 = vld [vmem:[#allocation2 + $0x1] sm:$0xff]
      %v491 = vld [vmem:[#allocation2 + $0x9] sm:$0xff]
      %v492 = vld [vmem:[#allocation2 + $0x19] sm:$0xff]
      %v493 = vld [vmem:[#allocation2 + $0x21] sm:$0xff]
      %v494 = vld [vmem:[#allocation2 + $0x31] sm:$0xff]
      %v495 = vld [vmem:[#allocation2 + $0x39] sm:$0xff]
      %v496 = vld [vmem:[#allocation2 + $0x49] sm:$0xff]
      %v497 = vld [vmem:[#allocation2 + $0x51] sm:$0xff]
      %v498 = vld [vmem:[#allocation2 + $0x61] sm:$0xff]
      %v499 = vld [vmem:[#allocation2 + $0x69] sm:$0xff]
      %v500 = vld [vmem:[#allocation2 + $0x79] sm:$0xff]
      %v501 = vld [vmem:[#allocation2 + $0x81] sm:$0xff]
      %v502 = vld [vmem:[#allocation2 + $0x91] sm:$0xff]
      %v503 = vld [vmem:[#allocation2 + $0x99] sm:$0xff]
      %v504 = vld [vmem:[#allocation2 + $0xa9] sm:$0xff]
      %v505 = vld [vmem:[#allocation2 + $0xb1] sm:$0xff]
      %v506 = vld [vmem:[#allocation2 + $0xc1] sm:$0xff]
      %v507 = vld [vmem:[#allocation2 + $0xc9] sm:$0xff]
      %v508 = vld [vmem:[#allocation2 + $0xd9] sm:$0xff]
      %v509 = vld [vmem:[#allocation2 + $0xe1] sm:$0xff]
      %v510 = vld [vmem:[#allocation2 + $0xf1] sm:$0xff]
      %v511 = vld [vmem:[#allocation2 + $0xf9] sm:$0xff]
      %v512 = vld [vmem:[#allocation2 + $0x109] sm:$0xff]
      %v513 = vld [vmem:[#allocation2 + $0x111] sm:$0xff]
      %v514 = vld [vmem:[#allocation2 + $0x121] sm:$0xff]
      %v515 = vld [vmem:[#allocation2 + $0x129] sm:$0xff]
      %v516 = vld [vmem:[#allocation2 + $0x139] sm:$0xff]
      %v517 = vld [vmem:[#allocation2 + $0x141] sm:$0xff]
      %v518 = vld [vmem:[#allocation2 + $0x151] sm:$0xff]
      %v519 = vld [vmem:[#allocation2 + $0x159] sm:$0xff]
      %v520 = vld [vmem:[#allocation2 + $0x169] sm:$0xff]
      %v521 = vld [vmem:[#allocation2 + $0x171] sm:$0xff]
      %v522 = vld [vmem:[%s3 + $0x4] sm:$0xf]
      %v524 = vsel %vm378, %v490, 0
      %v527 = vsel %vm378, %v491, 0
      %v530 = vsel %vm378, %v492, 0
      %v533 = vsel %vm378, %v493, 0
      %v536 = vsel %vm378, %v494, 0
      %v539 = vsel %vm378, %v495, 0
      %v542 = vsel %vm378, %v496, 0
      %v545 = vsel %vm378, %v497, 0
      %v548 = vsel %vm378, %v498, 0
      %v551 = vsel %vm378, %v499, 0
      %v554 = vsel %vm378, %v500, 0
      %v557 = vsel %vm378, %v501, 0
      %v560 = vsel %vm378, %v502, 0
      %v563 = vsel %vm378, %v503, 0
      %v566 = vsel %vm378, %v504, 0
      %v569 = vsel %vm378, %v505, 0
      %v572 = vsel %vm378, %v506, 0
      %v575 = vsel %vm378, %v507, 0
      %v578 = vsel %vm378, %v508, 0
      %v581 = vsel %vm378, %v509, 0
      %v584 = vsel %vm378, %v510, 0
      %v587 = vsel %vm378, %v511, 0
      %v590 = vsel %vm378, %v512, 0
      %v593 = vsel %vm378, %v513, 0
      %v596 = vsel %vm378, %v514, 0
      %v599 = vsel %vm378, %v515, 0
      %v602 = vsel %vm378, %v516, 0
      %v605 = vsel %vm378, %v517, 0
      %v608 = vsel %vm378, %v518, 0
      %v611 = vsel %vm378, %v519, 0
      %v614 = vsel %vm378, %v520, 0
      %v617 = vsel %vm378, %v521, 0
      %vm619 = vcmask 1043456
      %v621 = vsel %vm619, %v522, 0
      %623 = vmatprep.subr.mxu0 0.0
      %624 = vmatpush1.msra.mxu0 %v621
      %625 = vmatprep.subr.mxu0 0.0
      %626 = vmatpush1.msra.mxu0 0.0
      %627 = vmatprep.subr.mxu0 0.0
      %628 = vmatpush1.msra.mxu0 0.0
      %629 = vmatprep.subr.mxu0 0.0
      %630 = vmatpush1.msra.mxu0 0.0
      %631 = vmatprep.subr.mxu0 0.0
      %632 = vmatpush1.msra.mxu0 0.0
      %633 = vmatprep.subr.mxu0 0.0
      %634 = vmatpush1.msra.mxu0 0.0
      %635 = vmatprep.subr.mxu0 0.0
      %636 = vmatpush1.msra.mxu0 0.0
      %637 = vmatprep.subr.mxu0 0.0
      %638 = vmatpush1.msra.mxu0 0.0
      %639 = vmatprep.subr.mxu0 0.0
      %640 = vmatpush1.msra.mxu0 0.0
      %641 = vmatprep.subr.mxu0 0.0
      %642 = vmatpush1.msra.mxu0 0.0
      %643 = vmatprep.subr.mxu0 0.0
      %644 = vmatpush1.msra.mxu0 0.0
      %645 = vmatprep.subr.mxu0 0.0
      %646 = vmatpush1.msra.mxu0 0.0
      %647 = vmatprep.subr.mxu0 0.0
      %648 = vmatpush1.msra.mxu0 0.0
      %649 = vmatprep.subr.mxu0 0.0
      %650 = vmatpush1.msra.mxu0 0.0
      %651 = vmatprep.subr.mxu0 0.0
      %652 = vmatpush1.msra.mxu0 0.0
      %653 = vmatprep.subr.mxu0 0.0
      %654 = vmatpush1.msra.mxu0 0.0
      %655 = vmatprep.subr.mxu0 0.0
      %656 = vmatpush1.msra.mxu0 0.0
      %657 = vmatprep.subr.mxu0 0.0
      %658 = vmatpush1.msra.mxu0 0.0
      %659 = vmatprep.subr.mxu0 0.0
      %660 = vmatpush1.msra.mxu0 0.0
      %661 = vmatprep.subr.mxu0 0.0
      %662 = vmatpush1.msra.mxu0 0.0
      %663 = vmatprep.subr.mxu0 0.0
      %664 = vmatpush1.msra.mxu0 0.0
      %665 = vmatprep.subr.mxu0 0.0
      %666 = vmatpush1.msra.mxu0 0.0
      %667 = vmatprep.subr.mxu0 0.0
      %668 = vmatpush1.msra.mxu0 0.0
      %669 = vmatprep.subr.mxu0 0.0
      %670 = vmatpush1.msra.mxu0 0.0
      %671 = vmatprep.subr.mxu0 0.0
      %672 = vmatpush1.msra.mxu0 0.0
      %673 = vmatprep.subr.mxu0 0.0
      %674 = vmatpush1.msra.mxu0 0.0
      %675 = vmatprep.subr.mxu0 0.0
      %676 = vmatpush1.msra.mxu0 0.0
      %677 = vmatprep.subr.mxu0 0.0
      %678 = vmatpush1.msra.mxu0 0.0
      %679 = vmatprep.subr.mxu0 0.0
      %680 = vmatpush1.msra.mxu0 0.0
      %681 = vmatprep.subr.mxu0 0.0
      %682 = vmatpush1.msra.mxu0 0.0
      %683 = vmatprep.subr.mxu0 0.0
      %684 = vmatpush1.msra.mxu0 0.0
      %685 = vmatprep.subr.mxu0 0.0
      %686 = vmatpush1.msra.mxu0 0.0
      %687 = vmatprep.mubr.f32.mxu0 0.0
      %688 = vmatmul.mubr.f32.gmra.mrb[0].mxu0 %v524
      %v689 = vpop.f32.mrb[0].mxu0
      %v690 = vadd.f32 0.0, %v689
      %v691 = vpop.f32.mrb[0].mxu0
      %692 = vmatprep.mubr.f32.mxu0 0.0
      %693 = vmatmul.mubr.f32.gmra.mrb[0].mxu0 %v527
      %v694 = vpop.f32.mrb[0].mxu0
      %v695 = vadd.f32 0.0, %v694
      %v696 = vpop.f32.mrb[0].mxu0
      %697 = vmatprep.mubr.f32.mxu0 0.0
      %698 = vmatmul.mubr.f32.gmra.mrb[0].mxu0 %v530
      %v699 = vpop.f32.mrb[0].mxu0
      %v700 = vadd.f32 0.0, %v699
      %v701 = vpop.f32.mrb[0].mxu0
      %702 = vmatprep.mubr.f32.mxu0 0.0
      %703 = vmatmul.mubr.f32.gmra.mrb[0].mxu0 %v533
      %v704 = vpop.f32.mrb[0].mxu0
      %v705 = vadd.f32 0.0, %v704
      %v706 = vpop.f32.mrb[0].mxu0
      %707 = vmatprep.mubr.f32.mxu0 0.0
      %708 = vmatmul.mubr.f32.gmra.mrb[0].mxu0 %v536
      %v709 = vpop.f32.mrb[0].mxu0
      %v710 = vadd.f32 0.0, %v709
      %v711 = vpop.f32.mrb[0].mxu0
      %712 = vmatprep.mubr.f32.mxu0 0.0
      %713 = vmatmul.mubr.f32.gmra.mrb[0].mxu0 %v539
      %v714 = vpop.f32.mrb[0].mxu0
      %v715 = vadd.f32 0.0, %v714
      %v716 = vpop.f32.mrb[0].mxu0
      %717 = vmatprep.mubr.f32.mxu0 0.0
      %718 = vmatmul.mubr.f32.gmra.mrb[0].mxu0 %v542
      %v719 = vpop.f32.mrb[0].mxu0
      %v720 = vadd.f32 0.0, %v719
      %v721 = vpop.f32.mrb[0].mxu0
      %722 = vmatprep.mubr.f32.mxu0 0.0
      %723 = vmatmul.mubr.f32.gmra.mrb[0].mxu0 %v545
      %v724 = vpop.f32.mrb[0].mxu0
      %v725 = vadd.f32 0.0, %v724
      %v726 = vpop.f32.mrb[0].mxu0
      %727 = vmatprep.mubr.f32.mxu0 0.0
      %728 = vmatmul.mubr.f32.gmra.mrb[0].mxu0 %v548
      %v729 = vpop.f32.mrb[0].mxu0
      %v730 = vadd.f32 0.0, %v729
      %v731 = vpop.f32.mrb[0].mxu0
      %732 = vmatprep.mubr.f32.mxu0 0.0
      %733 = vmatmul.mubr.f32.gmra.mrb[0].mxu0 %v551
      %v734 = vpop.f32.mrb[0].mxu0
      %v735 = vadd.f32 0.0, %v734
      %v736 = vpop.f32.mrb[0].mxu0
      %737 = vmatprep.mubr.f32.mxu0 0.0
      %738 = vmatmul.mubr.f32.gmra.mrb[0].mxu0 %v554
      %v739 = vpop.f32.mrb[0].mxu0
      %v740 = vadd.f32 0.0, %v739
      %v741 = vpop.f32.mrb[0].mxu0
      %742 = vmatprep.mubr.f32.mxu0 0.0
      %743 = vmatmul.mubr.f32.gmra.mrb[0].mxu0 %v557
      %v744 = vpop.f32.mrb[0].mxu0
      %v745 = vadd.f32 0.0, %v744
      %v746 = vpop.f32.mrb[0].mxu0
      %747 = vmatprep.mubr.f32.mxu0 0.0
      %748 = vmatmul.mubr.f32.gmra.mrb[0].mxu0 %v560
      %v749 = vpop.f32.mrb[0].mxu0
      %v750 = vadd.f32 0.0, %v749
      %v751 = vpop.f32.mrb[0].mxu0
      %752 = vmatprep.mubr.f32.mxu0 0.0
      %753 = vmatmul.mubr.f32.gmra.mrb[0].mxu0 %v563
      %v754 = vpop.f32.mrb[0].mxu0
      %v755 = vadd.f32 0.0, %v754
      %v756 = vpop.f32.mrb[0].mxu0
      %757 = vmatprep.mubr.f32.mxu0 0.0
      %758 = vmatmul.mubr.f32.gmra.mrb[0].mxu0 %v566
      %v759 = vpop.f32.mrb[0].mxu0
      %v760 = vadd.f32 0.0, %v759
      %v761 = vpop.f32.mrb[0].mxu0
      %762 = vmatprep.mubr.f32.mxu0 0.0
      %763 = vmatmul.mubr.f32.gmra.mrb[0].mxu0 %v569
      %v764 = vpop.f32.mrb[0].mxu0
      %v765 = vadd.f32 0.0, %v764
      %v766 = vpop.f32.mrb[0].mxu0
      %767 = vmatprep.mubr.f32.mxu0 0.0
      %768 = vmatmul.mubr.f32.gmra.mrb[0].mxu0 %v572
      %v769 = vpop.f32.mrb[0].mxu0
      %v770 = vadd.f32 0.0, %v769
      %v771 = vpop.f32.mrb[0].mxu0
      %772 = vmatprep.mubr.f32.mxu0 0.0
      %773 = vmatmul.mubr.f32.gmra.mrb[0].mxu0 %v575
      %v774 = vpop.f32.mrb[0].mxu0
      %v775 = vadd.f32 0.0, %v774
      %v776 = vpop.f32.mrb[0].mxu0
      %777 = vmatprep.mubr.f32.mxu0 0.0
      %778 = vmatmul.mubr.f32.gmra.mrb[0].mxu0 %v578
      %v779 = vpop.f32.mrb[0].mxu0
      %v780 = vadd.f32 0.0, %v779
      %v781 = vpop.f32.mrb[0].mxu0
      %782 = vmatprep.mubr.f32.mxu0 0.0
      %783 = vmatmul.mubr.f32.gmra.mrb[0].mxu0 %v581
      %v784 = vpop.f32.mrb[0].mxu0
      %v785 = vadd.f32 0.0, %v784
      %v786 = vpop.f32.mrb[0].mxu0
      %787 = vmatprep.mubr.f32.mxu0 0.0
      %788 = vmatmul.mubr.f32.gmra.mrb[0].mxu0 %v584
      %v789 = vpop.f32.mrb[0].mxu0
      %v790 = vadd.f32 0.0, %v789
      %v791 = vpop.f32.mrb[0].mxu0
      %792 = vmatprep.mubr.f32.mxu0 0.0
      %793 = vmatmul.mubr.f32.gmra.mrb[0].mxu0 %v587
      %v794 = vpop.f32.mrb[0].mxu0
      %v795 = vadd.f32 0.0, %v794
      %v796 = vpop.f32.mrb[0].mxu0
      %797 = vmatprep.mubr.f32.mxu0 0.0
      %798 = vmatmul.mubr.f32.gmra.mrb[0].mxu0 %v590
      %v799 = vpop.f32.mrb[0].mxu0
      %v800 = vadd.f32 0.0, %v799
      %v801 = vpop.f32.mrb[0].mxu0
      %802 = vmatprep.mubr.f32.mxu0 0.0
      %803 = vmatmul.mubr.f32.gmra.mrb[0].mxu0 %v593
      %v804 = vpop.f32.mrb[0].mxu0
      %v805 = vadd.f32 0.0, %v804
      %v806 = vpop.f32.mrb[0].mxu0
      %807 = vmatprep.mubr.f32.mxu0 0.0
      %808 = vmatmul.mubr.f32.gmra.mrb[0].mxu0 %v596
      %v809 = vpop.f32.mrb[0].mxu0
      %v810 = vadd.f32 0.0, %v809
      %v811 = vpop.f32.mrb[0].mxu0
      %812 = vmatprep.mubr.f32.mxu0 0.0
      %813 = vmatmul.mubr.f32.gmra.mrb[0].mxu0 %v599
      %v814 = vpop.f32.mrb[0].mxu0
      %v815 = vadd.f32 0.0, %v814
      %v816 = vpop.f32.mrb[0].mxu0
      %817 = vmatprep.mubr.f32.mxu0 0.0
      %818 = vmatmul.mubr.f32.gmra.mrb[0].mxu0 %v602
      %v819 = vpop.f32.mrb[0].mxu0
      %v820 = vadd.f32 0.0, %v819
      %v821 = vpop.f32.mrb[0].mxu0
      %822 = vmatprep.mubr.f32.mxu0 0.0
      %823 = vmatmul.mubr.f32.gmra.mrb[0].mxu0 %v605
      %v824 = vpop.f32.mrb[0].mxu0
      %v825 = vadd.f32 0.0, %v824
      %v826 = vpop.f32.mrb[0].mxu0
      %827 = vmatprep.mubr.f32.mxu0 0.0
      %828 = vmatmul.mubr.f32.gmra.mrb[0].mxu0 %v608
      %v829 = vpop.f32.mrb[0].mxu0
      %v830 = vadd.f32 0.0, %v829
      %v831 = vpop.f32.mrb[0].mxu0
      %832 = vmatprep.mubr.f32.mxu0 0.0
      %833 = vmatmul.mubr.f32.gmra.mrb[0].mxu0 %v611
      %v834 = vpop.f32.mrb[0].mxu0
      %v835 = vadd.f32 0.0, %v834
      %v836 = vpop.f32.mrb[0].mxu0
      %837 = vmatprep.mubr.f32.mxu0 0.0
      %838 = vmatmul.mubr.f32.gmra.mrb[0].mxu0 %v614
      %v839 = vpop.f32.mrb[0].mxu0
      %v840 = vadd.f32 0.0, %v839
      %v841 = vpop.f32.mrb[0].mxu0
      %842 = vmatprep.mubr.f32.mxu0 0.0
      %843 = vmatmul.mubr.f32.gmra.mrb[0].mxu0 %v617
      %v844 = vpop.f32.mrb[0].mxu0
      %v845 = vadd.f32 0.0, %v844
      %v846 = vpop.f32.mrb[0].mxu0
      %847 = vdwg.mxu0
      %v849 = vsel %vm378, %v457, 0
      %v852 = vsel %vm378, %v458, 0
      %v855 = vsel %vm378, %v459, 0
      %v858 = vsel %vm378, %v460, 0
      %v861 = vsel %vm378, %v461, 0
      %v864 = vsel %vm378, %v462, 0
      %v867 = vsel %vm378, %v463, 0
      %v870 = vsel %vm378, %v464, 0
      %v873 = vsel %vm378, %v465, 0
      %v876 = vsel %vm378, %v466, 0
      %v879 = vsel %vm378, %v467, 0
      %v882 = vsel %vm378, %v468, 0
      %v885 = vsel %vm378, %v469, 0
      %v888 = vsel %vm378, %v470, 0
      %v891 = vsel %vm378, %v471, 0
      %v894 = vsel %vm378, %v472, 0
      %v897 = vsel %vm378, %v473, 0
      %v900 = vsel %vm378, %v474, 0
      %v903 = vsel %vm378, %v475, 0
      %v906 = vsel %vm378, %v476, 0
      %v909 = vsel %vm378, %v477, 0
      %v912 = vsel %vm378, %v478, 0
      %v915 = vsel %vm378, %v479, 0
      %v918 = vsel %vm378, %v480, 0
      %v921 = vsel %vm378, %v481, 0
      %v924 = vsel %vm378, %v482, 0
      %v927 = vsel %vm378, %v483, 0
      %v930 = vsel %vm378, %v484, 0
      %v933 = vsel %vm378, %v485, 0
      %v936 = vsel %vm378, %v486, 0
      %v939 = vsel %vm378, %v487, 0
      %v942 = vsel %vm378, %v488, 0
      %v945 = vsel %vm619, %v489, 0
      %947 = vmatprep.subr.mxu0 0.0
      %948 = vmatpush1.msra.mxu0 %v945
      %949 = vmatprep.subr.mxu0 0.0
      %950 = vmatpush1.msra.mxu0 0.0
      %951 = vmatprep.subr.mxu0 0.0
      %952 = vmatpush1.msra.mxu0 0.0
      %953 = vmatprep.subr.mxu0 0.0
      %954 = vmatpush1.msra.mxu0 0.0
      %955 = vmatprep.subr.mxu0 0.0
      %956 = vmatpush1.msra.mxu0 0.0
      %957 = vmatprep.subr.mxu0 0.0
      %958 = vmatpush1.msra.mxu0 0.0
      %959 = vmatprep.subr.mxu0 0.0
      %960 = vmatpush1.msra.mxu0 0.0
      %961 = vmatprep.subr.mxu0 0.0
      %962 = vmatpush1.msra.mxu0 0.0
      %963 = vmatprep.subr.mxu0 0.0
      %964 = vmatpush1.msra.mxu0 0.0
      %965 = vmatprep.subr.mxu0 0.0
      %966 = vmatpush1.msra.mxu0 0.0
      %967 = vmatprep.subr.mxu0 0.0
      %968 = vmatpush1.msra.mxu0 0.0
      %969 = vmatprep.subr.mxu0 0.0
      %970 = vmatpush1.msra.mxu0 0.0
      %971 = vmatprep.subr.mxu0 0.0
      %972 = vmatpush1.msra.mxu0 0.0
      %973 = vmatprep.subr.mxu0 0.0
      %974 = vmatpush1.msra.mxu0 0.0
      %975 = vmatprep.subr.mxu0 0.0
      %976 = vmatpush1.msra.mxu0 0.0
      %977 = vmatprep.subr.mxu0 0.0
      %978 = vmatpush1.msra.mxu0 0.0
      %979 = vmatprep.subr.mxu0 0.0
      %980 = vmatpush1.msra.mxu0 0.0
      %981 = vmatprep.subr.mxu0 0.0
      %982 = vmatpush1.msra.mxu0 0.0
      %983 = vmatprep.subr.mxu0 0.0
      %984 = vmatpush1.msra.mxu0 0.0
      %985 = vmatprep.subr.mxu0 0.0
      %986 = vmatpush1.msra.mxu0 0.0
      %987 = vmatprep.subr.mxu0 0.0
      %988 = vmatpush1.msra.mxu0 0.0
      %989 = vmatprep.subr.mxu0 0.0
      %990 = vmatpush1.msra.mxu0 0.0
      %991 = vmatprep.subr.mxu0 0.0
      %992 = vmatpush1.msra.mxu0 0.0
      %993 = vmatprep.subr.mxu0 0.0
      %994 = vmatpush1.msra.mxu0 0.0
      %995 = vmatprep.subr.mxu0 0.0
      %996 = vmatpush1.msra.mxu0 0.0
      %997 = vmatprep.subr.mxu0 0.0
      %998 = vmatpush1.msra.mxu0 0.0
      %999 = vmatprep.subr.mxu0 0.0
      %1000 = vmatpush1.msra.mxu0 0.0
      %1001 = vmatprep.subr.mxu0 0.0
      %1002 = vmatpush1.msra.mxu0 0.0
      %1003 = vmatprep.subr.mxu0 0.0
      %1004 = vmatpush1.msra.mxu0 0.0
      %1005 = vmatprep.subr.mxu0 0.0
      %1006 = vmatpush1.msra.mxu0 0.0
      %1007 = vmatprep.subr.mxu0 0.0
      %1008 = vmatpush1.msra.mxu0 0.0
      %1009 = vmatprep.subr.mxu0 0.0
      %1010 = vmatpush1.msra.mxu0 0.0
      %1011 = vmatprep.mubr.f32.mxu0 0.0
      %1012 = vmatmul.mubr.f32.gmra.mrb[0].mxu0 %v849
      %v1013 = vpop.f32.mrb[0].mxu0
      %v1014 = vadd.f32 %v690, %v1013
      %v1015 = vpop.f32.mrb[0].mxu0
      %1016 = vmatprep.mubr.f32.mxu0 0.0
      %1017 = vmatmul.mubr.f32.gmra.mrb[0].mxu0 %v852
      %v1018 = vpop.f32.mrb[0].mxu0
      %v1019 = vadd.f32 %v695, %v1018
      %v1020 = vpop.f32.mrb[0].mxu0
      %1021 = vmatprep.mubr.f32.mxu0 0.0
      %1022 = vmatmul.mubr.f32.gmra.mrb[0].mxu0 %v855
      %v1023 = vpop.f32.mrb[0].mxu0
      %v1024 = vadd.f32 %v700, %v1023
      %v1025 = vpop.f32.mrb[0].mxu0
      %1026 = vmatprep.mubr.f32.mxu0 0.0
      %1027 = vmatmul.mubr.f32.gmra.mrb[0].mxu0 %v858
      %v1028 = vpop.f32.mrb[0].mxu0
      %v1029 = vadd.f32 %v705, %v1028
      %v1030 = vpop.f32.mrb[0].mxu0
      %1031 = vmatprep.mubr.f32.mxu0 0.0
      %1032 = vmatmul.mubr.f32.gmra.mrb[0].mxu0 %v861
      %v1033 = vpop.f32.mrb[0].mxu0
      %v1034 = vadd.f32 %v710, %v1033
      %v1035 = vpop.f32.mrb[0].mxu0
      %1036 = vmatprep.mubr.f32.mxu0 0.0
      %1037 = vmatmul.mubr.f32.gmra.mrb[0].mxu0 %v864
      %v1038 = vpop.f32.mrb[0].mxu0
      %v1039 = vadd.f32 %v715, %v1038
      %v1040 = vpop.f32.mrb[0].mxu0
      %1041 = vmatprep.mubr.f32.mxu0 0.0
      %1042 = vmatmul.mubr.f32.gmra.mrb[0].mxu0 %v867
      %v1043 = vpop.f32.mrb[0].mxu0
      %v1044 = vadd.f32 %v720, %v1043
      %v1045 = vpop.f32.mrb[0].mxu0
      %1046 = vmatprep.mubr.f32.mxu0 0.0
      %1047 = vmatmul.mubr.f32.gmra.mrb[0].mxu0 %v870
      %v1048 = vpop.f32.mrb[0].mxu0
      %v1049 = vadd.f32 %v725, %v1048
      %v1050 = vpop.f32.mrb[0].mxu0
      %1051 = vmatprep.mubr.f32.mxu0 0.0
      %1052 = vmatmul.mubr.f32.gmra.mrb[0].mxu0 %v873
      %v1053 = vpop.f32.mrb[0].mxu0
      %v1054 = vadd.f32 %v730, %v1053
      %v1055 = vpop.f32.mrb[0].mxu0
      %1056 = vmatprep.mubr.f32.mxu0 0.0
      %1057 = vmatmul.mubr.f32.gmra.mrb[0].mxu0 %v876
      %v1058 = vpop.f32.mrb[0].mxu0
      %v1059 = vadd.f32 %v735, %v1058
      %v1060 = vpop.f32.mrb[0].mxu0
      %1061 = vmatprep.mubr.f32.mxu0 0.0
      %1062 = vmatmul.mubr.f32.gmra.mrb[0].mxu0 %v879
      %v1063 = vpop.f32.mrb[0].mxu0
      %v1064 = vadd.f32 %v740, %v1063
      %v1065 = vpop.f32.mrb[0].mxu0
      %1066 = vmatprep.mubr.f32.mxu0 0.0
      %1067 = vmatmul.mubr.f32.gmra.mrb[0].mxu0 %v882
      %v1068 = vpop.f32.mrb[0].mxu0
      %v1069 = vadd.f32 %v745, %v1068
      %v1070 = vpop.f32.mrb[0].mxu0
      %1071 = vmatprep.mubr.f32.mxu0 0.0
      %1072 = vmatmul.mubr.f32.gmra.mrb[0].mxu0 %v885
      %v1073 = vpop.f32.mrb[0].mxu0
      %v1074 = vadd.f32 %v750, %v1073
      %v1075 = vpop.f32.mrb[0].mxu0
      %1076 = vmatprep.mubr.f32.mxu0 0.0
      %1077 = vmatmul.mubr.f32.gmra.mrb[0].mxu0 %v888
      %v1078 = vpop.f32.mrb[0].mxu0
      %v1079 = vadd.f32 %v755, %v1078
      %v1080 = vpop.f32.mrb[0].mxu0
      %1081 = vmatprep.mubr.f32.mxu0 0.0
      %1082 = vmatmul.mubr.f32.gmra.mrb[0].mxu0 %v891
      %v1083 = vpop.f32.mrb[0].mxu0
      %v1084 = vadd.f32 %v760, %v1083
      %v1085 = vpop.f32.mrb[0].mxu0
      %1086 = vmatprep.mubr.f32.mxu0 0.0
      %1087 = vmatmul.mubr.f32.gmra.mrb[0].mxu0 %v894
      %v1088 = vpop.f32.mrb[0].mxu0
      %v1089 = vadd.f32 %v765, %v1088
      %v1090 = vpop.f32.mrb[0].mxu0
      %1091 = vmatprep.mubr.f32.mxu0 0.0
      %1092 = vmatmul.mubr.f32.gmra.mrb[0].mxu0 %v897
      %v1093 = vpop.f32.mrb[0].mxu0
      %v1094 = vadd.f32 %v770, %v1093
      %v1095 = vpop.f32.mrb[0].mxu0
      %1096 = vmatprep.mubr.f32.mxu0 0.0
      %1097 = vmatmul.mubr.f32.gmra.mrb[0].mxu0 %v900
      %v1098 = vpop.f32.mrb[0].mxu0
      %v1099 = vadd.f32 %v775, %v1098
      %v1100 = vpop.f32.mrb[0].mxu0
      %1101 = vmatprep.mubr.f32.mxu0 0.0
      %1102 = vmatmul.mubr.f32.gmra.mrb[0].mxu0 %v903
      %v1103 = vpop.f32.mrb[0].mxu0
      %v1104 = vadd.f32 %v780, %v1103
      %v1105 = vpop.f32.mrb[0].mxu0
      %1106 = vmatprep.mubr.f32.mxu0 0.0
      %1107 = vmatmul.mubr.f32.gmra.mrb[0].mxu0 %v906
      %v1108 = vpop.f32.mrb[0].mxu0
      %v1109 = vadd.f32 %v785, %v1108
      %v1110 = vpop.f32.mrb[0].mxu0
      %1111 = vmatprep.mubr.f32.mxu0 0.0
      %1112 = vmatmul.mubr.f32.gmra.mrb[0].mxu0 %v909
      %v1113 = vpop.f32.mrb[0].mxu0
      %v1114 = vadd.f32 %v790, %v1113
      %v1115 = vpop.f32.mrb[0].mxu0
      %1116 = vmatprep.mubr.f32.mxu0 0.0
      %1117 = vmatmul.mubr.f32.gmra.mrb[0].mxu0 %v912
      %v1118 = vpop.f32.mrb[0].mxu0
      %v1119 = vadd.f32 %v795, %v1118
      %v1120 = vpop.f32.mrb[0].mxu0
      %1121 = vmatprep.mubr.f32.mxu0 0.0
      %1122 = vmatmul.mubr.f32.gmra.mrb[0].mxu0 %v915
      %v1123 = vpop.f32.mrb[0].mxu0
      %v1124 = vadd.f32 %v800, %v1123
      %v1125 = vpop.f32.mrb[0].mxu0
      %1126 = vmatprep.mubr.f32.mxu0 0.0
      %1127 = vmatmul.mubr.f32.gmra.mrb[0].mxu0 %v918
      %v1128 = vpop.f32.mrb[0].mxu0
      %v1129 = vadd.f32 %v805, %v1128
      %v1130 = vpop.f32.mrb[0].mxu0
      %1131 = vmatprep.mubr.f32.mxu0 0.0
      %1132 = vmatmul.mubr.f32.gmra.mrb[0].mxu0 %v921
      %v1133 = vpop.f32.mrb[0].mxu0
      %v1134 = vadd.f32 %v810, %v1133
      %v1135 = vpop.f32.mrb[0].mxu0
      %1136 = vmatprep.mubr.f32.mxu0 0.0
      %1137 = vmatmul.mubr.f32.gmra.mrb[0].mxu0 %v924
      %v1138 = vpop.f32.mrb[0].mxu0
      %v1139 = vadd.f32 %v815, %v1138
      %v1140 = vpop.f32.mrb[0].mxu0
      %1141 = vmatprep.mubr.f32.mxu0 0.0
      %1142 = vmatmul.mubr.f32.gmra.mrb[0].mxu0 %v927
      %v1143 = vpop.f32.mrb[0].mxu0
      %v1144 = vadd.f32 %v820, %v1143
      %v1145 = vpop.f32.mrb[0].mxu0
      %1146 = vmatprep.mubr.f32.mxu0 0.0
      %1147 = vmatmul.mubr.f32.gmra.mrb[0].mxu0 %v930
      %v1148 = vpop.f32.mrb[0].mxu0
      %v1149 = vadd.f32 %v825, %v1148
      %v1150 = vpop.f32.mrb[0].mxu0
      %1151 = vmatprep.mubr.f32.mxu0 0.0
      %1152 = vmatmul.mubr.f32.gmra.mrb[0].mxu0 %v933
      %v1153 = vpop.f32.mrb[0].mxu0
      %v1154 = vadd.f32 %v830, %v1153
      %v1155 = vpop.f32.mrb[0].mxu0
      %1156 = vmatprep.mubr.f32.mxu0 0.0
      %1157 = vmatmul.mubr.f32.gmra.mrb[0].mxu0 %v936
      %v1158 = vpop.f32.mrb[0].mxu0
      %v1159 = vadd.f32 %v835, %v1158
      %v1160 = vpop.f32.mrb[0].mxu0
      %1161 = vmatprep.mubr.f32.mxu0 0.0
      %1162 = vmatmul.mubr.f32.gmra.mrb[0].mxu0 %v939
      %v1163 = vpop.f32.mrb[0].mxu0
      %v1164 = vadd.f32 %v840, %v1163
      %v1165 = vpop.f32.mrb[0].mxu0
      %1166 = vmatprep.mubr.f32.mxu0 0.0
      %1167 = vmatmul.mubr.f32.gmra.mrb[0].mxu0 %v942
      %v1168 = vpop.f32.mrb[0].mxu0
      %v1169 = vadd.f32 %v845, %v1168
      %v1170 = vpop.f32.mrb[0].mxu0
      %1171 = vdwg.mxu0
      %v1172 = vld [vmem:[#allocation2 + $0x2] sm:$0xff]
      %v1173 = vld [vmem:[#allocation2 + $0xa] sm:$0xff]
      %v1174 = vld [vmem:[#allocation2 + $0x1a] sm:$0xff]
      %v1175 = vld [vmem:[#allocation2 + $0x22] sm:$0xff]
      %v1176 = vld [vmem:[#allocation2 + $0x32] sm:$0xff]
      %v1177 = vld [vmem:[#allocation2 + $0x3a] sm:$0xff]
      %v1178 = vld [vmem:[#allocation2 + $0x4a] sm:$0xff]
      %v1179 = vld [vmem:[#allocation2 + $0x52] sm:$0xff]
      %v1180 = vld [vmem:[#allocation2 + $0x62] sm:$0xff]
      %v1181 = vld [vmem:[#allocation2 + $0x6a] sm:$0xff]
      %v1182 = vld [vmem:[#allocation2 + $0x7a] sm:$0xff]
      %v1183 = vld [vmem:[#allocation2 + $0x82] sm:$0xff]
      %v1184 = vld [vmem:[#allocation2 + $0x92] sm:$0xff]
      %v1185 = vld [vmem:[#allocation2 + $0x9a] sm:$0xff]
      %v1186 = vld [vmem:[#allocation2 + $0xaa] sm:$0xff]
      %v1187 = vld [vmem:[#allocation2 + $0xb2] sm:$0xff]
      %v1188 = vld [vmem:[#allocation2 + $0xc2] sm:$0xff]
      %v1189 = vld [vmem:[#allocation2 + $0xca] sm:$0xff]
      %v1190 = vld [vmem:[#allocation2 + $0xda] sm:$0xff]
      %v1191 = vld [vmem:[#allocation2 + $0xe2] sm:$0xff]
      %v1192 = vld [vmem:[#allocation2 + $0xf2] sm:$0xff]
      %v1193 = vld [vmem:[#allocation2 + $0xfa] sm:$0xff]
      %v1194 = vld [vmem:[#allocation2 + $0x10a] sm:$0xff]
      %v1195 = vld [vmem:[#allocation2 + $0x112] sm:$0xff]
      %v1196 = vld [vmem:[#allocation2 + $0x122] sm:$0xff]
      %v1197 = vld [vmem:[#allocation2 + $0x12a] sm:$0xff]
      %v1198 = vld [vmem:[#allocation2 + $0x13a] sm:$0xff]
      %v1199 = vld [vmem:[#allocation2 + $0x142] sm:$0xff]
      %v1200 = vld [vmem:[#allocation2 + $0x152] sm:$0xff]
      %v1201 = vld [vmem:[#allocation2 + $0x15a] sm:$0xff]
      %v1202 = vld [vmem:[#allocation2 + $0x16a] sm:$0xff]
      %v1203 = vld [vmem:[#allocation2 + $0x172] sm:$0xff]
      %v1204 = vld [vmem:[%s3 + $0x8] sm:$0xf]
      %v1206 = vsel %vm378, %v1172, 0
      %v1209 = vsel %vm378, %v1173, 0
      %v1212 = vsel %vm378, %v1174, 0
      %v1215 = vsel %vm378, %v1175, 0
      %v1218 = vsel %vm378, %v1176, 0
      %v1221 = vsel %vm378, %v1177, 0
      %v1224 = vsel %vm378, %v1178, 0
      %v1227 = vsel %vm378, %v1179, 0
      %v1230 = vsel %vm378, %v1180, 0
      %v1233 = vsel %vm378, %v1181, 0
      %v1236 = vsel %vm378, %v1182, 0
      %v1239 = vsel %vm378, %v1183, 0
      %v1242 = vsel %vm378, %v1184, 0
      %v1245 = vsel %vm378, %v1185, 0
      %v1248 = vsel %vm378, %v1186, 0
      %v1251 = vsel %vm378, %v1187, 0
      %v1254 = vsel %vm378, %v1188, 0
      %v1257 = vsel %vm378, %v1189, 0
      %v1260 = vsel %vm378, %v1190, 0
      %v1263 = vsel %vm378, %v1191, 0
      %v1266 = vsel %vm378, %v1192, 0
      %v1269 = vsel %vm378, %v1193, 0
      %v1272 = vsel %vm378, %v1194, 0
      %v1275 = vsel %vm378, %v1195, 0
      %v1278 = vsel %vm378, %v1196, 0
      %v1281 = vsel %vm378, %v1197, 0
      %v1284 = vsel %vm378, %v1198, 0
      %v1287 = vsel %vm378, %v1199, 0
      %v1290 = vsel %vm378, %v1200, 0
      %v1293 = vsel %vm378, %v1201, 0
      %v1296 = vsel %vm378, %v1202, 0
      %v1299 = vsel %vm378, %v1203, 0
      %v1302 = vsel %vm619, %v1204, 0
      %1304 = vmatprep.subr.mxu0 0.0
      %1305 = vmatpush1.msra.mxu0 %v1302
      %1306 = vmatprep.subr.mxu0 0.0
      %1307 = vmatpush1.msra.mxu0 0.0
      %1308 = vmatprep.subr.mxu0 0.0
      %1309 = vmatpush1.msra.mxu0 0.0
      %1310 = vmatprep.subr.mxu0 0.0
      %1311 = vmatpush1.msra.mxu0 0.0
      %1312 = vmatprep.subr.mxu0 0.0
      %1313 = vmatpush1.msra.mxu0 0.0
      %1314 = vmatprep.subr.mxu0 0.0
      %1315 = vmatpush1.msra.mxu0 0.0
      %1316 = vmatprep.subr.mxu0 0.0
      %1317 = vmatpush1.msra.mxu0 0.0
      %1318 = vmatprep.subr.mxu0 0.0
      %1319 = vmatpush1.msra.mxu0 0.0
      %1320 = vmatprep.subr.mxu0 0.0
      %1321 = vmatpush1.msra.mxu0 0.0
      %1322 = vmatprep.subr.mxu0 0.0
      %1323 = vmatpush1.msra.mxu0 0.0
      %1324 = vmatprep.subr.mxu0 0.0
      %1325 = vmatpush1.msra.mxu0 0.0
      %1326 = vmatprep.subr.mxu0 0.0
      %1327 = vmatpush1.msra.mxu0 0.0
      %1328 = vmatprep.subr.mxu0 0.0
      %1329 = vmatpush1.msra.mxu0 0.0
      %1330 = vmatprep.subr.mxu0 0.0
      %1331 = vmatpush1.msra.mxu0 0.0
      %1332 = vmatprep.subr.mxu0 0.0
      %1333 = vmatpush1.msra.mxu0 0.0
      %1334 = vmatprep.subr.mxu0 0.0
      %1335 = vmatpush1.msra.mxu0 0.0
      %1336 = vmatprep.subr.mxu0 0.0
      %1337 = vmatpush1.msra.mxu0 0.0
      %1338 = vmatprep.subr.mxu0 0.0
      %1339 = vmatpush1.msra.mxu0 0.0
      %1340 = vmatprep.subr.mxu0 0.0
      %1341 = vmatpush1.msra.mxu0 0.0
      %1342 = vmatprep.subr.mxu0 0.0
      %1343 = vmatpush1.msra.mxu0 0.0
      %1344 = vmatprep.subr.mxu0 0.0
      %1345 = vmatpush1.msra.mxu0 0.0
      %1346 = vmatprep.subr.mxu0 0.0
      %1347 = vmatpush1.msra.mxu0 0.0
      %1348 = vmatprep.subr.mxu0 0.0
      %1349 = vmatpush1.msra.mxu0 0.0
      %1350 = vmatprep.subr.mxu0 0.0
      %1351 = vmatpush1.msra.mxu0 0.0
      %1352 = vmatprep.subr.mxu0 0.0
      %1353 = vmatpush1.msra.mxu0 0.0
      %1354 = vmatprep.subr.mxu0 0.0
      %1355 = vmatpush1.msra.mxu0 0.0
      %1356 = vmatprep.subr.mxu0 0.0
      %1357 = vmatpush1.msra.mxu0 0.0
      %1358 = vmatprep.subr.mxu0 0.0
      %1359 = vmatpush1.msra.mxu0 0.0
      %1360 = vmatprep.subr.mxu0 0.0
      %1361 = vmatpush1.msra.mxu0 0.0
      %1362 = vmatprep.subr.mxu0 0.0
      %1363 = vmatpush1.msra.mxu0 0.0
      %1364 = vmatprep.subr.mxu0 0.0
      %1365 = vmatpush1.msra.mxu0 0.0
      %1366 = vmatprep.subr.mxu0 0.0
      %1367 = vmatpush1.msra.mxu0 0.0
      %1368 = vmatprep.mubr.f32.mxu0 0.0
      %1369 = vmatmul.mubr.f32.gmra.mrb[0].mxu0 %v1206
      %v1370 = vpop.f32.mrb[0].mxu0
      %v1371 = vadd.f32 0.0, %v1370
      %v1372 = vpop.f32.mrb[0].mxu0
      %1373 = vmatprep.mubr.f32.mxu0 0.0
      %1374 = vmatmul.mubr.f32.gmra.mrb[0].mxu0 %v1209
      %v1375 = vpop.f32.mrb[0].mxu0
      %v1376 = vadd.f32 0.0, %v1375
      %v1377 = vpop.f32.mrb[0].mxu0
      %1378 = vmatprep.mubr.f32.mxu0 0.0
      %1379 = vmatmul.mubr.f32.gmra.mrb[0].mxu0 %v1212
      %v1380 = vpop.f32.mrb[0].mxu0
      %v1381 = vadd.f32 0.0, %v1380
      %v1382 = vpop.f32.mrb[0].mxu0
      %1383 = vmatprep.mubr.f32.mxu0 0.0
      %1384 = vmatmul.mubr.f32.gmra.mrb[0].mxu0 %v1215
      %v1385 = vpop.f32.mrb[0].mxu0
      %v1386 = vadd.f32 0.0, %v1385
      %v1387 = vpop.f32.mrb[0].mxu0
      %1388 = vmatprep.mubr.f32.mxu0 0.0
      %1389 = vmatmul.mubr.f32.gmra.mrb[0].mxu0 %v1218
      %v1390 = vpop.f32.mrb[0].mxu0
      %v1391 = vadd.f32 0.0, %v1390
      %v1392 = vpop.f32.mrb[0].mxu0
      %1393 = vmatprep.mubr.f32.mxu0 0.0
      %1394 = vmatmul.mubr.f32.gmra.mrb[0].mxu0 %v1221
      %v1395 = vpop.f32.mrb[0].mxu0
      %v1396 = vadd.f32 0.0, %v1395
      %v1397 = vpop.f32.mrb[0].mxu0
      %1398 = vmatprep.mubr.f32.mxu0 0.0
      %1399 = vmatmul.mubr.f32.gmra.mrb[0].mxu0 %v1224
      %v1400 = vpop.f32.mrb[0].mxu0
      %v1401 = vadd.f32 0.0, %v1400
      %v1402 = vpop.f32.mrb[0].mxu0
      %1403 = vmatprep.mubr.f32.mxu0 0.0
      %1404 = vmatmul.mubr.f32.gmra.mrb[0].mxu0 %v1227
      %v1405 = vpop.f32.mrb[0].mxu0
      %v1406 = vadd.f32 0.0, %v1405
      %v1407 = vpop.f32.mrb[0].mxu0
      %1408 = vmatprep.mubr.f32.mxu0 0.0
      %1409 = vmatmul.mubr.f32.gmra.mrb[0].mxu0 %v1230
      %v1410 = vpop.f32.mrb[0].mxu0
      %v1411 = vadd.f32 0.0, %v1410
      %v1412 = vpop.f32.mrb[0].mxu0
      %1413 = vmatprep.mubr.f32.mxu0 0.0
      %1414 = vmatmul.mubr.f32.gmra.mrb[0].mxu0 %v1233
      %v1415 = vpop.f32.mrb[0].mxu0
      %v1416 = vadd.f32 0.0, %v1415
      %v1417 = vpop.f32.mrb[0].mxu0
      %1418 = vmatprep.mubr.f32.mxu0 0.0
      %1419 = vmatmul.mubr.f32.gmra.mrb[0].mxu0 %v1236
      %v1420 = vpop.f32.mrb[0].mxu0
      %v1421 = vadd.f32 0.0, %v1420
      %v1422 = vpop.f32.mrb[0].mxu0
      %1423 = vmatprep.mubr.f32.mxu0 0.0
      %1424 = vmatmul.mubr.f32.gmra.mrb[0].mxu0 %v1239
      %v1425 = vpop.f32.mrb[0].mxu0
      %v1426 = vadd.f32 0.0, %v1425
      %v1427 = vpop.f32.mrb[0].mxu0
      %1428 = vmatprep.mubr.f32.mxu0 0.0
      %1429 = vmatmul.mubr.f32.gmra.mrb[0].mxu0 %v1242
      %v1430 = vpop.f32.mrb[0].mxu0
      %v1431 = vadd.f32 0.0, %v1430
      %v1432 = vpop.f32.mrb[0].mxu0
      %1433 = vmatprep.mubr.f32.mxu0 0.0
      %1434 = vmatmul.mubr.f32.gmra.mrb[0].mxu0 %v1245
      %v1435 = vpop.f32.mrb[0].mxu0
      %v1436 = vadd.f32 0.0, %v1435
      %v1437 = vpop.f32.mrb[0].mxu0
      %1438 = vmatprep.mubr.f32.mxu0 0.0
      %1439 = vmatmul.mubr.f32.gmra.mrb[0].mxu0 %v1248
      %v1440 = vpop.f32.mrb[0].mxu0
      %v1441 = vadd.f32 0.0, %v1440
      %v1442 = vpop.f32.mrb[0].mxu0
      %1443 = vmatprep.mubr.f32.mxu0 0.0
      %1444 = vmatmul.mubr.f32.gmra.mrb[0].mxu0 %v1251
      %v1445 = vpop.f32.mrb[0].mxu0
      %v1446 = vadd.f32 0.0, %v1445
      %v1447 = vpop.f32.mrb[0].mxu0
      %1448 = vmatprep.mubr.f32.mxu0 0.0
      %1449 = vmatmul.mubr.f32.gmra.mrb[0].mxu0 %v1254
      %v1450 = vpop.f32.mrb[0].mxu0
      %v1451 = vadd.f32 0.0, %v1450
      %v1452 = vpop.f32.mrb[0].mxu0
      %1453 = vmatprep.mubr.f32.mxu0 0.0
      %1454 = vmatmul.mubr.f32.gmra.mrb[0].mxu0 %v1257
      %v1455 = vpop.f32.mrb[0].mxu0
      %v1456 = vadd.f32 0.0, %v1455
      %v1457 = vpop.f32.mrb[0].mxu0
      %1458 = vmatprep.mubr.f32.mxu0 0.0
      %1459 = vmatmul.mubr.f32.gmra.mrb[0].mxu0 %v1260
      %v1460 = vpop.f32.mrb[0].mxu0
      %v1461 = vadd.f32 0.0, %v1460
      %v1462 = vpop.f32.mrb[0].mxu0
      %1463 = vmatprep.mubr.f32.mxu0 0.0
      %1464 = vmatmul.mubr.f32.gmra.mrb[0].mxu0 %v1263
      %v1465 = vpop.f32.mrb[0].mxu0
      %v1466 = vadd.f32 0.0, %v1465
      %v1467 = vpop.f32.mrb[0].mxu0
      %1468 = vmatprep.mubr.f32.mxu0 0.0
      %1469 = vmatmul.mubr.f32.gmra.mrb[0].mxu0 %v1266
      %v1470 = vpop.f32.mrb[0].mxu0
      %v1471 = vadd.f32 0.0, %v1470
      %v1472 = vpop.f32.mrb[0].mxu0
      %1473 = vmatprep.mubr.f32.mxu0 0.0
      %1474 = vmatmul.mubr.f32.gmra.mrb[0].mxu0 %v1269
      %v1475 = vpop.f32.mrb[0].mxu0
      %v1476 = vadd.f32 0.0, %v1475
      %v1477 = vpop.f32.mrb[0].mxu0
      %1478 = vmatprep.mubr.f32.mxu0 0.0
      %1479 = vmatmul.mubr.f32.gmra.mrb[0].mxu0 %v1272
      %v1480 = vpop.f32.mrb[0].mxu0
      %v1481 = vadd.f32 0.0, %v1480
      %v1482 = vpop.f32.mrb[0].mxu0
      %1483 = vmatprep.mubr.f32.mxu0 0.0
      %1484 = vmatmul.mubr.f32.gmra.mrb[0].mxu0 %v1275
      %v1485 = vpop.f32.mrb[0].mxu0
      %v1486 = vadd.f32 0.0, %v1485
      %v1487 = vpop.f32.mrb[0].mxu0
      %1488 = vmatprep.mubr.f32.mxu0 0.0
      %1489 = vmatmul.mubr.f32.gmra.mrb[0].mxu0 %v1278
      %v1490 = vpop.f32.mrb[0].mxu0
      %v1491 = vadd.f32 0.0, %v1490
      %v1492 = vpop.f32.mrb[0].mxu0
      %1493 = vmatprep.mubr.f32.mxu0 0.0
      %1494 = vmatmul.mubr.f32.gmra.mrb[0].mxu0 %v1281
      %v1495 = vpop.f32.mrb[0].mxu0
      %v1496 = vadd.f32 0.0, %v1495
      %v1497 = vpop.f32.mrb[0].mxu0
      %1498 = vmatprep.mubr.f32.mxu0 0.0
      %1499 = vmatmul.mubr.f32.gmra.mrb[0].mxu0 %v1284
      %v1500 = vpop.f32.mrb[0].mxu0
      %v1501 = vadd.f32 0.0, %v1500
      %v1502 = vpop.f32.mrb[0].mxu0
      %1503 = vmatprep.mubr.f32.mxu0 0.0
      %1504 = vmatmul.mubr.f32.gmra.mrb[0].mxu0 %v1287
      %v1505 = vpop.f32.mrb[0].mxu0
      %v1506 = vadd.f32 0.0, %v1505
      %v1507 = vpop.f32.mrb[0].mxu0
      %1508 = vmatprep.mubr.f32.mxu0 0.0
      %1509 = vmatmul.mubr.f32.gmra.mrb[0].mxu0 %v1290
      %v1510 = vpop.f32.mrb[0].mxu0
      %v1511 = vadd.f32 0.0, %v1510
      %v1512 = vpop.f32.mrb[0].mxu0
      %1513 = vmatprep.mubr.f32.mxu0 0.0
      %1514 = vmatmul.mubr.f32.gmra.mrb[0].mxu0 %v1293
      %v1515 = vpop.f32.mrb[0].mxu0
      %v1516 = vadd.f32 0.0, %v1515
      %v1517 = vpop.f32.mrb[0].mxu0
      %1518 = vmatprep.mubr.f32.mxu0 0.0
      %1519 = vmatmul.mubr.f32.gmra.mrb[0].mxu0 %v1296
      %v1520 = vpop.f32.mrb[0].mxu0
      %v1521 = vadd.f32 0.0, %v1520
      %v1522 = vpop.f32.mrb[0].mxu0
      %1523 = vmatprep.mubr.f32.mxu0 0.0
      %1524 = vmatmul.mubr.f32.gmra.mrb[0].mxu0 %v1299
      %v1525 = vpop.f32.mrb[0].mxu0
      %v1526 = vadd.f32 0.0, %v1525
      %v1527 = vpop.f32.mrb[0].mxu0
      %1528 = vdwg.mxu0
      %v1529 = vadd.f32 %v1014, %v1371
      %v1530 = vadd.f32 %v1019, %v1376
      %v1531 = vadd.f32 %v1024, %v1381
      %v1532 = vadd.f32 %v1029, %v1386
      %v1533 = vadd.f32 %v1034, %v1391
      %v1534 = vadd.f32 %v1039, %v1396
      %v1535 = vadd.f32 %v1044, %v1401
      %v1536 = vadd.f32 %v1049, %v1406
      %v1537 = vadd.f32 %v1054, %v1411
      %v1538 = vadd.f32 %v1059, %v1416
      %v1539 = vadd.f32 %v1064, %v1421
      %v1540 = vadd.f32 %v1069, %v1426
      %v1541 = vadd.f32 %v1074, %v1431
      %v1542 = vadd.f32 %v1079, %v1436
      %v1543 = vadd.f32 %v1084, %v1441
      %v1544 = vadd.f32 %v1089, %v1446
      %v1545 = vadd.f32 %v1094, %v1451
      %v1546 = vadd.f32 %v1099, %v1456
      %v1547 = vadd.f32 %v1104, %v1461
      %v1548 = vadd.f32 %v1109, %v1466
      %v1549 = vadd.f32 %v1114, %v1471
      %v1550 = vadd.f32 %v1119, %v1476
      %v1551 = vadd.f32 %v1124, %v1481
      %v1552 = vadd.f32 %v1129, %v1486
      %v1553 = vadd.f32 %v1134, %v1491
      %v1554 = vadd.f32 %v1139, %v1496
      %v1555 = vadd.f32 %v1144, %v1501
      %v1556 = vadd.f32 %v1149, %v1506
      %v1557 = vadd.f32 %v1154, %v1511
      %v1558 = vadd.f32 %v1159, %v1516
      %v1559 = vadd.f32 %v1164, %v1521
      %v1560 = vadd.f32 %v1169, %v1526
      %v1561 = vld [vmem:[%s424] sm:$0xff]
      %v1562 = vld [vmem:[%s424 + $0x8] sm:$0xff]
      %v1563 = vld [vmem:[%s424 + $0x18] sm:$0xff]
      %v1564 = vld [vmem:[%s424 + $0x20] sm:$0xff]
      %v1565 = vld [vmem:[%s424 + $0x30] sm:$0xff]
      %v1566 = vld [vmem:[%s424 + $0x38] sm:$0xff]
      %v1567 = vld [vmem:[%s424 + $0x48] sm:$0xff]
      %v1568 = vld [vmem:[%s424 + $0x50] sm:$0xff]
      %v1569 = vld [vmem:[%s424 + $0x60] sm:$0xff]
      %v1570 = vld [vmem:[%s424 + $0x68] sm:$0xff]
      %v1571 = vld [vmem:[%s424 + $0x78] sm:$0xff]
      %v1572 = vld [vmem:[%s424 + $0x80] sm:$0xff]
      %v1573 = vld [vmem:[%s424 + $0x90] sm:$0xff]
      %v1574 = vld [vmem:[%s424 + $0x98] sm:$0xff]
      %v1575 = vld [vmem:[%s424 + $0xa8] sm:$0xff]
      %v1576 = vld [vmem:[%s424 + $0xb0] sm:$0xff]
      %v1577 = vld [vmem:[%s424 + $0xc0] sm:$0xff]
      %v1578 = vld [vmem:[%s424 + $0xc8] sm:$0xff]
      %v1579 = vld [vmem:[%s424 + $0xd8] sm:$0xff]
      %v1580 = vld [vmem:[%s424 + $0xe0] sm:$0xff]
      %v1581 = vld [vmem:[%s424 + $0xf0] sm:$0xff]
      %v1582 = vld [vmem:[%s424 + $0xf8] sm:$0xff]
      %v1583 = vld [vmem:[%s424 + $0x108] sm:$0xff]
      %v1584 = vld [vmem:[%s424 + $0x110] sm:$0xff]
      %v1585 = vld [vmem:[%s424 + $0x120] sm:$0xff]
      %v1586 = vld [vmem:[%s424 + $0x128] sm:$0xff]
      %v1587 = vld [vmem:[%s424 + $0x138] sm:$0xff]
      %v1588 = vld [vmem:[%s424 + $0x140] sm:$0xff]
      %v1589 = vld [vmem:[%s424 + $0x150] sm:$0xff]
      %v1590 = vld [vmem:[%s424 + $0x158] sm:$0xff]
      %v1591 = vld [vmem:[%s424 + $0x168] sm:$0xff]
      %v1592 = vld [vmem:[%s424 + $0x170] sm:$0xff]
      %v1593 = vld [vmem:[%s3 + $0xc] sm:$0xf]
      %v1595 = vsel %vm378, %v1561, 0
      %v1598 = vsel %vm378, %v1562, 0
      %v1601 = vsel %vm378, %v1563, 0
      %v1604 = vsel %vm378, %v1564, 0
      %v1607 = vsel %vm378, %v1565, 0
      %v1610 = vsel %vm378, %v1566, 0
      %v1613 = vsel %vm378, %v1567, 0
      %v1616 = vsel %vm378, %v1568, 0
      %v1619 = vsel %vm378, %v1569, 0
      %v1622 = vsel %vm378, %v1570, 0
      %v1625 = vsel %vm378, %v1571, 0
      %v1628 = vsel %vm378, %v1572, 0
      %v1631 = vsel %vm378, %v1573, 0
      %v1634 = vsel %vm378, %v1574, 0
      %v1637 = vsel %vm378, %v1575, 0
      %v1640 = vsel %vm378, %v1576, 0
      %v1643 = vsel %vm378, %v1577, 0
      %v1646 = vsel %vm378, %v1578, 0
      %v1649 = vsel %vm378, %v1579, 0
      %v1652 = vsel %vm378, %v1580, 0
      %v1655 = vsel %vm378, %v1581, 0
      %v1658 = vsel %vm378, %v1582, 0
      %v1661 = vsel %vm378, %v1583, 0
      %v1664 = vsel %vm378, %v1584, 0
      %v1667 = vsel %vm378, %v1585, 0
      %v1670 = vsel %vm378, %v1586, 0
      %v1673 = vsel %vm378, %v1587, 0
      %v1676 = vsel %vm378, %v1588, 0
      %v1679 = vsel %vm378, %v1589, 0
      %v1682 = vsel %vm378, %v1590, 0
      %v1685 = vsel %vm378, %v1591, 0
      %v1688 = vsel %vm378, %v1592, 0
      %v1691 = vsel %vm619, %v1593, 0
      %1693 = vmatprep.subr.mxu0 0.0
      %1694 = vmatpush1.msra.mxu0 %v1691
      %1695 = vmatprep.subr.mxu0 0.0
      %1696 = vmatpush1.msra.mxu0 0.0
      %1697 = vmatprep.subr.mxu0 0.0
      %1698 = vmatpush1.msra.mxu0 0.0
      %1699 = vmatprep.subr.mxu0 0.0
      %1700 = vmatpush1.msra.mxu0 0.0
      %1701 = vmatprep.subr.mxu0 0.0
      %1702 = vmatpush1.msra.mxu0 0.0
      %1703 = vmatprep.subr.mxu0 0.0
      %1704 = vmatpush1.msra.mxu0 0.0
      %1705 = vmatprep.subr.mxu0 0.0
      %1706 = vmatpush1.msra.mxu0 0.0
      %1707 = vmatprep.subr.mxu0 0.0
      %1708 = vmatpush1.msra.mxu0 0.0
      %1709 = vmatprep.subr.mxu0 0.0
      %1710 = vmatpush1.msra.mxu0 0.0
      %1711 = vmatprep.subr.mxu0 0.0
      %1712 = vmatpush1.msra.mxu0 0.0
      %1713 = vmatprep.subr.mxu0 0.0
      %1714 = vmatpush1.msra.mxu0 0.0
      %1715 = vmatprep.subr.mxu0 0.0
      %1716 = vmatpush1.msra.mxu0 0.0
      %1717 = vmatprep.subr.mxu0 0.0
      %1718 = vmatpush1.msra.mxu0 0.0
      %1719 = vmatprep.subr.mxu0 0.0
      %1720 = vmatpush1.msra.mxu0 0.0
      %1721 = vmatprep.subr.mxu0 0.0
      %1722 = vmatpush1.msra.mxu0 0.0
      %1723 = vmatprep.subr.mxu0 0.0
      %1724 = vmatpush1.msra.mxu0 0.0
      %1725 = vmatprep.subr.mxu0 0.0
      %1726 = vmatpush1.msra.mxu0 0.0
      %1727 = vmatprep.subr.mxu0 0.0
      %1728 = vmatpush1.msra.mxu0 0.0
      %1729 = vmatprep.subr.mxu0 0.0
      %1730 = vmatpush1.msra.mxu0 0.0
      %1731 = vmatprep.subr.mxu0 0.0
      %1732 = vmatpush1.msra.mxu0 0.0
      %1733 = vmatprep.subr.mxu0 0.0
      %1734 = vmatpush1.msra.mxu0 0.0
      %1735 = vmatprep.subr.mxu0 0.0
      %1736 = vmatpush1.msra.mxu0 0.0
      %1737 = vmatprep.subr.mxu0 0.0
      %1738 = vmatpush1.msra.mxu0 0.0
      %1739 = vmatprep.subr.mxu0 0.0
      %1740 = vmatpush1.msra.mxu0 0.0
      %1741 = vmatprep.subr.mxu0 0.0
      %1742 = vmatpush1.msra.mxu0 0.0
      %1743 = vmatprep.subr.mxu0 0.0
      %1744 = vmatpush1.msra.mxu0 0.0
      %1745 = vmatprep.subr.mxu0 0.0
      %1746 = vmatpush1.msra.mxu0 0.0
      %1747 = vmatprep.subr.mxu0 0.0
      %1748 = vmatpush1.msra.mxu0 0.0
      %1749 = vmatprep.subr.mxu0 0.0
      %1750 = vmatpush1.msra.mxu0 0.0
      %1751 = vmatprep.subr.mxu0 0.0
      %1752 = vmatpush1.msra.mxu0 0.0
      %1753 = vmatprep.subr.mxu0 0.0
      %1754 = vmatpush1.msra.mxu0 0.0
      %1755 = vmatprep.subr.mxu0 0.0
      %1756 = vmatpush1.msra.mxu0 0.0
      %1757 = vmatprep.mubr.f32.mxu0 0.0
      %1758 = vmatmul.mubr.f32.gmra.mrb[0].mxu0 %v1595
      %v1759 = vpop.f32.mrb[0].mxu0
      %v1760 = vadd.f32 0.0, %v1759
      %v1761 = vpop.f32.mrb[0].mxu0
      %1762 = vmatprep.mubr.f32.mxu0 0.0
      %1763 = vmatmul.mubr.f32.gmra.mrb[0].mxu0 %v1598
      %v1764 = vpop.f32.mrb[0].mxu0
      %v1765 = vadd.f32 0.0, %v1764
      %v1766 = vpop.f32.mrb[0].mxu0
      %1767 = vmatprep.mubr.f32.mxu0 0.0
      %1768 = vmatmul.mubr.f32.gmra.mrb[0].mxu0 %v1601
      %v1769 = vpop.f32.mrb[0].mxu0
      %v1770 = vadd.f32 0.0, %v1769
      %v1771 = vpop.f32.mrb[0].mxu0
      %1772 = vmatprep.mubr.f32.mxu0 0.0
      %1773 = vmatmul.mubr.f32.gmra.mrb[0].mxu0 %v1604
      %v1774 = vpop.f32.mrb[0].mxu0
      %v1775 = vadd.f32 0.0, %v1774
      %v1776 = vpop.f32.mrb[0].mxu0
      %1777 = vmatprep.mubr.f32.mxu0 0.0
      %1778 = vmatmul.mubr.f32.gmra.mrb[0].mxu0 %v1607
      %v1779 = vpop.f32.mrb[0].mxu0
      %v1780 = vadd.f32 0.0, %v1779
      %v1781 = vpop.f32.mrb[0].mxu0
      %1782 = vmatprep.mubr.f32.mxu0 0.0
      %1783 = vmatmul.mubr.f32.gmra.mrb[0].mxu0 %v1610
      %v1784 = vpop.f32.mrb[0].mxu0
      %v1785 = vadd.f32 0.0, %v1784
      %v1786 = vpop.f32.mrb[0].mxu0
      %1787 = vmatprep.mubr.f32.mxu0 0.0
      %1788 = vmatmul.mubr.f32.gmra.mrb[0].mxu0 %v1613
      %v1789 = vpop.f32.mrb[0].mxu0
      %v1790 = vadd.f32 0.0, %v1789
      %v1791 = vpop.f32.mrb[0].mxu0
      %1792 = vmatprep.mubr.f32.mxu0 0.0
      %1793 = vmatmul.mubr.f32.gmra.mrb[0].mxu0 %v1616
      %v1794 = vpop.f32.mrb[0].mxu0
      %v1795 = vadd.f32 0.0, %v1794
      %v1796 = vpop.f32.mrb[0].mxu0
      %1797 = vmatprep.mubr.f32.mxu0 0.0
      %1798 = vmatmul.mubr.f32.gmra.mrb[0].mxu0 %v1619
      %v1799 = vpop.f32.mrb[0].mxu0
      %v1800 = vadd.f32 0.0, %v1799
      %v1801 = vpop.f32.mrb[0].mxu0
      %1802 = vmatprep.mubr.f32.mxu0 0.0
      %1803 = vmatmul.mubr.f32.gmra.mrb[0].mxu0 %v1622
      %v1804 = vpop.f32.mrb[0].mxu0
      %v1805 = vadd.f32 0.0, %v1804
      %v1806 = vpop.f32.mrb[0].mxu0
      %1807 = vmatprep.mubr.f32.mxu0 0.0
      %1808 = vmatmul.mubr.f32.gmra.mrb[0].mxu0 %v1625
      %v1809 = vpop.f32.mrb[0].mxu0
      %v1810 = vadd.f32 0.0, %v1809
      %v1811 = vpop.f32.mrb[0].mxu0
      %1812 = vmatprep.mubr.f32.mxu0 0.0
      %1813 = vmatmul.mubr.f32.gmra.mrb[0].mxu0 %v1628
      %v1814 = vpop.f32.mrb[0].mxu0
      %v1815 = vadd.f32 0.0, %v1814
      %v1816 = vpop.f32.mrb[0].mxu0
      %1817 = vmatprep.mubr.f32.mxu0 0.0
      %1818 = vmatmul.mubr.f32.gmra.mrb[0].mxu0 %v1631
      %v1819 = vpop.f32.mrb[0].mxu0
      %v1820 = vadd.f32 0.0, %v1819
      %v1821 = vpop.f32.mrb[0].mxu0
      %1822 = vmatprep.mubr.f32.mxu0 0.0
      %1823 = vmatmul.mubr.f32.gmra.mrb[0].mxu0 %v1634
      %v1824 = vpop.f32.mrb[0].mxu0
      %v1825 = vadd.f32 0.0, %v1824
      %v1826 = vpop.f32.mrb[0].mxu0
      %1827 = vmatprep.mubr.f32.mxu0 0.0
      %1828 = vmatmul.mubr.f32.gmra.mrb[0].mxu0 %v1637
      %v1829 = vpop.f32.mrb[0].mxu0
      %v1830 = vadd.f32 0.0, %v1829
      %v1831 = vpop.f32.mrb[0].mxu0
      %1832 = vmatprep.mubr.f32.mxu0 0.0
      %1833 = vmatmul.mubr.f32.gmra.mrb[0].mxu0 %v1640
      %v1834 = vpop.f32.mrb[0].mxu0
      %v1835 = vadd.f32 0.0, %v1834
      %v1836 = vpop.f32.mrb[0].mxu0
      %1837 = vmatprep.mubr.f32.mxu0 0.0
      %1838 = vmatmul.mubr.f32.gmra.mrb[0].mxu0 %v1643
      %v1839 = vpop.f32.mrb[0].mxu0
      %v1840 = vadd.f32 0.0, %v1839
      %v1841 = vpop.f32.mrb[0].mxu0
      %1842 = vmatprep.mubr.f32.mxu0 0.0
      %1843 = vmatmul.mubr.f32.gmra.mrb[0].mxu0 %v1646
      %v1844 = vpop.f32.mrb[0].mxu0
      %v1845 = vadd.f32 0.0, %v1844
      %v1846 = vpop.f32.mrb[0].mxu0
      %1847 = vmatprep.mubr.f32.mxu0 0.0
      %1848 = vmatmul.mubr.f32.gmra.mrb[0].mxu0 %v1649
      %v1849 = vpop.f32.mrb[0].mxu0
      %v1850 = vadd.f32 0.0, %v1849
      %v1851 = vpop.f32.mrb[0].mxu0
      %1852 = vmatprep.mubr.f32.mxu0 0.0
      %1853 = vmatmul.mubr.f32.gmra.mrb[0].mxu0 %v1652
      %v1854 = vpop.f32.mrb[0].mxu0
      %v1855 = vadd.f32 0.0, %v1854
      %v1856 = vpop.f32.mrb[0].mxu0
      %1857 = vmatprep.mubr.f32.mxu0 0.0
      %1858 = vmatmul.mubr.f32.gmra.mrb[0].mxu0 %v1655
      %v1859 = vpop.f32.mrb[0].mxu0
      %v1860 = vadd.f32 0.0, %v1859
      %v1861 = vpop.f32.mrb[0].mxu0
      %1862 = vmatprep.mubr.f32.mxu0 0.0
      %1863 = vmatmul.mubr.f32.gmra.mrb[0].mxu0 %v1658
      %v1864 = vpop.f32.mrb[0].mxu0
      %v1865 = vadd.f32 0.0, %v1864
      %v1866 = vpop.f32.mrb[0].mxu0
      %1867 = vmatprep.mubr.f32.mxu0 0.0
      %1868 = vmatmul.mubr.f32.gmra.mrb[0].mxu0 %v1661
      %v1869 = vpop.f32.mrb[0].mxu0
      %v1870 = vadd.f32 0.0, %v1869
      %v1871 = vpop.f32.mrb[0].mxu0
      %1872 = vmatprep.mubr.f32.mxu0 0.0
      %1873 = vmatmul.mubr.f32.gmra.mrb[0].mxu0 %v1664
      %v1874 = vpop.f32.mrb[0].mxu0
      %v1875 = vadd.f32 0.0, %v1874
      %v1876 = vpop.f32.mrb[0].mxu0
      %1877 = vmatprep.mubr.f32.mxu0 0.0
      %1878 = vmatmul.mubr.f32.gmra.mrb[0].mxu0 %v1667
      %v1879 = vpop.f32.mrb[0].mxu0
      %v1880 = vadd.f32 0.0, %v1879
      %v1881 = vpop.f32.mrb[0].mxu0
      %1882 = vmatprep.mubr.f32.mxu0 0.0
      %1883 = vmatmul.mubr.f32.gmra.mrb[0].mxu0 %v1670
      %v1884 = vpop.f32.mrb[0].mxu0
      %v1885 = vadd.f32 0.0, %v1884
      %v1886 = vpop.f32.mrb[0].mxu0
      %1887 = vmatprep.mubr.f32.mxu0 0.0
      %1888 = vmatmul.mubr.f32.gmra.mrb[0].mxu0 %v1673
      %v1889 = vpop.f32.mrb[0].mxu0
      %v1890 = vadd.f32 0.0, %v1889
      %v1891 = vpop.f32.mrb[0].mxu0
      %1892 = vmatprep.mubr.f32.mxu0 0.0
      %1893 = vmatmul.mubr.f32.gmra.mrb[0].mxu0 %v1676
      %v1894 = vpop.f32.mrb[0].mxu0
      %v1895 = vadd.f32 0.0, %v1894
      %v1896 = vpop.f32.mrb[0].mxu0
      %1897 = vmatprep.mubr.f32.mxu0 0.0
      %1898 = vmatmul.mubr.f32.gmra.mrb[0].mxu0 %v1679
      %v1899 = vpop.f32.mrb[0].mxu0
      %v1900 = vadd.f32 0.0, %v1899
      %v1901 = vpop.f32.mrb[0].mxu0
      %1902 = vmatprep.mubr.f32.mxu0 0.0
      %1903 = vmatmul.mubr.f32.gmra.mrb[0].mxu0 %v1682
      %v1904 = vpop.f32.mrb[0].mxu0
      %v1905 = vadd.f32 0.0, %v1904
      %v1906 = vpop.f32.mrb[0].mxu0
      %1907 = vmatprep.mubr.f32.mxu0 0.0
      %1908 = vmatmul.mubr.f32.gmra.mrb[0].mxu0 %v1685
      %v1909 = vpop.f32.mrb[0].mxu0
      %v1910 = vadd.f32 0.0, %v1909
      %v1911 = vpop.f32.mrb[0].mxu0
      %1912 = vmatprep.mubr.f32.mxu0 0.0
      %1913 = vmatmul.mubr.f32.gmra.mrb[0].mxu0 %v1688
      %v1914 = vpop.f32.mrb[0].mxu0
      %v1915 = vadd.f32 0.0, %v1914
      %v1916 = vpop.f32.mrb[0].mxu0
      %1917 = vdwg.mxu0
      %v1918 = vadd.f32 %v1529, %v1760
      %v1919 = vadd.f32 %v1530, %v1765
      %v1920 = vadd.f32 %v1531, %v1770
      %v1921 = vadd.f32 %v1532, %v1775
      %v1922 = vadd.f32 %v1533, %v1780
      %v1923 = vadd.f32 %v1534, %v1785
      %v1924 = vadd.f32 %v1535, %v1790
      %v1925 = vadd.f32 %v1536, %v1795
      %v1926 = vadd.f32 %v1537, %v1800
      %v1927 = vadd.f32 %v1538, %v1805
      %v1928 = vadd.f32 %v1539, %v1810
      %v1929 = vadd.f32 %v1540, %v1815
      %v1930 = vadd.f32 %v1541, %v1820
      %v1931 = vadd.f32 %v1542, %v1825
      %v1932 = vadd.f32 %v1543, %v1830
      %v1933 = vadd.f32 %v1544, %v1835
      %v1934 = vadd.f32 %v1545, %v1840
      %v1935 = vadd.f32 %v1546, %v1845
      %v1936 = vadd.f32 %v1547, %v1850
      %v1937 = vadd.f32 %v1548, %v1855
      %v1938 = vadd.f32 %v1549, %v1860
      %v1939 = vadd.f32 %v1550, %v1865
      %v1940 = vadd.f32 %v1551, %v1870
      %v1941 = vadd.f32 %v1552, %v1875
      %v1942 = vadd.f32 %v1553, %v1880
      %v1943 = vadd.f32 %v1554, %v1885
      %v1944 = vadd.f32 %v1555, %v1890
      %v1945 = vadd.f32 %v1556, %v1895
      %v1946 = vadd.f32 %v1557, %v1900
      %v1947 = vadd.f32 %v1558, %v1905
      %v1948 = vadd.f32 %v1559, %v1910
      %v1949 = vadd.f32 %v1560, %v1915
      %v1950 = vld [vmem:[%s424 + $0x1] sm:$0xff]
      %v1951 = vld [vmem:[%s424 + $0x9] sm:$0xff]
      %v1952 = vld [vmem:[%s424 + $0x19] sm:$0xff]
      %v1953 = vld [vmem:[%s424 + $0x21] sm:$0xff]
      %v1954 = vld [vmem:[%s424 + $0x31] sm:$0xff]
      %v1955 = vld [vmem:[%s424 + $0x39] sm:$0xff]
      %v1956 = vld [vmem:[%s424 + $0x49] sm:$0xff]
      %v1957 = vld [vmem:[%s424 + $0x51] sm:$0xff]
      %v1958 = vld [vmem:[%s424 + $0x61] sm:$0xff]
      %v1959 = vld [vmem:[%s424 + $0x69] sm:$0xff]
      %v1960 = vld [vmem:[%s424 + $0x79] sm:$0xff]
      %v1961 = vld [vmem:[%s424 + $0x81] sm:$0xff]
      %v1962 = vld [vmem:[%s424 + $0x91] sm:$0xff]
      %v1963 = vld [vmem:[%s424 + $0x99] sm:$0xff]
      %v1964 = vld [vmem:[%s424 + $0xa9] sm:$0xff]
      %v1965 = vld [vmem:[%s424 + $0xb1] sm:$0xff]
      %v1966 = vld [vmem:[%s424 + $0xc1] sm:$0xff]
      %v1967 = vld [vmem:[%s424 + $0xc9] sm:$0xff]
      %v1968 = vld [vmem:[%s424 + $0xd9] sm:$0xff]
      %v1969 = vld [vmem:[%s424 + $0xe1] sm:$0xff]
      %v1970 = vld [vmem:[%s424 + $0xf1] sm:$0xff]
      %v1971 = vld [vmem:[%s424 + $0xf9] sm:$0xff]
      %v1972 = vld [vmem:[%s424 + $0x109] sm:$0xff]
      %v1973 = vld [vmem:[%s424 + $0x111] sm:$0xff]
      %v1974 = vld [vmem:[%s424 + $0x121] sm:$0xff]
      %v1975 = vld [vmem:[%s424 + $0x129] sm:$0xff]
      %v1976 = vld [vmem:[%s424 + $0x139] sm:$0xff]
      %v1977 = vld [vmem:[%s424 + $0x141] sm:$0xff]
      %v1978 = vld [vmem:[%s424 + $0x151] sm:$0xff]
      %v1979 = vld [vmem:[%s424 + $0x159] sm:$0xff]
      %v1980 = vld [vmem:[%s424 + $0x169] sm:$0xff]
      %v1981 = vld [vmem:[%s424 + $0x171] sm:$0xff]
      %v1982 = vld [vmem:[%s3 + $0x10] sm:$0xf]
      %v1984 = vsel %vm378, %v1950, 0
      %v1987 = vsel %vm378, %v1951, 0
      %v1990 = vsel %vm378, %v1952, 0
      %v1993 = vsel %vm378, %v1953, 0
      %v1996 = vsel %vm378, %v1954, 0
      %v1999 = vsel %vm378, %v1955, 0
      %v2002 = vsel %vm378, %v1956, 0
      %v2005 = vsel %vm378, %v1957, 0
      %v2008 = vsel %vm378, %v1958, 0
      %v2011 = vsel %vm378, %v1959, 0
      %v2014 = vsel %vm378, %v1960, 0
      %v2017 = vsel %vm378, %v1961, 0
      %v2020 = vsel %vm378, %v1962, 0
      %v2023 = vsel %vm378, %v1963, 0
      %v2026 = vsel %vm378, %v1964, 0
      %v2029 = vsel %vm378, %v1965, 0
      %v2032 = vsel %vm378, %v1966, 0
      %v2035 = vsel %vm378, %v1967, 0
      %v2038 = vsel %vm378, %v1968, 0
      %v2041 = vsel %vm378, %v1969, 0
      %v2044 = vsel %vm378, %v1970, 0
      %v2047 = vsel %vm378, %v1971, 0
      %v2050 = vsel %vm378, %v1972, 0
      %v2053 = vsel %vm378, %v1973, 0
      %v2056 = vsel %vm378, %v1974, 0
      %v2059 = vsel %vm378, %v1975, 0
      %v2062 = vsel %vm378, %v1976, 0
      %v2065 = vsel %vm378, %v1977, 0
      %v2068 = vsel %vm378, %v1978, 0
      %v2071 = vsel %vm378, %v1979, 0
      %v2074 = vsel %vm378, %v1980, 0
      %v2077 = vsel %vm378, %v1981, 0
      %v2080 = vsel %vm619, %v1982, 0
      %2082 = vmatprep.subr.mxu0 0.0
      %2083 = vmatpush1.msra.mxu0 %v2080
      %2084 = vmatprep.subr.mxu0 0.0
      %2085 = vmatpush1.msra.mxu0 0.0
      %2086 = vmatprep.subr.mxu0 0.0
      %2087 = vmatpush1.msra.mxu0 0.0
      %2088 = vmatprep.subr.mxu0 0.0
      %2089 = vmatpush1.msra.mxu0 0.0
      %2090 = vmatprep.subr.mxu0 0.0
      %2091 = vmatpush1.msra.mxu0 0.0
      %2092 = vmatprep.subr.mxu0 0.0
      %2093 = vmatpush1.msra.mxu0 0.0
      %2094 = vmatprep.subr.mxu0 0.0
      %2095 = vmatpush1.msra.mxu0 0.0
      %2096 = vmatprep.subr.mxu0 0.0
      %2097 = vmatpush1.msra.mxu0 0.0
      %2098 = vmatprep.subr.mxu0 0.0
      %2099 = vmatpush1.msra.mxu0 0.0
      %2100 = vmatprep.subr.mxu0 0.0
      %2101 = vmatpush1.msra.mxu0 0.0
      %2102 = vmatprep.subr.mxu0 0.0
      %2103 = vmatpush1.msra.mxu0 0.0
      %2104 = vmatprep.subr.mxu0 0.0
      %2105 = vmatpush1.msra.mxu0 0.0
      %2106 = vmatprep.subr.mxu0 0.0
      %2107 = vmatpush1.msra.mxu0 0.0
      %2108 = vmatprep.subr.mxu0 0.0
      %2109 = vmatpush1.msra.mxu0 0.0
      %2110 = vmatprep.subr.mxu0 0.0
      %2111 = vmatpush1.msra.mxu0 0.0
      %2112 = vmatprep.subr.mxu0 0.0
      %2113 = vmatpush1.msra.mxu0 0.0
      %2114 = vmatprep.subr.mxu0 0.0
      %2115 = vmatpush1.msra.mxu0 0.0
      %2116 = vmatprep.subr.mxu0 0.0
      %2117 = vmatpush1.msra.mxu0 0.0
      %2118 = vmatprep.subr.mxu0 0.0
      %2119 = vmatpush1.msra.mxu0 0.0
      %2120 = vmatprep.subr.mxu0 0.0
      %2121 = vmatpush1.msra.mxu0 0.0
      %2122 = vmatprep.subr.mxu0 0.0
      %2123 = vmatpush1.msra.mxu0 0.0
      %2124 = vmatprep.subr.mxu0 0.0
      %2125 = vmatpush1.msra.mxu0 0.0
      %2126 = vmatprep.subr.mxu0 0.0
      %2127 = vmatpush1.msra.mxu0 0.0
      %2128 = vmatprep.subr.mxu0 0.0
      %2129 = vmatpush1.msra.mxu0 0.0
      %2130 = vmatprep.subr.mxu0 0.0
      %2131 = vmatpush1.msra.mxu0 0.0
      %2132 = vmatprep.subr.mxu0 0.0
      %2133 = vmatpush1.msra.mxu0 0.0
      %2134 = vmatprep.subr.mxu0 0.0
      %2135 = vmatpush1.msra.mxu0 0.0
      %2136 = vmatprep.subr.mxu0 0.0
      %2137 = vmatpush1.msra.mxu0 0.0
      %2138 = vmatprep.subr.mxu0 0.0
      %2139 = vmatpush1.msra.mxu0 0.0
      %2140 = vmatprep.subr.mxu0 0.0
      %2141 = vmatpush1.msra.mxu0 0.0
      %2142 = vmatprep.subr.mxu0 0.0
      %2143 = vmatpush1.msra.mxu0 0.0
      %2144 = vmatprep.subr.mxu0 0.0
      %2145 = vmatpush1.msra.mxu0 0.0
      %2146 = vmatprep.mubr.f32.mxu0 0.0
      %2147 = vmatmul.mubr.f32.gmra.mrb[0].mxu0 %v1984
      %v2148 = vpop.f32.mrb[0].mxu0
      %v2149 = vadd.f32 0.0, %v2148
      %v2150 = vpop.f32.mrb[0].mxu0
      %2151 = vmatprep.mubr.f32.mxu0 0.0
      %2152 = vmatmul.mubr.f32.gmra.mrb[0].mxu0 %v1987
      %v2153 = vpop.f32.mrb[0].mxu0
      %v2154 = vadd.f32 0.0, %v2153
      %v2155 = vpop.f32.mrb[0].mxu0
      %2156 = vmatprep.mubr.f32.mxu0 0.0
      %2157 = vmatmul.mubr.f32.gmra.mrb[0].mxu0 %v1990
      %v2158 = vpop.f32.mrb[0].mxu0
      %v2159 = vadd.f32 0.0, %v2158
      %v2160 = vpop.f32.mrb[0].mxu0
      %2161 = vmatprep.mubr.f32.mxu0 0.0
      %2162 = vmatmul.mubr.f32.gmra.mrb[0].mxu0 %v1993
      %v2163 = vpop.f32.mrb[0].mxu0
      %v2164 = vadd.f32 0.0, %v2163
      %v2165 = vpop.f32.mrb[0].mxu0
      %2166 = vmatprep.mubr.f32.mxu0 0.0
      %2167 = vmatmul.mubr.f32.gmra.mrb[0].mxu0 %v1996
      %v2168 = vpop.f32.mrb[0].mxu0
      %v2169 = vadd.f32 0.0, %v2168
      %v2170 = vpop.f32.mrb[0].mxu0
      %2171 = vmatprep.mubr.f32.mxu0 0.0
      %2172 = vmatmul.mubr.f32.gmra.mrb[0].mxu0 %v1999
      %v2173 = vpop.f32.mrb[0].mxu0
      %v2174 = vadd.f32 0.0, %v2173
      %v2175 = vpop.f32.mrb[0].mxu0
      %2176 = vmatprep.mubr.f32.mxu0 0.0
      %2177 = vmatmul.mubr.f32.gmra.mrb[0].mxu0 %v2002
      %v2178 = vpop.f32.mrb[0].mxu0
      %v2179 = vadd.f32 0.0, %v2178
      %v2180 = vpop.f32.mrb[0].mxu0
      %2181 = vmatprep.mubr.f32.mxu0 0.0
      %2182 = vmatmul.mubr.f32.gmra.mrb[0].mxu0 %v2005
      %v2183 = vpop.f32.mrb[0].mxu0
      %v2184 = vadd.f32 0.0, %v2183
      %v2185 = vpop.f32.mrb[0].mxu0
      %2186 = vmatprep.mubr.f32.mxu0 0.0
      %2187 = vmatmul.mubr.f32.gmra.mrb[0].mxu0 %v2008
      %v2188 = vpop.f32.mrb[0].mxu0
      %v2189 = vadd.f32 0.0, %v2188
      %v2190 = vpop.f32.mrb[0].mxu0
      %2191 = vmatprep.mubr.f32.mxu0 0.0
      %2192 = vmatmul.mubr.f32.gmra.mrb[0].mxu0 %v2011
      %v2193 = vpop.f32.mrb[0].mxu0
      %v2194 = vadd.f32 0.0, %v2193
      %v2195 = vpop.f32.mrb[0].mxu0
      %2196 = vmatprep.mubr.f32.mxu0 0.0
      %2197 = vmatmul.mubr.f32.gmra.mrb[0].mxu0 %v2014
      %v2198 = vpop.f32.mrb[0].mxu0
      %v2199 = vadd.f32 0.0, %v2198
      %v2200 = vpop.f32.mrb[0].mxu0
      %2201 = vmatprep.mubr.f32.mxu0 0.0
      %2202 = vmatmul.mubr.f32.gmra.mrb[0].mxu0 %v2017
      %v2203 = vpop.f32.mrb[0].mxu0
      %v2204 = vadd.f32 0.0, %v2203
      %v2205 = vpop.f32.mrb[0].mxu0
      %2206 = vmatprep.mubr.f32.mxu0 0.0
      %2207 = vmatmul.mubr.f32.gmra.mrb[0].mxu0 %v2020
      %v2208 = vpop.f32.mrb[0].mxu0
      %v2209 = vadd.f32 0.0, %v2208
      %v2210 = vpop.f32.mrb[0].mxu0
      %2211 = vmatprep.mubr.f32.mxu0 0.0
      %2212 = vmatmul.mubr.f32.gmra.mrb[0].mxu0 %v2023
      %v2213 = vpop.f32.mrb[0].mxu0
      %v2214 = vadd.f32 0.0, %v2213
      %v2215 = vpop.f32.mrb[0].mxu0
      %2216 = vmatprep.mubr.f32.mxu0 0.0
      %2217 = vmatmul.mubr.f32.gmra.mrb[0].mxu0 %v2026
      %v2218 = vpop.f32.mrb[0].mxu0
      %v2219 = vadd.f32 0.0, %v2218
      %v2220 = vpop.f32.mrb[0].mxu0
      %2221 = vmatprep.mubr.f32.mxu0 0.0
      %2222 = vmatmul.mubr.f32.gmra.mrb[0].mxu0 %v2029
      %v2223 = vpop.f32.mrb[0].mxu0
      %v2224 = vadd.f32 0.0, %v2223
      %v2225 = vpop.f32.mrb[0].mxu0
      %2226 = vmatprep.mubr.f32.mxu0 0.0
      %2227 = vmatmul.mubr.f32.gmra.mrb[0].mxu0 %v2032
      %v2228 = vpop.f32.mrb[0].mxu0
      %v2229 = vadd.f32 0.0, %v2228
      %v2230 = vpop.f32.mrb[0].mxu0
      %2231 = vmatprep.mubr.f32.mxu0 0.0
      %2232 = vmatmul.mubr.f32.gmra.mrb[0].mxu0 %v2035
      %v2233 = vpop.f32.mrb[0].mxu0
      %v2234 = vadd.f32 0.0, %v2233
      %v2235 = vpop.f32.mrb[0].mxu0
      %2236 = vmatprep.mubr.f32.mxu0 0.0
      %2237 = vmatmul.mubr.f32.gmra.mrb[0].mxu0 %v2038
      %v2238 = vpop.f32.mrb[0].mxu0
      %v2239 = vadd.f32 0.0, %v2238
      %v2240 = vpop.f32.mrb[0].mxu0
      %2241 = vmatprep.mubr.f32.mxu0 0.0
      %2242 = vmatmul.mubr.f32.gmra.mrb[0].mxu0 %v2041
      %v2243 = vpop.f32.mrb[0].mxu0
      %v2244 = vadd.f32 0.0, %v2243
      %v2245 = vpop.f32.mrb[0].mxu0
      %2246 = vmatprep.mubr.f32.mxu0 0.0
      %2247 = vmatmul.mubr.f32.gmra.mrb[0].mxu0 %v2044
      %v2248 = vpop.f32.mrb[0].mxu0
      %v2249 = vadd.f32 0.0, %v2248
      %v2250 = vpop.f32.mrb[0].mxu0
      %2251 = vmatprep.mubr.f32.mxu0 0.0
      %2252 = vmatmul.mubr.f32.gmra.mrb[0].mxu0 %v2047
      %v2253 = vpop.f32.mrb[0].mxu0
      %v2254 = vadd.f32 0.0, %v2253
      %v2255 = vpop.f32.mrb[0].mxu0
      %2256 = vmatprep.mubr.f32.mxu0 0.0
      %2257 = vmatmul.mubr.f32.gmra.mrb[0].mxu0 %v2050
      %v2258 = vpop.f32.mrb[0].mxu0
      %v2259 = vadd.f32 0.0, %v2258
      %v2260 = vpop.f32.mrb[0].mxu0
      %2261 = vmatprep.mubr.f32.mxu0 0.0
      %2262 = vmatmul.mubr.f32.gmra.mrb[0].mxu0 %v2053
      %v2263 = vpop.f32.mrb[0].mxu0
      %v2264 = vadd.f32 0.0, %v2263
      %v2265 = vpop.f32.mrb[0].mxu0
      %2266 = vmatprep.mubr.f32.mxu0 0.0
      %2267 = vmatmul.mubr.f32.gmra.mrb[0].mxu0 %v2056
      %v2268 = vpop.f32.mrb[0].mxu0
      %v2269 = vadd.f32 0.0, %v2268
      %v2270 = vpop.f32.mrb[0].mxu0
      %2271 = vmatprep.mubr.f32.mxu0 0.0
      %2272 = vmatmul.mubr.f32.gmra.mrb[0].mxu0 %v2059
      %v2273 = vpop.f32.mrb[0].mxu0
      %v2274 = vadd.f32 0.0, %v2273
      %v2275 = vpop.f32.mrb[0].mxu0
      %2276 = vmatprep.mubr.f32.mxu0 0.0
      %2277 = vmatmul.mubr.f32.gmra.mrb[0].mxu0 %v2062
      %v2278 = vpop.f32.mrb[0].mxu0
      %v2279 = vadd.f32 0.0, %v2278
      %v2280 = vpop.f32.mrb[0].mxu0
      %2281 = vmatprep.mubr.f32.mxu0 0.0
      %2282 = vmatmul.mubr.f32.gmra.mrb[0].mxu0 %v2065
      %v2283 = vpop.f32.mrb[0].mxu0
      %v2284 = vadd.f32 0.0, %v2283
      %v2285 = vpop.f32.mrb[0].mxu0
      %2286 = vmatprep.mubr.f32.mxu0 0.0
      %2287 = vmatmul.mubr.f32.gmra.mrb[0].mxu0 %v2068
      %v2288 = vpop.f32.mrb[0].mxu0
      %v2289 = vadd.f32 0.0, %v2288
      %v2290 = vpop.f32.mrb[0].mxu0
      %2291 = vmatprep.mubr.f32.mxu0 0.0
      %2292 = vmatmul.mubr.f32.gmra.mrb[0].mxu0 %v2071
      %v2293 = vpop.f32.mrb[0].mxu0
      %v2294 = vadd.f32 0.0, %v2293
      %v2295 = vpop.f32.mrb[0].mxu0
      %2296 = vmatprep.mubr.f32.mxu0 0.0
      %2297 = vmatmul.mubr.f32.gmra.mrb[0].mxu0 %v2074
      %v2298 = vpop.f32.mrb[0].mxu0
      %v2299 = vadd.f32 0.0, %v2298
      %v2300 = vpop.f32.mrb[0].mxu0
      %2301 = vmatprep.mubr.f32.mxu0 0.0
      %2302 = vmatmul.mubr.f32.gmra.mrb[0].mxu0 %v2077
      %v2303 = vpop.f32.mrb[0].mxu0
      %v2304 = vadd.f32 0.0, %v2303
      %v2305 = vpop.f32.mrb[0].mxu0
      %2306 = vdwg.mxu0
      %v2307 = vadd.f32 %v1918, %v2149
      %v2308 = vadd.f32 %v1919, %v2154
      %v2309 = vadd.f32 %v1920, %v2159
      %v2310 = vadd.f32 %v1921, %v2164
      %v2311 = vadd.f32 %v1922, %v2169
      %v2312 = vadd.f32 %v1923, %v2174
      %v2313 = vadd.f32 %v1924, %v2179
      %v2314 = vadd.f32 %v1925, %v2184
      %v2315 = vadd.f32 %v1926, %v2189
      %v2316 = vadd.f32 %v1927, %v2194
      %v2317 = vadd.f32 %v1928, %v2199
      %v2318 = vadd.f32 %v1929, %v2204
      %v2319 = vadd.f32 %v1930, %v2209
      %v2320 = vadd.f32 %v1931, %v2214
      %v2321 = vadd.f32 %v1932, %v2219
      %v2322 = vadd.f32 %v1933, %v2224
      %v2323 = vadd.f32 %v1934, %v2229
      %v2324 = vadd.f32 %v1935, %v2234
      %v2325 = vadd.f32 %v1936, %v2239
      %v2326 = vadd.f32 %v1937, %v2244
      %v2327 = vadd.f32 %v1938, %v2249
      %v2328 = vadd.f32 %v1939, %v2254
      %v2329 = vadd.f32 %v1940, %v2259
      %v2330 = vadd.f32 %v1941, %v2264
      %v2331 = vadd.f32 %v1942, %v2269
      %v2332 = vadd.f32 %v1943, %v2274
      %v2333 = vadd.f32 %v1944, %v2279
      %v2334 = vadd.f32 %v1945, %v2284
      %v2335 = vadd.f32 %v1946, %v2289
      %v2336 = vadd.f32 %v1947, %v2294
      %v2337 = vadd.f32 %v1948, %v2299
      %v2338 = vadd.f32 %v1949, %v2304
      %v2339 = vld [vmem:[%s424 + $0x2] sm:$0xff]
      %v2340 = vld [vmem:[%s424 + $0xa] sm:$0xff]
      %v2341 = vld [vmem:[%s424 + $0x1a] sm:$0xff]
      %v2342 = vld [vmem:[%s424 + $0x22] sm:$0xff]
      %v2343 = vld [vmem:[%s424 + $0x32] sm:$0xff]
      %v2344 = vld [vmem:[%s424 + $0x3a] sm:$0xff]
      %v2345 = vld [vmem:[%s424 + $0x4a] sm:$0xff]
      %v2346 = vld [vmem:[%s424 + $0x52] sm:$0xff]
      %v2347 = vld [vmem:[%s424 + $0x62] sm:$0xff]
      %v2348 = vld [vmem:[%s424 + $0x6a] sm:$0xff]
      %v2349 = vld [vmem:[%s424 + $0x7a] sm:$0xff]
      %v2350 = vld [vmem:[%s424 + $0x82] sm:$0xff]
      %v2351 = vld [vmem:[%s424 + $0x92] sm:$0xff]
      %v2352 = vld [vmem:[%s424 + $0x9a] sm:$0xff]
      %v2353 = vld [vmem:[%s424 + $0xaa] sm:$0xff]
      %v2354 = vld [vmem:[%s424 + $0xb2] sm:$0xff]
      %v2355 = vld [vmem:[%s424 + $0xc2] sm:$0xff]
      %v2356 = vld [vmem:[%s424 + $0xca] sm:$0xff]
      %v2357 = vld [vmem:[%s424 + $0xda] sm:$0xff]
      %v2358 = vld [vmem:[%s424 + $0xe2] sm:$0xff]
      %v2359 = vld [vmem:[%s424 + $0xf2] sm:$0xff]
      %v2360 = vld [vmem:[%s424 + $0xfa] sm:$0xff]
      %v2361 = vld [vmem:[%s424 + $0x10a] sm:$0xff]
      %v2362 = vld [vmem:[%s424 + $0x112] sm:$0xff]
      %v2363 = vld [vmem:[%s424 + $0x122] sm:$0xff]
      %v2364 = vld [vmem:[%s424 + $0x12a] sm:$0xff]
      %v2365 = vld [vmem:[%s424 + $0x13a] sm:$0xff]
      %v2366 = vld [vmem:[%s424 + $0x142] sm:$0xff]
      %v2367 = vld [vmem:[%s424 + $0x152] sm:$0xff]
      %v2368 = vld [vmem:[%s424 + $0x15a] sm:$0xff]
      %v2369 = vld [vmem:[%s424 + $0x16a] sm:$0xff]
      %v2370 = vld [vmem:[%s424 + $0x172] sm:$0xff]
      %v2371 = vld [vmem:[%s3 + $0x14] sm:$0xf]
      %v2373 = vsel %vm378, %v2339, 0
      %v2376 = vsel %vm378, %v2340, 0
      %v2379 = vsel %vm378, %v2341, 0
      %v2382 = vsel %vm378, %v2342, 0
      %v2385 = vsel %vm378, %v2343, 0
      %v2388 = vsel %vm378, %v2344, 0
      %v2391 = vsel %vm378, %v2345, 0
      %v2394 = vsel %vm378, %v2346, 0
      %v2397 = vsel %vm378, %v2347, 0
      %v2400 = vsel %vm378, %v2348, 0
      %v2403 = vsel %vm378, %v2349, 0
      %v2406 = vsel %vm378, %v2350, 0
      %v2409 = vsel %vm378, %v2351, 0
      %v2412 = vsel %vm378, %v2352, 0
      %v2415 = vsel %vm378, %v2353, 0
      %v2418 = vsel %vm378, %v2354, 0
      %v2421 = vsel %vm378, %v2355, 0
      %v2424 = vsel %vm378, %v2356, 0
      %v2427 = vsel %vm378, %v2357, 0
      %v2430 = vsel %vm378, %v2358, 0
      %v2433 = vsel %vm378, %v2359, 0
      %v2436 = vsel %vm378, %v2360, 0
      %v2439 = vsel %vm378, %v2361, 0
      %v2442 = vsel %vm378, %v2362, 0
      %v2445 = vsel %vm378, %v2363, 0
      %v2448 = vsel %vm378, %v2364, 0
      %v2451 = vsel %vm378, %v2365, 0
      %v2454 = vsel %vm378, %v2366, 0
      %v2457 = vsel %vm378, %v2367, 0
      %v2460 = vsel %vm378, %v2368, 0
      %v2463 = vsel %vm378, %v2369, 0
      %v2466 = vsel %vm378, %v2370, 0
      %v2469 = vsel %vm619, %v2371, 0
      %2471 = vmatprep.subr.mxu0 0.0
      %2472 = vmatpush1.msra.mxu0 %v2469
      %2473 = vmatprep.subr.mxu0 0.0
      %2474 = vmatpush1.msra.mxu0 0.0
      %2475 = vmatprep.subr.mxu0 0.0
      %2476 = vmatpush1.msra.mxu0 0.0
      %2477 = vmatprep.subr.mxu0 0.0
      %2478 = vmatpush1.msra.mxu0 0.0
      %2479 = vmatprep.subr.mxu0 0.0
      %2480 = vmatpush1.msra.mxu0 0.0
      %2481 = vmatprep.subr.mxu0 0.0
      %2482 = vmatpush1.msra.mxu0 0.0
      %2483 = vmatprep.subr.mxu0 0.0
      %2484 = vmatpush1.msra.mxu0 0.0
      %2485 = vmatprep.subr.mxu0 0.0
      %2486 = vmatpush1.msra.mxu0 0.0
      %2487 = vmatprep.subr.mxu0 0.0
      %2488 = vmatpush1.msra.mxu0 0.0
      %2489 = vmatprep.subr.mxu0 0.0
      %2490 = vmatpush1.msra.mxu0 0.0
      %2491 = vmatprep.subr.mxu0 0.0
      %2492 = vmatpush1.msra.mxu0 0.0
      %2493 = vmatprep.subr.mxu0 0.0
      %2494 = vmatpush1.msra.mxu0 0.0
      %2495 = vmatprep.subr.mxu0 0.0
      %2496 = vmatpush1.msra.mxu0 0.0
      %2497 = vmatprep.subr.mxu0 0.0
      %2498 = vmatpush1.msra.mxu0 0.0
      %2499 = vmatprep.subr.mxu0 0.0
      %2500 = vmatpush1.msra.mxu0 0.0
      %2501 = vmatprep.subr.mxu0 0.0
      %2502 = vmatpush1.msra.mxu0 0.0
      %2503 = vmatprep.subr.mxu0 0.0
      %2504 = vmatpush1.msra.mxu0 0.0
      %2505 = vmatprep.subr.mxu0 0.0
      %2506 = vmatpush1.msra.mxu0 0.0
      %2507 = vmatprep.subr.mxu0 0.0
      %2508 = vmatpush1.msra.mxu0 0.0
      %2509 = vmatprep.subr.mxu0 0.0
      %2510 = vmatpush1.msra.mxu0 0.0
      %2511 = vmatprep.subr.mxu0 0.0
      %2512 = vmatpush1.msra.mxu0 0.0
      %2513 = vmatprep.subr.mxu0 0.0
      %2514 = vmatpush1.msra.mxu0 0.0
      %2515 = vmatprep.subr.mxu0 0.0
      %2516 = vmatpush1.msra.mxu0 0.0
      %2517 = vmatprep.subr.mxu0 0.0
      %2518 = vmatpush1.msra.mxu0 0.0
      %2519 = vmatprep.subr.mxu0 0.0
      %2520 = vmatpush1.msra.mxu0 0.0
      %2521 = vmatprep.subr.mxu0 0.0
      %2522 = vmatpush1.msra.mxu0 0.0
      %2523 = vmatprep.subr.mxu0 0.0
      %2524 = vmatpush1.msra.mxu0 0.0
      %2525 = vmatprep.subr.mxu0 0.0
      %2526 = vmatpush1.msra.mxu0 0.0
      %2527 = vmatprep.subr.mxu0 0.0
      %2528 = vmatpush1.msra.mxu0 0.0
      %2529 = vmatprep.subr.mxu0 0.0
      %2530 = vmatpush1.msra.mxu0 0.0
      %2531 = vmatprep.subr.mxu0 0.0
      %2532 = vmatpush1.msra.mxu0 0.0
      %2533 = vmatprep.subr.mxu0 0.0
      %2534 = vmatpush1.msra.mxu0 0.0
      %2535 = vmatprep.mubr.f32.mxu0 0.0
      %2536 = vmatmul.mubr.f32.gmra.mrb[0].mxu0 %v2373
      %v2537 = vpop.f32.mrb[0].mxu0
      %v2538 = vadd.f32 0.0, %v2537
      %v2539 = vpop.f32.mrb[0].mxu0
      %2540 = vmatprep.mubr.f32.mxu0 0.0
      %2541 = vmatmul.mubr.f32.gmra.mrb[0].mxu0 %v2376
      %v2542 = vpop.f32.mrb[0].mxu0
      %v2543 = vadd.f32 0.0, %v2542
      %v2544 = vpop.f32.mrb[0].mxu0
      %2545 = vmatprep.mubr.f32.mxu0 0.0
      %2546 = vmatmul.mubr.f32.gmra.mrb[0].mxu0 %v2379
      %v2547 = vpop.f32.mrb[0].mxu0
      %v2548 = vadd.f32 0.0, %v2547
      %v2549 = vpop.f32.mrb[0].mxu0
      %2550 = vmatprep.mubr.f32.mxu0 0.0
      %2551 = vmatmul.mubr.f32.gmra.mrb[0].mxu0 %v2382
      %v2552 = vpop.f32.mrb[0].mxu0
      %v2553 = vadd.f32 0.0, %v2552
      %v2554 = vpop.f32.mrb[0].mxu0
      %2555 = vmatprep.mubr.f32.mxu0 0.0
      %2556 = vmatmul.mubr.f32.gmra.mrb[0].mxu0 %v2385
      %v2557 = vpop.f32.mrb[0].mxu0
      %v2558 = vadd.f32 0.0, %v2557
      %v2559 = vpop.f32.mrb[0].mxu0
      %2560 = vmatprep.mubr.f32.mxu0 0.0
      %2561 = vmatmul.mubr.f32.gmra.mrb[0].mxu0 %v2388
      %v2562 = vpop.f32.mrb[0].mxu0
      %v2563 = vadd.f32 0.0, %v2562
      %v2564 = vpop.f32.mrb[0].mxu0
      %2565 = vmatprep.mubr.f32.mxu0 0.0
      %2566 = vmatmul.mubr.f32.gmra.mrb[0].mxu0 %v2391
      %v2567 = vpop.f32.mrb[0].mxu0
      %v2568 = vadd.f32 0.0, %v2567
      %v2569 = vpop.f32.mrb[0].mxu0
      %2570 = vmatprep.mubr.f32.mxu0 0.0
      %2571 = vmatmul.mubr.f32.gmra.mrb[0].mxu0 %v2394
      %v2572 = vpop.f32.mrb[0].mxu0
      %v2573 = vadd.f32 0.0, %v2572
      %v2574 = vpop.f32.mrb[0].mxu0
      %2575 = vmatprep.mubr.f32.mxu0 0.0
      %2576 = vmatmul.mubr.f32.gmra.mrb[0].mxu0 %v2397
      %v2577 = vpop.f32.mrb[0].mxu0
      %v2578 = vadd.f32 0.0, %v2577
      %v2579 = vpop.f32.mrb[0].mxu0
      %2580 = vmatprep.mubr.f32.mxu0 0.0
      %2581 = vmatmul.mubr.f32.gmra.mrb[0].mxu0 %v2400
      %v2582 = vpop.f32.mrb[0].mxu0
      %v2583 = vadd.f32 0.0, %v2582
      %v2584 = vpop.f32.mrb[0].mxu0
      %2585 = vmatprep.mubr.f32.mxu0 0.0
      %2586 = vmatmul.mubr.f32.gmra.mrb[0].mxu0 %v2403
      %v2587 = vpop.f32.mrb[0].mxu0
      %v2588 = vadd.f32 0.0, %v2587
      %v2589 = vpop.f32.mrb[0].mxu0
      %2590 = vmatprep.mubr.f32.mxu0 0.0
      %2591 = vmatmul.mubr.f32.gmra.mrb[0].mxu0 %v2406
      %v2592 = vpop.f32.mrb[0].mxu0
      %v2593 = vadd.f32 0.0, %v2592
      %v2594 = vpop.f32.mrb[0].mxu0
      %2595 = vmatprep.mubr.f32.mxu0 0.0
      %2596 = vmatmul.mubr.f32.gmra.mrb[0].mxu0 %v2409
      %v2597 = vpop.f32.mrb[0].mxu0
      %v2598 = vadd.f32 0.0, %v2597
      %v2599 = vpop.f32.mrb[0].mxu0
      %2600 = vmatprep.mubr.f32.mxu0 0.0
      %2601 = vmatmul.mubr.f32.gmra.mrb[0].mxu0 %v2412
      %v2602 = vpop.f32.mrb[0].mxu0
      %v2603 = vadd.f32 0.0, %v2602
      %v2604 = vpop.f32.mrb[0].mxu0
      %2605 = vmatprep.mubr.f32.mxu0 0.0
      %2606 = vmatmul.mubr.f32.gmra.mrb[0].mxu0 %v2415
      %v2607 = vpop.f32.mrb[0].mxu0
      %v2608 = vadd.f32 0.0, %v2607
      %v2609 = vpop.f32.mrb[0].mxu0
      %2610 = vmatprep.mubr.f32.mxu0 0.0
      %2611 = vmatmul.mubr.f32.gmra.mrb[0].mxu0 %v2418
      %v2612 = vpop.f32.mrb[0].mxu0
      %v2613 = vadd.f32 0.0, %v2612
      %v2614 = vpop.f32.mrb[0].mxu0
      %2615 = vmatprep.mubr.f32.mxu0 0.0
      %2616 = vmatmul.mubr.f32.gmra.mrb[0].mxu0 %v2421
      %v2617 = vpop.f32.mrb[0].mxu0
      %v2618 = vadd.f32 0.0, %v2617
      %v2619 = vpop.f32.mrb[0].mxu0
      %2620 = vmatprep.mubr.f32.mxu0 0.0
      %2621 = vmatmul.mubr.f32.gmra.mrb[0].mxu0 %v2424
      %v2622 = vpop.f32.mrb[0].mxu0
      %v2623 = vadd.f32 0.0, %v2622
      %v2624 = vpop.f32.mrb[0].mxu0
      %2625 = vmatprep.mubr.f32.mxu0 0.0
      %2626 = vmatmul.mubr.f32.gmra.mrb[0].mxu0 %v2427
      %v2627 = vpop.f32.mrb[0].mxu0
      %v2628 = vadd.f32 0.0, %v2627
      %v2629 = vpop.f32.mrb[0].mxu0
      %2630 = vmatprep.mubr.f32.mxu0 0.0
      %2631 = vmatmul.mubr.f32.gmra.mrb[0].mxu0 %v2430
      %v2632 = vpop.f32.mrb[0].mxu0
      %v2633 = vadd.f32 0.0, %v2632
      %v2634 = vpop.f32.mrb[0].mxu0
      %2635 = vmatprep.mubr.f32.mxu0 0.0
      %2636 = vmatmul.mubr.f32.gmra.mrb[0].mxu0 %v2433
      %v2637 = vpop.f32.mrb[0].mxu0
      %v2638 = vadd.f32 0.0, %v2637
      %v2639 = vpop.f32.mrb[0].mxu0
      %2640 = vmatprep.mubr.f32.mxu0 0.0
      %2641 = vmatmul.mubr.f32.gmra.mrb[0].mxu0 %v2436
      %v2642 = vpop.f32.mrb[0].mxu0
      %v2643 = vadd.f32 0.0, %v2642
      %v2644 = vpop.f32.mrb[0].mxu0
      %2645 = vmatprep.mubr.f32.mxu0 0.0
      %2646 = vmatmul.mubr.f32.gmra.mrb[0].mxu0 %v2439
      %v2647 = vpop.f32.mrb[0].mxu0
      %v2648 = vadd.f32 0.0, %v2647
      %v2649 = vpop.f32.mrb[0].mxu0
      %2650 = vmatprep.mubr.f32.mxu0 0.0
      %2651 = vmatmul.mubr.f32.gmra.mrb[0].mxu0 %v2442
      %v2652 = vpop.f32.mrb[0].mxu0
      %v2653 = vadd.f32 0.0, %v2652
      %v2654 = vpop.f32.mrb[0].mxu0
      %2655 = vmatprep.mubr.f32.mxu0 0.0
      %2656 = vmatmul.mubr.f32.gmra.mrb[0].mxu0 %v2445
      %v2657 = vpop.f32.mrb[0].mxu0
      %v2658 = vadd.f32 0.0, %v2657
      %v2659 = vpop.f32.mrb[0].mxu0
      %2660 = vmatprep.mubr.f32.mxu0 0.0
      %2661 = vmatmul.mubr.f32.gmra.mrb[0].mxu0 %v2448
      %v2662 = vpop.f32.mrb[0].mxu0
      %v2663 = vadd.f32 0.0, %v2662
      %v2664 = vpop.f32.mrb[0].mxu0
      %2665 = vmatprep.mubr.f32.mxu0 0.0
      %2666 = vmatmul.mubr.f32.gmra.mrb[0].mxu0 %v2451
      %v2667 = vpop.f32.mrb[0].mxu0
      %v2668 = vadd.f32 0.0, %v2667
      %v2669 = vpop.f32.mrb[0].mxu0
      %2670 = vmatprep.mubr.f32.mxu0 0.0
      %2671 = vmatmul.mubr.f32.gmra.mrb[0].mxu0 %v2454
      %v2672 = vpop.f32.mrb[0].mxu0
      %v2673 = vadd.f32 0.0, %v2672
      %v2674 = vpop.f32.mrb[0].mxu0
      %2675 = vmatprep.mubr.f32.mxu0 0.0
      %2676 = vmatmul.mubr.f32.gmra.mrb[0].mxu0 %v2457
      %v2677 = vpop.f32.mrb[0].mxu0
      %v2678 = vadd.f32 0.0, %v2677
      %v2679 = vpop.f32.mrb[0].mxu0
      %2680 = vmatprep.mubr.f32.mxu0 0.0
      %2681 = vmatmul.mubr.f32.gmra.mrb[0].mxu0 %v2460
      %v2682 = vpop.f32.mrb[0].mxu0
      %v2683 = vadd.f32 0.0, %v2682
      %v2684 = vpop.f32.mrb[0].mxu0
      %2685 = vmatprep.mubr.f32.mxu0 0.0
      %2686 = vmatmul.mubr.f32.gmra.mrb[0].mxu0 %v2463
      %v2687 = vpop.f32.mrb[0].mxu0
      %v2688 = vadd.f32 0.0, %v2687
      %v2689 = vpop.f32.mrb[0].mxu0
      %2690 = vmatprep.mubr.f32.mxu0 0.0
      %2691 = vmatmul.mubr.f32.gmra.mrb[0].mxu0 %v2466
      %v2692 = vpop.f32.mrb[0].mxu0
      %v2693 = vadd.f32 0.0, %v2692
      %v2694 = vpop.f32.mrb[0].mxu0
      %2695 = vdwg.mxu0
      %v2696 = vadd.f32 %v2307, %v2538
      %v2697 = vadd.f32 %v2308, %v2543
      %v2698 = vadd.f32 %v2309, %v2548
      %v2699 = vadd.f32 %v2310, %v2553
      %v2700 = vadd.f32 %v2311, %v2558
      %v2701 = vadd.f32 %v2312, %v2563
      %v2702 = vadd.f32 %v2313, %v2568
      %v2703 = vadd.f32 %v2314, %v2573
      %v2704 = vadd.f32 %v2315, %v2578
      %v2705 = vadd.f32 %v2316, %v2583
      %v2706 = vadd.f32 %v2317, %v2588
      %v2707 = vadd.f32 %v2318, %v2593
      %v2708 = vadd.f32 %v2319, %v2598
      %v2709 = vadd.f32 %v2320, %v2603
      %v2710 = vadd.f32 %v2321, %v2608
      %v2711 = vadd.f32 %v2322, %v2613
      %v2712 = vadd.f32 %v2323, %v2618
      %v2713 = vadd.f32 %v2324, %v2623
      %v2714 = vadd.f32 %v2325, %v2628
      %v2715 = vadd.f32 %v2326, %v2633
      %v2716 = vadd.f32 %v2327, %v2638
      %v2717 = vadd.f32 %v2328, %v2643
      %v2718 = vadd.f32 %v2329, %v2648
      %v2719 = vadd.f32 %v2330, %v2653
      %v2720 = vadd.f32 %v2331, %v2658
      %v2721 = vadd.f32 %v2332, %v2663
      %v2722 = vadd.f32 %v2333, %v2668
      %v2723 = vadd.f32 %v2334, %v2673
      %v2724 = vadd.f32 %v2335, %v2678
      %v2725 = vadd.f32 %v2336, %v2683
      %v2726 = vadd.f32 %v2337, %v2688
      %v2727 = vadd.f32 %v2338, %v2693
      %s2728 = scalar_lea.vmem [#allocation2], 48
      %v2729 = vld [vmem:[%s2728] sm:$0xff]
      %v2730 = vld [vmem:[%s2728 + $0x8] sm:$0xff]
      %v2731 = vld [vmem:[%s2728 + $0x18] sm:$0xff]
      %v2732 = vld [vmem:[%s2728 + $0x20] sm:$0xff]
      %v2733 = vld [vmem:[%s2728 + $0x30] sm:$0xff]
      %v2734 = vld [vmem:[%s2728 + $0x38] sm:$0xff]
      %v2735 = vld [vmem:[%s2728 + $0x48] sm:$0xff]
      %v2736 = vld [vmem:[%s2728 + $0x50] sm:$0xff]
      %v2737 = vld [vmem:[%s2728 + $0x60] sm:$0xff]
      %v2738 = vld [vmem:[%s2728 + $0x68] sm:$0xff]
      %v2739 = vld [vmem:[%s2728 + $0x78] sm:$0xff]
      %v2740 = vld [vmem:[%s2728 + $0x80] sm:$0xff]
      %v2741 = vld [vmem:[%s2728 + $0x90] sm:$0xff]
      %v2742 = vld [vmem:[%s2728 + $0x98] sm:$0xff]
      %v2743 = vld [vmem:[%s2728 + $0xa8] sm:$0xff]
      %v2744 = vld [vmem:[%s2728 + $0xb0] sm:$0xff]
      %v2745 = vld [vmem:[%s2728 + $0xc0] sm:$0xff]
      %v2746 = vld [vmem:[%s2728 + $0xc8] sm:$0xff]
      %v2747 = vld [vmem:[%s2728 + $0xd8] sm:$0xff]
      %v2748 = vld [vmem:[%s2728 + $0xe0] sm:$0xff]
      %v2749 = vld [vmem:[%s2728 + $0xf0] sm:$0xff]
      %v2750 = vld [vmem:[%s2728 + $0xf8] sm:$0xff]
      %v2751 = vld [vmem:[%s2728 + $0x108] sm:$0xff]
      %v2752 = vld [vmem:[%s2728 + $0x110] sm:$0xff]
      %v2753 = vld [vmem:[%s2728 + $0x120] sm:$0xff]
      %v2754 = vld [vmem:[%s2728 + $0x128] sm:$0xff]
      %v2755 = vld [vmem:[%s2728 + $0x138] sm:$0xff]
      %v2756 = vld [vmem:[%s2728 + $0x140] sm:$0xff]
      %v2757 = vld [vmem:[%s2728 + $0x150] sm:$0xff]
      %v2758 = vld [vmem:[%s2728 + $0x158] sm:$0xff]
      %v2759 = vld [vmem:[%s2728 + $0x168] sm:$0xff]
      %v2760 = vld [vmem:[%s2728 + $0x170] sm:$0xff]
      %v2761 = vld [vmem:[%s3 + $0x18] sm:$0xf]
      %v2763 = vsel %vm378, %v2729, 0
      %v2766 = vsel %vm378, %v2730, 0
      %v2769 = vsel %vm378, %v2731, 0
      %v2772 = vsel %vm378, %v2732, 0
      %v2775 = vsel %vm378, %v2733, 0
      %v2778 = vsel %vm378, %v2734, 0
      %v2781 = vsel %vm378, %v2735, 0
      %v2784 = vsel %vm378, %v2736, 0
      %v2787 = vsel %vm378, %v2737, 0
      %v2790 = vsel %vm378, %v2738, 0
      %v2793 = vsel %vm378, %v2739, 0
      %v2796 = vsel %vm378, %v2740, 0
      %v2799 = vsel %vm378, %v2741, 0
      %v2802 = vsel %vm378, %v2742, 0
      %v2805 = vsel %vm378, %v2743, 0
      %v2808 = vsel %vm378, %v2744, 0
      %v2811 = vsel %vm378, %v2745, 0
      %v2814 = vsel %vm378, %v2746, 0
      %v2817 = vsel %vm378, %v2747, 0
      %v2820 = vsel %vm378, %v2748, 0
      %v2823 = vsel %vm378, %v2749, 0
      %v2826 = vsel %vm378, %v2750, 0
      %v2829 = vsel %vm378, %v2751, 0
      %v2832 = vsel %vm378, %v2752, 0
      %v2835 = vsel %vm378, %v2753, 0
      %v2838 = vsel %vm378, %v2754, 0
      %v2841 = vsel %vm378, %v2755, 0
      %v2844 = vsel %vm378, %v2756, 0
      %v2847 = vsel %vm378, %v2757, 0
      %v2850 = vsel %vm378, %v2758, 0
      %v2853 = vsel %vm378, %v2759, 0
      %v2856 = vsel %vm378, %v2760, 0
      %v2859 = vsel %vm619, %v2761, 0
      %2861 = vmatprep.subr.mxu0 0.0
      %2862 = vmatpush1.msra.mxu0 %v2859
      %2863 = vmatprep.subr.mxu0 0.0
      %2864 = vmatpush1.msra.mxu0 0.0
      %2865 = vmatprep.subr.mxu0 0.0
      %2866 = vmatpush1.msra.mxu0 0.0
      %2867 = vmatprep.subr.mxu0 0.0
      %2868 = vmatpush1.msra.mxu0 0.0
      %2869 = vmatprep.subr.mxu0 0.0
      %2870 = vmatpush1.msra.mxu0 0.0
      %2871 = vmatprep.subr.mxu0 0.0
      %2872 = vmatpush1.msra.mxu0 0.0
      %2873 = vmatprep.subr.mxu0 0.0
      %2874 = vmatpush1.msra.mxu0 0.0
      %2875 = vmatprep.subr.mxu0 0.0
      %2876 = vmatpush1.msra.mxu0 0.0
      %2877 = vmatprep.subr.mxu0 0.0
      %2878 = vmatpush1.msra.mxu0 0.0
      %2879 = vmatprep.subr.mxu0 0.0
      %2880 = vmatpush1.msra.mxu0 0.0
      %2881 = vmatprep.subr.mxu0 0.0
      %2882 = vmatpush1.msra.mxu0 0.0
      %2883 = vmatprep.subr.mxu0 0.0
      %2884 = vmatpush1.msra.mxu0 0.0
      %2885 = vmatprep.subr.mxu0 0.0
      %2886 = vmatpush1.msra.mxu0 0.0
      %2887 = vmatprep.subr.mxu0 0.0
      %2888 = vmatpush1.msra.mxu0 0.0
      %2889 = vmatprep.subr.mxu0 0.0
      %2890 = vmatpush1.msra.mxu0 0.0
      %2891 = vmatprep.subr.mxu0 0.0
      %2892 = vmatpush1.msra.mxu0 0.0
      %2893 = vmatprep.subr.mxu0 0.0
      %2894 = vmatpush1.msra.mxu0 0.0
      %2895 = vmatprep.subr.mxu0 0.0
      %2896 = vmatpush1.msra.mxu0 0.0
      %2897 = vmatprep.subr.mxu0 0.0
      %2898 = vmatpush1.msra.mxu0 0.0
      %2899 = vmatprep.subr.mxu0 0.0
      %2900 = vmatpush1.msra.mxu0 0.0
      %2901 = vmatprep.subr.mxu0 0.0
      %2902 = vmatpush1.msra.mxu0 0.0
      %2903 = vmatprep.subr.mxu0 0.0
      %2904 = vmatpush1.msra.mxu0 0.0
      %2905 = vmatprep.subr.mxu0 0.0
      %2906 = vmatpush1.msra.mxu0 0.0
      %2907 = vmatprep.subr.mxu0 0.0
      %2908 = vmatpush1.msra.mxu0 0.0
      %2909 = vmatprep.subr.mxu0 0.0
      %2910 = vmatpush1.msra.mxu0 0.0
      %2911 = vmatprep.subr.mxu0 0.0
      %2912 = vmatpush1.msra.mxu0 0.0
      %2913 = vmatprep.subr.mxu0 0.0
      %2914 = vmatpush1.msra.mxu0 0.0
      %2915 = vmatprep.subr.mxu0 0.0
      %2916 = vmatpush1.msra.mxu0 0.0
      %2917 = vmatprep.subr.mxu0 0.0
      %2918 = vmatpush1.msra.mxu0 0.0
      %2919 = vmatprep.subr.mxu0 0.0
      %2920 = vmatpush1.msra.mxu0 0.0
      %2921 = vmatprep.subr.mxu0 0.0
      %2922 = vmatpush1.msra.mxu0 0.0
      %2923 = vmatprep.subr.mxu0 0.0
      %2924 = vmatpush1.msra.mxu0 0.0
      %2925 = vmatprep.mubr.f32.mxu0 0.0
      %2926 = vmatmul.mubr.f32.gmra.mrb[0].mxu0 %v2763
      %v2927 = vpop.f32.mrb[0].mxu0
      %v2928 = vadd.f32 0.0, %v2927
      %v2929 = vpop.f32.mrb[0].mxu0
      %2930 = vmatprep.mubr.f32.mxu0 0.0
      %2931 = vmatmul.mubr.f32.gmra.mrb[0].mxu0 %v2766
      %v2932 = vpop.f32.mrb[0].mxu0
      %v2933 = vadd.f32 0.0, %v2932
      %v2934 = vpop.f32.mrb[0].mxu0
      %2935 = vmatprep.mubr.f32.mxu0 0.0
      %2936 = vmatmul.mubr.f32.gmra.mrb[0].mxu0 %v2769
      %v2937 = vpop.f32.mrb[0].mxu0
      %v2938 = vadd.f32 0.0, %v2937
      %v2939 = vpop.f32.mrb[0].mxu0
      %2940 = vmatprep.mubr.f32.mxu0 0.0
      %2941 = vmatmul.mubr.f32.gmra.mrb[0].mxu0 %v2772
      %v2942 = vpop.f32.mrb[0].mxu0
      %v2943 = vadd.f32 0.0, %v2942
      %v2944 = vpop.f32.mrb[0].mxu0
      %2945 = vmatprep.mubr.f32.mxu0 0.0
      %2946 = vmatmul.mubr.f32.gmra.mrb[0].mxu0 %v2775
      %v2947 = vpop.f32.mrb[0].mxu0
      %v2948 = vadd.f32 0.0, %v2947
      %v2949 = vpop.f32.mrb[0].mxu0
      %2950 = vmatprep.mubr.f32.mxu0 0.0
      %2951 = vmatmul.mubr.f32.gmra.mrb[0].mxu0 %v2778
      %v2952 = vpop.f32.mrb[0].mxu0
      %v2953 = vadd.f32 0.0, %v2952
      %v2954 = vpop.f32.mrb[0].mxu0
      %2955 = vmatprep.mubr.f32.mxu0 0.0
      %2956 = vmatmul.mubr.f32.gmra.mrb[0].mxu0 %v2781
      %v2957 = vpop.f32.mrb[0].mxu0
      %v2958 = vadd.f32 0.0, %v2957
      %v2959 = vpop.f32.mrb[0].mxu0
      %2960 = vmatprep.mubr.f32.mxu0 0.0
      %2961 = vmatmul.mubr.f32.gmra.mrb[0].mxu0 %v2784
      %v2962 = vpop.f32.mrb[0].mxu0
      %v2963 = vadd.f32 0.0, %v2962
      %v2964 = vpop.f32.mrb[0].mxu0
      %2965 = vmatprep.mubr.f32.mxu0 0.0
      %2966 = vmatmul.mubr.f32.gmra.mrb[0].mxu0 %v2787
      %v2967 = vpop.f32.mrb[0].mxu0
      %v2968 = vadd.f32 0.0, %v2967
      %v2969 = vpop.f32.mrb[0].mxu0
      %2970 = vmatprep.mubr.f32.mxu0 0.0
      %2971 = vmatmul.mubr.f32.gmra.mrb[0].mxu0 %v2790
      %v2972 = vpop.f32.mrb[0].mxu0
      %v2973 = vadd.f32 0.0, %v2972
      %v2974 = vpop.f32.mrb[0].mxu0
      %2975 = vmatprep.mubr.f32.mxu0 0.0
      %2976 = vmatmul.mubr.f32.gmra.mrb[0].mxu0 %v2793
      %v2977 = vpop.f32.mrb[0].mxu0
      %v2978 = vadd.f32 0.0, %v2977
      %v2979 = vpop.f32.mrb[0].mxu0
      %2980 = vmatprep.mubr.f32.mxu0 0.0
      %2981 = vmatmul.mubr.f32.gmra.mrb[0].mxu0 %v2796
      %v2982 = vpop.f32.mrb[0].mxu0
      %v2983 = vadd.f32 0.0, %v2982
      %v2984 = vpop.f32.mrb[0].mxu0
      %2985 = vmatprep.mubr.f32.mxu0 0.0
      %2986 = vmatmul.mubr.f32.gmra.mrb[0].mxu0 %v2799
      %v2987 = vpop.f32.mrb[0].mxu0
      %v2988 = vadd.f32 0.0, %v2987
      %v2989 = vpop.f32.mrb[0].mxu0
      %2990 = vmatprep.mubr.f32.mxu0 0.0
      %2991 = vmatmul.mubr.f32.gmra.mrb[0].mxu0 %v2802
      %v2992 = vpop.f32.mrb[0].mxu0
      %v2993 = vadd.f32 0.0, %v2992
      %v2994 = vpop.f32.mrb[0].mxu0
      %2995 = vmatprep.mubr.f32.mxu0 0.0
      %2996 = vmatmul.mubr.f32.gmra.mrb[0].mxu0 %v2805
      %v2997 = vpop.f32.mrb[0].mxu0
      %v2998 = vadd.f32 0.0, %v2997
      %v2999 = vpop.f32.mrb[0].mxu0
      %3000 = vmatprep.mubr.f32.mxu0 0.0
      %3001 = vmatmul.mubr.f32.gmra.mrb[0].mxu0 %v2808
      %v3002 = vpop.f32.mrb[0].mxu0
      %v3003 = vadd.f32 0.0, %v3002
      %v3004 = vpop.f32.mrb[0].mxu0
      %3005 = vmatprep.mubr.f32.mxu0 0.0
      %3006 = vmatmul.mubr.f32.gmra.mrb[0].mxu0 %v2811
      %v3007 = vpop.f32.mrb[0].mxu0
      %v3008 = vadd.f32 0.0, %v3007
      %v3009 = vpop.f32.mrb[0].mxu0
      %3010 = vmatprep.mubr.f32.mxu0 0.0
      %3011 = vmatmul.mubr.f32.gmra.mrb[0].mxu0 %v2814
      %v3012 = vpop.f32.mrb[0].mxu0
      %v3013 = vadd.f32 0.0, %v3012
      %v3014 = vpop.f32.mrb[0].mxu0
      %3015 = vmatprep.mubr.f32.mxu0 0.0
      %3016 = vmatmul.mubr.f32.gmra.mrb[0].mxu0 %v2817
      %v3017 = vpop.f32.mrb[0].mxu0
      %v3018 = vadd.f32 0.0, %v3017
      %v3019 = vpop.f32.mrb[0].mxu0
      %3020 = vmatprep.mubr.f32.mxu0 0.0
      %3021 = vmatmul.mubr.f32.gmra.mrb[0].mxu0 %v2820
      %v3022 = vpop.f32.mrb[0].mxu0
      %v3023 = vadd.f32 0.0, %v3022
      %v3024 = vpop.f32.mrb[0].mxu0
      %3025 = vmatprep.mubr.f32.mxu0 0.0
      %3026 = vmatmul.mubr.f32.gmra.mrb[0].mxu0 %v2823
      %v3027 = vpop.f32.mrb[0].mxu0
      %v3028 = vadd.f32 0.0, %v3027
      %v3029 = vpop.f32.mrb[0].mxu0
      %3030 = vmatprep.mubr.f32.mxu0 0.0
      %3031 = vmatmul.mubr.f32.gmra.mrb[0].mxu0 %v2826
      %v3032 = vpop.f32.mrb[0].mxu0
      %v3033 = vadd.f32 0.0, %v3032
      %v3034 = vpop.f32.mrb[0].mxu0
      %3035 = vmatprep.mubr.f32.mxu0 0.0
      %3036 = vmatmul.mubr.f32.gmra.mrb[0].mxu0 %v2829
      %v3037 = vpop.f32.mrb[0].mxu0
      %v3038 = vadd.f32 0.0, %v3037
      %v3039 = vpop.f32.mrb[0].mxu0
      %3040 = vmatprep.mubr.f32.mxu0 0.0
      %3041 = vmatmul.mubr.f32.gmra.mrb[0].mxu0 %v2832
      %v3042 = vpop.f32.mrb[0].mxu0
      %v3043 = vadd.f32 0.0, %v3042
      %v3044 = vpop.f32.mrb[0].mxu0
      %3045 = vmatprep.mubr.f32.mxu0 0.0
      %3046 = vmatmul.mubr.f32.gmra.mrb[0].mxu0 %v2835
      %v3047 = vpop.f32.mrb[0].mxu0
      %v3048 = vadd.f32 0.0, %v3047
      %v3049 = vpop.f32.mrb[0].mxu0
      %3050 = vmatprep.mubr.f32.mxu0 0.0
      %3051 = vmatmul.mubr.f32.gmra.mrb[0].mxu0 %v2838
      %v3052 = vpop.f32.mrb[0].mxu0
      %v3053 = vadd.f32 0.0, %v3052
      %v3054 = vpop.f32.mrb[0].mxu0
      %3055 = vmatprep.mubr.f32.mxu0 0.0
      %3056 = vmatmul.mubr.f32.gmra.mrb[0].mxu0 %v2841
      %v3057 = vpop.f32.mrb[0].mxu0
      %v3058 = vadd.f32 0.0, %v3057
      %v3059 = vpop.f32.mrb[0].mxu0
      %3060 = vmatprep.mubr.f32.mxu0 0.0
      %3061 = vmatmul.mubr.f32.gmra.mrb[0].mxu0 %v2844
      %v3062 = vpop.f32.mrb[0].mxu0
      %v3063 = vadd.f32 0.0, %v3062
      %v3064 = vpop.f32.mrb[0].mxu0
      %3065 = vmatprep.mubr.f32.mxu0 0.0
      %3066 = vmatmul.mubr.f32.gmra.mrb[0].mxu0 %v2847
      %v3067 = vpop.f32.mrb[0].mxu0
      %v3068 = vadd.f32 0.0, %v3067
      %v3069 = vpop.f32.mrb[0].mxu0
      %3070 = vmatprep.mubr.f32.mxu0 0.0
      %3071 = vmatmul.mubr.f32.gmra.mrb[0].mxu0 %v2850
      %v3072 = vpop.f32.mrb[0].mxu0
      %v3073 = vadd.f32 0.0, %v3072
      %v3074 = vpop.f32.mrb[0].mxu0
      %3075 = vmatprep.mubr.f32.mxu0 0.0
      %3076 = vmatmul.mubr.f32.gmra.mrb[0].mxu0 %v2853
      %v3077 = vpop.f32.mrb[0].mxu0
      %v3078 = vadd.f32 0.0, %v3077
      %v3079 = vpop.f32.mrb[0].mxu0
      %3080 = vmatprep.mubr.f32.mxu0 0.0
      %3081 = vmatmul.mubr.f32.gmra.mrb[0].mxu0 %v2856
      %v3082 = vpop.f32.mrb[0].mxu0
      %v3083 = vadd.f32 0.0, %v3082
      %v3084 = vpop.f32.mrb[0].mxu0
      %3085 = vdwg.mxu0
      %v3086 = vadd.f32 %v2696, %v2928
      %v3087 = vadd.f32 %v2697, %v2933
      %v3088 = vadd.f32 %v2698, %v2938
      %v3089 = vadd.f32 %v2699, %v2943
      %v3090 = vadd.f32 %v2700, %v2948
      %v3091 = vadd.f32 %v2701, %v2953
      %v3092 = vadd.f32 %v2702, %v2958
      %v3093 = vadd.f32 %v2703, %v2963
      %v3094 = vadd.f32 %v2704, %v2968
      %v3095 = vadd.f32 %v2705, %v2973
      %v3096 = vadd.f32 %v2706, %v2978
      %v3097 = vadd.f32 %v2707, %v2983
      %v3098 = vadd.f32 %v2708, %v2988
      %v3099 = vadd.f32 %v2709, %v2993
      %v3100 = vadd.f32 %v2710, %v2998
      %v3101 = vadd.f32 %v2711, %v3003
      %v3102 = vadd.f32 %v2712, %v3008
      %v3103 = vadd.f32 %v2713, %v3013
      %v3104 = vadd.f32 %v2714, %v3018
      %v3105 = vadd.f32 %v2715, %v3023
      %v3106 = vadd.f32 %v2716, %v3028
      %v3107 = vadd.f32 %v2717, %v3033
      %v3108 = vadd.f32 %v2718, %v3038
      %v3109 = vadd.f32 %v2719, %v3043
      %v3110 = vadd.f32 %v2720, %v3048
      %v3111 = vadd.f32 %v2721, %v3053
      %v3112 = vadd.f32 %v2722, %v3058
      %v3113 = vadd.f32 %v2723, %v3063
      %v3114 = vadd.f32 %v2724, %v3068
      %v3115 = vadd.f32 %v2725, %v3073
      %v3116 = vadd.f32 %v2726, %v3078
      %v3117 = vadd.f32 %v2727, %v3083
      %v3118 = vld [vmem:[%s2728 + $0x1] sm:$0xff]
      %v3119 = vld [vmem:[%s2728 + $0x9] sm:$0xff]
      %v3120 = vld [vmem:[%s2728 + $0x19] sm:$0xff]
      %v3121 = vld [vmem:[%s2728 + $0x21] sm:$0xff]
      %v3122 = vld [vmem:[%s2728 + $0x31] sm:$0xff]
      %v3123 = vld [vmem:[%s2728 + $0x39] sm:$0xff]
      %v3124 = vld [vmem:[%s2728 + $0x49] sm:$0xff]
      %v3125 = vld [vmem:[%s2728 + $0x51] sm:$0xff]
      %v3126 = vld [vmem:[%s2728 + $0x61] sm:$0xff]
      %v3127 = vld [vmem:[%s2728 + $0x69] sm:$0xff]
      %v3128 = vld [vmem:[%s2728 + $0x79] sm:$0xff]
      %v3129 = vld [vmem:[%s2728 + $0x81] sm:$0xff]
      %v3130 = vld [vmem:[%s2728 + $0x91] sm:$0xff]
      %v3131 = vld [vmem:[%s2728 + $0x99] sm:$0xff]
      %v3132 = vld [vmem:[%s2728 + $0xa9] sm:$0xff]
      %v3133 = vld [vmem:[%s2728 + $0xb1] sm:$0xff]
      %v3134 = vld [vmem:[%s2728 + $0xc1] sm:$0xff]
      %v3135 = vld [vmem:[%s2728 + $0xc9] sm:$0xff]
      %v3136 = vld [vmem:[%s2728 + $0xd9] sm:$0xff]
      %v3137 = vld [vmem:[%s2728 + $0xe1] sm:$0xff]
      %v3138 = vld [vmem:[%s2728 + $0xf1] sm:$0xff]
      %v3139 = vld [vmem:[%s2728 + $0xf9] sm:$0xff]
      %v3140 = vld [vmem:[%s2728 + $0x109] sm:$0xff]
      %v3141 = vld [vmem:[%s2728 + $0x111] sm:$0xff]
      %v3142 = vld [vmem:[%s2728 + $0x121] sm:$0xff]
      %v3143 = vld [vmem:[%s2728 + $0x129] sm:$0xff]
      %v3144 = vld [vmem:[%s2728 + $0x139] sm:$0xff]
      %v3145 = vld [vmem:[%s2728 + $0x141] sm:$0xff]
      %v3146 = vld [vmem:[%s2728 + $0x151] sm:$0xff]
      %v3147 = vld [vmem:[%s2728 + $0x159] sm:$0xff]
      %v3148 = vld [vmem:[%s2728 + $0x169] sm:$0xff]
      %v3149 = vld [vmem:[%s2728 + $0x171] sm:$0xff]
      %v3150 = vld [vmem:[%s3 + $0x1c] sm:$0xf]
      %v3152 = vsel %vm378, %v3118, 0
      %v3155 = vsel %vm378, %v3119, 0
      %v3158 = vsel %vm378, %v3120, 0
      %v3161 = vsel %vm378, %v3121, 0
      %v3164 = vsel %vm378, %v3122, 0
      %v3167 = vsel %vm378, %v3123, 0
      %v3170 = vsel %vm378, %v3124, 0
      %v3173 = vsel %vm378, %v3125, 0
      %v3176 = vsel %vm378, %v3126, 0
      %v3179 = vsel %vm378, %v3127, 0
      %v3182 = vsel %vm378, %v3128, 0
      %v3185 = vsel %vm378, %v3129, 0
      %v3188 = vsel %vm378, %v3130, 0
      %v3191 = vsel %vm378, %v3131, 0
      %v3194 = vsel %vm378, %v3132, 0
      %v3197 = vsel %vm378, %v3133, 0
      %v3200 = vsel %vm378, %v3134, 0
      %v3203 = vsel %vm378, %v3135, 0
      %v3206 = vsel %vm378, %v3136, 0
      %v3209 = vsel %vm378, %v3137, 0
      %v3212 = vsel %vm378, %v3138, 0
      %v3215 = vsel %vm378, %v3139, 0
      %v3218 = vsel %vm378, %v3140, 0
      %v3221 = vsel %vm378, %v3141, 0
      %v3224 = vsel %vm378, %v3142, 0
      %v3227 = vsel %vm378, %v3143, 0
      %v3230 = vsel %vm378, %v3144, 0
      %v3233 = vsel %vm378, %v3145, 0
      %v3236 = vsel %vm378, %v3146, 0
      %v3239 = vsel %vm378, %v3147, 0
      %v3242 = vsel %vm378, %v3148, 0
      %v3245 = vsel %vm378, %v3149, 0
      %v3248 = vsel %vm619, %v3150, 0
      %3250 = vmatprep.subr.mxu0 0.0
      %3251 = vmatpush1.msra.mxu0 %v3248
      %3252 = vmatprep.subr.mxu0 0.0
      %3253 = vmatpush1.msra.mxu0 0.0
      %3254 = vmatprep.subr.mxu0 0.0
      %3255 = vmatpush1.msra.mxu0 0.0
      %3256 = vmatprep.subr.mxu0 0.0
      %3257 = vmatpush1.msra.mxu0 0.0
      %3258 = vmatprep.subr.mxu0 0.0
      %3259 = vmatpush1.msra.mxu0 0.0
      %3260 = vmatprep.subr.mxu0 0.0
      %3261 = vmatpush1.msra.mxu0 0.0
      %3262 = vmatprep.subr.mxu0 0.0
      %3263 = vmatpush1.msra.mxu0 0.0
      %3264 = vmatprep.subr.mxu0 0.0
      %3265 = vmatpush1.msra.mxu0 0.0
      %3266 = vmatprep.subr.mxu0 0.0
      %3267 = vmatpush1.msra.mxu0 0.0
      %3268 = vmatprep.subr.mxu0 0.0
      %3269 = vmatpush1.msra.mxu0 0.0
      %3270 = vmatprep.subr.mxu0 0.0
      %3271 = vmatpush1.msra.mxu0 0.0
      %3272 = vmatprep.subr.mxu0 0.0
      %3273 = vmatpush1.msra.mxu0 0.0
      %3274 = vmatprep.subr.mxu0 0.0
      %3275 = vmatpush1.msra.mxu0 0.0
      %3276 = vmatprep.subr.mxu0 0.0
      %3277 = vmatpush1.msra.mxu0 0.0
      %3278 = vmatprep.subr.mxu0 0.0
      %3279 = vmatpush1.msra.mxu0 0.0
      %3280 = vmatprep.subr.mxu0 0.0
      %3281 = vmatpush1.msra.mxu0 0.0
      %3282 = vmatprep.subr.mxu0 0.0
      %3283 = vmatpush1.msra.mxu0 0.0
      %3284 = vmatprep.subr.mxu0 0.0
      %3285 = vmatpush1.msra.mxu0 0.0
      %3286 = vmatprep.subr.mxu0 0.0
      %3287 = vmatpush1.msra.mxu0 0.0
      %3288 = vmatprep.subr.mxu0 0.0
      %3289 = vmatpush1.msra.mxu0 0.0
      %3290 = vmatprep.subr.mxu0 0.0
      %3291 = vmatpush1.msra.mxu0 0.0
      %3292 = vmatprep.subr.mxu0 0.0
      %3293 = vmatpush1.msra.mxu0 0.0
      %3294 = vmatprep.subr.mxu0 0.0
      %3295 = vmatpush1.msra.mxu0 0.0
      %3296 = vmatprep.subr.mxu0 0.0
      %3297 = vmatpush1.msra.mxu0 0.0
      %3298 = vmatprep.subr.mxu0 0.0
      %3299 = vmatpush1.msra.mxu0 0.0
      %3300 = vmatprep.subr.mxu0 0.0
      %3301 = vmatpush1.msra.mxu0 0.0
      %3302 = vmatprep.subr.mxu0 0.0
      %3303 = vmatpush1.msra.mxu0 0.0
      %3304 = vmatprep.subr.mxu0 0.0
      %3305 = vmatpush1.msra.mxu0 0.0
      %3306 = vmatprep.subr.mxu0 0.0
      %3307 = vmatpush1.msra.mxu0 0.0
      %3308 = vmatprep.subr.mxu0 0.0
      %3309 = vmatpush1.msra.mxu0 0.0
      %3310 = vmatprep.subr.mxu0 0.0
      %3311 = vmatpush1.msra.mxu0 0.0
      %3312 = vmatprep.subr.mxu0 0.0
      %3313 = vmatpush1.msra.mxu0 0.0
      %3314 = vmatprep.mubr.f32.mxu0 0.0
      %3315 = vmatmul.mubr.f32.gmra.mrb[0].mxu0 %v3152
      %v3316 = vpop.f32.mrb[0].mxu0
      %v3317 = vadd.f32 0.0, %v3316
      %v3318 = vpop.f32.mrb[0].mxu0
      %3319 = vmatprep.mubr.f32.mxu0 0.0
      %3320 = vmatmul.mubr.f32.gmra.mrb[0].mxu0 %v3155
      %v3321 = vpop.f32.mrb[0].mxu0
      %v3322 = vadd.f32 0.0, %v3321
      %v3323 = vpop.f32.mrb[0].mxu0
      %3324 = vmatprep.mubr.f32.mxu0 0.0
      %3325 = vmatmul.mubr.f32.gmra.mrb[0].mxu0 %v3158
      %v3326 = vpop.f32.mrb[0].mxu0
      %v3327 = vadd.f32 0.0, %v3326
      %v3328 = vpop.f32.mrb[0].mxu0
      %3329 = vmatprep.mubr.f32.mxu0 0.0
      %3330 = vmatmul.mubr.f32.gmra.mrb[0].mxu0 %v3161
      %v3331 = vpop.f32.mrb[0].mxu0
      %v3332 = vadd.f32 0.0, %v3331
      %v3333 = vpop.f32.mrb[0].mxu0
      %3334 = vmatprep.mubr.f32.mxu0 0.0
      %3335 = vmatmul.mubr.f32.gmra.mrb[0].mxu0 %v3164
      %v3336 = vpop.f32.mrb[0].mxu0
      %v3337 = vadd.f32 0.0, %v3336
      %v3338 = vpop.f32.mrb[0].mxu0
      %3339 = vmatprep.mubr.f32.mxu0 0.0
      %3340 = vmatmul.mubr.f32.gmra.mrb[0].mxu0 %v3167
      %v3341 = vpop.f32.mrb[0].mxu0
      %v3342 = vadd.f32 0.0, %v3341
      %v3343 = vpop.f32.mrb[0].mxu0
      %3344 = vmatprep.mubr.f32.mxu0 0.0
      %3345 = vmatmul.mubr.f32.gmra.mrb[0].mxu0 %v3170
      %v3346 = vpop.f32.mrb[0].mxu0
      %v3347 = vadd.f32 0.0, %v3346
      %v3348 = vpop.f32.mrb[0].mxu0
      %3349 = vmatprep.mubr.f32.mxu0 0.0
      %3350 = vmatmul.mubr.f32.gmra.mrb[0].mxu0 %v3173
      %v3351 = vpop.f32.mrb[0].mxu0
      %v3352 = vadd.f32 0.0, %v3351
      %v3353 = vpop.f32.mrb[0].mxu0
      %3354 = vmatprep.mubr.f32.mxu0 0.0
      %3355 = vmatmul.mubr.f32.gmra.mrb[0].mxu0 %v3176
      %v3356 = vpop.f32.mrb[0].mxu0
      %v3357 = vadd.f32 0.0, %v3356
      %v3358 = vpop.f32.mrb[0].mxu0
      %3359 = vmatprep.mubr.f32.mxu0 0.0
      %3360 = vmatmul.mubr.f32.gmra.mrb[0].mxu0 %v3179
      %v3361 = vpop.f32.mrb[0].mxu0
      %v3362 = vadd.f32 0.0, %v3361
      %v3363 = vpop.f32.mrb[0].mxu0
      %3364 = vmatprep.mubr.f32.mxu0 0.0
      %3365 = vmatmul.mubr.f32.gmra.mrb[0].mxu0 %v3182
      %v3366 = vpop.f32.mrb[0].mxu0
      %v3367 = vadd.f32 0.0, %v3366
      %v3368 = vpop.f32.mrb[0].mxu0
      %3369 = vmatprep.mubr.f32.mxu0 0.0
      %3370 = vmatmul.mubr.f32.gmra.mrb[0].mxu0 %v3185
      %v3371 = vpop.f32.mrb[0].mxu0
      %v3372 = vadd.f32 0.0, %v3371
      %v3373 = vpop.f32.mrb[0].mxu0
      %3374 = vmatprep.mubr.f32.mxu0 0.0
      %3375 = vmatmul.mubr.f32.gmra.mrb[0].mxu0 %v3188
      %v3376 = vpop.f32.mrb[0].mxu0
      %v3377 = vadd.f32 0.0, %v3376
      %v3378 = vpop.f32.mrb[0].mxu0
      %3379 = vmatprep.mubr.f32.mxu0 0.0
      %3380 = vmatmul.mubr.f32.gmra.mrb[0].mxu0 %v3191
      %v3381 = vpop.f32.mrb[0].mxu0
      %v3382 = vadd.f32 0.0, %v3381
      %v3383 = vpop.f32.mrb[0].mxu0
      %3384 = vmatprep.mubr.f32.mxu0 0.0
      %3385 = vmatmul.mubr.f32.gmra.mrb[0].mxu0 %v3194
      %v3386 = vpop.f32.mrb[0].mxu0
      %v3387 = vadd.f32 0.0, %v3386
      %v3388 = vpop.f32.mrb[0].mxu0
      %3389 = vmatprep.mubr.f32.mxu0 0.0
      %3390 = vmatmul.mubr.f32.gmra.mrb[0].mxu0 %v3197
      %v3391 = vpop.f32.mrb[0].mxu0
      %v3392 = vadd.f32 0.0, %v3391
      %v3393 = vpop.f32.mrb[0].mxu0
      %3394 = vmatprep.mubr.f32.mxu0 0.0
      %3395 = vmatmul.mubr.f32.gmra.mrb[0].mxu0 %v3200
      %v3396 = vpop.f32.mrb[0].mxu0
      %v3397 = vadd.f32 0.0, %v3396
      %v3398 = vpop.f32.mrb[0].mxu0
      %3399 = vmatprep.mubr.f32.mxu0 0.0
      %3400 = vmatmul.mubr.f32.gmra.mrb[0].mxu0 %v3203
      %v3401 = vpop.f32.mrb[0].mxu0
      %v3402 = vadd.f32 0.0, %v3401
      %v3403 = vpop.f32.mrb[0].mxu0
      %3404 = vmatprep.mubr.f32.mxu0 0.0
      %3405 = vmatmul.mubr.f32.gmra.mrb[0].mxu0 %v3206
      %v3406 = vpop.f32.mrb[0].mxu0
      %v3407 = vadd.f32 0.0, %v3406
      %v3408 = vpop.f32.mrb[0].mxu0
      %3409 = vmatprep.mubr.f32.mxu0 0.0
      %3410 = vmatmul.mubr.f32.gmra.mrb[0].mxu0 %v3209
      %v3411 = vpop.f32.mrb[0].mxu0
      %v3412 = vadd.f32 0.0, %v3411
      %v3413 = vpop.f32.mrb[0].mxu0
      %3414 = vmatprep.mubr.f32.mxu0 0.0
      %3415 = vmatmul.mubr.f32.gmra.mrb[0].mxu0 %v3212
      %v3416 = vpop.f32.mrb[0].mxu0
      %v3417 = vadd.f32 0.0, %v3416
      %v3418 = vpop.f32.mrb[0].mxu0
      %3419 = vmatprep.mubr.f32.mxu0 0.0
      %3420 = vmatmul.mubr.f32.gmra.mrb[0].mxu0 %v3215
      %v3421 = vpop.f32.mrb[0].mxu0
      %v3422 = vadd.f32 0.0, %v3421
      %v3423 = vpop.f32.mrb[0].mxu0
      %3424 = vmatprep.mubr.f32.mxu0 0.0
      %3425 = vmatmul.mubr.f32.gmra.mrb[0].mxu0 %v3218
      %v3426 = vpop.f32.mrb[0].mxu0
      %v3427 = vadd.f32 0.0, %v3426
      %v3428 = vpop.f32.mrb[0].mxu0
      %3429 = vmatprep.mubr.f32.mxu0 0.0
      %3430 = vmatmul.mubr.f32.gmra.mrb[0].mxu0 %v3221
      %v3431 = vpop.f32.mrb[0].mxu0
      %v3432 = vadd.f32 0.0, %v3431
      %v3433 = vpop.f32.mrb[0].mxu0
      %3434 = vmatprep.mubr.f32.mxu0 0.0
      %3435 = vmatmul.mubr.f32.gmra.mrb[0].mxu0 %v3224
      %v3436 = vpop.f32.mrb[0].mxu0
      %v3437 = vadd.f32 0.0, %v3436
      %v3438 = vpop.f32.mrb[0].mxu0
      %3439 = vmatprep.mubr.f32.mxu0 0.0
      %3440 = vmatmul.mubr.f32.gmra.mrb[0].mxu0 %v3227
      %v3441 = vpop.f32.mrb[0].mxu0
      %v3442 = vadd.f32 0.0, %v3441
      %v3443 = vpop.f32.mrb[0].mxu0
      %3444 = vmatprep.mubr.f32.mxu0 0.0
      %3445 = vmatmul.mubr.f32.gmra.mrb[0].mxu0 %v3230
      %v3446 = vpop.f32.mrb[0].mxu0
      %v3447 = vadd.f32 0.0, %v3446
      %v3448 = vpop.f32.mrb[0].mxu0
      %3449 = vmatprep.mubr.f32.mxu0 0.0
      %3450 = vmatmul.mubr.f32.gmra.mrb[0].mxu0 %v3233
      %v3451 = vpop.f32.mrb[0].mxu0
      %v3452 = vadd.f32 0.0, %v3451
      %v3453 = vpop.f32.mrb[0].mxu0
      %3454 = vmatprep.mubr.f32.mxu0 0.0
      %3455 = vmatmul.mubr.f32.gmra.mrb[0].mxu0 %v3236
      %v3456 = vpop.f32.mrb[0].mxu0
      %v3457 = vadd.f32 0.0, %v3456
      %v3458 = vpop.f32.mrb[0].mxu0
      %3459 = vmatprep.mubr.f32.mxu0 0.0
      %3460 = vmatmul.mubr.f32.gmra.mrb[0].mxu0 %v3239
      %v3461 = vpop.f32.mrb[0].mxu0
      %v3462 = vadd.f32 0.0, %v3461
      %v3463 = vpop.f32.mrb[0].mxu0
      %3464 = vmatprep.mubr.f32.mxu0 0.0
      %3465 = vmatmul.mubr.f32.gmra.mrb[0].mxu0 %v3242
      %v3466 = vpop.f32.mrb[0].mxu0
      %v3467 = vadd.f32 0.0, %v3466
      %v3468 = vpop.f32.mrb[0].mxu0
      %3469 = vmatprep.mubr.f32.mxu0 0.0
      %3470 = vmatmul.mubr.f32.gmra.mrb[0].mxu0 %v3245
      %v3471 = vpop.f32.mrb[0].mxu0
      %v3472 = vadd.f32 0.0, %v3471
      %v3473 = vpop.f32.mrb[0].mxu0
      %3474 = vdwg.mxu0
      %v3475 = vadd.f32 %v3086, %v3317
      %v3476 = vadd.f32 %v3087, %v3322
      %v3477 = vadd.f32 %v3088, %v3327
      %v3478 = vadd.f32 %v3089, %v3332
      %v3479 = vadd.f32 %v3090, %v3337
      %v3480 = vadd.f32 %v3091, %v3342
      %v3481 = vadd.f32 %v3092, %v3347
      %v3482 = vadd.f32 %v3093, %v3352
      %v3483 = vadd.f32 %v3094, %v3357
      %v3484 = vadd.f32 %v3095, %v3362
      %v3485 = vadd.f32 %v3096, %v3367
      %v3486 = vadd.f32 %v3097, %v3372
      %v3487 = vadd.f32 %v3098, %v3377
      %v3488 = vadd.f32 %v3099, %v3382
      %v3489 = vadd.f32 %v3100, %v3387
      %v3490 = vadd.f32 %v3101, %v3392
      %v3491 = vadd.f32 %v3102, %v3397
      %v3492 = vadd.f32 %v3103, %v3402
      %v3493 = vadd.f32 %v3104, %v3407
      %v3494 = vadd.f32 %v3105, %v3412
      %v3495 = vadd.f32 %v3106, %v3417
      %v3496 = vadd.f32 %v3107, %v3422
      %v3497 = vadd.f32 %v3108, %v3427
      %v3498 = vadd.f32 %v3109, %v3432
      %v3499 = vadd.f32 %v3110, %v3437
      %v3500 = vadd.f32 %v3111, %v3442
      %v3501 = vadd.f32 %v3112, %v3447
      %v3502 = vadd.f32 %v3113, %v3452
      %v3503 = vadd.f32 %v3114, %v3457
      %v3504 = vadd.f32 %v3115, %v3462
      %v3505 = vadd.f32 %v3116, %v3467
      %v3506 = vadd.f32 %v3117, %v3472
      %v3507 = vld [vmem:[%s2728 + $0x2] sm:$0xff]
      %v3508 = vld [vmem:[%s2728 + $0xa] sm:$0xff]
      %v3509 = vld [vmem:[%s2728 + $0x1a] sm:$0xff]
      %v3510 = vld [vmem:[%s2728 + $0x22] sm:$0xff]
      %v3511 = vld [vmem:[%s2728 + $0x32] sm:$0xff]
      %v3512 = vld [vmem:[%s2728 + $0x3a] sm:$0xff]
      %v3513 = vld [vmem:[%s2728 + $0x4a] sm:$0xff]
      %v3514 = vld [vmem:[%s2728 + $0x52] sm:$0xff]
      %v3515 = vld [vmem:[%s2728 + $0x62] sm:$0xff]
      %v3516 = vld [vmem:[%s2728 + $0x6a] sm:$0xff]
      %v3517 = vld [vmem:[%s2728 + $0x7a] sm:$0xff]
      %v3518 = vld [vmem:[%s2728 + $0x82] sm:$0xff]
      %v3519 = vld [vmem:[%s2728 + $0x92] sm:$0xff]
      %v3520 = vld [vmem:[%s2728 + $0x9a] sm:$0xff]
      %v3521 = vld [vmem:[%s2728 + $0xaa] sm:$0xff]
      %v3522 = vld [vmem:[%s2728 + $0xb2] sm:$0xff]
      %v3523 = vld [vmem:[%s2728 + $0xc2] sm:$0xff]
      %v3524 = vld [vmem:[%s2728 + $0xca] sm:$0xff]
      %v3525 = vld [vmem:[%s2728 + $0xda] sm:$0xff]
      %v3526 = vld [vmem:[%s2728 + $0xe2] sm:$0xff]
      %v3527 = vld [vmem:[%s2728 + $0xf2] sm:$0xff]
      %v3528 = vld [vmem:[%s2728 + $0xfa] sm:$0xff]
      %v3529 = vld [vmem:[%s2728 + $0x10a] sm:$0xff]
      %v3530 = vld [vmem:[%s2728 + $0x112] sm:$0xff]
      %v3531 = vld [vmem:[%s2728 + $0x122] sm:$0xff]
      %v3532 = vld [vmem:[%s2728 + $0x12a] sm:$0xff]
      %v3533 = vld [vmem:[%s2728 + $0x13a] sm:$0xff]
      %v3534 = vld [vmem:[%s2728 + $0x142] sm:$0xff]
      %v3535 = vld [vmem:[%s2728 + $0x152] sm:$0xff]
      %v3536 = vld [vmem:[%s2728 + $0x15a] sm:$0xff]
      %v3537 = vld [vmem:[%s2728 + $0x16a] sm:$0xff]
      %v3538 = vld [vmem:[%s2728 + $0x172] sm:$0xff]
      %v3539 = vld [vmem:[%s3 + $0x20] sm:$0xf]
      %v3541 = vsel %vm378, %v3507, 0
      %v3544 = vsel %vm378, %v3508, 0
      %v3547 = vsel %vm378, %v3509, 0
      %v3550 = vsel %vm378, %v3510, 0
      %v3553 = vsel %vm378, %v3511, 0
      %v3556 = vsel %vm378, %v3512, 0
      %v3559 = vsel %vm378, %v3513, 0
      %v3562 = vsel %vm378, %v3514, 0
      %v3565 = vsel %vm378, %v3515, 0
      %v3568 = vsel %vm378, %v3516, 0
      %v3571 = vsel %vm378, %v3517, 0
      %v3574 = vsel %vm378, %v3518, 0
      %v3577 = vsel %vm378, %v3519, 0
      %v3580 = vsel %vm378, %v3520, 0
      %v3583 = vsel %vm378, %v3521, 0
      %v3586 = vsel %vm378, %v3522, 0
      %v3589 = vsel %vm378, %v3523, 0
      %v3592 = vsel %vm378, %v3524, 0
      %v3595 = vsel %vm378, %v3525, 0
      %v3598 = vsel %vm378, %v3526, 0
      %v3601 = vsel %vm378, %v3527, 0
      %v3604 = vsel %vm378, %v3528, 0
      %v3607 = vsel %vm378, %v3529, 0
      %v3610 = vsel %vm378, %v3530, 0
      %v3613 = vsel %vm378, %v3531, 0
      %v3616 = vsel %vm378, %v3532, 0
      %v3619 = vsel %vm378, %v3533, 0
      %v3622 = vsel %vm378, %v3534, 0
      %v3625 = vsel %vm378, %v3535, 0
      %v3628 = vsel %vm378, %v3536, 0
      %v3631 = vsel %vm378, %v3537, 0
      %v3634 = vsel %vm378, %v3538, 0
      %v3637 = vsel %vm619, %v3539, 0
      %3639 = vmatprep.subr.mxu0 0.0
      %3640 = vmatpush1.msra.mxu0 %v3637
      %3641 = vmatprep.subr.mxu0 0.0
      %3642 = vmatpush1.msra.mxu0 0.0
      %3643 = vmatprep.subr.mxu0 0.0
      %3644 = vmatpush1.msra.mxu0 0.0
      %3645 = vmatprep.subr.mxu0 0.0
      %3646 = vmatpush1.msra.mxu0 0.0
      %3647 = vmatprep.subr.mxu0 0.0
      %3648 = vmatpush1.msra.mxu0 0.0
      %3649 = vmatprep.subr.mxu0 0.0
      %3650 = vmatpush1.msra.mxu0 0.0
      %3651 = vmatprep.subr.mxu0 0.0
      %3652 = vmatpush1.msra.mxu0 0.0
      %3653 = vmatprep.subr.mxu0 0.0
      %3654 = vmatpush1.msra.mxu0 0.0
      %3655 = vmatprep.subr.mxu0 0.0
      %3656 = vmatpush1.msra.mxu0 0.0
      %3657 = vmatprep.subr.mxu0 0.0
      %3658 = vmatpush1.msra.mxu0 0.0
      %3659 = vmatprep.subr.mxu0 0.0
      %3660 = vmatpush1.msra.mxu0 0.0
      %3661 = vmatprep.subr.mxu0 0.0
      %3662 = vmatpush1.msra.mxu0 0.0
      %3663 = vmatprep.subr.mxu0 0.0
      %3664 = vmatpush1.msra.mxu0 0.0
      %3665 = vmatprep.subr.mxu0 0.0
      %3666 = vmatpush1.msra.mxu0 0.0
      %3667 = vmatprep.subr.mxu0 0.0
      %3668 = vmatpush1.msra.mxu0 0.0
      %3669 = vmatprep.subr.mxu0 0.0
      %3670 = vmatpush1.msra.mxu0 0.0
      %3671 = vmatprep.subr.mxu0 0.0
      %3672 = vmatpush1.msra.mxu0 0.0
      %3673 = vmatprep.subr.mxu0 0.0
      %3674 = vmatpush1.msra.mxu0 0.0
      %3675 = vmatprep.subr.mxu0 0.0
      %3676 = vmatpush1.msra.mxu0 0.0
      %3677 = vmatprep.subr.mxu0 0.0
      %3678 = vmatpush1.msra.mxu0 0.0
      %3679 = vmatprep.subr.mxu0 0.0
      %3680 = vmatpush1.msra.mxu0 0.0
      %3681 = vmatprep.subr.mxu0 0.0
      %3682 = vmatpush1.msra.mxu0 0.0
      %3683 = vmatprep.subr.mxu0 0.0
      %3684 = vmatpush1.msra.mxu0 0.0
      %3685 = vmatprep.subr.mxu0 0.0
      %3686 = vmatpush1.msra.mxu0 0.0
      %3687 = vmatprep.subr.mxu0 0.0
      %3688 = vmatpush1.msra.mxu0 0.0
      %3689 = vmatprep.subr.mxu0 0.0
      %3690 = vmatpush1.msra.mxu0 0.0
      %3691 = vmatprep.subr.mxu0 0.0
      %3692 = vmatpush1.msra.mxu0 0.0
      %3693 = vmatprep.subr.mxu0 0.0
      %3694 = vmatpush1.msra.mxu0 0.0
      %3695 = vmatprep.subr.mxu0 0.0
      %3696 = vmatpush1.msra.mxu0 0.0
      %3697 = vmatprep.subr.mxu0 0.0
      %3698 = vmatpush1.msra.mxu0 0.0
      %3699 = vmatprep.subr.mxu0 0.0
      %3700 = vmatpush1.msra.mxu0 0.0
      %3701 = vmatprep.subr.mxu0 0.0
      %3702 = vmatpush1.msra.mxu0 0.0
      %3703 = vmatprep.mubr.f32.mxu0 0.0
      %3704 = vmatmul.mubr.f32.gmra.mrb[0].mxu0 %v3541
      %v3705 = vpop.f32.mrb[0].mxu0
      %v3706 = vadd.f32 0.0, %v3705
      %v3707 = vpop.f32.mrb[0].mxu0
      %3708 = vmatprep.mubr.f32.mxu0 0.0
      %3709 = vmatmul.mubr.f32.gmra.mrb[0].mxu0 %v3544
      %v3710 = vpop.f32.mrb[0].mxu0
      %v3711 = vadd.f32 0.0, %v3710
      %v3712 = vpop.f32.mrb[0].mxu0
      %3713 = vmatprep.mubr.f32.mxu0 0.0
      %3714 = vmatmul.mubr.f32.gmra.mrb[0].mxu0 %v3547
      %v3715 = vpop.f32.mrb[0].mxu0
      %v3716 = vadd.f32 0.0, %v3715
      %v3717 = vpop.f32.mrb[0].mxu0
      %3718 = vmatprep.mubr.f32.mxu0 0.0
      %3719 = vmatmul.mubr.f32.gmra.mrb[0].mxu0 %v3550
      %v3720 = vpop.f32.mrb[0].mxu0
      %v3721 = vadd.f32 0.0, %v3720
      %v3722 = vpop.f32.mrb[0].mxu0
      %3723 = vmatprep.mubr.f32.mxu0 0.0
      %3724 = vmatmul.mubr.f32.gmra.mrb[0].mxu0 %v3553
      %v3725 = vpop.f32.mrb[0].mxu0
      %v3726 = vadd.f32 0.0, %v3725
      %v3727 = vpop.f32.mrb[0].mxu0
      %3728 = vmatprep.mubr.f32.mxu0 0.0
      %3729 = vmatmul.mubr.f32.gmra.mrb[0].mxu0 %v3556
      %v3730 = vpop.f32.mrb[0].mxu0
      %v3731 = vadd.f32 0.0, %v3730
      %v3732 = vpop.f32.mrb[0].mxu0
      %3733 = vmatprep.mubr.f32.mxu0 0.0
      %3734 = vmatmul.mubr.f32.gmra.mrb[0].mxu0 %v3559
      %v3735 = vpop.f32.mrb[0].mxu0
      %v3736 = vadd.f32 0.0, %v3735
      %v3737 = vpop.f32.mrb[0].mxu0
      %3738 = vmatprep.mubr.f32.mxu0 0.0
      %3739 = vmatmul.mubr.f32.gmra.mrb[0].mxu0 %v3562
      %v3740 = vpop.f32.mrb[0].mxu0
      %v3741 = vadd.f32 0.0, %v3740
      %v3742 = vpop.f32.mrb[0].mxu0
      %3743 = vmatprep.mubr.f32.mxu0 0.0
      %3744 = vmatmul.mubr.f32.gmra.mrb[0].mxu0 %v3565
      %v3745 = vpop.f32.mrb[0].mxu0
      %v3746 = vadd.f32 0.0, %v3745
      %v3747 = vpop.f32.mrb[0].mxu0
      %3748 = vmatprep.mubr.f32.mxu0 0.0
      %3749 = vmatmul.mubr.f32.gmra.mrb[0].mxu0 %v3568
      %v3750 = vpop.f32.mrb[0].mxu0
      %v3751 = vadd.f32 0.0, %v3750
      %v3752 = vpop.f32.mrb[0].mxu0
      %3753 = vmatprep.mubr.f32.mxu0 0.0
      %3754 = vmatmul.mubr.f32.gmra.mrb[0].mxu0 %v3571
      %v3755 = vpop.f32.mrb[0].mxu0
      %v3756 = vadd.f32 0.0, %v3755
      %v3757 = vpop.f32.mrb[0].mxu0
      %3758 = vmatprep.mubr.f32.mxu0 0.0
      %3759 = vmatmul.mubr.f32.gmra.mrb[0].mxu0 %v3574
      %v3760 = vpop.f32.mrb[0].mxu0
      %v3761 = vadd.f32 0.0, %v3760
      %v3762 = vpop.f32.mrb[0].mxu0
      %3763 = vmatprep.mubr.f32.mxu0 0.0
      %3764 = vmatmul.mubr.f32.gmra.mrb[0].mxu0 %v3577
      %v3765 = vpop.f32.mrb[0].mxu0
      %v3766 = vadd.f32 0.0, %v3765
      %v3767 = vpop.f32.mrb[0].mxu0
      %3768 = vmatprep.mubr.f32.mxu0 0.0
      %3769 = vmatmul.mubr.f32.gmra.mrb[0].mxu0 %v3580
      %v3770 = vpop.f32.mrb[0].mxu0
      %v3771 = vadd.f32 0.0, %v3770
      %v3772 = vpop.f32.mrb[0].mxu0
      %3773 = vmatprep.mubr.f32.mxu0 0.0
      %3774 = vmatmul.mubr.f32.gmra.mrb[0].mxu0 %v3583
      %v3775 = vpop.f32.mrb[0].mxu0
      %v3776 = vadd.f32 0.0, %v3775
      %v3777 = vpop.f32.mrb[0].mxu0
      %3778 = vmatprep.mubr.f32.mxu0 0.0
      %3779 = vmatmul.mubr.f32.gmra.mrb[0].mxu0 %v3586
      %v3780 = vpop.f32.mrb[0].mxu0
      %v3781 = vadd.f32 0.0, %v3780
      %v3782 = vpop.f32.mrb[0].mxu0
      %3783 = vmatprep.mubr.f32.mxu0 0.0
      %3784 = vmatmul.mubr.f32.gmra.mrb[0].mxu0 %v3589
      %v3785 = vpop.f32.mrb[0].mxu0
      %v3786 = vadd.f32 0.0, %v3785
      %v3787 = vpop.f32.mrb[0].mxu0
      %3788 = vmatprep.mubr.f32.mxu0 0.0
      %3789 = vmatmul.mubr.f32.gmra.mrb[0].mxu0 %v3592
      %v3790 = vpop.f32.mrb[0].mxu0
      %v3791 = vadd.f32 0.0, %v3790
      %v3792 = vpop.f32.mrb[0].mxu0
      %3793 = vmatprep.mubr.f32.mxu0 0.0
      %3794 = vmatmul.mubr.f32.gmra.mrb[0].mxu0 %v3595
      %v3795 = vpop.f32.mrb[0].mxu0
      %v3796 = vadd.f32 0.0, %v3795
      %v3797 = vpop.f32.mrb[0].mxu0
      %3798 = vmatprep.mubr.f32.mxu0 0.0
      %3799 = vmatmul.mubr.f32.gmra.mrb[0].mxu0 %v3598
      %v3800 = vpop.f32.mrb[0].mxu0
      %v3801 = vadd.f32 0.0, %v3800
      %v3802 = vpop.f32.mrb[0].mxu0
      %3803 = vmatprep.mubr.f32.mxu0 0.0
      %3804 = vmatmul.mubr.f32.gmra.mrb[0].mxu0 %v3601
      %v3805 = vpop.f32.mrb[0].mxu0
      %v3806 = vadd.f32 0.0, %v3805
      %v3807 = vpop.f32.mrb[0].mxu0
      %3808 = vmatprep.mubr.f32.mxu0 0.0
      %3809 = vmatmul.mubr.f32.gmra.mrb[0].mxu0 %v3604
      %v3810 = vpop.f32.mrb[0].mxu0
      %v3811 = vadd.f32 0.0, %v3810
      %v3812 = vpop.f32.mrb[0].mxu0
      %3813 = vmatprep.mubr.f32.mxu0 0.0
      %3814 = vmatmul.mubr.f32.gmra.mrb[0].mxu0 %v3607
      %v3815 = vpop.f32.mrb[0].mxu0
      %v3816 = vadd.f32 0.0, %v3815
      %v3817 = vpop.f32.mrb[0].mxu0
      %3818 = vmatprep.mubr.f32.mxu0 0.0
      %3819 = vmatmul.mubr.f32.gmra.mrb[0].mxu0 %v3610
      %v3820 = vpop.f32.mrb[0].mxu0
      %v3821 = vadd.f32 0.0, %v3820
      %v3822 = vpop.f32.mrb[0].mxu0
      %3823 = vmatprep.mubr.f32.mxu0 0.0
      %3824 = vmatmul.mubr.f32.gmra.mrb[0].mxu0 %v3613
      %v3825 = vpop.f32.mrb[0].mxu0
      %v3826 = vadd.f32 0.0, %v3825
      %v3827 = vpop.f32.mrb[0].mxu0
      %3828 = vmatprep.mubr.f32.mxu0 0.0
      %3829 = vmatmul.mubr.f32.gmra.mrb[0].mxu0 %v3616
      %v3830 = vpop.f32.mrb[0].mxu0
      %v3831 = vadd.f32 0.0, %v3830
      %v3832 = vpop.f32.mrb[0].mxu0
      %3833 = vmatprep.mubr.f32.mxu0 0.0
      %3834 = vmatmul.mubr.f32.gmra.mrb[0].mxu0 %v3619
      %v3835 = vpop.f32.mrb[0].mxu0
      %v3836 = vadd.f32 0.0, %v3835
      %v3837 = vpop.f32.mrb[0].mxu0
      %3838 = vmatprep.mubr.f32.mxu0 0.0
      %3839 = vmatmul.mubr.f32.gmra.mrb[0].mxu0 %v3622
      %v3840 = vpop.f32.mrb[0].mxu0
      %v3841 = vadd.f32 0.0, %v3840
      %v3842 = vpop.f32.mrb[0].mxu0
      %3843 = vmatprep.mubr.f32.mxu0 0.0
      %3844 = vmatmul.mubr.f32.gmra.mrb[0].mxu0 %v3625
      %v3845 = vpop.f32.mrb[0].mxu0
      %v3846 = vadd.f32 0.0, %v3845
      %v3847 = vpop.f32.mrb[0].mxu0
      %3848 = vmatprep.mubr.f32.mxu0 0.0
      %3849 = vmatmul.mubr.f32.gmra.mrb[0].mxu0 %v3628
      %v3850 = vpop.f32.mrb[0].mxu0
      %v3851 = vadd.f32 0.0, %v3850
      %v3852 = vpop.f32.mrb[0].mxu0
      %3853 = vmatprep.mubr.f32.mxu0 0.0
      %3854 = vmatmul.mubr.f32.gmra.mrb[0].mxu0 %v3631
      %v3855 = vpop.f32.mrb[0].mxu0
      %v3856 = vadd.f32 0.0, %v3855
      %v3857 = vpop.f32.mrb[0].mxu0
      %3858 = vmatprep.mubr.f32.mxu0 0.0
      %3859 = vmatmul.mubr.f32.gmra.mrb[0].mxu0 %v3634
      %v3860 = vpop.f32.mrb[0].mxu0
      %v3861 = vadd.f32 0.0, %v3860
      %v3862 = vpop.f32.mrb[0].mxu0
      %3863 = vdwg.mxu0
      %v3864 = vadd.f32 %v3475, %v3706
      %v3865 = vadd.f32 %v3476, %v3711
      %v3866 = vadd.f32 %v3477, %v3716
      %v3867 = vadd.f32 %v3478, %v3721
      %v3868 = vadd.f32 %v3479, %v3726
      %v3869 = vadd.f32 %v3480, %v3731
      %v3870 = vadd.f32 %v3481, %v3736
      %v3871 = vadd.f32 %v3482, %v3741
      %v3872 = vadd.f32 %v3483, %v3746
      %v3873 = vadd.f32 %v3484, %v3751
      %v3874 = vadd.f32 %v3485, %v3756
      %v3875 = vadd.f32 %v3486, %v3761
      %v3876 = vadd.f32 %v3487, %v3766
      %v3877 = vadd.f32 %v3488, %v3771
      %v3878 = vadd.f32 %v3489, %v3776
      %v3879 = vadd.f32 %v3490, %v3781
      %v3880 = vadd.f32 %v3491, %v3786
      %v3881 = vadd.f32 %v3492, %v3791
      %v3882 = vadd.f32 %v3493, %v3796
      %v3883 = vadd.f32 %v3494, %v3801
      %v3884 = vadd.f32 %v3495, %v3806
      %v3885 = vadd.f32 %v3496, %v3811
      %v3886 = vadd.f32 %v3497, %v3816
      %v3887 = vadd.f32 %v3498, %v3821
      %v3888 = vadd.f32 %v3499, %v3826
      %v3889 = vadd.f32 %v3500, %v3831
      %v3890 = vadd.f32 %v3501, %v3836
      %v3891 = vadd.f32 %v3502, %v3841
      %v3892 = vadd.f32 %v3503, %v3846
      %v3893 = vadd.f32 %v3504, %v3851
      %v3894 = vadd.f32 %v3505, %v3856
      %v3895 = vadd.f32 %v3506, %v3861
      %3896 = vst.msk [vmem:[%s231] sm:$0xff] %vm378, %v3864
      %3897 = vst.msk [vmem:[%s231 + $0x8] sm:$0xff] %vm378, %v3865
      %3898 = vst.msk [vmem:[%s231 + $0x10] sm:$0xff] %vm378, %v3866
      %3899 = vst.msk [vmem:[%s231 + $0x18] sm:$0xff] %vm378, %v3867
      %3900 = vst.msk [vmem:[%s231 + $0x20] sm:$0xff] %vm378, %v3868
      %3901 = vst.msk [vmem:[%s231 + $0x28] sm:$0xff] %vm378, %v3869
      %3902 = vst.msk [vmem:[%s231 + $0x30] sm:$0xff] %vm378, %v3870
      %3903 = vst.msk [vmem:[%s231 + $0x38] sm:$0xff] %vm378, %v3871
      %3904 = vst.msk [vmem:[%s231 + $0x40] sm:$0xff] %vm378, %v3872
      %3905 = vst.msk [vmem:[%s231 + $0x48] sm:$0xff] %vm378, %v3873
      %3906 = vst.msk [vmem:[%s231 + $0x50] sm:$0xff] %vm378, %v3874
      %3907 = vst.msk [vmem:[%s231 + $0x58] sm:$0xff] %vm378, %v3875
      %3908 = vst.msk [vmem:[%s231 + $0x60] sm:$0xff] %vm378, %v3876
      %3909 = vst.msk [vmem:[%s231 + $0x68] sm:$0xff] %vm378, %v3877
      %3910 = vst.msk [vmem:[%s231 + $0x70] sm:$0xff] %vm378, %v3878
      %3911 = vst.msk [vmem:[%s231 + $0x78] sm:$0xff] %vm378, %v3879
      %3912 = vst.msk [vmem:[%s231 + $0x80] sm:$0xff] %vm378, %v3880
      %3913 = vst.msk [vmem:[%s231 + $0x88] sm:$0xff] %vm378, %v3881
      %3914 = vst.msk [vmem:[%s231 + $0x90] sm:$0xff] %vm378, %v3882
      %3915 = vst.msk [vmem:[%s231 + $0x98] sm:$0xff] %vm378, %v3883
      %3916 = vst.msk [vmem:[%s231 + $0xa0] sm:$0xff] %vm378, %v3884
      %3917 = vst.msk [vmem:[%s231 + $0xa8] sm:$0xff] %vm378, %v3885
      %3918 = vst.msk [vmem:[%s231 + $0xb0] sm:$0xff] %vm378, %v3886
      %3919 = vst.msk [vmem:[%s231 + $0xb8] sm:$0xff] %vm378, %v3887
      %3920 = vst.msk [vmem:[%s231 + $0xc0] sm:$0xff] %vm378, %v3888
      %3921 = vst.msk [vmem:[%s231 + $0xc8] sm:$0xff] %vm378, %v3889
      %3922 = vst.msk [vmem:[%s231 + $0xd0] sm:$0xff] %vm378, %v3890
      %3923 = vst.msk [vmem:[%s231 + $0xd8] sm:$0xff] %vm378, %v3891
      %3924 = vst.msk [vmem:[%s231 + $0xe0] sm:$0xff] %vm378, %v3892
      %3925 = vst.msk [vmem:[%s231 + $0xe8] sm:$0xff] %vm378, %v3893
      %3926 = vst.msk [vmem:[%s231 + $0xf0] sm:$0xff] %vm378, %v3894
      %3927 = vst.msk [vmem:[%s231 + $0xf8] sm:$0xff] %vm378, %v3895
      %v3928 = vsel %vm378, %v3864, 0.0
      %v3929 = vsel %vm378, %v3865, 0.0
      %v3930 = vadd.f32 %v3928, %v3929
      %v3931 = vsel %vm378, %v3866, 0.0
      %v3932 = vadd.f32 %v3930, %v3931
      %v3933 = vsel %vm378, %v3867, 0.0
      %v3934 = vadd.f32 %v3932, %v3933
      %v3935 = vsel %vm378, %v3868, 0.0
      %v3936 = vadd.f32 %v3934, %v3935
      %v3937 = vsel %vm378, %v3869, 0.0
      %v3938 = vadd.f32 %v3936, %v3937
      %v3939 = vsel %vm378, %v3870, 0.0
      %v3940 = vadd.f32 %v3938, %v3939
      %v3941 = vsel %vm378, %v3871, 0.0
      %v3942 = vadd.f32 %v3940, %v3941
      %v3943 = vsel %vm378, %v3872, 0.0
      %v3944 = vadd.f32 %v3942, %v3943
      %v3945 = vsel %vm378, %v3873, 0.0
      %v3946 = vadd.f32 %v3944, %v3945
      %v3947 = vsel %vm378, %v3874, 0.0
      %v3948 = vadd.f32 %v3946, %v3947
      %v3949 = vsel %vm378, %v3875, 0.0
      %v3950 = vadd.f32 %v3948, %v3949
      %v3951 = vsel %vm378, %v3876, 0.0
      %v3952 = vadd.f32 %v3950, %v3951
      %v3953 = vsel %vm378, %v3877, 0.0
      %v3954 = vadd.f32 %v3952, %v3953
      %v3955 = vsel %vm378, %v3878, 0.0
      %v3956 = vadd.f32 %v3954, %v3955
      %v3957 = vsel %vm378, %v3879, 0.0
      %v3958 = vadd.f32 %v3956, %v3957
      %v3959 = vsel %vm378, %v3880, 0.0
      %v3960 = vadd.f32 %v3958, %v3959
      %v3961 = vsel %vm378, %v3881, 0.0
      %v3962 = vadd.f32 %v3960, %v3961
      %v3963 = vsel %vm378, %v3882, 0.0
      %v3964 = vadd.f32 %v3962, %v3963
      %v3965 = vsel %vm378, %v3883, 0.0
      %v3966 = vadd.f32 %v3964, %v3965
      %v3967 = vsel %vm378, %v3884, 0.0
      %v3968 = vadd.f32 %v3966, %v3967
      %v3969 = vsel %vm378, %v3885, 0.0
      %v3970 = vadd.f32 %v3968, %v3969
      %v3971 = vsel %vm378, %v3886, 0.0
      %v3972 = vadd.f32 %v3970, %v3971
      %v3973 = vsel %vm378, %v3887, 0.0
      %v3974 = vadd.f32 %v3972, %v3973
      %v3975 = vsel %vm378, %v3888, 0.0
      %v3976 = vadd.f32 %v3974, %v3975
      %v3977 = vsel %vm378, %v3889, 0.0
      %v3978 = vadd.f32 %v3976, %v3977
      %v3979 = vsel %vm378, %v3890, 0.0
      %v3980 = vadd.f32 %v3978, %v3979
      %v3981 = vsel %vm378, %v3891, 0.0
      %v3982 = vadd.f32 %v3980, %v3981
      %v3983 = vsel %vm378, %v3892, 0.0
      %v3984 = vadd.f32 %v3982, %v3983
      %v3985 = vsel %vm378, %v3893, 0.0
      %v3986 = vadd.f32 %v3984, %v3985
      %v3987 = vsel %vm378, %v3894, 0.0
      %v3988 = vadd.f32 %v3986, %v3987
      %v3989 = vsel %vm378, %v3895, 0.0
      %v3990 = vadd.f32 %v3988, %v3989
      %v3991 = vrot.slane %v3990, 4
      %v3992 = vadd.f32 %v3990, %v3991
      %v3993 = vrot.slane %v3992, 2
      %v3994 = vadd.f32 %v3992, %v3993
      %v3995 = vrot.slane %v3994, 1
      %v3996 = vadd.f32 %v3994, %v3995
      %v3997 = vmul.f32 %v3864, %v3864
      %v3998 = vmul.f32 %v3865, %v3865
      %v3999 = vmul.f32 %v3866, %v3866
      %v4000 = vmul.f32 %v3867, %v3867
      %v4001 = vmul.f32 %v3868, %v3868
      %v4002 = vmul.f32 %v3869, %v3869
      %v4003 = vmul.f32 %v3870, %v3870
      %v4004 = vmul.f32 %v3871, %v3871
      %v4005 = vmul.f32 %v3872, %v3872
      %v4006 = vmul.f32 %v3873, %v3873
      %v4007 = vmul.f32 %v3874, %v3874
      %v4008 = vmul.f32 %v3875, %v3875
      %v4009 = vmul.f32 %v3876, %v3876
      %v4010 = vmul.f32 %v3877, %v3877
      %v4011 = vmul.f32 %v3878, %v3878
      %v4012 = vmul.f32 %v3879, %v3879
      %v4013 = vmul.f32 %v3880, %v3880
      %v4014 = vmul.f32 %v3881, %v3881
      %v4015 = vmul.f32 %v3882, %v3882
      %v4016 = vmul.f32 %v3883, %v3883
      %v4017 = vmul.f32 %v3884, %v3884
      %v4018 = vmul.f32 %v3885, %v3885
      %v4019 = vmul.f32 %v3886, %v3886
      %v4020 = vmul.f32 %v3887, %v3887
      %v4021 = vmul.f32 %v3888, %v3888
      %v4022 = vmul.f32 %v3889, %v3889
      %v4023 = vmul.f32 %v3890, %v3890
      %v4024 = vmul.f32 %v3891, %v3891
      %v4025 = vmul.f32 %v3892, %v3892
      %v4026 = vmul.f32 %v3893, %v3893
      %v4027 = vmul.f32 %v3894, %v3894
      %v4028 = vmul.f32 %v3895, %v3895
      %v4029 = vsel %vm378, %v3997, 0.0
      %v4030 = vsel %vm378, %v3998, 0.0
      %v4031 = vadd.f32 %v4029, %v4030
      %v4032 = vsel %vm378, %v3999, 0.0
      %v4033 = vadd.f32 %v4031, %v4032
      %v4034 = vsel %vm378, %v4000, 0.0
      %v4035 = vadd.f32 %v4033, %v4034
      %v4036 = vsel %vm378, %v4001, 0.0
      %v4037 = vadd.f32 %v4035, %v4036
      %v4038 = vsel %vm378, %v4002, 0.0
      %v4039 = vadd.f32 %v4037, %v4038
      %v4040 = vsel %vm378, %v4003, 0.0
      %v4041 = vadd.f32 %v4039, %v4040
      %v4042 = vsel %vm378, %v4004, 0.0
      %v4043 = vadd.f32 %v4041, %v4042
      %v4044 = vsel %vm378, %v4005, 0.0
      %v4045 = vadd.f32 %v4043, %v4044
      %v4046 = vsel %vm378, %v4006, 0.0
      %v4047 = vadd.f32 %v4045, %v4046
      %v4048 = vsel %vm378, %v4007, 0.0
      %v4049 = vadd.f32 %v4047, %v4048
      %v4050 = vsel %vm378, %v4008, 0.0
      %v4051 = vadd.f32 %v4049, %v4050
      %v4052 = vsel %vm378, %v4009, 0.0
      %v4053 = vadd.f32 %v4051, %v4052
      %v4054 = vsel %vm378, %v4010, 0.0
      %v4055 = vadd.f32 %v4053, %v4054
      %v4056 = vsel %vm378, %v4011, 0.0
      %v4057 = vadd.f32 %v4055, %v4056
      %v4058 = vsel %vm378, %v4012, 0.0
      %v4059 = vadd.f32 %v4057, %v4058
      %v4060 = vsel %vm378, %v4013, 0.0
      %v4061 = vadd.f32 %v4059, %v4060
      %v4062 = vsel %vm378, %v4014, 0.0
      %v4063 = vadd.f32 %v4061, %v4062
      %v4064 = vsel %vm378, %v4015, 0.0
      %v4065 = vadd.f32 %v4063, %v4064
      %v4066 = vsel %vm378, %v4016, 0.0
      %v4067 = vadd.f32 %v4065, %v4066
      %v4068 = vsel %vm378, %v4017, 0.0
      %v4069 = vadd.f32 %v4067, %v4068
      %v4070 = vsel %vm378, %v4018, 0.0
      %v4071 = vadd.f32 %v4069, %v4070
      %v4072 = vsel %vm378, %v4019, 0.0
      %v4073 = vadd.f32 %v4071, %v4072
      %v4074 = vsel %vm378, %v4020, 0.0
      %v4075 = vadd.f32 %v4073, %v4074
      %v4076 = vsel %vm378, %v4021, 0.0
      %v4077 = vadd.f32 %v4075, %v4076
      %v4078 = vsel %vm378, %v4022, 0.0
      %v4079 = vadd.f32 %v4077, %v4078
      %v4080 = vsel %vm378, %v4023, 0.0
      %v4081 = vadd.f32 %v4079, %v4080
      %v4082 = vsel %vm378, %v4024, 0.0
      %v4083 = vadd.f32 %v4081, %v4082
      %v4084 = vsel %vm378, %v4025, 0.0
      %v4085 = vadd.f32 %v4083, %v4084
      %v4086 = vsel %vm378, %v4026, 0.0
      %v4087 = vadd.f32 %v4085, %v4086
      %v4088 = vsel %vm378, %v4027, 0.0
      %v4089 = vadd.f32 %v4087, %v4088
      %v4090 = vsel %vm378, %v4028, 0.0
      %v4091 = vadd.f32 %v4089, %v4090
      %v4092 = vrot.slane %v4091, 4
      %v4093 = vadd.f32 %v4091, %v4092
      %v4094 = vrot.slane %v4093, 2
      %v4095 = vadd.f32 %v4093, %v4094
      %v4096 = vrot.slane %v4095, 1
      %v4097 = vadd.f32 %v4095, %v4096
      %vm4098 = vcmask 1040384
      %v4099 = vsel %vm4098, %v3996, %v4097
      %4100 = vst.msk [vmem:[%s235] sm:$0x3] %vm381, %v4099
      %p4101 = scmp.lt.s32.totalorder %s17, 1
      %s4102 = scalar_select %p4101, %s17, 1
      %s4103 = smul.addr %s4102, 32
      %s4104 = smul.addr %s4103, 8
      %s4105 = scalar_lea.vmem %s4, %s4104
      %p4106 = scmp.lt.s32.totalorder %s17, 1
      %s4107 = scalar_select %p4106, %s17, 1
      %s4108 = smul.addr %s4107, 2
      %s4109 = scalar_lea.vmem %s5, %s4108
      // Predicated region
      $region37: #{residual_block_nhwc.4} parent=35 // pred_check
        %p4110 = pneg %p124
      $region38: #{residual_block_nhwc.4} parent=35 // pred_check_branch
        %4112 = sbr.rel (%p4110) target = $region40
      $region39: #{residual_block_nhwc.4} parent=35 // pred_region
        _
      $region40: #{residual_block_nhwc.4} parent=35 // pred_fallthru
        _
      // Predicated region
      $region41: #{residual_block_nhwc.4} parent=35 // pred_check
        %p4113 = pneg %p150
      $region42: #{residual_block_nhwc.4} parent=35 // pred_check_branch
        %4115 = sbr.rel (%p4113) target = $region44
      $region43: #{residual_block_nhwc.4} parent=35 // pred_region
        _
      $region44: #{residual_block_nhwc.4} parent=35 // pred_fallthru
        _
    $region36: #{residual_block_nhwc.4} parent=5 // pred_fallthru
      _
    %p4116 = scmp.le.s32.totalorder 2, %s12
    // Predicated region
    $region45: #{residual_block_nhwc.4} parent=5 // pred_check
      %p4117 = pneg %p4116
    $region46: #{residual_block_nhwc.4} parent=5 // pred_check_branch
      %4119 = sbr.rel (%p4117) target = $region48
    $region47: #{residual_block_nhwc.4} parent=5 // pred_region
      %s4120 = ssub.s32 %s12, 2
      // Predicated region
      $region49: #{residual_block_nhwc.4} parent=47 // pred_check
        %p4121 = pneg %p130
      $region50: #{residual_block_nhwc.4} parent=47 // pred_check_branch
        %4123 = sbr.rel (%p4121) target = $region52
      $region51: #{residual_block_nhwc.4} parent=47 // pred_region
        %p4124 = scmp.lt.s32.totalorder %s18, 1
        %s4125 = scalar_select %p4124, %s18, 1
        %s4126 = smul.addr %s4125, 32
        %s4127 = smul.addr %s4126, 8
        %s4128 = scalar_lea.vmem %s4, %s4127
      $region52: #{residual_block_nhwc.4} parent=47 // pred_fallthru
        _
      // Predicated region
      $region53: #{residual_block_nhwc.4} parent=47 // pred_check
        %p4129 = pneg %p156
      $region54: #{residual_block_nhwc.4} parent=47 // pred_check_branch
        %4131 = sbr.rel (%p4129) target = $region56
      $region55: #{residual_block_nhwc.4} parent=47 // pred_region
        %p4132 = scmp.lt.s32.totalorder %s18, 1
        %s4133 = scalar_select %p4132, %s18, 1
        %s4134 = smul.addr %s4133, 2
        %s4135 = scalar_lea.vmem %s5, %s4134
      $region56: #{residual_block_nhwc.4} parent=47 // pred_fallthru
        _
    $region48: #{residual_block_nhwc.4} parent=5 // pred_fallthru
      _
  $region6: #{residual_block_nhwc.4} parent=0 // loop_footer
    %s16 = sadd.s32 1, %s12
  $region7: #{residual_block_nhwc.4} parent=0 // loop_footer_branch
    %11 = sbr.rel target = $region3
  $region8: #{residual_block_nhwc.4} parent=0 // loop_exit
    _

</llo_original>
